<compile_context>
chip_gen: v6e
topology: v6e:2x2x1
jax: 0.10.0
libtpu: 0.0.40
codegen_flags: <defaults>
</compile_context>

<pallas_src>
import functools
import math

import jax
import jax.numpy as jnp
from jax.experimental import pallas as pl
from jax.experimental.pallas import tpu as pltpu

_LANE = 128
_BN_EPS = 1e-5


# ----------------------------------------------------------------------------
# Generation-aware VMEM budget
# ----------------------------------------------------------------------------
@functools.lru_cache(maxsize=1)
def _vmem_budget():
    try:
        cap = int(pltpu.get_tpu_info().vmem_capacity_bytes)
    except Exception:
        cap = 64 * 1024 * 1024  # assume the smallest (v7x) part if the query fails
    # ~48 MiB usable on v7x (64 MiB parts), ~96 MiB on v5e/v6e (128 MiB parts).
    return int(min(0.75 * cap, 100 * 1024 * 1024))


# ----------------------------------------------------------------------------
# Packing helpers (lane-dense [real | imag] layout for the frequency domain)
# ----------------------------------------------------------------------------
def _round_up(n, m):
    return ((n + m - 1) // m) * m


def _pack_freq(cf):
    """(..., H, Wf) complex -> ((..., 2*Fp) float32 packed [real|imag], Fp)."""
    lead = cf.shape[:-2]
    f = cf.shape[-2] * cf.shape[-1]
    fp = _round_up(f, _LANE)
    r = jnp.real(cf).astype(jnp.float32).reshape(*lead, f)
    i = jnp.imag(cf).astype(jnp.float32).reshape(*lead, f)
    pad = [(0, 0)] * len(lead) + [(0, fp - f)]
    return jnp.concatenate([jnp.pad(r, pad), jnp.pad(i, pad)], axis=-1), fp


def _unpack_freq(packed, fp, h, wf):
    f = h * wf
    r = packed[..., :f]
    i = packed[..., fp:fp + f]
    return (r + 1j * i).reshape(*packed.shape[:-1], h, wf)


def precompute_freq_weights(weight, height, width):
    """Cache rfft2 of a Conv2d weight ONCE (not per forward call).

    weight: (C_out, C_in, kh, kw).  Returns the packed (C_out, C_in, 2*Fp)
    float32 spectrum of the circular-convolution kernel that is equivalent to
    PyTorch's circular-padded cross-correlation, plus Fp.
    """
    c_out, c_in, kh, kw = weight.shape
    ph, pw = kh // 2, kw // 2
    w_e = jnp.zeros((c_out, c_in, height, width), weight.dtype)
    w_e = w_e.at[:, :, :kh, :kw].set(weight)
    # cross-correlation with circular padding p == circular convolution with the
    # zero-padded kernel flipped and rolled by (p+1) along each spatial axis.
    hker = jnp.roll(w_e[..., ::-1, ::-1], shift=(ph + 1, pw + 1), axis=(-2, -1))
    return _pack_freq(jnp.fft.rfft2(hker))


# ----------------------------------------------------------------------------
# Tiling choice for the frequency-contraction kernel
# ----------------------------------------------------------------------------
def _tile_candidates(c):
    """Full dim first, then multiple-of-8 divisors descending ((8,128) block rule)."""
    cands = [c]
    m = (c // 8) * 8
    while m >= 8:
        if m != c and c % m == 0:
            cands.append(m)
        m -= 8
    return cands


def _pick_tiles(c_out, c_in, b, fp, budget_bytes):
    """Largest (co_t, ci_t) whose double-buffered blocks fit the VMEM budget.

    TODO(synk): at ResNet-scale channels prefer co_t giving >= 2 C_out tiles (so
    v7x's two TensorCores both get work) and 128/256-aligned tiles for the MXU path.
    """
    def fits(co, ci):
        xb = b * ci * 2 * fp * 4
        kb = co * ci * 2 * fp * 4
        ob = b * co * 2 * fp * 4
        return 2 * (xb + kb + ob) <= budget_bytes   # 2 pipeline buffers each
    for co in _tile_candidates(c_out):
        for ci in _tile_candidates(c_in):
            if fits(co, ci):
                return co, ci
    raise ValueError(
        f"no (c_out, c_in) tiling fits the VMEM budget ({budget_bytes} B) "
        f"for c_out={c_out}, c_in={c_in}, Fp={fp}, B={b}")


# ----------------------------------------------------------------------------
# Pallas kernel 1: frequency-domain complex multiply + C_in contraction
# ----------------------------------------------------------------------------
def _freq_contract_kernel(x_ref, k_ref, o_ref, *, fp, nb):
    # x_ref : (B, ci_t, 2*fp)    packed [real|imag] input spectra (all batches)
    # k_ref : (co_t, ci_t, 2*fp) packed weight spectrum tile (fetched once per tile)
    # o_ref : (B, co_t, 2*fp)    packed output spectra; resident across the i axis
    i = pl.program_id(1)

    @pl.when(i == 0)
    def _init():
        o_ref[...] = jnp.zeros_like(o_ref)

    k = k_ref[...]
    kr = k[:, :, :fp]
    ki = k[:, :, fp:]

    # Static unroll over the (small) batch keeps temporaries 3-D (co_t, ci_t, fp).
    # TODO(synk): at ResNet-scale channel counts (C_in/C_out >= ~128) reformulate
    # this contraction as MXU dot_generals (128-tiles on v5e, 256 on v6e/v7x)
    # instead of VPU broadcast+reduce.
    for b in range(nb):
        x = x_ref[b]                     # (ci_t, 2*fp)
        xr = x[:, :fp]
        xi = x[:, fp:]
        # schoolbook complex product (4 mul / 2 add) summed over C_in
        rr = jnp.sum(kr * xr[None, :, :], axis=1)   # (co_t, fp)
        ii = jnp.sum(ki * xi[None, :, :], axis=1)
        ri = jnp.sum(kr * xi[None, :, :], axis=1)
        ir = jnp.sum(ki * xr[None, :, :], axis=1)
        o_ref[b, :, :fp] += rr - ii
        o_ref[b, :, fp:] += ri + ir


def fft_circular_conv2d(x, k_packed, fp):
    """PyTorch Conv2d(padding_mode='circular'), no bias, via rfft2 + Pallas contraction.

    (conv biases for conv1/conv2 are folded away: they cancel exactly against the
    batch mean of the following training-mode BatchNorm.)
    """
    b, c_in, h, w = x.shape
    c_out = k_packed.shape[0]
    wf = w // 2 + 1

    # TODO(synk): rfft2 / irfft2 have no Pallas TPU primitive; left to XLA.
    x_packed, _ = _pack_freq(jnp.fft.rfft2(x))            # (B, C_in, 2*Fp)

    budget = _vmem_budget()
    co_t, ci_t = _pick_tiles(c_out, c_in, b, fp, budget)
    num_o = c_out // co_t
    num_i = c_in // ci_t

    # Grid: C_out tiles outer ("parallel"), C_in reduction innermost ("arbitrary").
    # The batch is folded into the x/o blocks, so each weight-spectrum tile is
    # DMA'd from HBM exactly once; the output block index is constant along the
    # reduction axis, so it stays VMEM-resident and is used as the accumulator.
    grid = (num_o, num_i)
    x_spec = pl.BlockSpec((b, ci_t, 2 * fp), lambda o, i: (0, i, 0))
    k_spec = pl.BlockSpec((co_t, ci_t, 2 * fp), lambda o, i: (o, i, 0))
    o_spec = pl.BlockSpec((b, co_t, 2 * fp), lambda o, i: (0, o, 0))

    flops = int(8 * b * c_out * c_in * fp)
    bytes_accessed = int(4 * (num_o * x_packed.size + k_packed.size
                              + b * c_out * 2 * fp))

    out_packed = pl.pallas_call(
        functools.partial(_freq_contract_kernel, fp=fp, nb=b),
        out_shape=jax.ShapeDtypeStruct((b, c_out, 2 * fp), jnp.float32),
        grid=grid,
        in_specs=[x_spec, k_spec],
        out_specs=o_spec,
        compiler_params=pltpu.CompilerParams(
            dimension_semantics=("parallel", "arbitrary"),
            vmem_limit_bytes=budget),
        cost_estimate=pl.CostEstimate(flops=flops, transcendentals=0,
                                      bytes_accessed=bytes_accessed),
    )(x_packed, k_packed)

    return jnp.fft.irfft2(_unpack_freq(out_packed, fp, h, wf), s=(h, w))


# ----------------------------------------------------------------------------
# Pallas kernel 2: 1x1 skip convolution as a single MXU matmul
# ----------------------------------------------------------------------------
def _skip_conv_kernel(w_ref, x_ref, b_ref, o_ref):
    # w: (C_out, C_in), x: (C_in, B*H*W), b: (C_out, 1), o: (C_out, B*H*W)
    o_ref[...] = jnp.dot(w_ref[...], x_ref[...],
                         preferred_element_type=jnp.float32) + b_ref[...]


def skip_conv_1x1(x, w2d, bias):
    """1x1 conv == (C_out, C_in) x (C_in, B*H*W) MXU contraction (no FFT needed)."""
    b, c_in, h, w = x.shape
    c_out = w2d.shape[0]
    hw = h * w
    x2 = jnp.transpose(x.reshape(b, c_in, hw), (1, 0, 2)).reshape(c_in, b * hw)
    out = pl.pallas_call(
        _skip_conv_kernel,
        out_shape=jax.ShapeDtypeStruct((c_out, b * hw), jnp.float32),
    )(w2d.astype(jnp.float32), x2, bias.reshape(c_out, 1).astype(jnp.float32))
    return jnp.transpose(out.reshape(c_out, b, hw), (1, 0, 2)).reshape(b, c_out, h, w)


# ----------------------------------------------------------------------------
# Pallas kernel 3: fused BatchNorm (batch stats + affine) [+ residual] + ReLU
# ----------------------------------------------------------------------------
def _bn_stats_scale_shift(y, g, bt, inv_n):
    s1 = jnp.sum(jnp.sum(y, axis=2, keepdims=True), axis=0, keepdims=True)       # (1,C,1)
    s2 = jnp.sum(jnp.sum(y * y, axis=2, keepdims=True), axis=0, keepdims=True)   # (1,C,1)
    mean = s1 * inv_n
    var = s2 * inv_n - mean * mean
    scale = g * jax.lax.rsqrt(var + _BN_EPS)
    shift = bt - mean * scale
    return scale, shift


def _bn_relu_kernel(y_ref, g_ref, b_ref, o_ref, *, inv_n):
    y = y_ref[...]
    scale, shift = _bn_stats_scale_shift(y, g_ref[...], b_ref[...], inv_n)
    o_ref[...] = jnp.maximum(y * scale + shift, 0.0)


def _bn_add_relu_kernel(y_ref, r_ref, g_ref, b_ref, o_ref, *, inv_n):
    y = y_ref[...]
    scale, shift = _bn_stats_scale_shift(y, g_ref[...], b_ref[...], inv_n)
    o_ref[...] = jnp.maximum(y * scale + shift + r_ref[...], 0.0)


def batchnorm_relu(y, gamma, beta, residual=None):
    """Training-mode BatchNorm2d + (residual add) + ReLU, fused in one Pallas call.

    TODO(synk): at ResNet-scale spatial sizes tile this (grid reduction for the
    stats); here the whole (B, C, H*W) tensor fits a single VMEM block.
    """
    b, c, h, w = y.shape
    hw = h * w
    inv_n = 1.0 / float(b * hw)
    y2 = y.reshape(b, c, hw)
    g = gamma.reshape(1, c, 1).astype(jnp.float32)
    bt = beta.reshape(1, c, 1).astype(jnp.float32)
    out_shape = jax.ShapeDtypeStruct((b, c, hw), jnp.float32)
    if residual is None:
        out = pl.pallas_call(
            functools.partial(_bn_relu_kernel, inv_n=inv_n),
            out_shape=out_shape,
        )(y2, g, bt)
    else:
        out = pl.pallas_call(
            functools.partial(_bn_add_relu_kernel, inv_n=inv_n),
            out_shape=out_shape,
        )(y2, residual.reshape(b, c, hw), g, bt)
    return out.reshape(b, c, h, w)


# ----------------------------------------------------------------------------
# ResBlock / ResNet forward
# ----------------------------------------------------------------------------
def res_block_forward(x, blk):
    skip = skip_conv_1x1(x, blk["skip_w"][:, :, 0, 0], blk["skip_b"])
    z = fft_circular_conv2d(x, blk["w1_khat"], blk["Fp"])          # bias folded into BN
    z = batchnorm_relu(z, blk["g1"], blk["beta1"])                 # BN1 + ReLU
    z = fft_circular_conv2d(z, blk["w2_khat"], blk["Fp"])          # bias folded into BN
    return batchnorm_relu(z, blk["g2"], blk["beta2"], residual=skip)  # BN2 + add + ReLU


def resnet_forward(x, blocks):
    for blk in blocks:
        x = res_block_forward(x, blk)
    return jnp.maximum(x, 0.0)   # final F.relu (idempotent after the block ReLU)


# ----------------------------------------------------------------------------
# Parameter construction (mirrors PyTorch module init; weight FFTs cached here)
# ----------------------------------------------------------------------------
def _conv_params(key, c_out, c_in, k):
    kw_, kb_ = jax.random.split(key)
    bound = 1.0 / math.sqrt(c_in * k * k)
    w = jax.random.uniform(kw_, (c_out, c_in, k, k), jnp.float32, -bound, bound)
    b = jax.random.uniform(kb_, (c_out,), jnp.float32, -bound, bound)
    return w, b


def init_res_block(key, c_in, c_out, h, w, kernel_size=3):
    k1, k2, k3 = jax.random.split(key, 3)
    w1, b1 = _conv_params(k1, c_out, c_in, kernel_size)
    w2, b2 = _conv_params(k2, c_out, c_out, kernel_size)
    ws, bs = _conv_params(k3, c_out, c_in, 1)
    w1_khat, fp = precompute_freq_weights(w1, h, w)
    w2_khat, _ = precompute_freq_weights(w2, h, w)
    return dict(
        w1=w1, b1=b1, w2=w2, b2=b2, skip_w=ws, skip_b=bs,
        g1=jnp.ones((c_out,), jnp.float32), beta1=jnp.zeros((c_out,), jnp.float32),
        g2=jnp.ones((c_out,), jnp.float32), beta2=jnp.zeros((c_out,), jnp.float32),
        w1_khat=w1_khat, w2_khat=w2_khat, Fp=fp,
    )


def init_resnet(key, c_out_list, h, w):
    pairs = [(1, c_out_list[0])]
    for i in range(len(c_out_list) - 1):
        pairs.append((c_out_list[i], c_out_list[i + 1]))
    pairs.append((c_out_list[-1], 1))
    blocks = []
    for ci, co in pairs:
        key, sub = jax.random.split(key)
        blocks.append(init_res_block(sub, ci, co, h, w))
    return blocks


# ----------------------------------------------------------------------------
# Pure-JAX reference (mirrors the PyTorch forward pass)
# ----------------------------------------------------------------------------
def _ref_circular_conv(x, w, b):
    p = w.shape[-1] // 2
    xp = jnp.pad(x, ((0, 0), (0, 0), (p, p), (p, p)), mode="wrap") if p else x
    y = jax.lax.conv_general_dilated(
        xp, w, window_strides=(1, 1), padding="VALID",
        dimension_numbers=("NCHW", "OIHW", "NCHW"),
        precision=jax.lax.Precision.HIGHEST)
    return y + b[None, :, None, None]


def _ref_bn(y, gamma, beta):
    mean = jnp.mean(y, axis=(0, 2, 3), keepdims=True)
    var = jnp.var(y, axis=(0, 2, 3), keepdims=True)
    return ((y - mean) * jax.lax.rsqrt(var + _BN_EPS)
            * gamma[None, :, None, None] + beta[None, :, None, None])


def _ref_block(x, blk):
    skip = _ref_circular_conv(x, blk["skip_w"], blk["skip_b"])
    z = jax.nn.relu(_ref_bn(_ref_circular_conv(x, blk["w1"], blk["b1"]),
                            blk["g1"], blk["beta1"]))
    z = _ref_bn(_ref_circular_conv(z, blk["w2"], blk["b2"]), blk["g2"], blk["beta2"])
    return jax.nn.relu(skip + z)


def _ref_forward(x, blocks):
    for blk in blocks:
        x = _ref_block(x, blk)
    return jax.nn.relu(x)


# ----------------------------------------------------------------------------
if __name__ == "__main__":
    B, H, W = 2, 16, 16
    c_out_list = [4, 8]            # ResNet(input_size=16, c_out_list=[4, 8])

    key = jax.random.PRNGKey(0)
    key, kx = jax.random.split(key)
    x = jax.random.normal(kx, (B, 1, H, W), dtype=jnp.float32)

    blocks = init_resnet(key, c_out_list, H, W)

    fwd = jax.jit(lambda xx: resnet_forward(xx, blocks))
    out = jax.block_until_ready(fwd(x))

    ref = jax.block_until_ready(_ref_forward(x, blocks))
    assert out.shape == (B, 1, H, W)
    max_err = float(jnp.max(jnp.abs(out - ref)))
    assert jnp.allclose(out, ref, atol=1e-3, rtol=1e-3), f"max abs err {max_err}"

    print("KERNEL_OK")
</pallas_src>

<mosaic_0001>
module attributes {stable_mosaic.version = 11 : i64} {
  func.func @_freq_contract_kernel(%arg0: i32, %arg1: i32, %arg2: memref<2x1x512xf32, #tpu.memory_space<vmem>>, %arg3: memref<4x1x512xf32, #tpu.memory_space<vmem>>, %arg4: memref<2x4x512xf32, #tpu.memory_space<vmem>>) attributes {dimension_semantics = [#tpu.dimension_semantics<parallel>, #tpu.dimension_semantics<arbitrary>], iteration_bounds = array<i64: 1, 1>, scalar_prefetch = 0 : i64, scratch_operands = 0 : i64, tpu.core_type = #tpu.core_type<tc>, window_params = [{transform_indices = @transform_0, window_bounds = array<i64: 2, 1, 512>}, {transform_indices = @transform_1, window_bounds = array<i64: 4, 1, 512>}, {transform_indices = @transform_2, window_bounds = array<i64: 2, 4, 512>}]} {
    %c0_i32 = arith.constant 0 : i32
    %0 = arith.cmpi eq, %arg1, %c0_i32 : i32
    %1 = arith.extui %0 : i1 to i32
    %c0_i32_0 = arith.constant 0 : i32
    %2 = arith.cmpi ne, %1, %c0_i32_0 : i32
    scf.if %2 {
      %cst_38 = arith.constant 0.000000e+00 : f32
      %74 = vector.broadcast %cst_38 : f32 to vector<2x4x512xf32>
      %c0_39 = arith.constant 0 : index
      %c0_40 = arith.constant 0 : index
      %c0_41 = arith.constant 0 : index
      %75 = vector.load %arg4[%c0_39, %c0_40, %c0_41] : memref<2x4x512xf32, #tpu.memory_space<vmem>>, vector<2x4x512xf32>
      tpu.vector_store %arg4[%c0_39, %c0_40, %c0_41], %74 {strides = array<i32>} : memref<2x4x512xf32, #tpu.memory_space<vmem>>, vector<2x4x512xf32>,
    } else {
    }
    %c0 = arith.constant 0 : index
    %c0_1 = arith.constant 0 : index
    %c0_2 = arith.constant 0 : index
    %3 = vector.load %arg3[%c0, %c0_1, %c0_2] : memref<4x1x512xf32, #tpu.memory_space<vmem>>, vector<4x1x512xf32>
    %4 = vector.extract_strided_slice %3 {offsets = [0, 0, 0], sizes = [4, 1, 256], strides = [1, 1, 1]} : vector<4x1x512xf32> to vector<4x1x256xf32>
    %5 = vector.extract_strided_slice %3 {offsets = [0, 0, 256], sizes = [4, 1, 256], strides = [1, 1, 1]} : vector<4x1x512xf32> to vector<4x1x256xf32>
    %c0_3 = arith.constant 0 : index
    %c0_4 = arith.constant 0 : index
    %c0_5 = arith.constant 0 : index
    %6 = vector.load %arg2[%c0_3, %c0_4, %c0_5] : memref<2x1x512xf32, #tpu.memory_space<vmem>>, vector<1x1x512xf32>
    %7 = vector.shape_cast %6 : vector<1x1x512xf32> to vector<1x512xf32>
    %8 = vector.extract_strided_slice %7 {offsets = [0, 0], sizes = [1, 256], strides = [1, 1]} : vector<1x512xf32> to vector<1x256xf32>
    %9 = vector.extract_strided_slice %7 {offsets = [0, 256], sizes = [1, 256], strides = [1, 1]} : vector<1x512xf32> to vector<1x256xf32>
    %10 = vector.shape_cast %8 : vector<1x256xf32> to vector<1x1x256xf32>
    %11 = vector.broadcast %10 : vector<1x1x256xf32> to vector<4x1x256xf32>
    %12 = arith.mulf %4, %11 : vector<4x1x256xf32>
    %cst = arith.constant dense<0.000000e+00> : vector<4x256xf32>
    %13 = vector.multi_reduction <add>, %12, %cst [1] : vector<4x1x256xf32> to vector<4x256xf32>
    %14 = vector.shape_cast %9 : vector<1x256xf32> to vector<1x1x256xf32>
    %15 = vector.broadcast %14 : vector<1x1x256xf32> to vector<4x1x256xf32>
    %16 = arith.mulf %5, %15 : vector<4x1x256xf32>
    %cst_6 = arith.constant dense<0.000000e+00> : vector<4x256xf32>
    %17 = vector.multi_reduction <add>, %16, %cst_6 [1] : vector<4x1x256xf32> to vector<4x256xf32>
    %18 = vector.shape_cast %9 : vector<1x256xf32> to vector<1x1x256xf32>
    %19 = vector.broadcast %18 : vector<1x1x256xf32> to vector<4x1x256xf32>
    %20 = arith.mulf %4, %19 : vector<4x1x256xf32>
    %cst_7 = arith.constant dense<0.000000e+00> : vector<4x256xf32>
    %21 = vector.multi_reduction <add>, %20, %cst_7 [1] : vector<4x1x256xf32> to vector<4x256xf32>
    %22 = vector.shape_cast %8 : vector<1x256xf32> to vector<1x1x256xf32>
    %23 = vector.broadcast %22 : vector<1x1x256xf32> to vector<4x1x256xf32>
    %24 = arith.mulf %5, %23 : vector<4x1x256xf32>
    %cst_8 = arith.constant dense<0.000000e+00> : vector<4x256xf32>
    %25 = vector.multi_reduction <add>, %24, %cst_8 [1] : vector<4x1x256xf32> to vector<4x256xf32>
    %c0_9 = arith.constant 0 : index
    %c0_10 = arith.constant 0 : index
    %c0_11 = arith.constant 0 : index
    %26 = vector.load %arg4[%c0_9, %c0_10, %c0_11] : memref<2x4x512xf32, #tpu.memory_space<vmem>>, vector<1x4x256xf32>
    %27 = vector.shape_cast %26 : vector<1x4x256xf32> to vector<4x256xf32>
    %28 = arith.subf %13, %17 : vector<4x256xf32>
    %29 = arith.addf %27, %28 : vector<4x256xf32>
    %c0_12 = arith.constant 0 : index
    %c0_13 = arith.constant 0 : index
    %c0_14 = arith.constant 0 : index
    %30 = vector.load %arg4[%c0_12, %c0_13, %c0_14] : memref<2x4x512xf32, #tpu.memory_space<vmem>>, vector<1x4x256xf32>
    %31 = vector.shape_cast %30 : vector<1x4x256xf32> to vector<4x256xf32>
    %32 = vector.shape_cast %29 : vector<4x256xf32> to vector<1x4x256xf32>
    tpu.vector_store %arg4[%c0_12, %c0_13, %c0_14], %32 {strides = array<i32>} : memref<2x4x512xf32, #tpu.memory_space<vmem>>, vector<1x4x256xf32>,
    %c0_15 = arith.constant 0 : index
    %c0_16 = arith.constant 0 : index
    %c256 = arith.constant 256 : index
    %33 = vector.load %arg4[%c0_15, %c0_16, %c256] : memref<2x4x512xf32, #tpu.memory_space<vmem>>, vector<1x4x256xf32>
    %34 = vector.shape_cast %33 : vector<1x4x256xf32> to vector<4x256xf32>
    %35 = arith.addf %21, %25 : vector<4x256xf32>
    %36 = arith.addf %34, %35 : vector<4x256xf32>
    %c0_17 = arith.constant 0 : index
    %c0_18 = arith.constant 0 : index
    %c256_19 = arith.constant 256 : index
    %37 = vector.load %arg4[%c0_17, %c0_18, %c256_19] : memref<2x4x512xf32, #tpu.memory_space<vmem>>, vector<1x4x256xf32>
    %38 = vector.shape_cast %37 : vector<1x4x256xf32> to vector<4x256xf32>
    %39 = vector.shape_cast %36 : vector<4x256xf32> to vector<1x4x256xf32>
    tpu.vector_store %arg4[%c0_17, %c0_18, %c256_19], %39 {strides = array<i32>} : memref<2x4x512xf32, #tpu.memory_space<vmem>>, vector<1x4x256xf32>,
    %c1 = arith.constant 1 : index
    %c0_20 = arith.constant 0 : index
    %c0_21 = arith.constant 0 : index
    %40 = vector.load %arg2[%c1, %c0_20, %c0_21] : memref<2x1x512xf32, #tpu.memory_space<vmem>>, vector<1x1x512xf32>
    %41 = vector.shape_cast %40 : vector<1x1x512xf32> to vector<1x512xf32>
    %42 = vector.extract_strided_slice %41 {offsets = [0, 0], sizes = [1, 256], strides = [1, 1]} : vector<1x512xf32> to vector<1x256xf32>
    %43 = vector.extract_strided_slice %41 {offsets = [0, 256], sizes = [1, 256], strides = [1, 1]} : vector<1x512xf32> to vector<1x256xf32>
    %44 = vector.shape_cast %42 : vector<1x256xf32> to vector<1x1x256xf32>
    %45 = vector.broadcast %44 : vector<1x1x256xf32> to vector<4x1x256xf32>
    %46 = arith.mulf %4, %45 : vector<4x1x256xf32>
    %cst_22 = arith.constant dense<0.000000e+00> : vector<4x256xf32>
    %47 = vector.multi_reduction <add>, %46, %cst_22 [1] : vector<4x1x256xf32> to vector<4x256xf32>
    %48 = vector.shape_cast %43 : vector<1x256xf32> to vector<1x1x256xf32>
    %49 = vector.broadcast %48 : vector<1x1x256xf32> to vector<4x1x256xf32>
    %50 = arith.mulf %5, %49 : vector<4x1x256xf32>
    %cst_23 = arith.constant dense<0.000000e+00> : vector<4x256xf32>
    %51 = vector.multi_reduction <add>, %50, %cst_23 [1] : vector<4x1x256xf32> to vector<4x256xf32>
    %52 = vector.shape_cast %43 : vector<1x256xf32> to vector<1x1x256xf32>
    %53 = vector.broadcast %52 : vector<1x1x256xf32> to vector<4x1x256xf32>
    %54 = arith.mulf %4, %53 : vector<4x1x256xf32>
    %cst_24 = arith.constant dense<0.000000e+00> : vector<4x256xf32>
    %55 = vector.multi_reduction <add>, %54, %cst_24 [1] : vector<4x1x256xf32> to vector<4x256xf32>
    %56 = vector.shape_cast %42 : vector<1x256xf32> to vector<1x1x256xf32>
    %57 = vector.broadcast %56 : vector<1x1x256xf32> to vector<4x1x256xf32>
    %58 = arith.mulf %5, %57 : vector<4x1x256xf32>
    %cst_25 = arith.constant dense<0.000000e+00> : vector<4x256xf32>
    %59 = vector.multi_reduction <add>, %58, %cst_25 [1] : vector<4x1x256xf32> to vector<4x256xf32>
    %c1_26 = arith.constant 1 : index
    %c0_27 = arith.constant 0 : index
    %c0_28 = arith.constant 0 : index
    %60 = vector.load %arg4[%c1_26, %c0_27, %c0_28] : memref<2x4x512xf32, #tpu.memory_space<vmem>>, vector<1x4x256xf32>
    %61 = vector.shape_cast %60 : vector<1x4x256xf32> to vector<4x256xf32>
    %62 = arith.subf %47, %51 : vector<4x256xf32>
    %63 = arith.addf %61, %62 : vector<4x256xf32>
    %c1_29 = arith.constant 1 : index
    %c0_30 = arith.constant 0 : index
    %c0_31 = arith.constant 0 : index
    %64 = vector.load %arg4[%c1_29, %c0_30, %c0_31] : memref<2x4x512xf32, #tpu.memory_space<vmem>>, vector<1x4x256xf32>
    %65 = vector.shape_cast %64 : vector<1x4x256xf32> to vector<4x256xf32>
    %66 = vector.shape_cast %63 : vector<4x256xf32> to vector<1x4x256xf32>
    tpu.vector_store %arg4[%c1_29, %c0_30, %c0_31], %66 {strides = array<i32>} : memref<2x4x512xf32, #tpu.memory_space<vmem>>, vector<1x4x256xf32>,
    %c1_32 = arith.constant 1 : index
    %c0_33 = arith.constant 0 : index
    %c256_34 = arith.constant 256 : index
    %67 = vector.load %arg4[%c1_32, %c0_33, %c256_34] : memref<2x4x512xf32, #tpu.memory_space<vmem>>, vector<1x4x256xf32>
    %68 = vector.shape_cast %67 : vector<1x4x256xf32> to vector<4x256xf32>
    %69 = arith.addf %55, %59 : vector<4x256xf32>
    %70 = arith.addf %68, %69 : vector<4x256xf32>
    %c1_35 = arith.constant 1 : index
    %c0_36 = arith.constant 0 : index
    %c256_37 = arith.constant 256 : index
    %71 = vector.load %arg4[%c1_35, %c0_36, %c256_37] : memref<2x4x512xf32, #tpu.memory_space<vmem>>, vector<1x4x256xf32>
    %72 = vector.shape_cast %71 : vector<1x4x256xf32> to vector<4x256xf32>
    %73 = vector.shape_cast %70 : vector<4x256xf32> to vector<1x4x256xf32>
    tpu.vector_store %arg4[%c1_35, %c0_36, %c256_37], %73 {strides = array<i32>} : memref<2x4x512xf32, #tpu.memory_space<vmem>>, vector<1x4x256xf32>,
    return
  }
  func.func @transform_0(%arg0: i32, %arg1: i32) -> (i32, i32, i32) {
    %c0_i32 = arith.constant 0 : i32
    %c0_i32_0 = arith.constant 0 : i32
    %c0_i32_1 = arith.constant 0 : i32
    return %c0_i32, %arg1, %c0_i32_0 : i32, i32, i32
  }
  func.func @transform_1(%arg0: i32, %arg1: i32) -> (i32, i32, i32) {
    %c0_i32 = arith.constant 0 : i32
    %c0_i32_0 = arith.constant 0 : i32
    return %arg0, %arg1, %c0_i32 : i32, i32, i32
  }
  func.func @transform_2(%arg0: i32, %arg1: i32) -> (i32, i32, i32) {
    %c0_i32 = arith.constant 0 : i32
    %c0_i32_0 = arith.constant 0 : i32
    %c0_i32_1 = arith.constant 0 : i32
    return %c0_i32, %arg0, %c0_i32_0 : i32, i32, i32
  }
}

module attributes {stable_mosaic.version = 11 : i64} {
  func.func @_bn_relu_kernel(%arg0: memref<2x4x256xf32, #tpu.memory_space<vmem>>, %arg1: memref<1x4x1xf32, #tpu.memory_space<vmem>>, %arg2: memref<1x4x1xf32, #tpu.memory_space<vmem>>, %arg3: memref<2x4x256xf32, #tpu.memory_space<vmem>>) attributes {dimension_semantics = [], scalar_prefetch = 0 : i64, scratch_operands = 0 : i64, tpu.core_type = #tpu.core_type<tc>} {
    %c0 = arith.constant 0 : index
    %c0_0 = arith.constant 0 : index
    %c0_1 = arith.constant 0 : index
    %0 = vector.load %arg0[%c0, %c0_0, %c0_1] : memref<2x4x256xf32, #tpu.memory_space<vmem>>, vector<2x4x256xf32>
    %c0_2 = arith.constant 0 : index
    %c0_3 = arith.constant 0 : index
    %c0_4 = arith.constant 0 : index
    %1 = vector.load %arg1[%c0_2, %c0_3, %c0_4] : memref<1x4x1xf32, #tpu.memory_space<vmem>>, vector<1x4x1xf32>
    %c0_5 = arith.constant 0 : index
    %c0_6 = arith.constant 0 : index
    %c0_7 = arith.constant 0 : index
    %2 = vector.load %arg2[%c0_5, %c0_6, %c0_7] : memref<1x4x1xf32, #tpu.memory_space<vmem>>, vector<1x4x1xf32>
    %cst = arith.constant dense<0.000000e+00> : vector<2x4xf32>
    %3 = vector.multi_reduction <add>, %0, %cst [2] : vector<2x4x256xf32> to vector<2x4xf32>
    %4 = vector.shape_cast %3 : vector<2x4xf32> to vector<2x4x1xf32>
    %cst_8 = arith.constant dense<0.000000e+00> : vector<4x1xf32>
    %5 = vector.multi_reduction <add>, %4, %cst_8 [0] : vector<2x4x1xf32> to vector<4x1xf32>
    %6 = vector.shape_cast %5 : vector<4x1xf32> to vector<1x4x1xf32>
    %7 = arith.mulf %0, %0 : vector<2x4x256xf32>
    %cst_9 = arith.constant dense<0.000000e+00> : vector<2x4xf32>
    %8 = vector.multi_reduction <add>, %7, %cst_9 [2] : vector<2x4x256xf32> to vector<2x4xf32>
    %9 = vector.shape_cast %8 : vector<2x4xf32> to vector<2x4x1xf32>
    %cst_10 = arith.constant dense<0.000000e+00> : vector<4x1xf32>
    %10 = vector.multi_reduction <add>, %9, %cst_10 [0] : vector<2x4x1xf32> to vector<4x1xf32>
    %11 = vector.shape_cast %10 : vector<4x1xf32> to vector<1x4x1xf32>
    %cst_11 = arith.constant 0.001953125 : f32
    %12 = vector.broadcast %cst_11 : f32 to vector<1x4x1xf32>
    %13 = arith.mulf %6, %12 : vector<1x4x1xf32>
    %cst_12 = arith.constant 0.001953125 : f32
    %14 = vector.broadcast %cst_12 : f32 to vector<1x4x1xf32>
    %15 = arith.mulf %11, %14 : vector<1x4x1xf32>
    %16 = arith.mulf %13, %13 : vector<1x4x1xf32>
    %17 = arith.subf %15, %16 : vector<1x4x1xf32>
    %cst_13 = arith.constant 9.99999974E-6 : f32
    %18 = vector.broadcast %cst_13 : f32 to vector<1x4x1xf32>
    %19 = arith.addf %17, %18 : vector<1x4x1xf32>
    %20 = math.rsqrt %19 : vector<1x4x1xf32>
    %21 = arith.mulf %1, %20 : vector<1x4x1xf32>
    %22 = arith.mulf %13, %21 : vector<1x4x1xf32>
    %23 = arith.subf %2, %22 : vector<1x4x1xf32>
    %24 = vector.broadcast %21 : vector<1x4x1xf32> to vector<2x4x256xf32>
    %25 = arith.mulf %0, %24 : vector<2x4x256xf32>
    %26 = vector.broadcast %23 : vector<1x4x1xf32> to vector<2x4x256xf32>
    %27 = arith.addf %25, %26 : vector<2x4x256xf32>
    %cst_14 = arith.constant 0.000000e+00 : f32
    %28 = vector.broadcast %cst_14 : f32 to vector<2x4x256xf32>
    %29 = arith.maximumf %27, %28 : vector<2x4x256xf32>
    %c0_15 = arith.constant 0 : index
    %c0_16 = arith.constant 0 : index
    %c0_17 = arith.constant 0 : index
    %30 = vector.load %arg3[%c0_15, %c0_16, %c0_17] : memref<2x4x256xf32, #tpu.memory_space<vmem>>, vector<2x4x256xf32>
    tpu.vector_store %arg3[%c0_15, %c0_16, %c0_17], %29 {strides = array<i32>} : memref<2x4x256xf32, #tpu.memory_space<vmem>>, vector<2x4x256xf32>,
    return
  }
}

module attributes {stable_mosaic.version = 11 : i64} {
  func.func @_freq_contract_kernel(%arg0: i32, %arg1: i32, %arg2: memref<2x4x512xf32, #tpu.memory_space<vmem>>, %arg3: memref<4x4x512xf32, #tpu.memory_space<vmem>>, %arg4: memref<2x4x512xf32, #tpu.memory_space<vmem>>) attributes {dimension_semantics = [#tpu.dimension_semantics<parallel>, #tpu.dimension_semantics<arbitrary>], iteration_bounds = array<i64: 1, 1>, scalar_prefetch = 0 : i64, scratch_operands = 0 : i64, tpu.core_type = #tpu.core_type<tc>, window_params = [{transform_indices = @transform_0, window_bounds = array<i64: 2, 4, 512>}, {transform_indices = @transform_1, window_bounds = array<i64: 4, 4, 512>}, {transform_indices = @transform_2, window_bounds = array<i64: 2, 4, 512>}]} {
    %c0_i32 = arith.constant 0 : i32
    %0 = arith.cmpi eq, %arg1, %c0_i32 : i32
    %1 = arith.extui %0 : i1 to i32
    %c0_i32_0 = arith.constant 0 : i32
    %2 = arith.cmpi ne, %1, %c0_i32_0 : i32
    scf.if %2 {
      %cst_38 = arith.constant 0.000000e+00 : f32
      %74 = vector.broadcast %cst_38 : f32 to vector<2x4x512xf32>
      %c0_39 = arith.constant 0 : index
      %c0_40 = arith.constant 0 : index
      %c0_41 = arith.constant 0 : index
      %75 = vector.load %arg4[%c0_39, %c0_40, %c0_41] : memref<2x4x512xf32, #tpu.memory_space<vmem>>, vector<2x4x512xf32>
      tpu.vector_store %arg4[%c0_39, %c0_40, %c0_41], %74 {strides = array<i32>} : memref<2x4x512xf32, #tpu.memory_space<vmem>>, vector<2x4x512xf32>,
    } else {
    }
    %c0 = arith.constant 0 : index
    %c0_1 = arith.constant 0 : index
    %c0_2 = arith.constant 0 : index
    %3 = vector.load %arg3[%c0, %c0_1, %c0_2] : memref<4x4x512xf32, #tpu.memory_space<vmem>>, vector<4x4x512xf32>
    %4 = vector.extract_strided_slice %3 {offsets = [0, 0, 0], sizes = [4, 4, 256], strides = [1, 1, 1]} : vector<4x4x512xf32> to vector<4x4x256xf32>
    %5 = vector.extract_strided_slice %3 {offsets = [0, 0, 256], sizes = [4, 4, 256], strides = [1, 1, 1]} : vector<4x4x512xf32> to vector<4x4x256xf32>
    %c0_3 = arith.constant 0 : index
    %c0_4 = arith.constant 0 : index
    %c0_5 = arith.constant 0 : index
    %6 = vector.load %arg2[%c0_3, %c0_4, %c0_5] : memref<2x4x512xf32, #tpu.memory_space<vmem>>, vector<1x4x512xf32>
    %7 = vector.shape_cast %6 : vector<1x4x512xf32> to vector<4x512xf32>
    %8 = vector.extract_strided_slice %7 {offsets = [0, 0], sizes = [4, 256], strides = [1, 1]} : vector<4x512xf32> to vector<4x256xf32>
    %9 = vector.extract_strided_slice %7 {offsets = [0, 256], sizes = [4, 256], strides = [1, 1]} : vector<4x512xf32> to vector<4x256xf32>
    %10 = vector.shape_cast %8 : vector<4x256xf32> to vector<1x4x256xf32>
    %11 = vector.broadcast %10 : vector<1x4x256xf32> to vector<4x4x256xf32>
    %12 = arith.mulf %4, %11 : vector<4x4x256xf32>
    %cst = arith.constant dense<0.000000e+00> : vector<4x256xf32>
    %13 = vector.multi_reduction <add>, %12, %cst [1] : vector<4x4x256xf32> to vector<4x256xf32>
    %14 = vector.shape_cast %9 : vector<4x256xf32> to vector<1x4x256xf32>
    %15 = vector.broadcast %14 : vector<1x4x256xf32> to vector<4x4x256xf32>
    %16 = arith.mulf %5, %15 : vector<4x4x256xf32>
    %cst_6 = arith.constant dense<0.000000e+00> : vector<4x256xf32>
    %17 = vector.multi_reduction <add>, %16, %cst_6 [1] : vector<4x4x256xf32> to vector<4x256xf32>
    %18 = vector.shape_cast %9 : vector<4x256xf32> to vector<1x4x256xf32>
    %19 = vector.broadcast %18 : vector<1x4x256xf32> to vector<4x4x256xf32>
    %20 = arith.mulf %4, %19 : vector<4x4x256xf32>
    %cst_7 = arith.constant dense<0.000000e+00> : vector<4x256xf32>
    %21 = vector.multi_reduction <add>, %20, %cst_7 [1] : vector<4x4x256xf32> to vector<4x256xf32>
    %22 = vector.shape_cast %8 : vector<4x256xf32> to vector<1x4x256xf32>
    %23 = vector.broadcast %22 : vector<1x4x256xf32> to vector<4x4x256xf32>
    %24 = arith.mulf %5, %23 : vector<4x4x256xf32>
    %cst_8 = arith.constant dense<0.000000e+00> : vector<4x256xf32>
    %25 = vector.multi_reduction <add>, %24, %cst_8 [1] : vector<4x4x256xf32> to vector<4x256xf32>
    %c0_9 = arith.constant 0 : index
    %c0_10 = arith.constant 0 : index
    %c0_11 = arith.constant 0 : index
    %26 = vector.load %arg4[%c0_9, %c0_10, %c0_11] : memref<2x4x512xf32, #tpu.memory_space<vmem>>, vector<1x4x256xf32>
    %27 = vector.shape_cast %26 : vector<1x4x256xf32> to vector<4x256xf32>
    %28 = arith.subf %13, %17 : vector<4x256xf32>
    %29 = arith.addf %27, %28 : vector<4x256xf32>
    %c0_12 = arith.constant 0 : index
    %c0_13 = arith.constant 0 : index
    %c0_14 = arith.constant 0 : index
    %30 = vector.load %arg4[%c0_12, %c0_13, %c0_14] : memref<2x4x512xf32, #tpu.memory_space<vmem>>, vector<1x4x256xf32>
    %31 = vector.shape_cast %30 : vector<1x4x256xf32> to vector<4x256xf32>
    %32 = vector.shape_cast %29 : vector<4x256xf32> to vector<1x4x256xf32>
    tpu.vector_store %arg4[%c0_12, %c0_13, %c0_14], %32 {strides = array<i32>} : memref<2x4x512xf32, #tpu.memory_space<vmem>>, vector<1x4x256xf32>,
    %c0_15 = arith.constant 0 : index
    %c0_16 = arith.constant 0 : index
    %c256 = arith.constant 256 : index
    %33 = vector.load %arg4[%c0_15, %c0_16, %c256] : memref<2x4x512xf32, #tpu.memory_space<vmem>>, vector<1x4x256xf32>
    %34 = vector.shape_cast %33 : vector<1x4x256xf32> to vector<4x256xf32>
    %35 = arith.addf %21, %25 : vector<4x256xf32>
    %36 = arith.addf %34, %35 : vector<4x256xf32>
    %c0_17 = arith.constant 0 : index
    %c0_18 = arith.constant 0 : index
    %c256_19 = arith.constant 256 : index
    %37 = vector.load %arg4[%c0_17, %c0_18, %c256_19] : memref<2x4x512xf32, #tpu.memory_space<vmem>>, vector<1x4x256xf32>
    %38 = vector.shape_cast %37 : vector<1x4x256xf32> to vector<4x256xf32>
    %39 = vector.shape_cast %36 : vector<4x256xf32> to vector<1x4x256xf32>
    tpu.vector_store %arg4[%c0_17, %c0_18, %c256_19], %39 {strides = array<i32>} : memref<2x4x512xf32, #tpu.memory_space<vmem>>, vector<1x4x256xf32>,
    %c1 = arith.constant 1 : index
    %c0_20 = arith.constant 0 : index
    %c0_21 = arith.constant 0 : index
    %40 = vector.load %arg2[%c1, %c0_20, %c0_21] : memref<2x4x512xf32, #tpu.memory_space<vmem>>, vector<1x4x512xf32>
    %41 = vector.shape_cast %40 : vector<1x4x512xf32> to vector<4x512xf32>
    %42 = vector.extract_strided_slice %41 {offsets = [0, 0], sizes = [4, 256], strides = [1, 1]} : vector<4x512xf32> to vector<4x256xf32>
    %43 = vector.extract_strided_slice %41 {offsets = [0, 256], sizes = [4, 256], strides = [1, 1]} : vector<4x512xf32> to vector<4x256xf32>
    %44 = vector.shape_cast %42 : vector<4x256xf32> to vector<1x4x256xf32>
    %45 = vector.broadcast %44 : vector<1x4x256xf32> to vector<4x4x256xf32>
    %46 = arith.mulf %4, %45 : vector<4x4x256xf32>
    %cst_22 = arith.constant dense<0.000000e+00> : vector<4x256xf32>
    %47 = vector.multi_reduction <add>, %46, %cst_22 [1] : vector<4x4x256xf32> to vector<4x256xf32>
    %48 = vector.shape_cast %43 : vector<4x256xf32> to vector<1x4x256xf32>
    %49 = vector.broadcast %48 : vector<1x4x256xf32> to vector<4x4x256xf32>
    %50 = arith.mulf %5, %49 : vector<4x4x256xf32>
    %cst_23 = arith.constant dense<0.000000e+00> : vector<4x256xf32>
    %51 = vector.multi_reduction <add>, %50, %cst_23 [1] : vector<4x4x256xf32> to vector<4x256xf32>
    %52 = vector.shape_cast %43 : vector<4x256xf32> to vector<1x4x256xf32>
    %53 = vector.broadcast %52 : vector<1x4x256xf32> to vector<4x4x256xf32>
    %54 = arith.mulf %4, %53 : vector<4x4x256xf32>
    %cst_24 = arith.constant dense<0.000000e+00> : vector<4x256xf32>
    %55 = vector.multi_reduction <add>, %54, %cst_24 [1] : vector<4x4x256xf32> to vector<4x256xf32>
    %56 = vector.shape_cast %42 : vector<4x256xf32> to vector<1x4x256xf32>
    %57 = vector.broadcast %56 : vector<1x4x256xf32> to vector<4x4x256xf32>
    %58 = arith.mulf %5, %57 : vector<4x4x256xf32>
    %cst_25 = arith.constant dense<0.000000e+00> : vector<4x256xf32>
    %59 = vector.multi_reduction <add>, %58, %cst_25 [1] : vector<4x4x256xf32> to vector<4x256xf32>
    %c1_26 = arith.constant 1 : index
    %c0_27 = arith.constant 0 : index
    %c0_28 = arith.constant 0 : index
    %60 = vector.load %arg4[%c1_26, %c0_27, %c0_28] : memref<2x4x512xf32, #tpu.memory_space<vmem>>, vector<1x4x256xf32>
    %61 = vector.shape_cast %60 : vector<1x4x256xf32> to vector<4x256xf32>
    %62 = arith.subf %47, %51 : vector<4x256xf32>
    %63 = arith.addf %61, %62 : vector<4x256xf32>
    %c1_29 = arith.constant 1 : index
    %c0_30 = arith.constant 0 : index
    %c0_31 = arith.constant 0 : index
    %64 = vector.load %arg4[%c1_29, %c0_30, %c0_31] : memref<2x4x512xf32, #tpu.memory_space<vmem>>, vector<1x4x256xf32>
    %65 = vector.shape_cast %64 : vector<1x4x256xf32> to vector<4x256xf32>
    %66 = vector.shape_cast %63 : vector<4x256xf32> to vector<1x4x256xf32>
    tpu.vector_store %arg4[%c1_29, %c0_30, %c0_31], %66 {strides = array<i32>} : memref<2x4x512xf32, #tpu.memory_space<vmem>>, vector<1x4x256xf32>,
    %c1_32 = arith.constant 1 : index
    %c0_33 = arith.constant 0 : index
    %c256_34 = arith.constant 256 : index
    %67 = vector.load %arg4[%c1_32, %c0_33, %c256_34] : memref<2x4x512xf32, #tpu.memory_space<vmem>>, vector<1x4x256xf32>
    %68 = vector.shape_cast %67 : vector<1x4x256xf32> to vector<4x256xf32>
    %69 = arith.addf %55, %59 : vector<4x256xf32>
    %70 = arith.addf %68, %69 : vector<4x256xf32>
    %c1_35 = arith.constant 1 : index
    %c0_36 = arith.constant 0 : index
    %c256_37 = arith.constant 256 : index
    %71 = vector.load %arg4[%c1_35, %c0_36, %c256_37] : memref<2x4x512xf32, #tpu.memory_space<vmem>>, vector<1x4x256xf32>
    %72 = vector.shape_cast %71 : vector<1x4x256xf32> to vector<4x256xf32>
    %73 = vector.shape_cast %70 : vector<4x256xf32> to vector<1x4x256xf32>
    tpu.vector_store %arg4[%c1_35, %c0_36, %c256_37], %73 {strides = array<i32>} : memref<2x4x512xf32, #tpu.memory_space<vmem>>, vector<1x4x256xf32>,
    return
  }
  func.func @transform_0(%arg0: i32, %arg1: i32) -> (i32, i32, i32) {
    %c0_i32 = arith.constant 0 : i32
    %c0_i32_0 = arith.constant 0 : i32
    %c0_i32_1 = arith.constant 0 : i32
    return %c0_i32, %arg1, %c0_i32_0 : i32, i32, i32
  }
  func.func @transform_1(%arg0: i32, %arg1: i32) -> (i32, i32, i32) {
    %c0_i32 = arith.constant 0 : i32
    %c0_i32_0 = arith.constant 0 : i32
    return %arg0, %arg1, %c0_i32 : i32, i32, i32
  }
  func.func @transform_2(%arg0: i32, %arg1: i32) -> (i32, i32, i32) {
    %c0_i32 = arith.constant 0 : i32
    %c0_i32_0 = arith.constant 0 : i32
    %c0_i32_1 = arith.constant 0 : i32
    return %c0_i32, %arg0, %c0_i32_0 : i32, i32, i32
  }
}

module attributes {stable_mosaic.version = 11 : i64} {
  func.func @_skip_conv_kernel(%arg0: memref<4x1xf32, #tpu.memory_space<vmem>>, %arg1: memref<1x512xf32, #tpu.memory_space<vmem>>, %arg2: memref<4x1xf32, #tpu.memory_space<vmem>>, %arg3: memref<4x512xf32, #tpu.memory_space<vmem>>) attributes {dimension_semantics = [], scalar_prefetch = 0 : i64, scratch_operands = 0 : i64, tpu.core_type = #tpu.core_type<tc>} {
    %c0 = arith.constant 0 : index
    %c0_0 = arith.constant 0 : index
    %0 = vector.load %arg0[%c0, %c0_0] : memref<4x1xf32, #tpu.memory_space<vmem>>, vector<4x1xf32>
    %c0_1 = arith.constant 0 : index
    %c0_2 = arith.constant 0 : index
    %1 = vector.load %arg1[%c0_1, %c0_2] : memref<1x512xf32, #tpu.memory_space<vmem>>, vector<1x512xf32>
    %cst = arith.constant dense<0.000000e+00> : vector<4x512xf32>
    %2 = tpu.matmul %0, %1, %cst {dimension_numbers = #tpu.dot_dimension_numbers<[1], [0], [0], [1], [0, 0, 1, 1], [], []>} : vector<4x1xf32>, vector<1x512xf32>, vector<4x512xf32> -> vector<4x512xf32>
    %c0_3 = arith.constant 0 : index
    %c0_4 = arith.constant 0 : index
    %3 = vector.load %arg2[%c0_3, %c0_4] : memref<4x1xf32, #tpu.memory_space<vmem>>, vector<4x1xf32>
    %4 = vector.broadcast %3 : vector<4x1xf32> to vector<4x512xf32>
    %5 = arith.addf %2, %4 : vector<4x512xf32>
    %c0_5 = arith.constant 0 : index
    %c0_6 = arith.constant 0 : index
    %6 = vector.load %arg3[%c0_5, %c0_6] : memref<4x512xf32, #tpu.memory_space<vmem>>, vector<4x512xf32>
    tpu.vector_store %arg3[%c0_5, %c0_6], %5 {strides = array<i32>} : memref<4x512xf32, #tpu.memory_space<vmem>>, vector<4x512xf32>,
    return
  }
}

module attributes {stable_mosaic.version = 11 : i64} {
  func.func @_bn_add_relu_kernel(%arg0: memref<2x4x256xf32, #tpu.memory_space<vmem>>, %arg1: memref<2x4x256xf32, #tpu.memory_space<vmem>>, %arg2: memref<1x4x1xf32, #tpu.memory_space<vmem>>, %arg3: memref<1x4x1xf32, #tpu.memory_space<vmem>>, %arg4: memref<2x4x256xf32, #tpu.memory_space<vmem>>) attributes {dimension_semantics = [], scalar_prefetch = 0 : i64, scratch_operands = 0 : i64, tpu.core_type = #tpu.core_type<tc>} {
    %c0 = arith.constant 0 : index
    %c0_0 = arith.constant 0 : index
    %c0_1 = arith.constant 0 : index
    %0 = vector.load %arg0[%c0, %c0_0, %c0_1] : memref<2x4x256xf32, #tpu.memory_space<vmem>>, vector<2x4x256xf32>
    %c0_2 = arith.constant 0 : index
    %c0_3 = arith.constant 0 : index
    %c0_4 = arith.constant 0 : index
    %1 = vector.load %arg2[%c0_2, %c0_3, %c0_4] : memref<1x4x1xf32, #tpu.memory_space<vmem>>, vector<1x4x1xf32>
    %c0_5 = arith.constant 0 : index
    %c0_6 = arith.constant 0 : index
    %c0_7 = arith.constant 0 : index
    %2 = vector.load %arg3[%c0_5, %c0_6, %c0_7] : memref<1x4x1xf32, #tpu.memory_space<vmem>>, vector<1x4x1xf32>
    %cst = arith.constant dense<0.000000e+00> : vector<2x4xf32>
    %3 = vector.multi_reduction <add>, %0, %cst [2] : vector<2x4x256xf32> to vector<2x4xf32>
    %4 = vector.shape_cast %3 : vector<2x4xf32> to vector<2x4x1xf32>
    %cst_8 = arith.constant dense<0.000000e+00> : vector<4x1xf32>
    %5 = vector.multi_reduction <add>, %4, %cst_8 [0] : vector<2x4x1xf32> to vector<4x1xf32>
    %6 = vector.shape_cast %5 : vector<4x1xf32> to vector<1x4x1xf32>
    %7 = arith.mulf %0, %0 : vector<2x4x256xf32>
    %cst_9 = arith.constant dense<0.000000e+00> : vector<2x4xf32>
    %8 = vector.multi_reduction <add>, %7, %cst_9 [2] : vector<2x4x256xf32> to vector<2x4xf32>
    %9 = vector.shape_cast %8 : vector<2x4xf32> to vector<2x4x1xf32>
    %cst_10 = arith.constant dense<0.000000e+00> : vector<4x1xf32>
    %10 = vector.multi_reduction <add>, %9, %cst_10 [0] : vector<2x4x1xf32> to vector<4x1xf32>
    %11 = vector.shape_cast %10 : vector<4x1xf32> to vector<1x4x1xf32>
    %cst_11 = arith.constant 0.001953125 : f32
    %12 = vector.broadcast %cst_11 : f32 to vector<1x4x1xf32>
    %13 = arith.mulf %6, %12 : vector<1x4x1xf32>
    %cst_12 = arith.constant 0.001953125 : f32
    %14 = vector.broadcast %cst_12 : f32 to vector<1x4x1xf32>
    %15 = arith.mulf %11, %14 : vector<1x4x1xf32>
    %16 = arith.mulf %13, %13 : vector<1x4x1xf32>
    %17 = arith.subf %15, %16 : vector<1x4x1xf32>
    %cst_13 = arith.constant 9.99999974E-6 : f32
    %18 = vector.broadcast %cst_13 : f32 to vector<1x4x1xf32>
    %19 = arith.addf %17, %18 : vector<1x4x1xf32>
    %20 = math.rsqrt %19 : vector<1x4x1xf32>
    %21 = arith.mulf %1, %20 : vector<1x4x1xf32>
    %22 = arith.mulf %13, %21 : vector<1x4x1xf32>
    %23 = arith.subf %2, %22 : vector<1x4x1xf32>
    %24 = vector.broadcast %21 : vector<1x4x1xf32> to vector<2x4x256xf32>
    %25 = arith.mulf %0, %24 : vector<2x4x256xf32>
    %26 = vector.broadcast %23 : vector<1x4x1xf32> to vector<2x4x256xf32>
    %27 = arith.addf %25, %26 : vector<2x4x256xf32>
    %c0_14 = arith.constant 0 : index
    %c0_15 = arith.constant 0 : index
    %c0_16 = arith.constant 0 : index
    %28 = vector.load %arg1[%c0_14, %c0_15, %c0_16] : memref<2x4x256xf32, #tpu.memory_space<vmem>>, vector<2x4x256xf32>
    %29 = arith.addf %27, %28 : vector<2x4x256xf32>
    %cst_17 = arith.constant 0.000000e+00 : f32
    %30 = vector.broadcast %cst_17 : f32 to vector<2x4x256xf32>
    %31 = arith.maximumf %29, %30 : vector<2x4x256xf32>
    %c0_18 = arith.constant 0 : index
    %c0_19 = arith.constant 0 : index
    %c0_20 = arith.constant 0 : index
    %32 = vector.load %arg4[%c0_18, %c0_19, %c0_20] : memref<2x4x256xf32, #tpu.memory_space<vmem>>, vector<2x4x256xf32>
    tpu.vector_store %arg4[%c0_18, %c0_19, %c0_20], %31 {strides = array<i32>} : memref<2x4x256xf32, #tpu.memory_space<vmem>>, vector<2x4x256xf32>,
    return
  }
}

module attributes {stable_mosaic.version = 11 : i64} {
  func.func @_freq_contract_kernel(%arg0: i32, %arg1: i32, %arg2: memref<2x4x512xf32, #tpu.memory_space<vmem>>, %arg3: memref<8x4x512xf32, #tpu.memory_space<vmem>>, %arg4: memref<2x8x512xf32, #tpu.memory_space<vmem>>) attributes {dimension_semantics = [#tpu.dimension_semantics<parallel>, #tpu.dimension_semantics<arbitrary>], iteration_bounds = array<i64: 1, 1>, scalar_prefetch = 0 : i64, scratch_operands = 0 : i64, tpu.core_type = #tpu.core_type<tc>, window_params = [{transform_indices = @transform_0, window_bounds = array<i64: 2, 4, 512>}, {transform_indices = @transform_1, window_bounds = array<i64: 8, 4, 512>}, {transform_indices = @transform_2, window_bounds = array<i64: 2, 8, 512>}]} {
    %c0_i32 = arith.constant 0 : i32
    %0 = arith.cmpi eq, %arg1, %c0_i32 : i32
    %1 = arith.extui %0 : i1 to i32
    %c0_i32_0 = arith.constant 0 : i32
    %2 = arith.cmpi ne, %1, %c0_i32_0 : i32
    scf.if %2 {
      %cst_38 = arith.constant 0.000000e+00 : f32
      %74 = vector.broadcast %cst_38 : f32 to vector<2x8x512xf32>
      %c0_39 = arith.constant 0 : index
      %c0_40 = arith.constant 0 : index
      %c0_41 = arith.constant 0 : index
      %75 = vector.load %arg4[%c0_39, %c0_40, %c0_41] : memref<2x8x512xf32, #tpu.memory_space<vmem>>, vector<2x8x512xf32>
      tpu.vector_store %arg4[%c0_39, %c0_40, %c0_41], %74 {strides = array<i32>} : memref<2x8x512xf32, #tpu.memory_space<vmem>>, vector<2x8x512xf32>,
    } else {
    }
    %c0 = arith.constant 0 : index
    %c0_1 = arith.constant 0 : index
    %c0_2 = arith.constant 0 : index
    %3 = vector.load %arg3[%c0, %c0_1, %c0_2] : memref<8x4x512xf32, #tpu.memory_space<vmem>>, vector<8x4x512xf32>
    %4 = vector.extract_strided_slice %3 {offsets = [0, 0, 0], sizes = [8, 4, 256], strides = [1, 1, 1]} : vector<8x4x512xf32> to vector<8x4x256xf32>
    %5 = vector.extract_strided_slice %3 {offsets = [0, 0, 256], sizes = [8, 4, 256], strides = [1, 1, 1]} : vector<8x4x512xf32> to vector<8x4x256xf32>
    %c0_3 = arith.constant 0 : index
    %c0_4 = arith.constant 0 : index
    %c0_5 = arith.constant 0 : index
    %6 = vector.load %arg2[%c0_3, %c0_4, %c0_5] : memref<2x4x512xf32, #tpu.memory_space<vmem>>, vector<1x4x512xf32>
    %7 = vector.shape_cast %6 : vector<1x4x512xf32> to vector<4x512xf32>
    %8 = vector.extract_strided_slice %7 {offsets = [0, 0], sizes = [4, 256], strides = [1, 1]} : vector<4x512xf32> to vector<4x256xf32>
    %9 = vector.extract_strided_slice %7 {offsets = [0, 256], sizes = [4, 256], strides = [1, 1]} : vector<4x512xf32> to vector<4x256xf32>
    %10 = vector.shape_cast %8 : vector<4x256xf32> to vector<1x4x256xf32>
    %11 = vector.broadcast %10 : vector<1x4x256xf32> to vector<8x4x256xf32>
    %12 = arith.mulf %4, %11 : vector<8x4x256xf32>
    %cst = arith.constant dense<0.000000e+00> : vector<8x256xf32>
    %13 = vector.multi_reduction <add>, %12, %cst [1] : vector<8x4x256xf32> to vector<8x256xf32>
    %14 = vector.shape_cast %9 : vector<4x256xf32> to vector<1x4x256xf32>
    %15 = vector.broadcast %14 : vector<1x4x256xf32> to vector<8x4x256xf32>
    %16 = arith.mulf %5, %15 : vector<8x4x256xf32>
    %cst_6 = arith.constant dense<0.000000e+00> : vector<8x256xf32>
    %17 = vector.multi_reduction <add>, %16, %cst_6 [1] : vector<8x4x256xf32> to vector<8x256xf32>
    %18 = vector.shape_cast %9 : vector<4x256xf32> to vector<1x4x256xf32>
    %19 = vector.broadcast %18 : vector<1x4x256xf32> to vector<8x4x256xf32>
    %20 = arith.mulf %4, %19 : vector<8x4x256xf32>
    %cst_7 = arith.constant dense<0.000000e+00> : vector<8x256xf32>
    %21 = vector.multi_reduction <add>, %20, %cst_7 [1] : vector<8x4x256xf32> to vector<8x256xf32>
    %22 = vector.shape_cast %8 : vector<4x256xf32> to vector<1x4x256xf32>
    %23 = vector.broadcast %22 : vector<1x4x256xf32> to vector<8x4x256xf32>
    %24 = arith.mulf %5, %23 : vector<8x4x256xf32>
    %cst_8 = arith.constant dense<0.000000e+00> : vector<8x256xf32>
    %25 = vector.multi_reduction <add>, %24, %cst_8 [1] : vector<8x4x256xf32> to vector<8x256xf32>
    %c0_9 = arith.constant 0 : index
    %c0_10 = arith.constant 0 : index
    %c0_11 = arith.constant 0 : index
    %26 = vector.load %arg4[%c0_9, %c0_10, %c0_11] : memref<2x8x512xf32, #tpu.memory_space<vmem>>, vector<1x8x256xf32>
    %27 = vector.shape_cast %26 : vector<1x8x256xf32> to vector<8x256xf32>
    %28 = arith.subf %13, %17 : vector<8x256xf32>
    %29 = arith.addf %27, %28 : vector<8x256xf32>
    %c0_12 = arith.constant 0 : index
    %c0_13 = arith.constant 0 : index
    %c0_14 = arith.constant 0 : index
    %30 = vector.load %arg4[%c0_12, %c0_13, %c0_14] : memref<2x8x512xf32, #tpu.memory_space<vmem>>, vector<1x8x256xf32>
    %31 = vector.shape_cast %30 : vector<1x8x256xf32> to vector<8x256xf32>
    %32 = vector.shape_cast %29 : vector<8x256xf32> to vector<1x8x256xf32>
    tpu.vector_store %arg4[%c0_12, %c0_13, %c0_14], %32 {strides = array<i32>} : memref<2x8x512xf32, #tpu.memory_space<vmem>>, vector<1x8x256xf32>,
    %c0_15 = arith.constant 0 : index
    %c0_16 = arith.constant 0 : index
    %c256 = arith.constant 256 : index
    %33 = vector.load %arg4[%c0_15, %c0_16, %c256] : memref<2x8x512xf32, #tpu.memory_space<vmem>>, vector<1x8x256xf32>
    %34 = vector.shape_cast %33 : vector<1x8x256xf32> to vector<8x256xf32>
    %35 = arith.addf %21, %25 : vector<8x256xf32>
    %36 = arith.addf %34, %35 : vector<8x256xf32>
    %c0_17 = arith.constant 0 : index
    %c0_18 = arith.constant 0 : index
    %c256_19 = arith.constant 256 : index
    %37 = vector.load %arg4[%c0_17, %c0_18, %c256_19] : memref<2x8x512xf32, #tpu.memory_space<vmem>>, vector<1x8x256xf32>
    %38 = vector.shape_cast %37 : vector<1x8x256xf32> to vector<8x256xf32>
    %39 = vector.shape_cast %36 : vector<8x256xf32> to vector<1x8x256xf32>
    tpu.vector_store %arg4[%c0_17, %c0_18, %c256_19], %39 {strides = array<i32>} : memref<2x8x512xf32, #tpu.memory_space<vmem>>, vector<1x8x256xf32>,
    %c1 = arith.constant 1 : index
    %c0_20 = arith.constant 0 : index
    %c0_21 = arith.constant 0 : index
    %40 = vector.load %arg2[%c1, %c0_20, %c0_21] : memref<2x4x512xf32, #tpu.memory_space<vmem>>, vector<1x4x512xf32>
    %41 = vector.shape_cast %40 : vector<1x4x512xf32> to vector<4x512xf32>
    %42 = vector.extract_strided_slice %41 {offsets = [0, 0], sizes = [4, 256], strides = [1, 1]} : vector<4x512xf32> to vector<4x256xf32>
    %43 = vector.extract_strided_slice %41 {offsets = [0, 256], sizes = [4, 256], strides = [1, 1]} : vector<4x512xf32> to vector<4x256xf32>
    %44 = vector.shape_cast %42 : vector<4x256xf32> to vector<1x4x256xf32>
    %45 = vector.broadcast %44 : vector<1x4x256xf32> to vector<8x4x256xf32>
    %46 = arith.mulf %4, %45 : vector<8x4x256xf32>
    %cst_22 = arith.constant dense<0.000000e+00> : vector<8x256xf32>
    %47 = vector.multi_reduction <add>, %46, %cst_22 [1] : vector<8x4x256xf32> to vector<8x256xf32>
    %48 = vector.shape_cast %43 : vector<4x256xf32> to vector<1x4x256xf32>
    %49 = vector.broadcast %48 : vector<1x4x256xf32> to vector<8x4x256xf32>
    %50 = arith.mulf %5, %49 : vector<8x4x256xf32>
    %cst_23 = arith.constant dense<0.000000e+00> : vector<8x256xf32>
    %51 = vector.multi_reduction <add>, %50, %cst_23 [1] : vector<8x4x256xf32> to vector<8x256xf32>
    %52 = vector.shape_cast %43 : vector<4x256xf32> to vector<1x4x256xf32>
    %53 = vector.broadcast %52 : vector<1x4x256xf32> to vector<8x4x256xf32>
    %54 = arith.mulf %4, %53 : vector<8x4x256xf32>
    %cst_24 = arith.constant dense<0.000000e+00> : vector<8x256xf32>
    %55 = vector.multi_reduction <add>, %54, %cst_24 [1] : vector<8x4x256xf32> to vector<8x256xf32>
    %56 = vector.shape_cast %42 : vector<4x256xf32> to vector<1x4x256xf32>
    %57 = vector.broadcast %56 : vector<1x4x256xf32> to vector<8x4x256xf32>
    %58 = arith.mulf %5, %57 : vector<8x4x256xf32>
    %cst_25 = arith.constant dense<0.000000e+00> : vector<8x256xf32>
    %59 = vector.multi_reduction <add>, %58, %cst_25 [1] : vector<8x4x256xf32> to vector<8x256xf32>
    %c1_26 = arith.constant 1 : index
    %c0_27 = arith.constant 0 : index
    %c0_28 = arith.constant 0 : index
    %60 = vector.load %arg4[%c1_26, %c0_27, %c0_28] : memref<2x8x512xf32, #tpu.memory_space<vmem>>, vector<1x8x256xf32>
    %61 = vector.shape_cast %60 : vector<1x8x256xf32> to vector<8x256xf32>
    %62 = arith.subf %47, %51 : vector<8x256xf32>
    %63 = arith.addf %61, %62 : vector<8x256xf32>
    %c1_29 = arith.constant 1 : index
    %c0_30 = arith.constant 0 : index
    %c0_31 = arith.constant 0 : index
    %64 = vector.load %arg4[%c1_29, %c0_30, %c0_31] : memref<2x8x512xf32, #tpu.memory_space<vmem>>, vector<1x8x256xf32>
    %65 = vector.shape_cast %64 : vector<1x8x256xf32> to vector<8x256xf32>
    %66 = vector.shape_cast %63 : vector<8x256xf32> to vector<1x8x256xf32>
    tpu.vector_store %arg4[%c1_29, %c0_30, %c0_31], %66 {strides = array<i32>} : memref<2x8x512xf32, #tpu.memory_space<vmem>>, vector<1x8x256xf32>,
    %c1_32 = arith.constant 1 : index
    %c0_33 = arith.constant 0 : index
    %c256_34 = arith.constant 256 : index
    %67 = vector.load %arg4[%c1_32, %c0_33, %c256_34] : memref<2x8x512xf32, #tpu.memory_space<vmem>>, vector<1x8x256xf32>
    %68 = vector.shape_cast %67 : vector<1x8x256xf32> to vector<8x256xf32>
    %69 = arith.addf %55, %59 : vector<8x256xf32>
    %70 = arith.addf %68, %69 : vector<8x256xf32>
    %c1_35 = arith.constant 1 : index
    %c0_36 = arith.constant 0 : index
    %c256_37 = arith.constant 256 : index
    %71 = vector.load %arg4[%c1_35, %c0_36, %c256_37] : memref<2x8x512xf32, #tpu.memory_space<vmem>>, vector<1x8x256xf32>
    %72 = vector.shape_cast %71 : vector<1x8x256xf32> to vector<8x256xf32>
    %73 = vector.shape_cast %70 : vector<8x256xf32> to vector<1x8x256xf32>
    tpu.vector_store %arg4[%c1_35, %c0_36, %c256_37], %73 {strides = array<i32>} : memref<2x8x512xf32, #tpu.memory_space<vmem>>, vector<1x8x256xf32>,
    return
  }
  func.func @transform_0(%arg0: i32, %arg1: i32) -> (i32, i32, i32) {
    %c0_i32 = arith.constant 0 : i32
    %c0_i32_0 = arith.constant 0 : i32
    %c0_i32_1 = arith.constant 0 : i32
    return %c0_i32, %arg1, %c0_i32_0 : i32, i32, i32
  }
  func.func @transform_1(%arg0: i32, %arg1: i32) -> (i32, i32, i32) {
    %c0_i32 = arith.constant 0 : i32
    %c0_i32_0 = arith.constant 0 : i32
    return %arg0, %arg1, %c0_i32 : i32, i32, i32
  }
  func.func @transform_2(%arg0: i32, %arg1: i32) -> (i32, i32, i32) {
    %c0_i32 = arith.constant 0 : i32
    %c0_i32_0 = arith.constant 0 : i32
    %c0_i32_1 = arith.constant 0 : i32
    return %c0_i32, %arg0, %c0_i32_0 : i32, i32, i32
  }
}

module attributes {stable_mosaic.version = 11 : i64} {
  func.func @_bn_relu_kernel(%arg0: memref<2x8x256xf32, #tpu.memory_space<vmem>>, %arg1: memref<1x8x1xf32, #tpu.memory_space<vmem>>, %arg2: memref<1x8x1xf32, #tpu.memory_space<vmem>>, %arg3: memref<2x8x256xf32, #tpu.memory_space<vmem>>) attributes {dimension_semantics = [], scalar_prefetch = 0 : i64, scratch_operands = 0 : i64, tpu.core_type = #tpu.core_type<tc>} {
    %c0 = arith.constant 0 : index
    %c0_0 = arith.constant 0 : index
    %c0_1 = arith.constant 0 : index
    %0 = vector.load %arg0[%c0, %c0_0, %c0_1] : memref<2x8x256xf32, #tpu.memory_space<vmem>>, vector<2x8x256xf32>
    %c0_2 = arith.constant 0 : index
    %c0_3 = arith.constant 0 : index
    %c0_4 = arith.constant 0 : index
    %1 = vector.load %arg1[%c0_2, %c0_3, %c0_4] : memref<1x8x1xf32, #tpu.memory_space<vmem>>, vector<1x8x1xf32>
    %c0_5 = arith.constant 0 : index
    %c0_6 = arith.constant 0 : index
    %c0_7 = arith.constant 0 : index
    %2 = vector.load %arg2[%c0_5, %c0_6, %c0_7] : memref<1x8x1xf32, #tpu.memory_space<vmem>>, vector<1x8x1xf32>
    %cst = arith.constant dense<0.000000e+00> : vector<2x8xf32>
    %3 = vector.multi_reduction <add>, %0, %cst [2] : vector<2x8x256xf32> to vector<2x8xf32>
    %4 = vector.shape_cast %3 : vector<2x8xf32> to vector<2x8x1xf32>
    %cst_8 = arith.constant dense<0.000000e+00> : vector<8x1xf32>
    %5 = vector.multi_reduction <add>, %4, %cst_8 [0] : vector<2x8x1xf32> to vector<8x1xf32>
    %6 = vector.shape_cast %5 : vector<8x1xf32> to vector<1x8x1xf32>
    %7 = arith.mulf %0, %0 : vector<2x8x256xf32>
    %cst_9 = arith.constant dense<0.000000e+00> : vector<2x8xf32>
    %8 = vector.multi_reduction <add>, %7, %cst_9 [2] : vector<2x8x256xf32> to vector<2x8xf32>
    %9 = vector.shape_cast %8 : vector<2x8xf32> to vector<2x8x1xf32>
    %cst_10 = arith.constant dense<0.000000e+00> : vector<8x1xf32>
    %10 = vector.multi_reduction <add>, %9, %cst_10 [0] : vector<2x8x1xf32> to vector<8x1xf32>
    %11 = vector.shape_cast %10 : vector<8x1xf32> to vector<1x8x1xf32>
    %cst_11 = arith.constant 0.001953125 : f32
    %12 = vector.broadcast %cst_11 : f32 to vector<1x8x1xf32>
    %13 = arith.mulf %6, %12 : vector<1x8x1xf32>
    %cst_12 = arith.constant 0.001953125 : f32
    %14 = vector.broadcast %cst_12 : f32 to vector<1x8x1xf32>
    %15 = arith.mulf %11, %14 : vector<1x8x1xf32>
    %16 = arith.mulf %13, %13 : vector<1x8x1xf32>
    %17 = arith.subf %15, %16 : vector<1x8x1xf32>
    %cst_13 = arith.constant 9.99999974E-6 : f32
    %18 = vector.broadcast %cst_13 : f32 to vector<1x8x1xf32>
    %19 = arith.addf %17, %18 : vector<1x8x1xf32>
    %20 = math.rsqrt %19 : vector<1x8x1xf32>
    %21 = arith.mulf %1, %20 : vector<1x8x1xf32>
    %22 = arith.mulf %13, %21 : vector<1x8x1xf32>
    %23 = arith.subf %2, %22 : vector<1x8x1xf32>
    %24 = vector.broadcast %21 : vector<1x8x1xf32> to vector<2x8x256xf32>
    %25 = arith.mulf %0, %24 : vector<2x8x256xf32>
    %26 = vector.broadcast %23 : vector<1x8x1xf32> to vector<2x8x256xf32>
    %27 = arith.addf %25, %26 : vector<2x8x256xf32>
    %cst_14 = arith.constant 0.000000e+00 : f32
    %28 = vector.broadcast %cst_14 : f32 to vector<2x8x256xf32>
    %29 = arith.maximumf %27, %28 : vector<2x8x256xf32>
    %c0_15 = arith.constant 0 : index
    %c0_16 = arith.constant 0 : index
    %c0_17 = arith.constant 0 : index
    %30 = vector.load %arg3[%c0_15, %c0_16, %c0_17] : memref<2x8x256xf32, #tpu.memory_space<vmem>>, vector<2x8x256xf32>
    tpu.vector_store %arg3[%c0_15, %c0_16, %c0_17], %29 {strides = array<i32>} : memref<2x8x256xf32, #tpu.memory_space<vmem>>, vector<2x8x256xf32>,
    return
  }
}

module attributes {stable_mosaic.version = 11 : i64} {
  func.func @_skip_conv_kernel(%arg0: memref<8x4xf32, #tpu.memory_space<vmem>>, %arg1: memref<4x512xf32, #tpu.memory_space<vmem>>, %arg2: memref<8x1xf32, #tpu.memory_space<vmem>>, %arg3: memref<8x512xf32, #tpu.memory_space<vmem>>) attributes {dimension_semantics = [], scalar_prefetch = 0 : i64, scratch_operands = 0 : i64, tpu.core_type = #tpu.core_type<tc>} {
    %c0 = arith.constant 0 : index
    %c0_0 = arith.constant 0 : index
    %0 = vector.load %arg0[%c0, %c0_0] : memref<8x4xf32, #tpu.memory_space<vmem>>, vector<8x4xf32>
    %c0_1 = arith.constant 0 : index
    %c0_2 = arith.constant 0 : index
    %1 = vector.load %arg1[%c0_1, %c0_2] : memref<4x512xf32, #tpu.memory_space<vmem>>, vector<4x512xf32>
    %cst = arith.constant dense<0.000000e+00> : vector<8x512xf32>
    %2 = tpu.matmul %0, %1, %cst {dimension_numbers = #tpu.dot_dimension_numbers<[1], [0], [0], [1], [0, 0, 1, 1], [], []>} : vector<8x4xf32>, vector<4x512xf32>, vector<8x512xf32> -> vector<8x512xf32>
    %c0_3 = arith.constant 0 : index
    %c0_4 = arith.constant 0 : index
    %3 = vector.load %arg2[%c0_3, %c0_4] : memref<8x1xf32, #tpu.memory_space<vmem>>, vector<8x1xf32>
    %4 = vector.broadcast %3 : vector<8x1xf32> to vector<8x512xf32>
    %5 = arith.addf %2, %4 : vector<8x512xf32>
    %c0_5 = arith.constant 0 : index
    %c0_6 = arith.constant 0 : index
    %6 = vector.load %arg3[%c0_5, %c0_6] : memref<8x512xf32, #tpu.memory_space<vmem>>, vector<8x512xf32>
    tpu.vector_store %arg3[%c0_5, %c0_6], %5 {strides = array<i32>} : memref<8x512xf32, #tpu.memory_space<vmem>>, vector<8x512xf32>,
    return
  }
}

module attributes {stable_mosaic.version = 11 : i64} {
  func.func @_freq_contract_kernel(%arg0: i32, %arg1: i32, %arg2: memref<2x8x512xf32, #tpu.memory_space<vmem>>, %arg3: memref<8x8x512xf32, #tpu.memory_space<vmem>>, %arg4: memref<2x8x512xf32, #tpu.memory_space<vmem>>) attributes {dimension_semantics = [#tpu.dimension_semantics<parallel>, #tpu.dimension_semantics<arbitrary>], iteration_bounds = array<i64: 1, 1>, scalar_prefetch = 0 : i64, scratch_operands = 0 : i64, tpu.core_type = #tpu.core_type<tc>, window_params = [{transform_indices = @transform_0, window_bounds = array<i64: 2, 8, 512>}, {transform_indices = @transform_1, window_bounds = array<i64: 8, 8, 512>}, {transform_indices = @transform_2, window_bounds = array<i64: 2, 8, 512>}]} {
    %c0_i32 = arith.constant 0 : i32
    %0 = arith.cmpi eq, %arg1, %c0_i32 : i32
    %1 = arith.extui %0 : i1 to i32
    %c0_i32_0 = arith.constant 0 : i32
    %2 = arith.cmpi ne, %1, %c0_i32_0 : i32
    scf.if %2 {
      %cst_38 = arith.constant 0.000000e+00 : f32
      %74 = vector.broadcast %cst_38 : f32 to vector<2x8x512xf32>
      %c0_39 = arith.constant 0 : index
      %c0_40 = arith.constant 0 : index
      %c0_41 = arith.constant 0 : index
      %75 = vector.load %arg4[%c0_39, %c0_40, %c0_41] : memref<2x8x512xf32, #tpu.memory_space<vmem>>, vector<2x8x512xf32>
      tpu.vector_store %arg4[%c0_39, %c0_40, %c0_41], %74 {strides = array<i32>} : memref<2x8x512xf32, #tpu.memory_space<vmem>>, vector<2x8x512xf32>,
    } else {
    }
    %c0 = arith.constant 0 : index
    %c0_1 = arith.constant 0 : index
    %c0_2 = arith.constant 0 : index
    %3 = vector.load %arg3[%c0, %c0_1, %c0_2] : memref<8x8x512xf32, #tpu.memory_space<vmem>>, vector<8x8x512xf32>
    %4 = vector.extract_strided_slice %3 {offsets = [0, 0, 0], sizes = [8, 8, 256], strides = [1, 1, 1]} : vector<8x8x512xf32> to vector<8x8x256xf32>
    %5 = vector.extract_strided_slice %3 {offsets = [0, 0, 256], sizes = [8, 8, 256], strides = [1, 1, 1]} : vector<8x8x512xf32> to vector<8x8x256xf32>
    %c0_3 = arith.constant 0 : index
    %c0_4 = arith.constant 0 : index
    %c0_5 = arith.constant 0 : index
    %6 = vector.load %arg2[%c0_3, %c0_4, %c0_5] : memref<2x8x512xf32, #tpu.memory_space<vmem>>, vector<1x8x512xf32>
    %7 = vector.shape_cast %6 : vector<1x8x512xf32> to vector<8x512xf32>
    %8 = vector.extract_strided_slice %7 {offsets = [0, 0], sizes = [8, 256], strides = [1, 1]} : vector<8x512xf32> to vector<8x256xf32>
    %9 = vector.extract_strided_slice %7 {offsets = [0, 256], sizes = [8, 256], strides = [1, 1]} : vector<8x512xf32> to vector<8x256xf32>
    %10 = vector.shape_cast %8 : vector<8x256xf32> to vector<1x8x256xf32>
    %11 = vector.broadcast %10 : vector<1x8x256xf32> to vector<8x8x256xf32>
    %12 = arith.mulf %4, %11 : vector<8x8x256xf32>
    %cst = arith.constant dense<0.000000e+00> : vector<8x256xf32>
    %13 = vector.multi_reduction <add>, %12, %cst [1] : vector<8x8x256xf32> to vector<8x256xf32>
    %14 = vector.shape_cast %9 : vector<8x256xf32> to vector<1x8x256xf32>
    %15 = vector.broadcast %14 : vector<1x8x256xf32> to vector<8x8x256xf32>
    %16 = arith.mulf %5, %15 : vector<8x8x256xf32>
    %cst_6 = arith.constant dense<0.000000e+00> : vector<8x256xf32>
    %17 = vector.multi_reduction <add>, %16, %cst_6 [1] : vector<8x8x256xf32> to vector<8x256xf32>
    %18 = vector.shape_cast %9 : vector<8x256xf32> to vector<1x8x256xf32>
    %19 = vector.broadcast %18 : vector<1x8x256xf32> to vector<8x8x256xf32>
    %20 = arith.mulf %4, %19 : vector<8x8x256xf32>
    %cst_7 = arith.constant dense<0.000000e+00> : vector<8x256xf32>
    %21 = vector.multi_reduction <add>, %20, %cst_7 [1] : vector<8x8x256xf32> to vector<8x256xf32>
    %22 = vector.shape_cast %8 : vector<8x256xf32> to vector<1x8x256xf32>
    %23 = vector.broadcast %22 : vector<1x8x256xf32> to vector<8x8x256xf32>
    %24 = arith.mulf %5, %23 : vector<8x8x256xf32>
    %cst_8 = arith.constant dense<0.000000e+00> : vector<8x256xf32>
    %25 = vector.multi_reduction <add>, %24, %cst_8 [1] : vector<8x8x256xf32> to vector<8x256xf32>
    %c0_9 = arith.constant 0 : index
    %c0_10 = arith.constant 0 : index
    %c0_11 = arith.constant 0 : index
    %26 = vector.load %arg4[%c0_9, %c0_10, %c0_11] : memref<2x8x512xf32, #tpu.memory_space<vmem>>, vector<1x8x256xf32>
    %27 = vector.shape_cast %26 : vector<1x8x256xf32> to vector<8x256xf32>
    %28 = arith.subf %13, %17 : vector<8x256xf32>
    %29 = arith.addf %27, %28 : vector<8x256xf32>
    %c0_12 = arith.constant 0 : index
    %c0_13 = arith.constant 0 : index
    %c0_14 = arith.constant 0 : index
    %30 = vector.load %arg4[%c0_12, %c0_13, %c0_14] : memref<2x8x512xf32, #tpu.memory_space<vmem>>, vector<1x8x256xf32>
    %31 = vector.shape_cast %30 : vector<1x8x256xf32> to vector<8x256xf32>
    %32 = vector.shape_cast %29 : vector<8x256xf32> to vector<1x8x256xf32>
    tpu.vector_store %arg4[%c0_12, %c0_13, %c0_14], %32 {strides = array<i32>} : memref<2x8x512xf32, #tpu.memory_space<vmem>>, vector<1x8x256xf32>,
    %c0_15 = arith.constant 0 : index
    %c0_16 = arith.constant 0 : index
    %c256 = arith.constant 256 : index
    %33 = vector.load %arg4[%c0_15, %c0_16, %c256] : memref<2x8x512xf32, #tpu.memory_space<vmem>>, vector<1x8x256xf32>
    %34 = vector.shape_cast %33 : vector<1x8x256xf32> to vector<8x256xf32>
    %35 = arith.addf %21, %25 : vector<8x256xf32>
    %36 = arith.addf %34, %35 : vector<8x256xf32>
    %c0_17 = arith.constant 0 : index
    %c0_18 = arith.constant 0 : index
    %c256_19 = arith.constant 256 : index
    %37 = vector.load %arg4[%c0_17, %c0_18, %c256_19] : memref<2x8x512xf32, #tpu.memory_space<vmem>>, vector<1x8x256xf32>
    %38 = vector.shape_cast %37 : vector<1x8x256xf32> to vector<8x256xf32>
    %39 = vector.shape_cast %36 : vector<8x256xf32> to vector<1x8x256xf32>
    tpu.vector_store %arg4[%c0_17, %c0_18, %c256_19], %39 {strides = array<i32>} : memref<2x8x512xf32, #tpu.memory_space<vmem>>, vector<1x8x256xf32>,
    %c1 = arith.constant 1 : index
    %c0_20 = arith.constant 0 : index
    %c0_21 = arith.constant 0 : index
    %40 = vector.load %arg2[%c1, %c0_20, %c0_21] : memref<2x8x512xf32, #tpu.memory_space<vmem>>, vector<1x8x512xf32>
    %41 = vector.shape_cast %40 : vector<1x8x512xf32> to vector<8x512xf32>
    %42 = vector.extract_strided_slice %41 {offsets = [0, 0], sizes = [8, 256], strides = [1, 1]} : vector<8x512xf32> to vector<8x256xf32>
    %43 = vector.extract_strided_slice %41 {offsets = [0, 256], sizes = [8, 256], strides = [1, 1]} : vector<8x512xf32> to vector<8x256xf32>
    %44 = vector.shape_cast %42 : vector<8x256xf32> to vector<1x8x256xf32>
    %45 = vector.broadcast %44 : vector<1x8x256xf32> to vector<8x8x256xf32>
    %46 = arith.mulf %4, %45 : vector<8x8x256xf32>
    %cst_22 = arith.constant dense<0.000000e+00> : vector<8x256xf32>
    %47 = vector.multi_reduction <add>, %46, %cst_22 [1] : vector<8x8x256xf32> to vector<8x256xf32>
    %48 = vector.shape_cast %43 : vector<8x256xf32> to vector<1x8x256xf32>
    %49 = vector.broadcast %48 : vector<1x8x256xf32> to vector<8x8x256xf32>
    %50 = arith.mulf %5, %49 : vector<8x8x256xf32>
    %cst_23 = arith.constant dense<0.000000e+00> : vector<8x256xf32>
    %51 = vector.multi_reduction <add>, %50, %cst_23 [1] : vector<8x8x256xf32> to vector<8x256xf32>
    %52 = vector.shape_cast %43 : vector<8x256xf32> to vector<1x8x256xf32>
    %53 = vector.broadcast %52 : vector<1x8x256xf32> to vector<8x8x256xf32>
    %54 = arith.mulf %4, %53 : vector<8x8x256xf32>
    %cst_24 = arith.constant dense<0.000000e+00> : vector<8x256xf32>
    %55 = vector.multi_reduction <add>, %54, %cst_24 [1] : vector<8x8x256xf32> to vector<8x256xf32>
    %56 = vector.shape_cast %42 : vector<8x256xf32> to vector<1x8x256xf32>
    %57 = vector.broadcast %56 : vector<1x8x256xf32> to vector<8x8x256xf32>
    %58 = arith.mulf %5, %57 : vector<8x8x256xf32>
    %cst_25 = arith.constant dense<0.000000e+00> : vector<8x256xf32>
    %59 = vector.multi_reduction <add>, %58, %cst_25 [1] : vector<8x8x256xf32> to vector<8x256xf32>
    %c1_26 = arith.constant 1 : index
    %c0_27 = arith.constant 0 : index
    %c0_28 = arith.constant 0 : index
    %60 = vector.load %arg4[%c1_26, %c0_27, %c0_28] : memref<2x8x512xf32, #tpu.memory_space<vmem>>, vector<1x8x256xf32>
    %61 = vector.shape_cast %60 : vector<1x8x256xf32> to vector<8x256xf32>
    %62 = arith.subf %47, %51 : vector<8x256xf32>
    %63 = arith.addf %61, %62 : vector<8x256xf32>
    %c1_29 = arith.constant 1 : index
    %c0_30 = arith.constant 0 : index
    %c0_31 = arith.constant 0 : index
    %64 = vector.load %arg4[%c1_29, %c0_30, %c0_31] : memref<2x8x512xf32, #tpu.memory_space<vmem>>, vector<1x8x256xf32>
    %65 = vector.shape_cast %64 : vector<1x8x256xf32> to vector<8x256xf32>
    %66 = vector.shape_cast %63 : vector<8x256xf32> to vector<1x8x256xf32>
    tpu.vector_store %arg4[%c1_29, %c0_30, %c0_31], %66 {strides = array<i32>} : memref<2x8x512xf32, #tpu.memory_space<vmem>>, vector<1x8x256xf32>,
    %c1_32 = arith.constant 1 : index
    %c0_33 = arith.constant 0 : index
    %c256_34 = arith.constant 256 : index
    %67 = vector.load %arg4[%c1_32, %c0_33, %c256_34] : memref<2x8x512xf32, #tpu.memory_space<vmem>>, vector<1x8x256xf32>
    %68 = vector.shape_cast %67 : vector<1x8x256xf32> to vector<8x256xf32>
    %69 = arith.addf %55, %59 : vector<8x256xf32>
    %70 = arith.addf %68, %69 : vector<8x256xf32>
    %c1_35 = arith.constant 1 : index
    %c0_36 = arith.constant 0 : index
    %c256_37 = arith.constant 256 : index
    %71 = vector.load %arg4[%c1_35, %c0_36, %c256_37] : memref<2x8x512xf32, #tpu.memory_space<vmem>>, vector<1x8x256xf32>
    %72 = vector.shape_cast %71 : vector<1x8x256xf32> to vector<8x256xf32>
    %73 = vector.shape_cast %70 : vector<8x256xf32> to vector<1x8x256xf32>
    tpu.vector_store %arg4[%c1_35, %c0_36, %c256_37], %73 {strides = array<i32>} : memref<2x8x512xf32, #tpu.memory_space<vmem>>, vector<1x8x256xf32>,
    return
  }
  func.func @transform_0(%arg0: i32, %arg1: i32) -> (i32, i32, i32) {
    %c0_i32 = arith.constant 0 : i32
    %c0_i32_0 = arith.constant 0 : i32
    %c0_i32_1 = arith.constant 0 : i32
    return %c0_i32, %arg1, %c0_i32_0 : i32, i32, i32
  }
  func.func @transform_1(%arg0: i32, %arg1: i32) -> (i32, i32, i32) {
    %c0_i32 = arith.constant 0 : i32
    %c0_i32_0 = arith.constant 0 : i32
    return %arg0, %arg1, %c0_i32 : i32, i32, i32
  }
  func.func @transform_2(%arg0: i32, %arg1: i32) -> (i32, i32, i32) {
    %c0_i32 = arith.constant 0 : i32
    %c0_i32_0 = arith.constant 0 : i32
    %c0_i32_1 = arith.constant 0 : i32
    return %c0_i32, %arg0, %c0_i32_0 : i32, i32, i32
  }
}

module attributes {stable_mosaic.version = 11 : i64} {
  func.func @_bn_add_relu_kernel(%arg0: memref<2x8x256xf32, #tpu.memory_space<vmem>>, %arg1: memref<2x8x256xf32, #tpu.memory_space<vmem>>, %arg2: memref<1x8x1xf32, #tpu.memory_space<vmem>>, %arg3: memref<1x8x1xf32, #tpu.memory_space<vmem>>, %arg4: memref<2x8x256xf32, #tpu.memory_space<vmem>>) attributes {dimension_semantics = [], scalar_prefetch = 0 : i64, scratch_operands = 0 : i64, tpu.core_type = #tpu.core_type<tc>} {
    %c0 = arith.constant 0 : index
    %c0_0 = arith.constant 0 : index
    %c0_1 = arith.constant 0 : index
    %0 = vector.load %arg0[%c0, %c0_0, %c0_1] : memref<2x8x256xf32, #tpu.memory_space<vmem>>, vector<2x8x256xf32>
    %c0_2 = arith.constant 0 : index
    %c0_3 = arith.constant 0 : index
    %c0_4 = arith.constant 0 : index
    %1 = vector.load %arg2[%c0_2, %c0_3, %c0_4] : memref<1x8x1xf32, #tpu.memory_space<vmem>>, vector<1x8x1xf32>
    %c0_5 = arith.constant 0 : index
    %c0_6 = arith.constant 0 : index
    %c0_7 = arith.constant 0 : index
    %2 = vector.load %arg3[%c0_5, %c0_6, %c0_7] : memref<1x8x1xf32, #tpu.memory_space<vmem>>, vector<1x8x1xf32>
    %cst = arith.constant dense<0.000000e+00> : vector<2x8xf32>
    %3 = vector.multi_reduction <add>, %0, %cst [2] : vector<2x8x256xf32> to vector<2x8xf32>
    %4 = vector.shape_cast %3 : vector<2x8xf32> to vector<2x8x1xf32>
    %cst_8 = arith.constant dense<0.000000e+00> : vector<8x1xf32>
    %5 = vector.multi_reduction <add>, %4, %cst_8 [0] : vector<2x8x1xf32> to vector<8x1xf32>
    %6 = vector.shape_cast %5 : vector<8x1xf32> to vector<1x8x1xf32>
    %7 = arith.mulf %0, %0 : vector<2x8x256xf32>
    %cst_9 = arith.constant dense<0.000000e+00> : vector<2x8xf32>
    %8 = vector.multi_reduction <add>, %7, %cst_9 [2] : vector<2x8x256xf32> to vector<2x8xf32>
    %9 = vector.shape_cast %8 : vector<2x8xf32> to vector<2x8x1xf32>
    %cst_10 = arith.constant dense<0.000000e+00> : vector<8x1xf32>
    %10 = vector.multi_reduction <add>, %9, %cst_10 [0] : vector<2x8x1xf32> to vector<8x1xf32>
    %11 = vector.shape_cast %10 : vector<8x1xf32> to vector<1x8x1xf32>
    %cst_11 = arith.constant 0.001953125 : f32
    %12 = vector.broadcast %cst_11 : f32 to vector<1x8x1xf32>
    %13 = arith.mulf %6, %12 : vector<1x8x1xf32>
    %cst_12 = arith.constant 0.001953125 : f32
    %14 = vector.broadcast %cst_12 : f32 to vector<1x8x1xf32>
    %15 = arith.mulf %11, %14 : vector<1x8x1xf32>
    %16 = arith.mulf %13, %13 : vector<1x8x1xf32>
    %17 = arith.subf %15, %16 : vector<1x8x1xf32>
    %cst_13 = arith.constant 9.99999974E-6 : f32
    %18 = vector.broadcast %cst_13 : f32 to vector<1x8x1xf32>
    %19 = arith.addf %17, %18 : vector<1x8x1xf32>
    %20 = math.rsqrt %19 : vector<1x8x1xf32>
    %21 = arith.mulf %1, %20 : vector<1x8x1xf32>
    %22 = arith.mulf %13, %21 : vector<1x8x1xf32>
    %23 = arith.subf %2, %22 : vector<1x8x1xf32>
    %24 = vector.broadcast %21 : vector<1x8x1xf32> to vector<2x8x256xf32>
    %25 = arith.mulf %0, %24 : vector<2x8x256xf32>
    %26 = vector.broadcast %23 : vector<1x8x1xf32> to vector<2x8x256xf32>
    %27 = arith.addf %25, %26 : vector<2x8x256xf32>
    %c0_14 = arith.constant 0 : index
    %c0_15 = arith.constant 0 : index
    %c0_16 = arith.constant 0 : index
    %28 = vector.load %arg1[%c0_14, %c0_15, %c0_16] : memref<2x8x256xf32, #tpu.memory_space<vmem>>, vector<2x8x256xf32>
    %29 = arith.addf %27, %28 : vector<2x8x256xf32>
    %cst_17 = arith.constant 0.000000e+00 : f32
    %30 = vector.broadcast %cst_17 : f32 to vector<2x8x256xf32>
    %31 = arith.maximumf %29, %30 : vector<2x8x256xf32>
    %c0_18 = arith.constant 0 : index
    %c0_19 = arith.constant 0 : index
    %c0_20 = arith.constant 0 : index
    %32 = vector.load %arg4[%c0_18, %c0_19, %c0_20] : memref<2x8x256xf32, #tpu.memory_space<vmem>>, vector<2x8x256xf32>
    tpu.vector_store %arg4[%c0_18, %c0_19, %c0_20], %31 {strides = array<i32>} : memref<2x8x256xf32, #tpu.memory_space<vmem>>, vector<2x8x256xf32>,
    return
  }
}

module attributes {stable_mosaic.version = 11 : i64} {
  func.func @_freq_contract_kernel(%arg0: i32, %arg1: i32, %arg2: memref<2x8x512xf32, #tpu.memory_space<vmem>>, %arg3: memref<1x8x512xf32, #tpu.memory_space<vmem>>, %arg4: memref<2x1x512xf32, #tpu.memory_space<vmem>>) attributes {dimension_semantics = [#tpu.dimension_semantics<parallel>, #tpu.dimension_semantics<arbitrary>], iteration_bounds = array<i64: 1, 1>, scalar_prefetch = 0 : i64, scratch_operands = 0 : i64, tpu.core_type = #tpu.core_type<tc>, window_params = [{transform_indices = @transform_0, window_bounds = array<i64: 2, 8, 512>}, {transform_indices = @transform_1, window_bounds = array<i64: 1, 8, 512>}, {transform_indices = @transform_2, window_bounds = array<i64: 2, 1, 512>}]} {
    %c0_i32 = arith.constant 0 : i32
    %0 = arith.cmpi eq, %arg1, %c0_i32 : i32
    %1 = arith.extui %0 : i1 to i32
    %c0_i32_0 = arith.constant 0 : i32
    %2 = arith.cmpi ne, %1, %c0_i32_0 : i32
    scf.if %2 {
      %cst_38 = arith.constant 0.000000e+00 : f32
      %66 = vector.broadcast %cst_38 : f32 to vector<2x1x512xf32>
      %c0_39 = arith.constant 0 : index
      %c0_40 = arith.constant 0 : index
      %c0_41 = arith.constant 0 : index
      %67 = vector.load %arg4[%c0_39, %c0_40, %c0_41] : memref<2x1x512xf32, #tpu.memory_space<vmem>>, vector<2x1x512xf32>
      tpu.vector_store %arg4[%c0_39, %c0_40, %c0_41], %66 {strides = array<i32>} : memref<2x1x512xf32, #tpu.memory_space<vmem>>, vector<2x1x512xf32>,
    } else {
    }
    %c0 = arith.constant 0 : index
    %c0_1 = arith.constant 0 : index
    %c0_2 = arith.constant 0 : index
    %3 = vector.load %arg3[%c0, %c0_1, %c0_2] : memref<1x8x512xf32, #tpu.memory_space<vmem>>, vector<1x8x512xf32>
    %4 = vector.extract_strided_slice %3 {offsets = [0, 0, 0], sizes = [1, 8, 256], strides = [1, 1, 1]} : vector<1x8x512xf32> to vector<1x8x256xf32>
    %5 = vector.extract_strided_slice %3 {offsets = [0, 0, 256], sizes = [1, 8, 256], strides = [1, 1, 1]} : vector<1x8x512xf32> to vector<1x8x256xf32>
    %c0_3 = arith.constant 0 : index
    %c0_4 = arith.constant 0 : index
    %c0_5 = arith.constant 0 : index
    %6 = vector.load %arg2[%c0_3, %c0_4, %c0_5] : memref<2x8x512xf32, #tpu.memory_space<vmem>>, vector<1x8x512xf32>
    %7 = vector.shape_cast %6 : vector<1x8x512xf32> to vector<8x512xf32>
    %8 = vector.extract_strided_slice %7 {offsets = [0, 0], sizes = [8, 256], strides = [1, 1]} : vector<8x512xf32> to vector<8x256xf32>
    %9 = vector.extract_strided_slice %7 {offsets = [0, 256], sizes = [8, 256], strides = [1, 1]} : vector<8x512xf32> to vector<8x256xf32>
    %10 = vector.shape_cast %8 : vector<8x256xf32> to vector<1x8x256xf32>
    %11 = arith.mulf %4, %10 : vector<1x8x256xf32>
    %cst = arith.constant dense<0.000000e+00> : vector<1x256xf32>
    %12 = vector.multi_reduction <add>, %11, %cst [1] : vector<1x8x256xf32> to vector<1x256xf32>
    %13 = vector.shape_cast %9 : vector<8x256xf32> to vector<1x8x256xf32>
    %14 = arith.mulf %5, %13 : vector<1x8x256xf32>
    %cst_6 = arith.constant dense<0.000000e+00> : vector<1x256xf32>
    %15 = vector.multi_reduction <add>, %14, %cst_6 [1] : vector<1x8x256xf32> to vector<1x256xf32>
    %16 = vector.shape_cast %9 : vector<8x256xf32> to vector<1x8x256xf32>
    %17 = arith.mulf %4, %16 : vector<1x8x256xf32>
    %cst_7 = arith.constant dense<0.000000e+00> : vector<1x256xf32>
    %18 = vector.multi_reduction <add>, %17, %cst_7 [1] : vector<1x8x256xf32> to vector<1x256xf32>
    %19 = vector.shape_cast %8 : vector<8x256xf32> to vector<1x8x256xf32>
    %20 = arith.mulf %5, %19 : vector<1x8x256xf32>
    %cst_8 = arith.constant dense<0.000000e+00> : vector<1x256xf32>
    %21 = vector.multi_reduction <add>, %20, %cst_8 [1] : vector<1x8x256xf32> to vector<1x256xf32>
    %c0_9 = arith.constant 0 : index
    %c0_10 = arith.constant 0 : index
    %c0_11 = arith.constant 0 : index
    %22 = vector.load %arg4[%c0_9, %c0_10, %c0_11] : memref<2x1x512xf32, #tpu.memory_space<vmem>>, vector<1x1x256xf32>
    %23 = vector.shape_cast %22 : vector<1x1x256xf32> to vector<1x256xf32>
    %24 = arith.subf %12, %15 : vector<1x256xf32>
    %25 = arith.addf %23, %24 : vector<1x256xf32>
    %c0_12 = arith.constant 0 : index
    %c0_13 = arith.constant 0 : index
    %c0_14 = arith.constant 0 : index
    %26 = vector.load %arg4[%c0_12, %c0_13, %c0_14] : memref<2x1x512xf32, #tpu.memory_space<vmem>>, vector<1x1x256xf32>
    %27 = vector.shape_cast %26 : vector<1x1x256xf32> to vector<1x256xf32>
    %28 = vector.shape_cast %25 : vector<1x256xf32> to vector<1x1x256xf32>
    tpu.vector_store %arg4[%c0_12, %c0_13, %c0_14], %28 {strides = array<i32>} : memref<2x1x512xf32, #tpu.memory_space<vmem>>, vector<1x1x256xf32>,
    %c0_15 = arith.constant 0 : index
    %c0_16 = arith.constant 0 : index
    %c256 = arith.constant 256 : index
    %29 = vector.load %arg4[%c0_15, %c0_16, %c256] : memref<2x1x512xf32, #tpu.memory_space<vmem>>, vector<1x1x256xf32>
    %30 = vector.shape_cast %29 : vector<1x1x256xf32> to vector<1x256xf32>
    %31 = arith.addf %18, %21 : vector<1x256xf32>
    %32 = arith.addf %30, %31 : vector<1x256xf32>
    %c0_17 = arith.constant 0 : index
    %c0_18 = arith.constant 0 : index
    %c256_19 = arith.constant 256 : index
    %33 = vector.load %arg4[%c0_17, %c0_18, %c256_19] : memref<2x1x512xf32, #tpu.memory_space<vmem>>, vector<1x1x256xf32>
    %34 = vector.shape_cast %33 : vector<1x1x256xf32> to vector<1x256xf32>
    %35 = vector.shape_cast %32 : vector<1x256xf32> to vector<1x1x256xf32>
    tpu.vector_store %arg4[%c0_17, %c0_18, %c256_19], %35 {strides = array<i32>} : memref<2x1x512xf32, #tpu.memory_space<vmem>>, vector<1x1x256xf32>,
    %c1 = arith.constant 1 : index
    %c0_20 = arith.constant 0 : index
    %c0_21 = arith.constant 0 : index
    %36 = vector.load %arg2[%c1, %c0_20, %c0_21] : memref<2x8x512xf32, #tpu.memory_space<vmem>>, vector<1x8x512xf32>
    %37 = vector.shape_cast %36 : vector<1x8x512xf32> to vector<8x512xf32>
    %38 = vector.extract_strided_slice %37 {offsets = [0, 0], sizes = [8, 256], strides = [1, 1]} : vector<8x512xf32> to vector<8x256xf32>
    %39 = vector.extract_strided_slice %37 {offsets = [0, 256], sizes = [8, 256], strides = [1, 1]} : vector<8x512xf32> to vector<8x256xf32>
    %40 = vector.shape_cast %38 : vector<8x256xf32> to vector<1x8x256xf32>
    %41 = arith.mulf %4, %40 : vector<1x8x256xf32>
    %cst_22 = arith.constant dense<0.000000e+00> : vector<1x256xf32>
    %42 = vector.multi_reduction <add>, %41, %cst_22 [1] : vector<1x8x256xf32> to vector<1x256xf32>
    %43 = vector.shape_cast %39 : vector<8x256xf32> to vector<1x8x256xf32>
    %44 = arith.mulf %5, %43 : vector<1x8x256xf32>
    %cst_23 = arith.constant dense<0.000000e+00> : vector<1x256xf32>
    %45 = vector.multi_reduction <add>, %44, %cst_23 [1] : vector<1x8x256xf32> to vector<1x256xf32>
    %46 = vector.shape_cast %39 : vector<8x256xf32> to vector<1x8x256xf32>
    %47 = arith.mulf %4, %46 : vector<1x8x256xf32>
    %cst_24 = arith.constant dense<0.000000e+00> : vector<1x256xf32>
    %48 = vector.multi_reduction <add>, %47, %cst_24 [1] : vector<1x8x256xf32> to vector<1x256xf32>
    %49 = vector.shape_cast %38 : vector<8x256xf32> to vector<1x8x256xf32>
    %50 = arith.mulf %5, %49 : vector<1x8x256xf32>
    %cst_25 = arith.constant dense<0.000000e+00> : vector<1x256xf32>
    %51 = vector.multi_reduction <add>, %50, %cst_25 [1] : vector<1x8x256xf32> to vector<1x256xf32>
    %c1_26 = arith.constant 1 : index
    %c0_27 = arith.constant 0 : index
    %c0_28 = arith.constant 0 : index
    %52 = vector.load %arg4[%c1_26, %c0_27, %c0_28] : memref<2x1x512xf32, #tpu.memory_space<vmem>>, vector<1x1x256xf32>
    %53 = vector.shape_cast %52 : vector<1x1x256xf32> to vector<1x256xf32>
    %54 = arith.subf %42, %45 : vector<1x256xf32>
    %55 = arith.addf %53, %54 : vector<1x256xf32>
    %c1_29 = arith.constant 1 : index
    %c0_30 = arith.constant 0 : index
    %c0_31 = arith.constant 0 : index
    %56 = vector.load %arg4[%c1_29, %c0_30, %c0_31] : memref<2x1x512xf32, #tpu.memory_space<vmem>>, vector<1x1x256xf32>
    %57 = vector.shape_cast %56 : vector<1x1x256xf32> to vector<1x256xf32>
    %58 = vector.shape_cast %55 : vector<1x256xf32> to vector<1x1x256xf32>
    tpu.vector_store %arg4[%c1_29, %c0_30, %c0_31], %58 {strides = array<i32>} : memref<2x1x512xf32, #tpu.memory_space<vmem>>, vector<1x1x256xf32>,
    %c1_32 = arith.constant 1 : index
    %c0_33 = arith.constant 0 : index
    %c256_34 = arith.constant 256 : index
    %59 = vector.load %arg4[%c1_32, %c0_33, %c256_34] : memref<2x1x512xf32, #tpu.memory_space<vmem>>, vector<1x1x256xf32>
    %60 = vector.shape_cast %59 : vector<1x1x256xf32> to vector<1x256xf32>
    %61 = arith.addf %48, %51 : vector<1x256xf32>
    %62 = arith.addf %60, %61 : vector<1x256xf32>
    %c1_35 = arith.constant 1 : index
    %c0_36 = arith.constant 0 : index
    %c256_37 = arith.constant 256 : index
    %63 = vector.load %arg4[%c1_35, %c0_36, %c256_37] : memref<2x1x512xf32, #tpu.memory_space<vmem>>, vector<1x1x256xf32>
    %64 = vector.shape_cast %63 : vector<1x1x256xf32> to vector<1x256xf32>
    %65 = vector.shape_cast %62 : vector<1x256xf32> to vector<1x1x256xf32>
    tpu.vector_store %arg4[%c1_35, %c0_36, %c256_37], %65 {strides = array<i32>} : memref<2x1x512xf32, #tpu.memory_space<vmem>>, vector<1x1x256xf32>,
    return
  }
  func.func @transform_0(%arg0: i32, %arg1: i32) -> (i32, i32, i32) {
    %c0_i32 = arith.constant 0 : i32
    %c0_i32_0 = arith.constant 0 : i32
    %c0_i32_1 = arith.constant 0 : i32
    return %c0_i32, %arg1, %c0_i32_0 : i32, i32, i32
  }
  func.func @transform_1(%arg0: i32, %arg1: i32) -> (i32, i32, i32) {
    %c0_i32 = arith.constant 0 : i32
    %c0_i32_0 = arith.constant 0 : i32
    return %arg0, %arg1, %c0_i32 : i32, i32, i32
  }
  func.func @transform_2(%arg0: i32, %arg1: i32) -> (i32, i32, i32) {
    %c0_i32 = arith.constant 0 : i32
    %c0_i32_0 = arith.constant 0 : i32
    %c0_i32_1 = arith.constant 0 : i32
    return %c0_i32, %arg0, %c0_i32_0 : i32, i32, i32
  }
}

module attributes {stable_mosaic.version = 11 : i64} {
  func.func @_bn_relu_kernel(%arg0: memref<2x1x256xf32, #tpu.memory_space<vmem>>, %arg1: memref<1x1x1xf32, #tpu.memory_space<vmem>>, %arg2: memref<1x1x1xf32, #tpu.memory_space<vmem>>, %arg3: memref<2x1x256xf32, #tpu.memory_space<vmem>>) attributes {dimension_semantics = [], scalar_prefetch = 0 : i64, scratch_operands = 0 : i64, tpu.core_type = #tpu.core_type<tc>} {
    %c0 = arith.constant 0 : index
    %c0_0 = arith.constant 0 : index
    %c0_1 = arith.constant 0 : index
    %0 = vector.load %arg0[%c0, %c0_0, %c0_1] : memref<2x1x256xf32, #tpu.memory_space<vmem>>, vector<2x1x256xf32>
    %c0_2 = arith.constant 0 : index
    %c0_3 = arith.constant 0 : index
    %c0_4 = arith.constant 0 : index
    %1 = vector.load %arg1[%c0_2, %c0_3, %c0_4] : memref<1x1x1xf32, #tpu.memory_space<vmem>>, vector<1x1x1xf32>
    %c0_5 = arith.constant 0 : index
    %c0_6 = arith.constant 0 : index
    %c0_7 = arith.constant 0 : index
    %2 = vector.load %arg2[%c0_5, %c0_6, %c0_7] : memref<1x1x1xf32, #tpu.memory_space<vmem>>, vector<1x1x1xf32>
    %cst = arith.constant dense<0.000000e+00> : vector<2x1xf32>
    %3 = vector.multi_reduction <add>, %0, %cst [2] : vector<2x1x256xf32> to vector<2x1xf32>
    %4 = vector.shape_cast %3 : vector<2x1xf32> to vector<2x1x1xf32>
    %cst_8 = arith.constant dense<0.000000e+00> : vector<1x1xf32>
    %5 = vector.multi_reduction <add>, %4, %cst_8 [0] : vector<2x1x1xf32> to vector<1x1xf32>
    %6 = vector.shape_cast %5 : vector<1x1xf32> to vector<1x1x1xf32>
    %7 = arith.mulf %0, %0 : vector<2x1x256xf32>
    %cst_9 = arith.constant dense<0.000000e+00> : vector<2x1xf32>
    %8 = vector.multi_reduction <add>, %7, %cst_9 [2] : vector<2x1x256xf32> to vector<2x1xf32>
    %9 = vector.shape_cast %8 : vector<2x1xf32> to vector<2x1x1xf32>
    %cst_10 = arith.constant dense<0.000000e+00> : vector<1x1xf32>
    %10 = vector.multi_reduction <add>, %9, %cst_10 [0] : vector<2x1x1xf32> to vector<1x1xf32>
    %11 = vector.shape_cast %10 : vector<1x1xf32> to vector<1x1x1xf32>
    %cst_11 = arith.constant 0.001953125 : f32
    %12 = vector.broadcast %cst_11 : f32 to vector<1x1x1xf32>
    %13 = arith.mulf %6, %12 : vector<1x1x1xf32>
    %cst_12 = arith.constant 0.001953125 : f32
    %14 = vector.broadcast %cst_12 : f32 to vector<1x1x1xf32>
    %15 = arith.mulf %11, %14 : vector<1x1x1xf32>
    %16 = arith.mulf %13, %13 : vector<1x1x1xf32>
    %17 = arith.subf %15, %16 : vector<1x1x1xf32>
    %cst_13 = arith.constant 9.99999974E-6 : f32
    %18 = vector.broadcast %cst_13 : f32 to vector<1x1x1xf32>
    %19 = arith.addf %17, %18 : vector<1x1x1xf32>
    %20 = math.rsqrt %19 : vector<1x1x1xf32>
    %21 = arith.mulf %1, %20 : vector<1x1x1xf32>
    %22 = arith.mulf %13, %21 : vector<1x1x1xf32>
    %23 = arith.subf %2, %22 : vector<1x1x1xf32>
    %24 = vector.broadcast %21 : vector<1x1x1xf32> to vector<2x1x256xf32>
    %25 = arith.mulf %0, %24 : vector<2x1x256xf32>
    %26 = vector.broadcast %23 : vector<1x1x1xf32> to vector<2x1x256xf32>
    %27 = arith.addf %25, %26 : vector<2x1x256xf32>
    %cst_14 = arith.constant 0.000000e+00 : f32
    %28 = vector.broadcast %cst_14 : f32 to vector<2x1x256xf32>
    %29 = arith.maximumf %27, %28 : vector<2x1x256xf32>
    %c0_15 = arith.constant 0 : index
    %c0_16 = arith.constant 0 : index
    %c0_17 = arith.constant 0 : index
    %30 = vector.load %arg3[%c0_15, %c0_16, %c0_17] : memref<2x1x256xf32, #tpu.memory_space<vmem>>, vector<2x1x256xf32>
    tpu.vector_store %arg3[%c0_15, %c0_16, %c0_17], %29 {strides = array<i32>} : memref<2x1x256xf32, #tpu.memory_space<vmem>>, vector<2x1x256xf32>,
    return
  }
}

module attributes {stable_mosaic.version = 11 : i64} {
  func.func @_freq_contract_kernel(%arg0: i32, %arg1: i32, %arg2: memref<2x1x512xf32, #tpu.memory_space<vmem>>, %arg3: memref<1x1x512xf32, #tpu.memory_space<vmem>>, %arg4: memref<2x1x512xf32, #tpu.memory_space<vmem>>) attributes {dimension_semantics = [#tpu.dimension_semantics<parallel>, #tpu.dimension_semantics<arbitrary>], iteration_bounds = array<i64: 1, 1>, scalar_prefetch = 0 : i64, scratch_operands = 0 : i64, tpu.core_type = #tpu.core_type<tc>, window_params = [{transform_indices = @transform_0, window_bounds = array<i64: 2, 1, 512>}, {transform_indices = @transform_1, window_bounds = array<i64: 1, 1, 512>}, {transform_indices = @transform_2, window_bounds = array<i64: 2, 1, 512>}]} {
    %c0_i32 = arith.constant 0 : i32
    %0 = arith.cmpi eq, %arg1, %c0_i32 : i32
    %1 = arith.extui %0 : i1 to i32
    %c0_i32_0 = arith.constant 0 : i32
    %2 = arith.cmpi ne, %1, %c0_i32_0 : i32
    scf.if %2 {
      %cst_38 = arith.constant 0.000000e+00 : f32
      %66 = vector.broadcast %cst_38 : f32 to vector<2x1x512xf32>
      %c0_39 = arith.constant 0 : index
      %c0_40 = arith.constant 0 : index
      %c0_41 = arith.constant 0 : index
      %67 = vector.load %arg4[%c0_39, %c0_40, %c0_41] : memref<2x1x512xf32, #tpu.memory_space<vmem>>, vector<2x1x512xf32>
      tpu.vector_store %arg4[%c0_39, %c0_40, %c0_41], %66 {strides = array<i32>} : memref<2x1x512xf32, #tpu.memory_space<vmem>>, vector<2x1x512xf32>,
    } else {
    }
    %c0 = arith.constant 0 : index
    %c0_1 = arith.constant 0 : index
    %c0_2 = arith.constant 0 : index
    %3 = vector.load %arg3[%c0, %c0_1, %c0_2] : memref<1x1x512xf32, #tpu.memory_space<vmem>>, vector<1x1x512xf32>
    %4 = vector.extract_strided_slice %3 {offsets = [0, 0, 0], sizes = [1, 1, 256], strides = [1, 1, 1]} : vector<1x1x512xf32> to vector<1x1x256xf32>
    %5 = vector.extract_strided_slice %3 {offsets = [0, 0, 256], sizes = [1, 1, 256], strides = [1, 1, 1]} : vector<1x1x512xf32> to vector<1x1x256xf32>
    %c0_3 = arith.constant 0 : index
    %c0_4 = arith.constant 0 : index
    %c0_5 = arith.constant 0 : index
    %6 = vector.load %arg2[%c0_3, %c0_4, %c0_5] : memref<2x1x512xf32, #tpu.memory_space<vmem>>, vector<1x1x512xf32>
    %7 = vector.shape_cast %6 : vector<1x1x512xf32> to vector<1x512xf32>
    %8 = vector.extract_strided_slice %7 {offsets = [0, 0], sizes = [1, 256], strides = [1, 1]} : vector<1x512xf32> to vector<1x256xf32>
    %9 = vector.extract_strided_slice %7 {offsets = [0, 256], sizes = [1, 256], strides = [1, 1]} : vector<1x512xf32> to vector<1x256xf32>
    %10 = vector.shape_cast %8 : vector<1x256xf32> to vector<1x1x256xf32>
    %11 = arith.mulf %4, %10 : vector<1x1x256xf32>
    %cst = arith.constant dense<0.000000e+00> : vector<1x256xf32>
    %12 = vector.multi_reduction <add>, %11, %cst [1] : vector<1x1x256xf32> to vector<1x256xf32>
    %13 = vector.shape_cast %9 : vector<1x256xf32> to vector<1x1x256xf32>
    %14 = arith.mulf %5, %13 : vector<1x1x256xf32>
    %cst_6 = arith.constant dense<0.000000e+00> : vector<1x256xf32>
    %15 = vector.multi_reduction <add>, %14, %cst_6 [1] : vector<1x1x256xf32> to vector<1x256xf32>
    %16 = vector.shape_cast %9 : vector<1x256xf32> to vector<1x1x256xf32>
    %17 = arith.mulf %4, %16 : vector<1x1x256xf32>
    %cst_7 = arith.constant dense<0.000000e+00> : vector<1x256xf32>
    %18 = vector.multi_reduction <add>, %17, %cst_7 [1] : vector<1x1x256xf32> to vector<1x256xf32>
    %19 = vector.shape_cast %8 : vector<1x256xf32> to vector<1x1x256xf32>
    %20 = arith.mulf %5, %19 : vector<1x1x256xf32>
    %cst_8 = arith.constant dense<0.000000e+00> : vector<1x256xf32>
    %21 = vector.multi_reduction <add>, %20, %cst_8 [1] : vector<1x1x256xf32> to vector<1x256xf32>
    %c0_9 = arith.constant 0 : index
    %c0_10 = arith.constant 0 : index
    %c0_11 = arith.constant 0 : index
    %22 = vector.load %arg4[%c0_9, %c0_10, %c0_11] : memref<2x1x512xf32, #tpu.memory_space<vmem>>, vector<1x1x256xf32>
    %23 = vector.shape_cast %22 : vector<1x1x256xf32> to vector<1x256xf32>
    %24 = arith.subf %12, %15 : vector<1x256xf32>
    %25 = arith.addf %23, %24 : vector<1x256xf32>
    %c0_12 = arith.constant 0 : index
    %c0_13 = arith.constant 0 : index
    %c0_14 = arith.constant 0 : index
    %26 = vector.load %arg4[%c0_12, %c0_13, %c0_14] : memref<2x1x512xf32, #tpu.memory_space<vmem>>, vector<1x1x256xf32>
    %27 = vector.shape_cast %26 : vector<1x1x256xf32> to vector<1x256xf32>
    %28 = vector.shape_cast %25 : vector<1x256xf32> to vector<1x1x256xf32>
    tpu.vector_store %arg4[%c0_12, %c0_13, %c0_14], %28 {strides = array<i32>} : memref<2x1x512xf32, #tpu.memory_space<vmem>>, vector<1x1x256xf32>,
    %c0_15 = arith.constant 0 : index
    %c0_16 = arith.constant 0 : index
    %c256 = arith.constant 256 : index
    %29 = vector.load %arg4[%c0_15, %c0_16, %c256] : memref<2x1x512xf32, #tpu.memory_space<vmem>>, vector<1x1x256xf32>
    %30 = vector.shape_cast %29 : vector<1x1x256xf32> to vector<1x256xf32>
    %31 = arith.addf %18, %21 : vector<1x256xf32>
    %32 = arith.addf %30, %31 : vector<1x256xf32>
    %c0_17 = arith.constant 0 : index
    %c0_18 = arith.constant 0 : index
    %c256_19 = arith.constant 256 : index
    %33 = vector.load %arg4[%c0_17, %c0_18, %c256_19] : memref<2x1x512xf32, #tpu.memory_space<vmem>>, vector<1x1x256xf32>
    %34 = vector.shape_cast %33 : vector<1x1x256xf32> to vector<1x256xf32>
    %35 = vector.shape_cast %32 : vector<1x256xf32> to vector<1x1x256xf32>
    tpu.vector_store %arg4[%c0_17, %c0_18, %c256_19], %35 {strides = array<i32>} : memref<2x1x512xf32, #tpu.memory_space<vmem>>, vector<1x1x256xf32>,
    %c1 = arith.constant 1 : index
    %c0_20 = arith.constant 0 : index
    %c0_21 = arith.constant 0 : index
    %36 = vector.load %arg2[%c1, %c0_20, %c0_21] : memref<2x1x512xf32, #tpu.memory_space<vmem>>, vector<1x1x512xf32>
    %37 = vector.shape_cast %36 : vector<1x1x512xf32> to vector<1x512xf32>
    %38 = vector.extract_strided_slice %37 {offsets = [0, 0], sizes = [1, 256], strides = [1, 1]} : vector<1x512xf32> to vector<1x256xf32>
    %39 = vector.extract_strided_slice %37 {offsets = [0, 256], sizes = [1, 256], strides = [1, 1]} : vector<1x512xf32> to vector<1x256xf32>
    %40 = vector.shape_cast %38 : vector<1x256xf32> to vector<1x1x256xf32>
    %41 = arith.mulf %4, %40 : vector<1x1x256xf32>
    %cst_22 = arith.constant dense<0.000000e+00> : vector<1x256xf32>
    %42 = vector.multi_reduction <add>, %41, %cst_22 [1] : vector<1x1x256xf32> to vector<1x256xf32>
    %43 = vector.shape_cast %39 : vector<1x256xf32> to vector<1x1x256xf32>
    %44 = arith.mulf %5, %43 : vector<1x1x256xf32>
    %cst_23 = arith.constant dense<0.000000e+00> : vector<1x256xf32>
    %45 = vector.multi_reduction <add>, %44, %cst_23 [1] : vector<1x1x256xf32> to vector<1x256xf32>
    %46 = vector.shape_cast %39 : vector<1x256xf32> to vector<1x1x256xf32>
    %47 = arith.mulf %4, %46 : vector<1x1x256xf32>
    %cst_24 = arith.constant dense<0.000000e+00> : vector<1x256xf32>
    %48 = vector.multi_reduction <add>, %47, %cst_24 [1] : vector<1x1x256xf32> to vector<1x256xf32>
    %49 = vector.shape_cast %38 : vector<1x256xf32> to vector<1x1x256xf32>
    %50 = arith.mulf %5, %49 : vector<1x1x256xf32>
    %cst_25 = arith.constant dense<0.000000e+00> : vector<1x256xf32>
    %51 = vector.multi_reduction <add>, %50, %cst_25 [1] : vector<1x1x256xf32> to vector<1x256xf32>
    %c1_26 = arith.constant 1 : index
    %c0_27 = arith.constant 0 : index
    %c0_28 = arith.constant 0 : index
    %52 = vector.load %arg4[%c1_26, %c0_27, %c0_28] : memref<2x1x512xf32, #tpu.memory_space<vmem>>, vector<1x1x256xf32>
    %53 = vector.shape_cast %52 : vector<1x1x256xf32> to vector<1x256xf32>
    %54 = arith.subf %42, %45 : vector<1x256xf32>
    %55 = arith.addf %53, %54 : vector<1x256xf32>
    %c1_29 = arith.constant 1 : index
    %c0_30 = arith.constant 0 : index
    %c0_31 = arith.constant 0 : index
    %56 = vector.load %arg4[%c1_29, %c0_30, %c0_31] : memref<2x1x512xf32, #tpu.memory_space<vmem>>, vector<1x1x256xf32>
    %57 = vector.shape_cast %56 : vector<1x1x256xf32> to vector<1x256xf32>
    %58 = vector.shape_cast %55 : vector<1x256xf32> to vector<1x1x256xf32>
    tpu.vector_store %arg4[%c1_29, %c0_30, %c0_31], %58 {strides = array<i32>} : memref<2x1x512xf32, #tpu.memory_space<vmem>>, vector<1x1x256xf32>,
    %c1_32 = arith.constant 1 : index
    %c0_33 = arith.constant 0 : index
    %c256_34 = arith.constant 256 : index
    %59 = vector.load %arg4[%c1_32, %c0_33, %c256_34] : memref<2x1x512xf32, #tpu.memory_space<vmem>>, vector<1x1x256xf32>
    %60 = vector.shape_cast %59 : vector<1x1x256xf32> to vector<1x256xf32>
    %61 = arith.addf %48, %51 : vector<1x256xf32>
    %62 = arith.addf %60, %61 : vector<1x256xf32>
    %c1_35 = arith.constant 1 : index
    %c0_36 = arith.constant 0 : index
    %c256_37 = arith.constant 256 : index
    %63 = vector.load %arg4[%c1_35, %c0_36, %c256_37] : memref<2x1x512xf32, #tpu.memory_space<vmem>>, vector<1x1x256xf32>
    %64 = vector.shape_cast %63 : vector<1x1x256xf32> to vector<1x256xf32>
    %65 = vector.shape_cast %62 : vector<1x256xf32> to vector<1x1x256xf32>
    tpu.vector_store %arg4[%c1_35, %c0_36, %c256_37], %65 {strides = array<i32>} : memref<2x1x512xf32, #tpu.memory_space<vmem>>, vector<1x1x256xf32>,
    return
  }
  func.func @transform_0(%arg0: i32, %arg1: i32) -> (i32, i32, i32) {
    %c0_i32 = arith.constant 0 : i32
    %c0_i32_0 = arith.constant 0 : i32
    %c0_i32_1 = arith.constant 0 : i32
    return %c0_i32, %arg1, %c0_i32_0 : i32, i32, i32
  }
  func.func @transform_1(%arg0: i32, %arg1: i32) -> (i32, i32, i32) {
    %c0_i32 = arith.constant 0 : i32
    %c0_i32_0 = arith.constant 0 : i32
    return %arg0, %arg1, %c0_i32 : i32, i32, i32
  }
  func.func @transform_2(%arg0: i32, %arg1: i32) -> (i32, i32, i32) {
    %c0_i32 = arith.constant 0 : i32
    %c0_i32_0 = arith.constant 0 : i32
    %c0_i32_1 = arith.constant 0 : i32
    return %c0_i32, %arg0, %c0_i32_0 : i32, i32, i32
  }
}

module attributes {stable_mosaic.version = 11 : i64} {
  func.func @_bn_add_relu_kernel(%arg0: memref<2x1x256xf32, #tpu.memory_space<vmem>>, %arg1: memref<2x1x256xf32, #tpu.memory_space<vmem>>, %arg2: memref<1x1x1xf32, #tpu.memory_space<vmem>>, %arg3: memref<1x1x1xf32, #tpu.memory_space<vmem>>, %arg4: memref<2x1x256xf32, #tpu.memory_space<vmem>>) attributes {dimension_semantics = [], scalar_prefetch = 0 : i64, scratch_operands = 0 : i64, tpu.core_type = #tpu.core_type<tc>} {
    %c0 = arith.constant 0 : index
    %c0_0 = arith.constant 0 : index
    %c0_1 = arith.constant 0 : index
    %0 = vector.load %arg0[%c0, %c0_0, %c0_1] : memref<2x1x256xf32, #tpu.memory_space<vmem>>, vector<2x1x256xf32>
    %c0_2 = arith.constant 0 : index
    %c0_3 = arith.constant 0 : index
    %c0_4 = arith.constant 0 : index
    %1 = vector.load %arg2[%c0_2, %c0_3, %c0_4] : memref<1x1x1xf32, #tpu.memory_space<vmem>>, vector<1x1x1xf32>
    %c0_5 = arith.constant 0 : index
    %c0_6 = arith.constant 0 : index
    %c0_7 = arith.constant 0 : index
    %2 = vector.load %arg3[%c0_5, %c0_6, %c0_7] : memref<1x1x1xf32, #tpu.memory_space<vmem>>, vector<1x1x1xf32>
    %cst = arith.constant dense<0.000000e+00> : vector<2x1xf32>
    %3 = vector.multi_reduction <add>, %0, %cst [2] : vector<2x1x256xf32> to vector<2x1xf32>
    %4 = vector.shape_cast %3 : vector<2x1xf32> to vector<2x1x1xf32>
    %cst_8 = arith.constant dense<0.000000e+00> : vector<1x1xf32>
    %5 = vector.multi_reduction <add>, %4, %cst_8 [0] : vector<2x1x1xf32> to vector<1x1xf32>
    %6 = vector.shape_cast %5 : vector<1x1xf32> to vector<1x1x1xf32>
    %7 = arith.mulf %0, %0 : vector<2x1x256xf32>
    %cst_9 = arith.constant dense<0.000000e+00> : vector<2x1xf32>
    %8 = vector.multi_reduction <add>, %7, %cst_9 [2] : vector<2x1x256xf32> to vector<2x1xf32>
    %9 = vector.shape_cast %8 : vector<2x1xf32> to vector<2x1x1xf32>
    %cst_10 = arith.constant dense<0.000000e+00> : vector<1x1xf32>
    %10 = vector.multi_reduction <add>, %9, %cst_10 [0] : vector<2x1x1xf32> to vector<1x1xf32>
    %11 = vector.shape_cast %10 : vector<1x1xf32> to vector<1x1x1xf32>
    %cst_11 = arith.constant 0.001953125 : f32
    %12 = vector.broadcast %cst_11 : f32 to vector<1x1x1xf32>
    %13 = arith.mulf %6, %12 : vector<1x1x1xf32>
    %cst_12 = arith.constant 0.001953125 : f32
    %14 = vector.broadcast %cst_12 : f32 to vector<1x1x1xf32>
    %15 = arith.mulf %11, %14 : vector<1x1x1xf32>
    %16 = arith.mulf %13, %13 : vector<1x1x1xf32>
    %17 = arith.subf %15, %16 : vector<1x1x1xf32>
    %cst_13 = arith.constant 9.99999974E-6 : f32
    %18 = vector.broadcast %cst_13 : f32 to vector<1x1x1xf32>
    %19 = arith.addf %17, %18 : vector<1x1x1xf32>
    %20 = math.rsqrt %19 : vector<1x1x1xf32>
    %21 = arith.mulf %1, %20 : vector<1x1x1xf32>
    %22 = arith.mulf %13, %21 : vector<1x1x1xf32>
    %23 = arith.subf %2, %22 : vector<1x1x1xf32>
    %24 = vector.broadcast %21 : vector<1x1x1xf32> to vector<2x1x256xf32>
    %25 = arith.mulf %0, %24 : vector<2x1x256xf32>
    %26 = vector.broadcast %23 : vector<1x1x1xf32> to vector<2x1x256xf32>
    %27 = arith.addf %25, %26 : vector<2x1x256xf32>
    %c0_14 = arith.constant 0 : index
    %c0_15 = arith.constant 0 : index
    %c0_16 = arith.constant 0 : index
    %28 = vector.load %arg1[%c0_14, %c0_15, %c0_16] : memref<2x1x256xf32, #tpu.memory_space<vmem>>, vector<2x1x256xf32>
    %29 = arith.addf %27, %28 : vector<2x1x256xf32>
    %cst_17 = arith.constant 0.000000e+00 : f32
    %30 = vector.broadcast %cst_17 : f32 to vector<2x1x256xf32>
    %31 = arith.maximumf %29, %30 : vector<2x1x256xf32>
    %c0_18 = arith.constant 0 : index
    %c0_19 = arith.constant 0 : index
    %c0_20 = arith.constant 0 : index
    %32 = vector.load %arg4[%c0_18, %c0_19, %c0_20] : memref<2x1x256xf32, #tpu.memory_space<vmem>>, vector<2x1x256xf32>
    tpu.vector_store %arg4[%c0_18, %c0_19, %c0_20], %31 {strides = array<i32>} : memref<2x1x256xf32, #tpu.memory_space<vmem>>, vector<2x1x256xf32>,
    return
  }
}

module attributes {stable_mosaic.version = 11 : i64} {
  func.func @_skip_conv_kernel(%arg0: memref<1x8xf32, #tpu.memory_space<vmem>>, %arg1: memref<8x512xf32, #tpu.memory_space<vmem>>, %arg2: memref<1x1xf32, #tpu.memory_space<vmem>>, %arg3: memref<1x512xf32, #tpu.memory_space<vmem>>) attributes {dimension_semantics = [], scalar_prefetch = 0 : i64, scratch_operands = 0 : i64, tpu.core_type = #tpu.core_type<tc>} {
    %c0 = arith.constant 0 : index
    %c0_0 = arith.constant 0 : index
    %0 = vector.load %arg0[%c0, %c0_0] : memref<1x8xf32, #tpu.memory_space<vmem>>, vector<1x8xf32>
    %c0_1 = arith.constant 0 : index
    %c0_2 = arith.constant 0 : index
    %1 = vector.load %arg1[%c0_1, %c0_2] : memref<8x512xf32, #tpu.memory_space<vmem>>, vector<8x512xf32>
    %cst = arith.constant dense<0.000000e+00> : vector<1x512xf32>
    %2 = tpu.matmul %0, %1, %cst {dimension_numbers = #tpu.dot_dimension_numbers<[1], [0], [0], [1], [0, 0, 1, 1], [], []>} : vector<1x8xf32>, vector<8x512xf32>, vector<1x512xf32> -> vector<1x512xf32>
    %c0_3 = arith.constant 0 : index
    %c0_4 = arith.constant 0 : index
    %3 = vector.load %arg2[%c0_3, %c0_4] : memref<1x1xf32, #tpu.memory_space<vmem>>, vector<1x1xf32>
    %4 = vector.broadcast %3 : vector<1x1xf32> to vector<1x512xf32>
    %5 = arith.addf %2, %4 : vector<1x512xf32>
    %c0_5 = arith.constant 0 : index
    %c0_6 = arith.constant 0 : index
    %6 = vector.load %arg3[%c0_5, %c0_6] : memref<1x512xf32, #tpu.memory_space<vmem>>, vector<1x512xf32>
    tpu.vector_store %arg3[%c0_5, %c0_6], %5 {strides = array<i32>} : memref<1x512xf32, #tpu.memory_space<vmem>>, vector<1x512xf32>,
    return
  }
}

</mosaic_0001>

<llo_original>
// kernel: reverse.13
$region0: #{reverse.13}
  %s0 = inlined_call_operand.vmem [shape: f32[2,4,16,7], index: 0, kind: input, shape index: {}]
  %s1 = inlined_call_operand.vmem [shape: f32[2,4,16,7], index: 1, kind: output, shape index: {}]
  $region1: #{reverse.13} parent=0
    #allocation0 [shape = 'u8[65536]{0}', space=vmem, size = 0x10000, scoped, tag = 'operand span for operand 0']
    #allocation1 [shape = 'u8[32768]{0}', space=vmem, size = 0x8000, scoped, tag = 'operand span for operand 1']
    %s2 = scalar_lea.vmem [#allocation0], 8
    // Predicated region
    $region2: #{reverse.13} parent=1 // pred_check
      _
    $region3: #{reverse.13} parent=1 // pred_check_branch
      %4 = sbr.rel (0) target = $region5
    $region4: #{reverse.13} parent=1 // pred_region
      // Predicated region
      $region6: #{reverse.13} parent=4 // pred_check
        _
      $region7: #{reverse.13} parent=4 // pred_check_branch
        %6 = sbr.rel (0) target = $region9
      $region8: #{reverse.13} parent=4 // pred_region
        // Predicated region
        $region21: #{reverse.13} parent=8 // pred_check
          _
        $region22: #{reverse.13} parent=8 // pred_check_branch
          %36 = sbr.rel (0) target = $region24
        $region23: #{reverse.13} parent=8 // pred_region
          loop: start=0, step=1, limit=1
          $region25: #{reverse.13} parent=23 // loop_pre_header
            _
          $region26: #{reverse.13} parent=23 // loop_header
            %s38 = sphi 0, %s42
            %p39 = scmp.ge.s32.totalorder %s38, 1
            %s43 = sphi %s0, %s0
            %s44 = sphi %s2, %s2
          $region27: #{reverse.13} parent=23 // loop_header_branch
            %41 = sbr.rel (%p39) target = $region31
          $region28: #{reverse.13} parent=23 // loop_body
            %v45 = vld [vmem:[%s43] sm:$0xff]
            %46 = vst [vmem:[%s44] sm:$0xff] %v45
            %v47 = vld [vmem:[%s43 + $0x8] sm:$0xff]
            %48 = vst [vmem:[%s44 + $0x10] sm:$0xff] %v47
            %v49 = vld [vmem:[%s43 + $0x10] sm:$0xff]
            %50 = vst [vmem:[%s44 + $0x20] sm:$0xff] %v49
            %v51 = vld [vmem:[%s43 + $0x18] sm:$0xff]
            %52 = vst [vmem:[%s44 + $0x30] sm:$0xff] %v51
            %v53 = vld [vmem:[%s43 + $0x20] sm:$0xff]
            %54 = vst [vmem:[%s44 + $0x40] sm:$0xff] %v53
            %v55 = vld [vmem:[%s43 + $0x28] sm:$0xff]
            %56 = vst [vmem:[%s44 + $0x50] sm:$0xff] %v55
            %v57 = vld [vmem:[%s43 + $0x30] sm:$0xff]
            %58 = vst [vmem:[%s44 + $0x60] sm:$0xff] %v57
            %v59 = vld [vmem:[%s43 + $0x38] sm:$0xff]
            %60 = vst [vmem:[%s44 + $0x70] sm:$0xff] %v59
          $region29: #{reverse.13} parent=23 // loop_footer
            %s42 = sadd.s32 1, %s38
          $region30: #{reverse.13} parent=23 // loop_footer_branch
            %37 = sbr.rel target = $region26
          $region31: #{reverse.13} parent=23 // loop_exit
            _
        $region24: #{reverse.13} parent=8 // pred_fallthru
          _
        // Predicated region
        $region32: #{reverse.13} parent=8 // pred_check
          _
        $region33: #{reverse.13} parent=8 // pred_check_branch
          %62 = sbr.rel target = $region35
        $region34: #{reverse.13} parent=8 // pred_region
          _
        $region35: #{reverse.13} parent=8 // pred_fallthru
          _
      $region9: #{reverse.13} parent=4 // pred_fallthru
        _
      // Predicated region
      $region10: #{reverse.13} parent=4 // pred_check
        _
      $region11: #{reverse.13} parent=4 // pred_check_branch
        %8 = sbr.rel target = $region13
      $region12: #{reverse.13} parent=4 // pred_region
        %s10 = ssub.s32 256, 1
        loop: start=0, step=1, limit=1
        $region14: #{reverse.13} parent=12 // loop_pre_header
          _
        $region15: #{reverse.13} parent=12 // loop_header
          %s12 = sphi 0, %s16
          %p13 = scmp.ge.s32.totalorder %s12, 1
          %s17 = sphi %s0, %s0
          %s18 = sphi %s2, %s2
        $region16: #{reverse.13} parent=12 // loop_header_branch
          %15 = sbr.rel (%p13) target = $region20
        $region17: #{reverse.13} parent=12 // loop_body
          %v19 = vld [vmem:[%s17] sm:%s10]
          %20 = vst [vmem:[%s18] sm:%s10] %v19
          %v21 = vld [vmem:[%s17 + $0x8] sm:%s10]
          %22 = vst [vmem:[%s18 + $0x10] sm:%s10] %v21
          %v23 = vld [vmem:[%s17 + $0x10] sm:%s10]
          %24 = vst [vmem:[%s18 + $0x20] sm:%s10] %v23
          %v25 = vld [vmem:[%s17 + $0x18] sm:%s10]
          %26 = vst [vmem:[%s18 + $0x30] sm:%s10] %v25
          %v27 = vld [vmem:[%s17 + $0x20] sm:%s10]
          %28 = vst [vmem:[%s18 + $0x40] sm:%s10] %v27
          %v29 = vld [vmem:[%s17 + $0x28] sm:%s10]
          %30 = vst [vmem:[%s18 + $0x50] sm:%s10] %v29
          %v31 = vld [vmem:[%s17 + $0x30] sm:%s10]
          %32 = vst [vmem:[%s18 + $0x60] sm:%s10] %v31
          %v33 = vld [vmem:[%s17 + $0x38] sm:%s10]
          %34 = vst [vmem:[%s18 + $0x70] sm:%s10] %v33
        $region18: #{reverse.13} parent=12 // loop_footer
          %s16 = sadd.s32 1, %s12
        $region19: #{reverse.13} parent=12 // loop_footer_branch
          %11 = sbr.rel target = $region15
        $region20: #{reverse.13} parent=12 // loop_exit
          _
      $region13: #{reverse.13} parent=4 // pred_fallthru
        _
    $region5: #{reverse.13} parent=1 // pred_fallthru
      _
    %63 = vnop
    %s64 = scalar_lea.vmem [#allocation0], 7
    %v65 = vld [vmem:[%s64] ss:$-1 sm:$0xff]
    %v66 = vrot.slane %v65, 1
    %67 = vst [vmem:[#allocation1] sm:$0xff] %v66
    %s68 = scalar_lea.vmem [#allocation0], 8
    %s69 = scalar_lea.vmem %s68, 7 [#allocation0]
    %v70 = vld [vmem:[%s69] ss:$-1 sm:$0xff]
    %v71 = vrot.slane %v70, 1
    %v72 = vlaneseq
    %v73 = vshrl.u32 %v72, 7
    %vm74 = vcmp.lt.s32.totalorder %v73, 7
    %75 = vst.msk [vmem:[#allocation1] sm:$0xff] %vm74, %v71
    %s76 = scalar_lea.vmem [#allocation1], 8
    %s77 = scalar_lea.vmem [#allocation0], 16
    %s78 = scalar_lea.vmem %s77, 7 [#allocation0]
    %v79 = vld [vmem:[%s78] ss:$-1 sm:$0xff]
    %v80 = vrot.slane %v79, 1
    %81 = vst [vmem:[%s76] sm:$0xff] %v80
    %s82 = scalar_lea.vmem %s77, 8 [#allocation0]
    %s83 = scalar_lea.vmem %s82, 7 [#allocation0]
    %v84 = vld [vmem:[%s83] ss:$-1 sm:$0xff]
    %v85 = vrot.slane %v84, 1
    %v86 = vlaneseq
    %v87 = vshrl.u32 %v86, 7
    %vm88 = vcmp.lt.s32.totalorder %v87, 7
    %89 = vst.msk [vmem:[%s76] sm:$0xff] %vm88, %v85
    %s90 = scalar_lea.vmem [#allocation1], 16
    %s91 = scalar_lea.vmem [#allocation0], 32
    %s92 = scalar_lea.vmem %s91, 7 [#allocation0]
    %v93 = vld [vmem:[%s92] ss:$-1 sm:$0xff]
    %v94 = vrot.slane %v93, 1
    %95 = vst [vmem:[%s90] sm:$0xff] %v94
    %s96 = scalar_lea.vmem %s91, 8 [#allocation0]
    %s97 = scalar_lea.vmem %s96, 7 [#allocation0]
    %v98 = vld [vmem:[%s97] ss:$-1 sm:$0xff]
    %v99 = vrot.slane %v98, 1
    %v100 = vlaneseq
    %v101 = vshrl.u32 %v100, 7
    %vm102 = vcmp.lt.s32.totalorder %v101, 7
    %103 = vst.msk [vmem:[%s90] sm:$0xff] %vm102, %v99
    %s104 = scalar_lea.vmem [#allocation1], 24
    %s105 = scalar_lea.vmem [#allocation0], 48
    %s106 = scalar_lea.vmem %s105, 7 [#allocation0]
    %v107 = vld [vmem:[%s106] ss:$-1 sm:$0xff]
    %v108 = vrot.slane %v107, 1
    %109 = vst [vmem:[%s104] sm:$0xff] %v108
    %s110 = scalar_lea.vmem %s105, 8 [#allocation0]
    %s111 = scalar_lea.vmem %s110, 7 [#allocation0]
    %v112 = vld [vmem:[%s111] ss:$-1 sm:$0xff]
    %v113 = vrot.slane %v112, 1
    %v114 = vlaneseq
    %v115 = vshrl.u32 %v114, 7
    %vm116 = vcmp.lt.s32.totalorder %v115, 7
    %117 = vst.msk [vmem:[%s104] sm:$0xff] %vm116, %v113
    %s118 = scalar_lea.vmem [#allocation1], 32
    %s119 = scalar_lea.vmem [#allocation0], 64
    %s120 = scalar_lea.vmem %s119, 7 [#allocation0]
    %v121 = vld [vmem:[%s120] ss:$-1 sm:$0xff]
    %v122 = vrot.slane %v121, 1
    %123 = vst [vmem:[%s118] sm:$0xff] %v122
    %s124 = scalar_lea.vmem %s119, 8 [#allocation0]
    %s125 = scalar_lea.vmem %s124, 7 [#allocation0]
    %v126 = vld [vmem:[%s125] ss:$-1 sm:$0xff]
    %v127 = vrot.slane %v126, 1
    %v128 = vlaneseq
    %v129 = vshrl.u32 %v128, 7
    %vm130 = vcmp.lt.s32.totalorder %v129, 7
    %131 = vst.msk [vmem:[%s118] sm:$0xff] %vm130, %v127
    %s132 = scalar_lea.vmem [#allocation1], 40
    %s133 = scalar_lea.vmem [#allocation0], 80
    %s134 = scalar_lea.vmem %s133, 7 [#allocation0]
    %v135 = vld [vmem:[%s134] ss:$-1 sm:$0xff]
    %v136 = vrot.slane %v135, 1
    %137 = vst [vmem:[%s132] sm:$0xff] %v136
    %s138 = scalar_lea.vmem %s133, 8 [#allocation0]
    %s139 = scalar_lea.vmem %s138, 7 [#allocation0]
    %v140 = vld [vmem:[%s139] ss:$-1 sm:$0xff]
    %v141 = vrot.slane %v140, 1
    %v142 = vlaneseq
    %v143 = vshrl.u32 %v142, 7
    %vm144 = vcmp.lt.s32.totalorder %v143, 7
    %145 = vst.msk [vmem:[%s132] sm:$0xff] %vm144, %v141
    %s146 = scalar_lea.vmem [#allocation1], 48
    %s147 = scalar_lea.vmem [#allocation0], 96
    %s148 = scalar_lea.vmem %s147, 7 [#allocation0]
    %v149 = vld [vmem:[%s148] ss:$-1 sm:$0xff]
    %v150 = vrot.slane %v149, 1
    %151 = vst [vmem:[%s146] sm:$0xff] %v150
    %s152 = scalar_lea.vmem %s147, 8 [#allocation0]
    %s153 = scalar_lea.vmem %s152, 7 [#allocation0]
    %v154 = vld [vmem:[%s153] ss:$-1 sm:$0xff]
    %v155 = vrot.slane %v154, 1
    %v156 = vlaneseq
    %v157 = vshrl.u32 %v156, 7
    %vm158 = vcmp.lt.s32.totalorder %v157, 7
    %159 = vst.msk [vmem:[%s146] sm:$0xff] %vm158, %v155
    %s160 = scalar_lea.vmem [#allocation1], 56
    %s161 = scalar_lea.vmem [#allocation0], 112
    %s162 = scalar_lea.vmem %s161, 7 [#allocation0]
    %v163 = vld [vmem:[%s162] ss:$-1 sm:$0xff]
    %v164 = vrot.slane %v163, 1
    %165 = vst [vmem:[%s160] sm:$0xff] %v164
    %s166 = scalar_lea.vmem %s161, 8 [#allocation0]
    %s167 = scalar_lea.vmem %s166, 7 [#allocation0]
    %v168 = vld [vmem:[%s167] ss:$-1 sm:$0xff]
    %v169 = vrot.slane %v168, 1
    %v170 = vlaneseq
    %v171 = vshrl.u32 %v170, 7
    %vm172 = vcmp.lt.s32.totalorder %v171, 7
    %173 = vst.msk [vmem:[%s160] sm:$0xff] %vm172, %v169
    // Predicated region
    $region36: #{reverse.13} parent=1 // pred_check
      _
    $region37: #{reverse.13} parent=1 // pred_check_branch
      %175 = sbr.rel (0) target = $region39
    $region38: #{reverse.13} parent=1 // pred_region
      // Predicated region
      $region40: #{reverse.13} parent=38 // pred_check
        _
      $region41: #{reverse.13} parent=38 // pred_check_branch
        %177 = sbr.rel (0) target = $region43
      $region42: #{reverse.13} parent=38 // pred_region
        // Predicated region
        $region55: #{reverse.13} parent=42 // pred_check
          _
        $region56: #{reverse.13} parent=42 // pred_check_branch
          %207 = sbr.rel (0) target = $region58
        $region57: #{reverse.13} parent=42 // pred_region
          loop: start=0, step=1, limit=1
          $region59: #{reverse.13} parent=57 // loop_pre_header
            _
          $region60: #{reverse.13} parent=57 // loop_header
            %s209 = sphi 0, %s213
            %p210 = scmp.ge.s32.totalorder %s209, 1
            %s214 = sphi [#allocation1], [#allocation1]
            %s215 = sphi %s1, %s1
          $region61: #{reverse.13} parent=57 // loop_header_branch
            %212 = sbr.rel (%p210) target = $region65
          $region62: #{reverse.13} parent=57 // loop_body
            %v216 = vld [vmem:[%s214] sm:$0xff]
            %217 = vst [vmem:[%s215] sm:$0xff] %v216
            %v218 = vld [vmem:[%s214 + $0x8] sm:$0xff]
            %219 = vst [vmem:[%s215 + $0x8] sm:$0xff] %v218
            %v220 = vld [vmem:[%s214 + $0x10] sm:$0xff]
            %221 = vst [vmem:[%s215 + $0x10] sm:$0xff] %v220
            %v222 = vld [vmem:[%s214 + $0x18] sm:$0xff]
            %223 = vst [vmem:[%s215 + $0x18] sm:$0xff] %v222
            %v224 = vld [vmem:[%s214 + $0x20] sm:$0xff]
            %225 = vst [vmem:[%s215 + $0x20] sm:$0xff] %v224
            %v226 = vld [vmem:[%s214 + $0x28] sm:$0xff]
            %227 = vst [vmem:[%s215 + $0x28] sm:$0xff] %v226
            %v228 = vld [vmem:[%s214 + $0x30] sm:$0xff]
            %229 = vst [vmem:[%s215 + $0x30] sm:$0xff] %v228
            %v230 = vld [vmem:[%s214 + $0x38] sm:$0xff]
            %231 = vst [vmem:[%s215 + $0x38] sm:$0xff] %v230
          $region63: #{reverse.13} parent=57 // loop_footer
            %s213 = sadd.s32 1, %s209
          $region64: #{reverse.13} parent=57 // loop_footer_branch
            %208 = sbr.rel target = $region60
          $region65: #{reverse.13} parent=57 // loop_exit
            _
        $region58: #{reverse.13} parent=42 // pred_fallthru
          _
        // Predicated region
        $region66: #{reverse.13} parent=42 // pred_check
          _
        $region67: #{reverse.13} parent=42 // pred_check_branch
          %233 = sbr.rel target = $region69
        $region68: #{reverse.13} parent=42 // pred_region
          _
        $region69: #{reverse.13} parent=42 // pred_fallthru
          _
      $region43: #{reverse.13} parent=38 // pred_fallthru
        _
      // Predicated region
      $region44: #{reverse.13} parent=38 // pred_check
        _
      $region45: #{reverse.13} parent=38 // pred_check_branch
        %179 = sbr.rel target = $region47
      $region46: #{reverse.13} parent=38 // pred_region
        %s181 = ssub.s32 256, 1
        loop: start=0, step=1, limit=1
        $region48: #{reverse.13} parent=46 // loop_pre_header
          _
        $region49: #{reverse.13} parent=46 // loop_header
          %s183 = sphi 0, %s187
          %p184 = scmp.ge.s32.totalorder %s183, 1
          %s188 = sphi [#allocation1], [#allocation1]
          %s189 = sphi %s1, %s1
        $region50: #{reverse.13} parent=46 // loop_header_branch
          %186 = sbr.rel (%p184) target = $region54
        $region51: #{reverse.13} parent=46 // loop_body
          %v190 = vld [vmem:[%s188] sm:%s181]
          %191 = vst [vmem:[%s189] sm:%s181] %v190
          %v192 = vld [vmem:[%s188 + $0x8] sm:%s181]
          %193 = vst [vmem:[%s189 + $0x8] sm:%s181] %v192
          %v194 = vld [vmem:[%s188 + $0x10] sm:%s181]
          %195 = vst [vmem:[%s189 + $0x10] sm:%s181] %v194
          %v196 = vld [vmem:[%s188 + $0x18] sm:%s181]
          %197 = vst [vmem:[%s189 + $0x18] sm:%s181] %v196
          %v198 = vld [vmem:[%s188 + $0x20] sm:%s181]
          %199 = vst [vmem:[%s189 + $0x20] sm:%s181] %v198
          %v200 = vld [vmem:[%s188 + $0x28] sm:%s181]
          %201 = vst [vmem:[%s189 + $0x28] sm:%s181] %v200
          %v202 = vld [vmem:[%s188 + $0x30] sm:%s181]
          %203 = vst [vmem:[%s189 + $0x30] sm:%s181] %v202
          %v204 = vld [vmem:[%s188 + $0x38] sm:%s181]
          %205 = vst [vmem:[%s189 + $0x38] sm:%s181] %v204
        $region52: #{reverse.13} parent=46 // loop_footer
          %s187 = sadd.s32 1, %s183
        $region53: #{reverse.13} parent=46 // loop_footer_branch
          %182 = sbr.rel target = $region49
        $region54: #{reverse.13} parent=46 // loop_exit
          _
      $region47: #{reverse.13} parent=38 // pred_fallthru
        _
    $region39: #{reverse.13} parent=1 // pred_fallthru
      _
    %234 = vnop

// kernel: _lambda_.15
$region0: #{_lambda_.15}
  #allocation0 [shape = 'u32[]', space=smem, size = 0x4, offset = 0x4, fixed_abs, tag = 'smem constant byte address 0x4 - core index']
  #allocation1 [shape = 'u32[144,128]{1,0:T(1,128)}', space=vmem, size = 0x12000, scoped, tag = 'internal scratch']
  %s0 = inlined_call_operand.vmem [shape: f32[2,1,512], index: 0, kind: input, shape index: {}]
  %s1 = inlined_call_operand.vmem [shape: f32[4,1,512], index: 1, kind: input, shape index: {}]
  %s2 = inlined_call_operand.vmem [shape: f32[2,4,512], index: 2, kind: output, shape index: {}]
  %s3 = sld [smem:[#allocation0]]
  $region22: #{_lambda_.15} parent=0
    _
  %s5 = ssub.s32 1, %s3
  %s6 = scalar_select 0, %s5, %s3
  // Predicated region
  $region2: #{_lambda_.15} parent=0 // pred_check
    _
  $region3: #{_lambda_.15} parent=0 // pred_check_branch
    %8 = sbr.rel (0) target = $region5
  $region4: #{_lambda_.15} parent=0 // pred_region
    _
  $region5: #{_lambda_.15} parent=0 // pred_fallthru
    _
  // Predicated region
  $region6: #{_lambda_.15} parent=0 // pred_check
    _
  $region7: #{_lambda_.15} parent=0 // pred_check_branch
    %10 = sbr.rel (0) target = $region9
  $region8: #{_lambda_.15} parent=0 // pred_region
    _
  $region9: #{_lambda_.15} parent=0 // pred_fallthru
    _
  %p11 = scmp.eq.s32.totalorder 0, 0
  // Predicated region
  $region10: #{_lambda_.15} parent=0 // pred_check
    %p12 = pneg %p11
  $region11: #{_lambda_.15} parent=0 // pred_check_branch
    %14 = sbr.rel (%p12) target = $region13
  $region12: #{_lambda_.15} parent=0 // pred_region
    %15 = vst [vmem:[%s2] sm:$0xff] 0.0
    %16 = vst [vmem:[%s2 + $0x8] sm:$0xff] 0.0
    %17 = vst [vmem:[%s2 + $0x10] sm:$0xff] 0.0
    %18 = vst [vmem:[%s2 + $0x18] sm:$0xff] 0.0
  $region13: #{_lambda_.15} parent=0 // pred_fallthru
    _
  %v19 = vld [vmem:[%s1] sm:$0xf]
  %v20 = vld [vmem:[%s1 + $0x4] sm:$0xf]
  %v21 = vld [vmem:[%s1 + $0x8] sm:$0xf]
  %v22 = vld [vmem:[%s1 + $0xc] sm:$0xf]
  %v23 = vld [vmem:[%s0] sm:$0xf]
  %v24 = vmul.f32 %v19, %v23
  %v25 = vmul.f32 %v20, %v23
  %v26 = vmul.f32 %v21, %v23
  %v27 = vmul.f32 %v22, %v23
  %v28 = vadd.f32 %v24, 0.0
  %v29 = vadd.f32 %v25, 0.0
  %v30 = vadd.f32 %v26, 0.0
  %v31 = vadd.f32 %v27, 0.0
  %v33 = vrot.slane %v23, 2
  %v39 = vrot.slane %v19, 2
  %v40 = vrot.slane %v20, 2
  %v41 = vrot.slane %v21, 2
  %v42 = vrot.slane %v22, 2
  %v47 = vmul.f32 %v39, %v33
  %v48 = vmul.f32 %v40, %v33
  %v49 = vmul.f32 %v41, %v33
  %v50 = vmul.f32 %v42, %v33
  %v51 = vadd.f32 %v47, 0.0
  %v52 = vadd.f32 %v48, 0.0
  %v53 = vadd.f32 %v49, 0.0
  %v54 = vadd.f32 %v50, 0.0
  %v55 = vmul.f32 %v19, %v33
  %v56 = vmul.f32 %v20, %v33
  %v57 = vmul.f32 %v21, %v33
  %v58 = vmul.f32 %v22, %v33
  %v59 = vadd.f32 %v55, 0.0
  %v60 = vadd.f32 %v56, 0.0
  %v61 = vadd.f32 %v57, 0.0
  %v62 = vadd.f32 %v58, 0.0
  %v63 = vmul.f32 %v39, %v23
  %v64 = vmul.f32 %v40, %v23
  %v65 = vmul.f32 %v41, %v23
  %v66 = vmul.f32 %v42, %v23
  %v67 = vadd.f32 %v63, 0.0
  %v68 = vadd.f32 %v64, 0.0
  %v69 = vadd.f32 %v65, 0.0
  %v70 = vadd.f32 %v66, 0.0
  %v71 = vld [vmem:[%s2] sm:$0xff]
  %v72 = vsub.f32 %v28, %v51
  %v73 = vsub.f32 %v29, %v52
  %v74 = vsub.f32 %v30, %v53
  %v75 = vsub.f32 %v31, %v54
  %v80 = vcombine.low %v72, %v74
  %v81 = vcombine.low %v73, %v75
  %v83 = vunpack.c.l.s4 1935823168
  %v84 = vunpack.c.0.s8 %v83
  %v85 = vlaneseq
  %v86 = vshrl.u32 %v85, 7
  %v87 = vsub.s32 %v84, %v86
  %v88 = vrot.slane %v80, %v87
  %v90 = vunpack.c.l.s4 1935823168
  %v91 = vunpack.c.0.s8 %v90
  %v92 = vlaneseq
  %v93 = vshrl.u32 %v92, 7
  %v94 = vsub.s32 %v91, %v93
  %v95 = vrot.slane %v81, %v94
  %v96 = vcombine.low %v88, %v95
  %v98 = vunpack.c.l.s4 1935823168
  %v99 = vunpack.c.0.s8 %v98
  %v100 = vlaneseq
  %v101 = vshrl.u32 %v100, 7
  %v102 = vsub.s32 %v99, %v101
  %v103 = vrot.slane %v96, %v102
  %v105 = vadd.f32 %v71, %v103
  %106 = vst [vmem:[%s2] sm:$0xff] %v105
  %v107 = vld [vmem:[%s2 + $0x8] sm:$0xff]
  %v108 = vadd.f32 %v59, %v67
  %v109 = vadd.f32 %v60, %v68
  %v110 = vadd.f32 %v61, %v69
  %v111 = vadd.f32 %v62, %v70
  %v116 = vcombine.low %v108, %v110
  %v117 = vcombine.low %v109, %v111
  %v119 = vunpack.c.l.s4 1935823168
  %v120 = vunpack.c.0.s8 %v119
  %v121 = vlaneseq
  %v122 = vshrl.u32 %v121, 7
  %v123 = vsub.s32 %v120, %v122
  %v124 = vrot.slane %v116, %v123
  %v126 = vunpack.c.l.s4 1935823168
  %v127 = vunpack.c.0.s8 %v126
  %v128 = vlaneseq
  %v129 = vshrl.u32 %v128, 7
  %v130 = vsub.s32 %v127, %v129
  %v131 = vrot.slane %v117, %v130
  %v132 = vcombine.low %v124, %v131
  %v134 = vunpack.c.l.s4 1935823168
  %v135 = vunpack.c.0.s8 %v134
  %v136 = vlaneseq
  %v137 = vshrl.u32 %v136, 7
  %v138 = vsub.s32 %v135, %v137
  %v139 = vrot.slane %v132, %v138
  %v141 = vadd.f32 %v107, %v139
  %142 = vst [vmem:[%s2 + $0x8] sm:$0xff] %v141
  %s143 = scalar_lea.vmem %s0, 4
  %v144 = vld [vmem:[%s143] sm:$0xf]
  %v145 = vmul.f32 %v19, %v144
  %v146 = vmul.f32 %v20, %v144
  %v147 = vmul.f32 %v21, %v144
  %v148 = vmul.f32 %v22, %v144
  %v149 = vadd.f32 %v145, 0.0
  %v150 = vadd.f32 %v146, 0.0
  %v151 = vadd.f32 %v147, 0.0
  %v152 = vadd.f32 %v148, 0.0
  %v154 = vrot.slane %v144, 2
  %v156 = vmul.f32 %v39, %v154
  %v157 = vmul.f32 %v40, %v154
  %v158 = vmul.f32 %v41, %v154
  %v159 = vmul.f32 %v42, %v154
  %v160 = vadd.f32 %v156, 0.0
  %v161 = vadd.f32 %v157, 0.0
  %v162 = vadd.f32 %v158, 0.0
  %v163 = vadd.f32 %v159, 0.0
  %v164 = vmul.f32 %v19, %v154
  %v165 = vmul.f32 %v20, %v154
  %v166 = vmul.f32 %v21, %v154
  %v167 = vmul.f32 %v22, %v154
  %v168 = vadd.f32 %v164, 0.0
  %v169 = vadd.f32 %v165, 0.0
  %v170 = vadd.f32 %v166, 0.0
  %v171 = vadd.f32 %v167, 0.0
  %v172 = vmul.f32 %v39, %v144
  %v173 = vmul.f32 %v40, %v144
  %v174 = vmul.f32 %v41, %v144
  %v175 = vmul.f32 %v42, %v144
  %v176 = vadd.f32 %v172, 0.0
  %v177 = vadd.f32 %v173, 0.0
  %v178 = vadd.f32 %v174, 0.0
  %v179 = vadd.f32 %v175, 0.0
  %s180 = scalar_lea.vmem %s2, 16
  %v181 = vld [vmem:[%s180] sm:$0xff]
  %v182 = vsub.f32 %v149, %v160
  %v183 = vsub.f32 %v150, %v161
  %v184 = vsub.f32 %v151, %v162
  %v185 = vsub.f32 %v152, %v163
  %v190 = vcombine.low %v182, %v184
  %v191 = vcombine.low %v183, %v185
  %v193 = vunpack.c.l.s4 1935823168
  %v194 = vunpack.c.0.s8 %v193
  %v195 = vlaneseq
  %v196 = vshrl.u32 %v195, 7
  %v197 = vsub.s32 %v194, %v196
  %v198 = vrot.slane %v190, %v197
  %v200 = vunpack.c.l.s4 1935823168
  %v201 = vunpack.c.0.s8 %v200
  %v202 = vlaneseq
  %v203 = vshrl.u32 %v202, 7
  %v204 = vsub.s32 %v201, %v203
  %v205 = vrot.slane %v191, %v204
  %v206 = vcombine.low %v198, %v205
  %v208 = vunpack.c.l.s4 1935823168
  %v209 = vunpack.c.0.s8 %v208
  %v210 = vlaneseq
  %v211 = vshrl.u32 %v210, 7
  %v212 = vsub.s32 %v209, %v211
  %v213 = vrot.slane %v206, %v212
  %v215 = vadd.f32 %v181, %v213
  %216 = vst [vmem:[%s180] sm:$0xff] %v215
  %v217 = vld [vmem:[%s180 + $0x8] sm:$0xff]
  %v218 = vadd.f32 %v168, %v176
  %v219 = vadd.f32 %v169, %v177
  %v220 = vadd.f32 %v170, %v178
  %v221 = vadd.f32 %v171, %v179
  %v226 = vcombine.low %v218, %v220
  %v227 = vcombine.low %v219, %v221
  %v229 = vunpack.c.l.s4 1935823168
  %v230 = vunpack.c.0.s8 %v229
  %v231 = vlaneseq
  %v232 = vshrl.u32 %v231, 7
  %v233 = vsub.s32 %v230, %v232
  %v234 = vrot.slane %v226, %v233
  %v236 = vunpack.c.l.s4 1935823168
  %v237 = vunpack.c.0.s8 %v236
  %v238 = vlaneseq
  %v239 = vshrl.u32 %v238, 7
  %v240 = vsub.s32 %v237, %v239
  %v241 = vrot.slane %v227, %v240
  %v242 = vcombine.low %v234, %v241
  %v244 = vunpack.c.l.s4 1935823168
  %v245 = vunpack.c.0.s8 %v244
  %v246 = vlaneseq
  %v247 = vshrl.u32 %v246, 7
  %v248 = vsub.s32 %v245, %v247
  %v249 = vrot.slane %v242, %v248
  %v251 = vadd.f32 %v217, %v249
  %252 = vst [vmem:[%s180 + $0x8] sm:$0xff] %v251
  // Predicated region
  $region14: #{_lambda_.15} parent=0 // pred_check
    _
  $region15: #{_lambda_.15} parent=0 // pred_check_branch
    %254 = sbr.rel (0) target = $region17
  $region16: #{_lambda_.15} parent=0 // pred_region
    _
  $region17: #{_lambda_.15} parent=0 // pred_fallthru
    _
  // Predicated region
  $region18: #{_lambda_.15} parent=0 // pred_check
    _
  $region19: #{_lambda_.15} parent=0 // pred_check_branch
    %256 = sbr.rel (0) target = $region21
  $region20: #{_lambda_.15} parent=0 // pred_region
    _
  $region21: #{_lambda_.15} parent=0 // pred_fallthru
    _

// kernel: _lambda_.16
$region0: #{_lambda_.16}
  #allocation0 [shape = 'u32[]', space=smem, size = 0x4, offset = 0x4, fixed_abs, tag = 'smem constant byte address 0x4 - core index']
  #allocation1 [shape = 'u32[144,128]{1,0:T(1,128)}', space=vmem, size = 0x12000, scoped, tag = 'internal scratch']
  %s0 = inlined_call_operand.vmem [shape: f32[2,4,256], index: 0, kind: input, shape index: {}]
  %s1 = inlined_call_operand.vmem [shape: f32[1,4,1], index: 1, kind: input, shape index: {}]
  %s2 = inlined_call_operand.vmem [shape: f32[1,4,1], index: 2, kind: input, shape index: {}]
  %s3 = inlined_call_operand.vmem [shape: f32[2,4,256], index: 3, kind: output, shape index: {}]
  %s4 = sld [smem:[#allocation0]]
  $region22: #{_lambda_.16} parent=0
    _
  %s6 = ssub.s32 1, %s4
  %s7 = scalar_select 0, %s6, %s4
  // Predicated region
  $region2: #{_lambda_.16} parent=0 // pred_check
    _
  $region3: #{_lambda_.16} parent=0 // pred_check_branch
    %9 = sbr.rel (0) target = $region5
  $region4: #{_lambda_.16} parent=0 // pred_region
    _
  $region5: #{_lambda_.16} parent=0 // pred_fallthru
    _
  // Predicated region
  $region6: #{_lambda_.16} parent=0 // pred_check
    _
  $region7: #{_lambda_.16} parent=0 // pred_check_branch
    %11 = sbr.rel (0) target = $region9
  $region8: #{_lambda_.16} parent=0 // pred_region
    _
  $region9: #{_lambda_.16} parent=0 // pred_fallthru
    _
  // Predicated region
  $region10: #{_lambda_.16} parent=0 // pred_check
    _
  $region11: #{_lambda_.16} parent=0 // pred_check_branch
    %13 = sbr.rel (0) target = $region13
  $region12: #{_lambda_.16} parent=0 // pred_region
    _
  $region13: #{_lambda_.16} parent=0 // pred_fallthru
    _
  %v14 = vld [vmem:[%s0] sm:$0xff]
  %v15 = vld [vmem:[%s0 + $0x8] sm:$0xff]
  %v16 = vld [vmem:[%s1] sm:$0xf]
  %v17 = vld [vmem:[%s2] sm:$0xf]
  %v20 = vcombine.high %v14, %v14
  %v21 = vcombine.high %v15, %v15
  %vm24 = vcmask 1043456
  %v25 = vsel %vm24, %v14, 0.0
  %v26 = vsel %vm24, %v20, 0.0
  %v27 = vadd.f32 %v25, %v26
  %28 = vadd.xlane.f32.xlu0 %v27
  %v29 = vpop.xlane.xlu0 %28
  %v30 = vsel %vm24, %v15, 0.0
  %v31 = vsel %vm24, %v21, 0.0
  %v32 = vadd.f32 %v30, %v31
  %33 = vadd.xlane.f32.xlu0 %v32
  %v34 = vpop.xlane.xlu0 %33
  %v35 = vsel %vm24, %v29, 0.0
  %v36 = vsel %vm24, %v34, 0.0
  %v37 = vadd.f32 %v35, %v36
  %v38 = vmul.f32 %v14, %v14
  %v39 = vmul.f32 %v15, %v15
  %v42 = vcombine.high %v38, %v38
  %v43 = vcombine.high %v39, %v39
  %v46 = vsel %vm24, %v38, 0.0
  %v47 = vsel %vm24, %v42, 0.0
  %v48 = vadd.f32 %v46, %v47
  %49 = vadd.xlane.f32.xlu0 %v48
  %v50 = vpop.xlane.xlu0 %49
  %v51 = vsel %vm24, %v39, 0.0
  %v52 = vsel %vm24, %v43, 0.0
  %v53 = vadd.f32 %v51, %v52
  %54 = vadd.xlane.f32.xlu0 %v53
  %v55 = vpop.xlane.xlu0 %54
  %v56 = vsel %vm24, %v50, 0.0
  %v57 = vsel %vm24, %v55, 0.0
  %v58 = vadd.f32 %v56, %v57
  %v59 = vmul.f32 %v37, 0.001953125
  %v60 = vmul.f32 %v58, 0.001953125
  %v61 = vmul.f32 %v59, %v59
  %v62 = vsub.f32 %v60, %v61
  %v63 = vadd.f32 %v62, 1e-05
  %v64 = vrsqrt.pop %v63
  %v65 = vmul.f32 %v16, %v64
  %v66 = vmul.f32 %v59, %v65
  %v67 = vsub.f32 %v17, %v66
  %69 = vset.pattern.permute.xlu0 0
  %70 = vperm.xlu0 %69, %v65
  %v71 = vpop.permute.xlu0 %70
  %v73 = vunpack.c.l.s4 839922192
  %v74 = vunpack.c.0.s8 %v73
  %v75 = vlaneseq
  %v76 = vshrl.u32 %v75, 7
  %v77 = vsub.s32 %v74, %v76
  %v78 = vrot.slane %v71, %v77
  %v80 = vmul.f32 %v14, %v78
  %v81 = vmul.f32 %v15, %v78
  %83 = vset.pattern.permute.xlu0 0
  %84 = vperm.xlu0 %83, %v67
  %v85 = vpop.permute.xlu0 %84
  %v87 = vunpack.c.l.s4 839922192
  %v88 = vunpack.c.0.s8 %v87
  %v89 = vlaneseq
  %v90 = vshrl.u32 %v89, 7
  %v91 = vsub.s32 %v88, %v90
  %v92 = vrot.slane %v85, %v91
  %v94 = vadd.f32 %v80, %v92
  %v95 = vadd.f32 %v81, %v92
  %v96 = vmax.f32 %v94, 0.0
  %v97 = vmax.f32 %v95, 0.0
  %98 = vst [vmem:[%s3] sm:$0xff] %v96
  %99 = vst [vmem:[%s3 + $0x8] sm:$0xff] %v97
  // Predicated region
  $region14: #{_lambda_.16} parent=0 // pred_check
    _
  $region15: #{_lambda_.16} parent=0 // pred_check_branch
    %101 = sbr.rel (0) target = $region17
  $region16: #{_lambda_.16} parent=0 // pred_region
    _
  $region17: #{_lambda_.16} parent=0 // pred_fallthru
    _
  // Predicated region
  $region18: #{_lambda_.16} parent=0 // pred_check
    _
  $region19: #{_lambda_.16} parent=0 // pred_check_branch
    %103 = sbr.rel (0) target = $region21
  $region20: #{_lambda_.16} parent=0 // pred_region
    _
  $region21: #{_lambda_.16} parent=0 // pred_fallthru
    _

// kernel: _lambda_.18
$region0: #{_lambda_.18}
  #allocation0 [shape = 'u32[]', space=smem, size = 0x4, offset = 0x4, fixed_abs, tag = 'smem constant byte address 0x4 - core index']
  #allocation1 [shape = 'u32[144,128]{1,0:T(1,128)}', space=vmem, size = 0x12000, scoped, tag = 'internal scratch']
  %s0 = inlined_call_operand.vmem [shape: f32[4,1], index: 0, kind: input, shape index: {}]
  %s1 = inlined_call_operand.vmem [shape: f32[1,512], index: 1, kind: input, shape index: {}]
  %s2 = inlined_call_operand.vmem [shape: f32[4,1], index: 2, kind: input, shape index: {}]
  %s3 = inlined_call_operand.vmem [shape: f32[4,512], index: 3, kind: output, shape index: {}]
  %s4 = sld [smem:[#allocation0]]
  $region22: #{_lambda_.18} parent=0
    _
  %s6 = ssub.s32 1, %s4
  %s7 = scalar_select 0, %s6, %s4
  // Predicated region
  $region2: #{_lambda_.18} parent=0 // pred_check
    _
  $region3: #{_lambda_.18} parent=0 // pred_check_branch
    %9 = sbr.rel (0) target = $region5
  $region4: #{_lambda_.18} parent=0 // pred_region
    _
  $region5: #{_lambda_.18} parent=0 // pred_fallthru
    _
  // Predicated region
  $region6: #{_lambda_.18} parent=0 // pred_check
    _
  $region7: #{_lambda_.18} parent=0 // pred_check_branch
    %11 = sbr.rel (0) target = $region9
  $region8: #{_lambda_.18} parent=0 // pred_region
    _
  $region9: #{_lambda_.18} parent=0 // pred_fallthru
    _
  // Predicated region
  $region10: #{_lambda_.18} parent=0 // pred_check
    _
  $region11: #{_lambda_.18} parent=0 // pred_check_branch
    %13 = sbr.rel (0) target = $region13
  $region12: #{_lambda_.18} parent=0 // pred_region
    _
  $region13: #{_lambda_.18} parent=0 // pred_fallthru
    _
  %v14 = vld [vmem:[%s0] sm:$0xf]
  %v15 = vld [vmem:[%s1] sm:$0xf]
  %v16 = vld [vmem:[%s2] sm:$0xf]
  %18 = vset.pattern.permute.xlu0 0
  %19 = vperm.xlu0 %18, %v16
  %v20 = vpop.permute.xlu0 %19
  %v23 = vlaneseq
  %v24 = vshrl.u32 %v23, 7
  %v25 = vsub.s32 0, %v24
  %v26 = vrot.slane %v15, %v25
  %v27 = vlaneseq
  %v28 = vshrl.u32 %v27, 7
  %v29 = vsub.s32 1, %v28
  %v30 = vrot.slane %v15, %v29
  %v31 = vlaneseq
  %v32 = vshrl.u32 %v31, 7
  %v33 = vsub.s32 2, %v32
  %v34 = vrot.slane %v15, %v33
  %v35 = vlaneseq
  %v36 = vshrl.u32 %v35, 7
  %v37 = vsub.s32 3, %v36
  %v38 = vrot.slane %v15, %v37
  %vm39 = vcmask 7168
  %v41 = vsel %vm39, %v14, 0
  %vm43 = vcmask 1040384
  %v44 = vsel %vm43, %v26, 0
  %v46 = vsel %vm43, %v30, 0
  %v48 = vsel %vm43, %v34, 0
  %v50 = vsel %vm43, %v38, 0
  %52 = vmatprep.subr.mxu0 0.0
  %53 = vmatpush1.msra.mxu0 0.0
  %54 = vmatprep.subr.mxu0 0.0
  %55 = vmatpush1.msra.mxu0 0.0
  %56 = vmatprep.subr.mxu0 0.0
  %57 = vmatpush1.msra.mxu0 0.0
  %58 = vmatprep.subr.mxu0 0.0
  %59 = vmatpush1.msra.mxu0 0.0
  %60 = vmatprep.subr.mxu0 0.0
  %61 = vmatpush1.msra.mxu0 0.0
  %62 = vmatprep.subr.mxu0 0.0
  %63 = vmatpush1.msra.mxu0 0.0
  %64 = vmatprep.subr.mxu0 0.0
  %65 = vmatpush1.msra.mxu0 0.0
  %66 = vmatprep.subr.mxu0 0.0
  %67 = vmatpush1.msra.mxu0 0.0
  %68 = vmatprep.subr.mxu0 0.0
  %69 = vmatpush1.msra.mxu0 0.0
  %70 = vmatprep.subr.mxu0 0.0
  %71 = vmatpush1.msra.mxu0 0.0
  %72 = vmatprep.subr.mxu0 0.0
  %73 = vmatpush1.msra.mxu0 0.0
  %74 = vmatprep.subr.mxu0 0.0
  %75 = vmatpush1.msra.mxu0 0.0
  %76 = vmatprep.subr.mxu0 0.0
  %77 = vmatpush1.msra.mxu0 0.0
  %78 = vmatprep.subr.mxu0 0.0
  %79 = vmatpush1.msra.mxu0 0.0
  %80 = vmatprep.subr.mxu0 0.0
  %81 = vmatpush1.msra.mxu0 0.0
  %82 = vmatprep.subr.mxu0 %v46
  %83 = vmatpush1.msra.mxu0 %v44
  %84 = vmatprep.subr.mxu0 0.0
  %85 = vmatpush2.msra.mxu0 0.0
  %86 = vmatprep.subr.mxu0 0.0
  %87 = vmatpush2.msra.mxu0 0.0
  %88 = vmatprep.subr.mxu0 0.0
  %89 = vmatpush2.msra.mxu0 0.0
  %90 = vmatprep.subr.mxu0 0.0
  %91 = vmatpush2.msra.mxu0 0.0
  %92 = vmatprep.subr.mxu0 0.0
  %93 = vmatpush2.msra.mxu0 0.0
  %94 = vmatprep.subr.mxu0 0.0
  %95 = vmatpush2.msra.mxu0 0.0
  %96 = vmatprep.subr.mxu0 0.0
  %97 = vmatpush2.msra.mxu0 0.0
  %98 = vmatprep.subr.mxu0 0.0
  %99 = vmatpush2.msra.mxu0 0.0
  %100 = vmatprep.subr.mxu0 0.0
  %101 = vmatpush2.msra.mxu0 0.0
  %102 = vmatprep.subr.mxu0 0.0
  %103 = vmatpush2.msra.mxu0 0.0
  %104 = vmatprep.subr.mxu0 0.0
  %105 = vmatpush2.msra.mxu0 0.0
  %106 = vmatprep.subr.mxu0 0.0
  %107 = vmatpush2.msra.mxu0 0.0
  %108 = vmatprep.subr.mxu0 0.0
  %109 = vmatpush2.msra.mxu0 0.0
  %110 = vmatprep.subr.mxu0 0.0
  %111 = vmatpush2.msra.mxu0 0.0
  %112 = vmatprep.subr.mxu0 0.0
  %113 = vmatpush2.msra.mxu0 0.0
  %114 = vmatprep.subr.mxu0 0.0
  %115 = vmatpush2.msra.mxu0 0.0
  %116 = vmatprep.mubr.f32.mxu0 0.0
  %117 = vmatmul.mubr.f32.gmra.mxu0 %v41
  %v118 = vpop.f32.mrf.mxu0
  %v119 = vadd.f32 %v20, %v118
  %v120 = vpop.f32.mrf.mxu0
  %v121 = vadd.f32 %v20, %v120
  %122 = vdwg.mxu0
  %123 = vmatprep.subr.mxu0 0.0
  %124 = vmatpush1.msra.mxu0 0.0
  %125 = vmatprep.subr.mxu0 0.0
  %126 = vmatpush1.msra.mxu0 0.0
  %127 = vmatprep.subr.mxu0 0.0
  %128 = vmatpush1.msra.mxu0 0.0
  %129 = vmatprep.subr.mxu0 0.0
  %130 = vmatpush1.msra.mxu0 0.0
  %131 = vmatprep.subr.mxu0 0.0
  %132 = vmatpush1.msra.mxu0 0.0
  %133 = vmatprep.subr.mxu0 0.0
  %134 = vmatpush1.msra.mxu0 0.0
  %135 = vmatprep.subr.mxu0 0.0
  %136 = vmatpush1.msra.mxu0 0.0
  %137 = vmatprep.subr.mxu0 0.0
  %138 = vmatpush1.msra.mxu0 0.0
  %139 = vmatprep.subr.mxu0 0.0
  %140 = vmatpush1.msra.mxu0 0.0
  %141 = vmatprep.subr.mxu0 0.0
  %142 = vmatpush1.msra.mxu0 0.0
  %143 = vmatprep.subr.mxu0 0.0
  %144 = vmatpush1.msra.mxu0 0.0
  %145 = vmatprep.subr.mxu0 0.0
  %146 = vmatpush1.msra.mxu0 0.0
  %147 = vmatprep.subr.mxu0 0.0
  %148 = vmatpush1.msra.mxu0 0.0
  %149 = vmatprep.subr.mxu0 0.0
  %150 = vmatpush1.msra.mxu0 0.0
  %151 = vmatprep.subr.mxu0 0.0
  %152 = vmatpush1.msra.mxu0 0.0
  %153 = vmatprep.subr.mxu0 %v50
  %154 = vmatpush1.msra.mxu0 %v48
  %155 = vmatprep.subr.mxu0 0.0
  %156 = vmatpush2.msra.mxu0 0.0
  %157 = vmatprep.subr.mxu0 0.0
  %158 = vmatpush2.msra.mxu0 0.0
  %159 = vmatprep.subr.mxu0 0.0
  %160 = vmatpush2.msra.mxu0 0.0
  %161 = vmatprep.subr.mxu0 0.0
  %162 = vmatpush2.msra.mxu0 0.0
  %163 = vmatprep.subr.mxu0 0.0
  %164 = vmatpush2.msra.mxu0 0.0
  %165 = vmatprep.subr.mxu0 0.0
  %166 = vmatpush2.msra.mxu0 0.0
  %167 = vmatprep.subr.mxu0 0.0
  %168 = vmatpush2.msra.mxu0 0.0
  %169 = vmatprep.subr.mxu0 0.0
  %170 = vmatpush2.msra.mxu0 0.0
  %171 = vmatprep.subr.mxu0 0.0
  %172 = vmatpush2.msra.mxu0 0.0
  %173 = vmatprep.subr.mxu0 0.0
  %174 = vmatpush2.msra.mxu0 0.0
  %175 = vmatprep.subr.mxu0 0.0
  %176 = vmatpush2.msra.mxu0 0.0
  %177 = vmatprep.subr.mxu0 0.0
  %178 = vmatpush2.msra.mxu0 0.0
  %179 = vmatprep.subr.mxu0 0.0
  %180 = vmatpush2.msra.mxu0 0.0
  %181 = vmatprep.subr.mxu0 0.0
  %182 = vmatpush2.msra.mxu0 0.0
  %183 = vmatprep.subr.mxu0 0.0
  %184 = vmatpush2.msra.mxu0 0.0
  %185 = vmatprep.subr.mxu0 0.0
  %186 = vmatpush2.msra.mxu0 0.0
  %187 = vmatprep.mubr.f32.mxu0 0.0
  %188 = vmatmul.mubr.f32.gmra.mxu0 %v41
  %v189 = vpop.f32.mrf.mxu0
  %v190 = vadd.f32 %v20, %v189
  %v191 = vpop.f32.mrf.mxu0
  %v192 = vadd.f32 %v20, %v191
  %193 = vdwg.mxu0
  %v198 = vcombine.low %v119, %v121
  %v199 = vcombine.low %v190, %v192
  %202 = vst [vmem:[%s3] sm:$0xff] %v198
  %203 = vst [vmem:[%s3 + $0x8] sm:$0xff] %v199
  // Predicated region
  $region14: #{_lambda_.18} parent=0 // pred_check
    _
  $region15: #{_lambda_.18} parent=0 // pred_check_branch
    %205 = sbr.rel (0) target = $region17
  $region16: #{_lambda_.18} parent=0 // pred_region
    _
  $region17: #{_lambda_.18} parent=0 // pred_fallthru
    _
  // Predicated region
  $region18: #{_lambda_.18} parent=0 // pred_check
    _
  $region19: #{_lambda_.18} parent=0 // pred_check_branch
    %207 = sbr.rel (0) target = $region21
  $region20: #{_lambda_.18} parent=0 // pred_region
    _
  $region21: #{_lambda_.18} parent=0 // pred_fallthru
    _

// kernel: _lambda_.17
$region0: #{_lambda_.17}
  #allocation0 [shape = 'u32[]', space=smem, size = 0x4, offset = 0x4, fixed_abs, tag = 'smem constant byte address 0x4 - core index']
  #allocation1 [shape = 'u32[144,128]{1,0:T(1,128)}', space=vmem, size = 0x12000, scoped, tag = 'internal scratch']
  %s0 = inlined_call_operand.vmem [shape: f32[2,4,512], index: 0, kind: input, shape index: {}]
  %s1 = inlined_call_operand.vmem [shape: f32[4,4,512], index: 1, kind: input, shape index: {}]
  %s2 = inlined_call_operand.vmem [shape: f32[2,4,512], index: 2, kind: output, shape index: {}]
  %s3 = sld [smem:[#allocation0]]
  $region22: #{_lambda_.17} parent=0
    _
  %s5 = ssub.s32 1, %s3
  %s6 = scalar_select 0, %s5, %s3
  // Predicated region
  $region2: #{_lambda_.17} parent=0 // pred_check
    _
  $region3: #{_lambda_.17} parent=0 // pred_check_branch
    %8 = sbr.rel (0) target = $region5
  $region4: #{_lambda_.17} parent=0 // pred_region
    _
  $region5: #{_lambda_.17} parent=0 // pred_fallthru
    _
  // Predicated region
  $region6: #{_lambda_.17} parent=0 // pred_check
    _
  $region7: #{_lambda_.17} parent=0 // pred_check_branch
    %10 = sbr.rel (0) target = $region9
  $region8: #{_lambda_.17} parent=0 // pred_region
    _
  $region9: #{_lambda_.17} parent=0 // pred_fallthru
    _
  %p11 = scmp.eq.s32.totalorder 0, 0
  // Predicated region
  $region10: #{_lambda_.17} parent=0 // pred_check
    %p12 = pneg %p11
  $region11: #{_lambda_.17} parent=0 // pred_check_branch
    %14 = sbr.rel (%p12) target = $region13
  $region12: #{_lambda_.17} parent=0 // pred_region
    %15 = vst [vmem:[%s2] sm:$0xff] 0.0
    %16 = vst [vmem:[%s2 + $0x8] sm:$0xff] 0.0
    %17 = vst [vmem:[%s2 + $0x10] sm:$0xff] 0.0
    %18 = vst [vmem:[%s2 + $0x18] sm:$0xff] 0.0
  $region13: #{_lambda_.17} parent=0 // pred_fallthru
    _
  %v19 = vld [vmem:[%s1] sm:$0xff]
  %v20 = vld [vmem:[%s1 + $0x8] sm:$0xff]
  %v21 = vld [vmem:[%s1 + $0x10] sm:$0xff]
  %v22 = vld [vmem:[%s1 + $0x18] sm:$0xff]
  %v23 = vld [vmem:[%s1 + $0x20] sm:$0xff]
  %v24 = vld [vmem:[%s1 + $0x28] sm:$0xff]
  %v25 = vld [vmem:[%s1 + $0x30] sm:$0xff]
  %v26 = vld [vmem:[%s1 + $0x38] sm:$0xff]
  %v27 = vld [vmem:[%s0] sm:$0xff]
  %v28 = vld [vmem:[%s0 + $0x8] sm:$0xff]
  %v29 = vmul.f32 %v19, %v27
  %v30 = vmul.f32 %v21, %v27
  %v31 = vmul.f32 %v23, %v27
  %v32 = vmul.f32 %v25, %v27
  %v37 = vcombine.high %v29, %v29
  %v38 = vcombine.high %v30, %v30
  %v39 = vcombine.high %v31, %v31
  %v40 = vcombine.high %v32, %v32
  %vm45 = vcmask 1043456
  %v46 = vsel %vm45, %v29, 0.0
  %v47 = vrot.slane %v46, 4
  %v48 = vadd.f32 %v46, %v47
  %v49 = vrot.slane %v48, 2
  %v50 = vadd.f32 %v48, %v49
  %v51 = vrot.slane %v50, 1
  %v52 = vadd.f32 %v50, %v51
  %v53 = vsel %vm45, %v37, 0.0
  %v54 = vrot.slane %v53, 4
  %v55 = vadd.f32 %v53, %v54
  %v56 = vrot.slane %v55, 2
  %v57 = vadd.f32 %v55, %v56
  %v58 = vrot.slane %v57, 1
  %v59 = vadd.f32 %v57, %v58
  %v60 = vsel %vm45, %v30, 0.0
  %v61 = vrot.slane %v60, 4
  %v62 = vadd.f32 %v60, %v61
  %v63 = vrot.slane %v62, 2
  %v64 = vadd.f32 %v62, %v63
  %v65 = vrot.slane %v64, 1
  %v66 = vadd.f32 %v64, %v65
  %v67 = vsel %vm45, %v38, 0.0
  %v68 = vrot.slane %v67, 4
  %v69 = vadd.f32 %v67, %v68
  %v70 = vrot.slane %v69, 2
  %v71 = vadd.f32 %v69, %v70
  %v72 = vrot.slane %v71, 1
  %v73 = vadd.f32 %v71, %v72
  %v74 = vsel %vm45, %v31, 0.0
  %v75 = vrot.slane %v74, 4
  %v76 = vadd.f32 %v74, %v75
  %v77 = vrot.slane %v76, 2
  %v78 = vadd.f32 %v76, %v77
  %v79 = vrot.slane %v78, 1
  %v80 = vadd.f32 %v78, %v79
  %v81 = vsel %vm45, %v39, 0.0
  %v82 = vrot.slane %v81, 4
  %v83 = vadd.f32 %v81, %v82
  %v84 = vrot.slane %v83, 2
  %v85 = vadd.f32 %v83, %v84
  %v86 = vrot.slane %v85, 1
  %v87 = vadd.f32 %v85, %v86
  %v88 = vsel %vm45, %v32, 0.0
  %v89 = vrot.slane %v88, 4
  %v90 = vadd.f32 %v88, %v89
  %v91 = vrot.slane %v90, 2
  %v92 = vadd.f32 %v90, %v91
  %v93 = vrot.slane %v92, 1
  %v94 = vadd.f32 %v92, %v93
  %v95 = vsel %vm45, %v40, 0.0
  %v96 = vrot.slane %v95, 4
  %v97 = vadd.f32 %v95, %v96
  %v98 = vrot.slane %v97, 2
  %v99 = vadd.f32 %v97, %v98
  %v100 = vrot.slane %v99, 1
  %v101 = vadd.f32 %v99, %v100
  %v102 = vmul.f32 %v20, %v28
  %v103 = vmul.f32 %v22, %v28
  %v104 = vmul.f32 %v24, %v28
  %v105 = vmul.f32 %v26, %v28
  %v110 = vcombine.high %v102, %v102
  %v111 = vcombine.high %v103, %v103
  %v112 = vcombine.high %v104, %v104
  %v113 = vcombine.high %v105, %v105
  %v118 = vsel %vm45, %v102, 0.0
  %v119 = vrot.slane %v118, 4
  %v120 = vadd.f32 %v118, %v119
  %v121 = vrot.slane %v120, 2
  %v122 = vadd.f32 %v120, %v121
  %v123 = vrot.slane %v122, 1
  %v124 = vadd.f32 %v122, %v123
  %v125 = vsel %vm45, %v110, 0.0
  %v126 = vrot.slane %v125, 4
  %v127 = vadd.f32 %v125, %v126
  %v128 = vrot.slane %v127, 2
  %v129 = vadd.f32 %v127, %v128
  %v130 = vrot.slane %v129, 1
  %v131 = vadd.f32 %v129, %v130
  %v132 = vsel %vm45, %v103, 0.0
  %v133 = vrot.slane %v132, 4
  %v134 = vadd.f32 %v132, %v133
  %v135 = vrot.slane %v134, 2
  %v136 = vadd.f32 %v134, %v135
  %v137 = vrot.slane %v136, 1
  %v138 = vadd.f32 %v136, %v137
  %v139 = vsel %vm45, %v111, 0.0
  %v140 = vrot.slane %v139, 4
  %v141 = vadd.f32 %v139, %v140
  %v142 = vrot.slane %v141, 2
  %v143 = vadd.f32 %v141, %v142
  %v144 = vrot.slane %v143, 1
  %v145 = vadd.f32 %v143, %v144
  %v146 = vsel %vm45, %v104, 0.0
  %v147 = vrot.slane %v146, 4
  %v148 = vadd.f32 %v146, %v147
  %v149 = vrot.slane %v148, 2
  %v150 = vadd.f32 %v148, %v149
  %v151 = vrot.slane %v150, 1
  %v152 = vadd.f32 %v150, %v151
  %v153 = vsel %vm45, %v112, 0.0
  %v154 = vrot.slane %v153, 4
  %v155 = vadd.f32 %v153, %v154
  %v156 = vrot.slane %v155, 2
  %v157 = vadd.f32 %v155, %v156
  %v158 = vrot.slane %v157, 1
  %v159 = vadd.f32 %v157, %v158
  %v160 = vsel %vm45, %v105, 0.0
  %v161 = vrot.slane %v160, 4
  %v162 = vadd.f32 %v160, %v161
  %v163 = vrot.slane %v162, 2
  %v164 = vadd.f32 %v162, %v163
  %v165 = vrot.slane %v164, 1
  %v166 = vadd.f32 %v164, %v165
  %v167 = vsel %vm45, %v113, 0.0
  %v168 = vrot.slane %v167, 4
  %v169 = vadd.f32 %v167, %v168
  %v170 = vrot.slane %v169, 2
  %v171 = vadd.f32 %v169, %v170
  %v172 = vrot.slane %v171, 1
  %v173 = vadd.f32 %v171, %v172
  %v174 = vmul.f32 %v19, %v28
  %v175 = vmul.f32 %v21, %v28
  %v176 = vmul.f32 %v23, %v28
  %v177 = vmul.f32 %v25, %v28
  %v182 = vcombine.high %v174, %v174
  %v183 = vcombine.high %v175, %v175
  %v184 = vcombine.high %v176, %v176
  %v185 = vcombine.high %v177, %v177
  %v190 = vsel %vm45, %v174, 0.0
  %v191 = vrot.slane %v190, 4
  %v192 = vadd.f32 %v190, %v191
  %v193 = vrot.slane %v192, 2
  %v194 = vadd.f32 %v192, %v193
  %v195 = vrot.slane %v194, 1
  %v196 = vadd.f32 %v194, %v195
  %v197 = vsel %vm45, %v182, 0.0
  %v198 = vrot.slane %v197, 4
  %v199 = vadd.f32 %v197, %v198
  %v200 = vrot.slane %v199, 2
  %v201 = vadd.f32 %v199, %v200
  %v202 = vrot.slane %v201, 1
  %v203 = vadd.f32 %v201, %v202
  %v204 = vsel %vm45, %v175, 0.0
  %v205 = vrot.slane %v204, 4
  %v206 = vadd.f32 %v204, %v205
  %v207 = vrot.slane %v206, 2
  %v208 = vadd.f32 %v206, %v207
  %v209 = vrot.slane %v208, 1
  %v210 = vadd.f32 %v208, %v209
  %v211 = vsel %vm45, %v183, 0.0
  %v212 = vrot.slane %v211, 4
  %v213 = vadd.f32 %v211, %v212
  %v214 = vrot.slane %v213, 2
  %v215 = vadd.f32 %v213, %v214
  %v216 = vrot.slane %v215, 1
  %v217 = vadd.f32 %v215, %v216
  %v218 = vsel %vm45, %v176, 0.0
  %v219 = vrot.slane %v218, 4
  %v220 = vadd.f32 %v218, %v219
  %v221 = vrot.slane %v220, 2
  %v222 = vadd.f32 %v220, %v221
  %v223 = vrot.slane %v222, 1
  %v224 = vadd.f32 %v222, %v223
  %v225 = vsel %vm45, %v184, 0.0
  %v226 = vrot.slane %v225, 4
  %v227 = vadd.f32 %v225, %v226
  %v228 = vrot.slane %v227, 2
  %v229 = vadd.f32 %v227, %v228
  %v230 = vrot.slane %v229, 1
  %v231 = vadd.f32 %v229, %v230
  %v232 = vsel %vm45, %v177, 0.0
  %v233 = vrot.slane %v232, 4
  %v234 = vadd.f32 %v232, %v233
  %v235 = vrot.slane %v234, 2
  %v236 = vadd.f32 %v234, %v235
  %v237 = vrot.slane %v236, 1
  %v238 = vadd.f32 %v236, %v237
  %v239 = vsel %vm45, %v185, 0.0
  %v240 = vrot.slane %v239, 4
  %v241 = vadd.f32 %v239, %v240
  %v242 = vrot.slane %v241, 2
  %v243 = vadd.f32 %v241, %v242
  %v244 = vrot.slane %v243, 1
  %v245 = vadd.f32 %v243, %v244
  %v246 = vmul.f32 %v20, %v27
  %v247 = vmul.f32 %v22, %v27
  %v248 = vmul.f32 %v24, %v27
  %v249 = vmul.f32 %v26, %v27
  %v254 = vcombine.high %v246, %v246
  %v255 = vcombine.high %v247, %v247
  %v256 = vcombine.high %v248, %v248
  %v257 = vcombine.high %v249, %v249
  %v262 = vsel %vm45, %v246, 0.0
  %v263 = vrot.slane %v262, 4
  %v264 = vadd.f32 %v262, %v263
  %v265 = vrot.slane %v264, 2
  %v266 = vadd.f32 %v264, %v265
  %v267 = vrot.slane %v266, 1
  %v268 = vadd.f32 %v266, %v267
  %v269 = vsel %vm45, %v254, 0.0
  %v270 = vrot.slane %v269, 4
  %v271 = vadd.f32 %v269, %v270
  %v272 = vrot.slane %v271, 2
  %v273 = vadd.f32 %v271, %v272
  %v274 = vrot.slane %v273, 1
  %v275 = vadd.f32 %v273, %v274
  %v276 = vsel %vm45, %v247, 0.0
  %v277 = vrot.slane %v276, 4
  %v278 = vadd.f32 %v276, %v277
  %v279 = vrot.slane %v278, 2
  %v280 = vadd.f32 %v278, %v279
  %v281 = vrot.slane %v280, 1
  %v282 = vadd.f32 %v280, %v281
  %v283 = vsel %vm45, %v255, 0.0
  %v284 = vrot.slane %v283, 4
  %v285 = vadd.f32 %v283, %v284
  %v286 = vrot.slane %v285, 2
  %v287 = vadd.f32 %v285, %v286
  %v288 = vrot.slane %v287, 1
  %v289 = vadd.f32 %v287, %v288
  %v290 = vsel %vm45, %v248, 0.0
  %v291 = vrot.slane %v290, 4
  %v292 = vadd.f32 %v290, %v291
  %v293 = vrot.slane %v292, 2
  %v294 = vadd.f32 %v292, %v293
  %v295 = vrot.slane %v294, 1
  %v296 = vadd.f32 %v294, %v295
  %v297 = vsel %vm45, %v256, 0.0
  %v298 = vrot.slane %v297, 4
  %v299 = vadd.f32 %v297, %v298
  %v300 = vrot.slane %v299, 2
  %v301 = vadd.f32 %v299, %v300
  %v302 = vrot.slane %v301, 1
  %v303 = vadd.f32 %v301, %v302
  %v304 = vsel %vm45, %v249, 0.0
  %v305 = vrot.slane %v304, 4
  %v306 = vadd.f32 %v304, %v305
  %v307 = vrot.slane %v306, 2
  %v308 = vadd.f32 %v306, %v307
  %v309 = vrot.slane %v308, 1
  %v310 = vadd.f32 %v308, %v309
  %v311 = vsel %vm45, %v257, 0.0
  %v312 = vrot.slane %v311, 4
  %v313 = vadd.f32 %v311, %v312
  %v314 = vrot.slane %v313, 2
  %v315 = vadd.f32 %v313, %v314
  %v316 = vrot.slane %v315, 1
  %v317 = vadd.f32 %v315, %v316
  %v318 = vld [vmem:[%s2] sm:$0xff]
  %v319 = vsub.f32 %v52, %v124
  %v320 = vsub.f32 %v59, %v131
  %v321 = vsub.f32 %v66, %v138
  %v322 = vsub.f32 %v73, %v145
  %v323 = vsub.f32 %v80, %v152
  %v324 = vsub.f32 %v87, %v159
  %v325 = vsub.f32 %v94, %v166
  %v326 = vsub.f32 %v101, %v173
  %v335 = vcombine.low %v319, %v320
  %v336 = vcombine.low %v321, %v322
  %v337 = vcombine.low %v323, %v324
  %v338 = vcombine.low %v325, %v326
  %v339 = vrot.slane %v336, 7
  %vm340 = vcmask 1041409
  %v341 = vsel %vm340, %v339, %v335
  %vm342 = vcmask 1045509
  %v343 = vsel %vm342, %v339, %v341
  %v344 = vrot.slane %v337, 6
  %vm345 = vcmask 1042434
  %v346 = vsel %vm345, %v344, %v343
  %vm347 = vcmask 1046534
  %v348 = vsel %vm347, %v344, %v346
  %v349 = vrot.slane %v338, 5
  %vm350 = vcmask 1043459
  %v351 = vsel %vm350, %v349, %v348
  %vm352 = vcmask 1047559
  %v353 = vsel %vm352, %v349, %v351
  %v355 = vadd.f32 %v318, %v353
  %356 = vst [vmem:[%s2] sm:$0xff] %v355
  %v357 = vld [vmem:[%s2 + $0x8] sm:$0xff]
  %v358 = vadd.f32 %v196, %v268
  %v359 = vadd.f32 %v203, %v275
  %v360 = vadd.f32 %v210, %v282
  %v361 = vadd.f32 %v217, %v289
  %v362 = vadd.f32 %v224, %v296
  %v363 = vadd.f32 %v231, %v303
  %v364 = vadd.f32 %v238, %v310
  %v365 = vadd.f32 %v245, %v317
  %v374 = vcombine.low %v358, %v359
  %v375 = vcombine.low %v360, %v361
  %v376 = vcombine.low %v362, %v363
  %v377 = vcombine.low %v364, %v365
  %v378 = vrot.slane %v375, 7
  %v379 = vsel %vm340, %v378, %v374
  %v380 = vsel %vm342, %v378, %v379
  %v381 = vrot.slane %v376, 6
  %v382 = vsel %vm345, %v381, %v380
  %v383 = vsel %vm347, %v381, %v382
  %v384 = vrot.slane %v377, 5
  %v385 = vsel %vm350, %v384, %v383
  %v386 = vsel %vm352, %v384, %v385
  %v388 = vadd.f32 %v357, %v386
  %389 = vst [vmem:[%s2 + $0x8] sm:$0xff] %v388
  %s390 = scalar_lea.vmem %s0, 16
  %v391 = vld [vmem:[%s390] sm:$0xff]
  %v392 = vld [vmem:[%s390 + $0x8] sm:$0xff]
  %v393 = vmul.f32 %v19, %v391
  %v394 = vmul.f32 %v21, %v391
  %v395 = vmul.f32 %v23, %v391
  %v396 = vmul.f32 %v25, %v391
  %v401 = vcombine.high %v393, %v393
  %v402 = vcombine.high %v394, %v394
  %v403 = vcombine.high %v395, %v395
  %v404 = vcombine.high %v396, %v396
  %v409 = vsel %vm45, %v393, 0.0
  %v410 = vrot.slane %v409, 4
  %v411 = vadd.f32 %v409, %v410
  %v412 = vrot.slane %v411, 2
  %v413 = vadd.f32 %v411, %v412
  %v414 = vrot.slane %v413, 1
  %v415 = vadd.f32 %v413, %v414
  %v416 = vsel %vm45, %v401, 0.0
  %v417 = vrot.slane %v416, 4
  %v418 = vadd.f32 %v416, %v417
  %v419 = vrot.slane %v418, 2
  %v420 = vadd.f32 %v418, %v419
  %v421 = vrot.slane %v420, 1
  %v422 = vadd.f32 %v420, %v421
  %v423 = vsel %vm45, %v394, 0.0
  %v424 = vrot.slane %v423, 4
  %v425 = vadd.f32 %v423, %v424
  %v426 = vrot.slane %v425, 2
  %v427 = vadd.f32 %v425, %v426
  %v428 = vrot.slane %v427, 1
  %v429 = vadd.f32 %v427, %v428
  %v430 = vsel %vm45, %v402, 0.0
  %v431 = vrot.slane %v430, 4
  %v432 = vadd.f32 %v430, %v431
  %v433 = vrot.slane %v432, 2
  %v434 = vadd.f32 %v432, %v433
  %v435 = vrot.slane %v434, 1
  %v436 = vadd.f32 %v434, %v435
  %v437 = vsel %vm45, %v395, 0.0
  %v438 = vrot.slane %v437, 4
  %v439 = vadd.f32 %v437, %v438
  %v440 = vrot.slane %v439, 2
  %v441 = vadd.f32 %v439, %v440
  %v442 = vrot.slane %v441, 1
  %v443 = vadd.f32 %v441, %v442
  %v444 = vsel %vm45, %v403, 0.0
  %v445 = vrot.slane %v444, 4
  %v446 = vadd.f32 %v444, %v445
  %v447 = vrot.slane %v446, 2
  %v448 = vadd.f32 %v446, %v447
  %v449 = vrot.slane %v448, 1
  %v450 = vadd.f32 %v448, %v449
  %v451 = vsel %vm45, %v396, 0.0
  %v452 = vrot.slane %v451, 4
  %v453 = vadd.f32 %v451, %v452
  %v454 = vrot.slane %v453, 2
  %v455 = vadd.f32 %v453, %v454
  %v456 = vrot.slane %v455, 1
  %v457 = vadd.f32 %v455, %v456
  %v458 = vsel %vm45, %v404, 0.0
  %v459 = vrot.slane %v458, 4
  %v460 = vadd.f32 %v458, %v459
  %v461 = vrot.slane %v460, 2
  %v462 = vadd.f32 %v460, %v461
  %v463 = vrot.slane %v462, 1
  %v464 = vadd.f32 %v462, %v463
  %v465 = vmul.f32 %v20, %v392
  %v466 = vmul.f32 %v22, %v392
  %v467 = vmul.f32 %v24, %v392
  %v468 = vmul.f32 %v26, %v392
  %v473 = vcombine.high %v465, %v465
  %v474 = vcombine.high %v466, %v466
  %v475 = vcombine.high %v467, %v467
  %v476 = vcombine.high %v468, %v468
  %v481 = vsel %vm45, %v465, 0.0
  %v482 = vrot.slane %v481, 4
  %v483 = vadd.f32 %v481, %v482
  %v484 = vrot.slane %v483, 2
  %v485 = vadd.f32 %v483, %v484
  %v486 = vrot.slane %v485, 1
  %v487 = vadd.f32 %v485, %v486
  %v488 = vsel %vm45, %v473, 0.0
  %v489 = vrot.slane %v488, 4
  %v490 = vadd.f32 %v488, %v489
  %v491 = vrot.slane %v490, 2
  %v492 = vadd.f32 %v490, %v491
  %v493 = vrot.slane %v492, 1
  %v494 = vadd.f32 %v492, %v493
  %v495 = vsel %vm45, %v466, 0.0
  %v496 = vrot.slane %v495, 4
  %v497 = vadd.f32 %v495, %v496
  %v498 = vrot.slane %v497, 2
  %v499 = vadd.f32 %v497, %v498
  %v500 = vrot.slane %v499, 1
  %v501 = vadd.f32 %v499, %v500
  %v502 = vsel %vm45, %v474, 0.0
  %v503 = vrot.slane %v502, 4
  %v504 = vadd.f32 %v502, %v503
  %v505 = vrot.slane %v504, 2
  %v506 = vadd.f32 %v504, %v505
  %v507 = vrot.slane %v506, 1
  %v508 = vadd.f32 %v506, %v507
  %v509 = vsel %vm45, %v467, 0.0
  %v510 = vrot.slane %v509, 4
  %v511 = vadd.f32 %v509, %v510
  %v512 = vrot.slane %v511, 2
  %v513 = vadd.f32 %v511, %v512
  %v514 = vrot.slane %v513, 1
  %v515 = vadd.f32 %v513, %v514
  %v516 = vsel %vm45, %v475, 0.0
  %v517 = vrot.slane %v516, 4
  %v518 = vadd.f32 %v516, %v517
  %v519 = vrot.slane %v518, 2
  %v520 = vadd.f32 %v518, %v519
  %v521 = vrot.slane %v520, 1
  %v522 = vadd.f32 %v520, %v521
  %v523 = vsel %vm45, %v468, 0.0
  %v524 = vrot.slane %v523, 4
  %v525 = vadd.f32 %v523, %v524
  %v526 = vrot.slane %v525, 2
  %v527 = vadd.f32 %v525, %v526
  %v528 = vrot.slane %v527, 1
  %v529 = vadd.f32 %v527, %v528
  %v530 = vsel %vm45, %v476, 0.0
  %v531 = vrot.slane %v530, 4
  %v532 = vadd.f32 %v530, %v531
  %v533 = vrot.slane %v532, 2
  %v534 = vadd.f32 %v532, %v533
  %v535 = vrot.slane %v534, 1
  %v536 = vadd.f32 %v534, %v535
  %v537 = vmul.f32 %v19, %v392
  %v538 = vmul.f32 %v21, %v392
  %v539 = vmul.f32 %v23, %v392
  %v540 = vmul.f32 %v25, %v392
  %v545 = vcombine.high %v537, %v537
  %v546 = vcombine.high %v538, %v538
  %v547 = vcombine.high %v539, %v539
  %v548 = vcombine.high %v540, %v540
  %v553 = vsel %vm45, %v537, 0.0
  %v554 = vrot.slane %v553, 4
  %v555 = vadd.f32 %v553, %v554
  %v556 = vrot.slane %v555, 2
  %v557 = vadd.f32 %v555, %v556
  %v558 = vrot.slane %v557, 1
  %v559 = vadd.f32 %v557, %v558
  %v560 = vsel %vm45, %v545, 0.0
  %v561 = vrot.slane %v560, 4
  %v562 = vadd.f32 %v560, %v561
  %v563 = vrot.slane %v562, 2
  %v564 = vadd.f32 %v562, %v563
  %v565 = vrot.slane %v564, 1
  %v566 = vadd.f32 %v564, %v565
  %v567 = vsel %vm45, %v538, 0.0
  %v568 = vrot.slane %v567, 4
  %v569 = vadd.f32 %v567, %v568
  %v570 = vrot.slane %v569, 2
  %v571 = vadd.f32 %v569, %v570
  %v572 = vrot.slane %v571, 1
  %v573 = vadd.f32 %v571, %v572
  %v574 = vsel %vm45, %v546, 0.0
  %v575 = vrot.slane %v574, 4
  %v576 = vadd.f32 %v574, %v575
  %v577 = vrot.slane %v576, 2
  %v578 = vadd.f32 %v576, %v577
  %v579 = vrot.slane %v578, 1
  %v580 = vadd.f32 %v578, %v579
  %v581 = vsel %vm45, %v539, 0.0
  %v582 = vrot.slane %v581, 4
  %v583 = vadd.f32 %v581, %v582
  %v584 = vrot.slane %v583, 2
  %v585 = vadd.f32 %v583, %v584
  %v586 = vrot.slane %v585, 1
  %v587 = vadd.f32 %v585, %v586
  %v588 = vsel %vm45, %v547, 0.0
  %v589 = vrot.slane %v588, 4
  %v590 = vadd.f32 %v588, %v589
  %v591 = vrot.slane %v590, 2
  %v592 = vadd.f32 %v590, %v591
  %v593 = vrot.slane %v592, 1
  %v594 = vadd.f32 %v592, %v593
  %v595 = vsel %vm45, %v540, 0.0
  %v596 = vrot.slane %v595, 4
  %v597 = vadd.f32 %v595, %v596
  %v598 = vrot.slane %v597, 2
  %v599 = vadd.f32 %v597, %v598
  %v600 = vrot.slane %v599, 1
  %v601 = vadd.f32 %v599, %v600
  %v602 = vsel %vm45, %v548, 0.0
  %v603 = vrot.slane %v602, 4
  %v604 = vadd.f32 %v602, %v603
  %v605 = vrot.slane %v604, 2
  %v606 = vadd.f32 %v604, %v605
  %v607 = vrot.slane %v606, 1
  %v608 = vadd.f32 %v606, %v607
  %v609 = vmul.f32 %v20, %v391
  %v610 = vmul.f32 %v22, %v391
  %v611 = vmul.f32 %v24, %v391
  %v612 = vmul.f32 %v26, %v391
  %v617 = vcombine.high %v609, %v609
  %v618 = vcombine.high %v610, %v610
  %v619 = vcombine.high %v611, %v611
  %v620 = vcombine.high %v612, %v612
  %v625 = vsel %vm45, %v609, 0.0
  %v626 = vrot.slane %v625, 4
  %v627 = vadd.f32 %v625, %v626
  %v628 = vrot.slane %v627, 2
  %v629 = vadd.f32 %v627, %v628
  %v630 = vrot.slane %v629, 1
  %v631 = vadd.f32 %v629, %v630
  %v632 = vsel %vm45, %v617, 0.0
  %v633 = vrot.slane %v632, 4
  %v634 = vadd.f32 %v632, %v633
  %v635 = vrot.slane %v634, 2
  %v636 = vadd.f32 %v634, %v635
  %v637 = vrot.slane %v636, 1
  %v638 = vadd.f32 %v636, %v637
  %v639 = vsel %vm45, %v610, 0.0
  %v640 = vrot.slane %v639, 4
  %v641 = vadd.f32 %v639, %v640
  %v642 = vrot.slane %v641, 2
  %v643 = vadd.f32 %v641, %v642
  %v644 = vrot.slane %v643, 1
  %v645 = vadd.f32 %v643, %v644
  %v646 = vsel %vm45, %v618, 0.0
  %v647 = vrot.slane %v646, 4
  %v648 = vadd.f32 %v646, %v647
  %v649 = vrot.slane %v648, 2
  %v650 = vadd.f32 %v648, %v649
  %v651 = vrot.slane %v650, 1
  %v652 = vadd.f32 %v650, %v651
  %v653 = vsel %vm45, %v611, 0.0
  %v654 = vrot.slane %v653, 4
  %v655 = vadd.f32 %v653, %v654
  %v656 = vrot.slane %v655, 2
  %v657 = vadd.f32 %v655, %v656
  %v658 = vrot.slane %v657, 1
  %v659 = vadd.f32 %v657, %v658
  %v660 = vsel %vm45, %v619, 0.0
  %v661 = vrot.slane %v660, 4
  %v662 = vadd.f32 %v660, %v661
  %v663 = vrot.slane %v662, 2
  %v664 = vadd.f32 %v662, %v663
  %v665 = vrot.slane %v664, 1
  %v666 = vadd.f32 %v664, %v665
  %v667 = vsel %vm45, %v612, 0.0
  %v668 = vrot.slane %v667, 4
  %v669 = vadd.f32 %v667, %v668
  %v670 = vrot.slane %v669, 2
  %v671 = vadd.f32 %v669, %v670
  %v672 = vrot.slane %v671, 1
  %v673 = vadd.f32 %v671, %v672
  %v674 = vsel %vm45, %v620, 0.0
  %v675 = vrot.slane %v674, 4
  %v676 = vadd.f32 %v674, %v675
  %v677 = vrot.slane %v676, 2
  %v678 = vadd.f32 %v676, %v677
  %v679 = vrot.slane %v678, 1
  %v680 = vadd.f32 %v678, %v679
  %s681 = scalar_lea.vmem %s2, 16
  %v682 = vld [vmem:[%s681] sm:$0xff]
  %v683 = vsub.f32 %v415, %v487
  %v684 = vsub.f32 %v422, %v494
  %v685 = vsub.f32 %v429, %v501
  %v686 = vsub.f32 %v436, %v508
  %v687 = vsub.f32 %v443, %v515
  %v688 = vsub.f32 %v450, %v522
  %v689 = vsub.f32 %v457, %v529
  %v690 = vsub.f32 %v464, %v536
  %v699 = vcombine.low %v683, %v684
  %v700 = vcombine.low %v685, %v686
  %v701 = vcombine.low %v687, %v688
  %v702 = vcombine.low %v689, %v690
  %v703 = vrot.slane %v700, 7
  %v704 = vsel %vm340, %v703, %v699
  %v705 = vsel %vm342, %v703, %v704
  %v706 = vrot.slane %v701, 6
  %v707 = vsel %vm345, %v706, %v705
  %v708 = vsel %vm347, %v706, %v707
  %v709 = vrot.slane %v702, 5
  %v710 = vsel %vm350, %v709, %v708
  %v711 = vsel %vm352, %v709, %v710
  %v713 = vadd.f32 %v682, %v711
  %714 = vst [vmem:[%s681] sm:$0xff] %v713
  %v715 = vld [vmem:[%s681 + $0x8] sm:$0xff]
  %v716 = vadd.f32 %v559, %v631
  %v717 = vadd.f32 %v566, %v638
  %v718 = vadd.f32 %v573, %v645
  %v719 = vadd.f32 %v580, %v652
  %v720 = vadd.f32 %v587, %v659
  %v721 = vadd.f32 %v594, %v666
  %v722 = vadd.f32 %v601, %v673
  %v723 = vadd.f32 %v608, %v680
  %v732 = vcombine.low %v716, %v717
  %v733 = vcombine.low %v718, %v719
  %v734 = vcombine.low %v720, %v721
  %v735 = vcombine.low %v722, %v723
  %v736 = vrot.slane %v733, 7
  %v737 = vsel %vm340, %v736, %v732
  %v738 = vsel %vm342, %v736, %v737
  %v739 = vrot.slane %v734, 6
  %v740 = vsel %vm345, %v739, %v738
  %v741 = vsel %vm347, %v739, %v740
  %v742 = vrot.slane %v735, 5
  %v743 = vsel %vm350, %v742, %v741
  %v744 = vsel %vm352, %v742, %v743
  %v746 = vadd.f32 %v715, %v744
  %747 = vst [vmem:[%s681 + $0x8] sm:$0xff] %v746
  // Predicated region
  $region14: #{_lambda_.17} parent=0 // pred_check
    _
  $region15: #{_lambda_.17} parent=0 // pred_check_branch
    %749 = sbr.rel (0) target = $region17
  $region16: #{_lambda_.17} parent=0 // pred_region
    _
  $region17: #{_lambda_.17} parent=0 // pred_fallthru
    _
  // Predicated region
  $region18: #{_lambda_.17} parent=0 // pred_check
    _
  $region19: #{_lambda_.17} parent=0 // pred_check_branch
    %751 = sbr.rel (0) target = $region21
  $region20: #{_lambda_.17} parent=0 // pred_region
    _
  $region21: #{_lambda_.17} parent=0 // pred_fallthru
    _

// kernel: _lambda_.19
$region0: #{_lambda_.19}
  #allocation0 [shape = 'u32[]', space=smem, size = 0x4, offset = 0x4, fixed_abs, tag = 'smem constant byte address 0x4 - core index']
  #allocation1 [shape = 'u32[144,128]{1,0:T(1,128)}', space=vmem, size = 0x12000, scoped, tag = 'internal scratch']
  %s0 = inlined_call_operand.vmem [shape: f32[2,4,256], index: 0, kind: input, shape index: {}]
  %s1 = inlined_call_operand.vmem [shape: f32[2,4,256], index: 1, kind: input, shape index: {}]
  %s2 = inlined_call_operand.vmem [shape: f32[1,4,1], index: 2, kind: input, shape index: {}]
  %s3 = inlined_call_operand.vmem [shape: f32[1,4,1], index: 3, kind: input, shape index: {}]
  %s4 = inlined_call_operand.vmem [shape: f32[2,4,256], index: 4, kind: output, shape index: {}]
  %s5 = sld [smem:[#allocation0]]
  $region26: #{_lambda_.19} parent=0
    _
  %s7 = ssub.s32 1, %s5
  %s8 = scalar_select 0, %s7, %s5
  // Predicated region
  $region2: #{_lambda_.19} parent=0 // pred_check
    _
  $region3: #{_lambda_.19} parent=0 // pred_check_branch
    %10 = sbr.rel (0) target = $region5
  $region4: #{_lambda_.19} parent=0 // pred_region
    _
  $region5: #{_lambda_.19} parent=0 // pred_fallthru
    _
  // Predicated region
  $region6: #{_lambda_.19} parent=0 // pred_check
    _
  $region7: #{_lambda_.19} parent=0 // pred_check_branch
    %12 = sbr.rel (0) target = $region9
  $region8: #{_lambda_.19} parent=0 // pred_region
    _
  $region9: #{_lambda_.19} parent=0 // pred_fallthru
    _
  // Predicated region
  $region10: #{_lambda_.19} parent=0 // pred_check
    _
  $region11: #{_lambda_.19} parent=0 // pred_check_branch
    %14 = sbr.rel (0) target = $region13
  $region12: #{_lambda_.19} parent=0 // pred_region
    _
  $region13: #{_lambda_.19} parent=0 // pred_fallthru
    _
  // Predicated region
  $region14: #{_lambda_.19} parent=0 // pred_check
    _
  $region15: #{_lambda_.19} parent=0 // pred_check_branch
    %16 = sbr.rel (0) target = $region17
  $region16: #{_lambda_.19} parent=0 // pred_region
    _
  $region17: #{_lambda_.19} parent=0 // pred_fallthru
    _
  %v17 = vld [vmem:[%s0] sm:$0xff]
  %v18 = vld [vmem:[%s0 + $0x8] sm:$0xff]
  %v19 = vld [vmem:[%s2] sm:$0xf]
  %v20 = vld [vmem:[%s3] sm:$0xf]
  %v23 = vcombine.high %v17, %v17
  %v24 = vcombine.high %v18, %v18
  %vm27 = vcmask 1043456
  %v28 = vsel %vm27, %v17, 0.0
  %v29 = vsel %vm27, %v23, 0.0
  %v30 = vadd.f32 %v28, %v29
  %31 = vadd.xlane.f32.xlu0 %v30
  %v32 = vpop.xlane.xlu0 %31
  %v33 = vsel %vm27, %v18, 0.0
  %v34 = vsel %vm27, %v24, 0.0
  %v35 = vadd.f32 %v33, %v34
  %36 = vadd.xlane.f32.xlu0 %v35
  %v37 = vpop.xlane.xlu0 %36
  %v38 = vsel %vm27, %v32, 0.0
  %v39 = vsel %vm27, %v37, 0.0
  %v40 = vadd.f32 %v38, %v39
  %v41 = vmul.f32 %v17, %v17
  %v42 = vmul.f32 %v18, %v18
  %v45 = vcombine.high %v41, %v41
  %v46 = vcombine.high %v42, %v42
  %v49 = vsel %vm27, %v41, 0.0
  %v50 = vsel %vm27, %v45, 0.0
  %v51 = vadd.f32 %v49, %v50
  %52 = vadd.xlane.f32.xlu0 %v51
  %v53 = vpop.xlane.xlu0 %52
  %v54 = vsel %vm27, %v42, 0.0
  %v55 = vsel %vm27, %v46, 0.0
  %v56 = vadd.f32 %v54, %v55
  %57 = vadd.xlane.f32.xlu0 %v56
  %v58 = vpop.xlane.xlu0 %57
  %v59 = vsel %vm27, %v53, 0.0
  %v60 = vsel %vm27, %v58, 0.0
  %v61 = vadd.f32 %v59, %v60
  %v62 = vmul.f32 %v40, 0.001953125
  %v63 = vmul.f32 %v61, 0.001953125
  %v64 = vmul.f32 %v62, %v62
  %v65 = vsub.f32 %v63, %v64
  %v66 = vadd.f32 %v65, 1e-05
  %v67 = vrsqrt.pop %v66
  %v68 = vmul.f32 %v19, %v67
  %v69 = vmul.f32 %v62, %v68
  %v70 = vsub.f32 %v20, %v69
  %72 = vset.pattern.permute.xlu0 0
  %73 = vperm.xlu0 %72, %v68
  %v74 = vpop.permute.xlu0 %73
  %v76 = vunpack.c.l.s4 839922192
  %v77 = vunpack.c.0.s8 %v76
  %v78 = vlaneseq
  %v79 = vshrl.u32 %v78, 7
  %v80 = vsub.s32 %v77, %v79
  %v81 = vrot.slane %v74, %v80
  %v83 = vmul.f32 %v17, %v81
  %v84 = vmul.f32 %v18, %v81
  %86 = vset.pattern.permute.xlu0 0
  %87 = vperm.xlu0 %86, %v70
  %v88 = vpop.permute.xlu0 %87
  %v90 = vunpack.c.l.s4 839922192
  %v91 = vunpack.c.0.s8 %v90
  %v92 = vlaneseq
  %v93 = vshrl.u32 %v92, 7
  %v94 = vsub.s32 %v91, %v93
  %v95 = vrot.slane %v88, %v94
  %v97 = vadd.f32 %v83, %v95
  %v98 = vadd.f32 %v84, %v95
  %v99 = vld [vmem:[%s1] sm:$0xff]
  %v100 = vld [vmem:[%s1 + $0x8] sm:$0xff]
  %v101 = vadd.f32 %v97, %v99
  %v102 = vadd.f32 %v98, %v100
  %v103 = vmax.f32 %v101, 0.0
  %v104 = vmax.f32 %v102, 0.0
  %105 = vst [vmem:[%s4] sm:$0xff] %v103
  %106 = vst [vmem:[%s4 + $0x8] sm:$0xff] %v104
  // Predicated region
  $region18: #{_lambda_.19} parent=0 // pred_check
    _
  $region19: #{_lambda_.19} parent=0 // pred_check_branch
    %108 = sbr.rel (0) target = $region21
  $region20: #{_lambda_.19} parent=0 // pred_region
    _
  $region21: #{_lambda_.19} parent=0 // pred_fallthru
    _
  // Predicated region
  $region22: #{_lambda_.19} parent=0 // pred_check
    _
  $region23: #{_lambda_.19} parent=0 // pred_check_branch
    %110 = sbr.rel (0) target = $region25
  $region24: #{_lambda_.19} parent=0 // pred_region
    _
  $region25: #{_lambda_.19} parent=0 // pred_fallthru
    _

// kernel: _lambda_.20
$region0: #{_lambda_.20}
  #allocation0 [shape = 'u32[]', space=smem, size = 0x4, offset = 0x4, fixed_abs, tag = 'smem constant byte address 0x4 - core index']
  #allocation1 [shape = 'u32[144,128]{1,0:T(1,128)}', space=vmem, size = 0x12000, scoped, tag = 'internal scratch']
  %s0 = inlined_call_operand.vmem [shape: f32[2,4,512], index: 0, kind: input, shape index: {}]
  %s1 = inlined_call_operand.vmem [shape: f32[8,4,512], index: 1, kind: input, shape index: {}]
  %s2 = inlined_call_operand.vmem [shape: f32[2,8,512], index: 2, kind: output, shape index: {}]
  %s3 = sld [smem:[#allocation0]]
  $region22: #{_lambda_.20} parent=0
    _
  %s5 = ssub.s32 1, %s3
  %s6 = scalar_select 0, %s5, %s3
  // Predicated region
  $region2: #{_lambda_.20} parent=0 // pred_check
    _
  $region3: #{_lambda_.20} parent=0 // pred_check_branch
    %8 = sbr.rel (0) target = $region5
  $region4: #{_lambda_.20} parent=0 // pred_region
    _
  $region5: #{_lambda_.20} parent=0 // pred_fallthru
    _
  // Predicated region
  $region6: #{_lambda_.20} parent=0 // pred_check
    _
  $region7: #{_lambda_.20} parent=0 // pred_check_branch
    %10 = sbr.rel (0) target = $region9
  $region8: #{_lambda_.20} parent=0 // pred_region
    _
  $region9: #{_lambda_.20} parent=0 // pred_fallthru
    _
  %p11 = scmp.eq.s32.totalorder 0, 0
  // Predicated region
  $region10: #{_lambda_.20} parent=0 // pred_check
    %p12 = pneg %p11
  $region11: #{_lambda_.20} parent=0 // pred_check_branch
    %14 = sbr.rel (%p12) target = $region13
  $region12: #{_lambda_.20} parent=0 // pred_region
    %15 = vst [vmem:[%s2] sm:$0xff] 0.0
    %16 = vst [vmem:[%s2 + $0x8] sm:$0xff] 0.0
    %17 = vst [vmem:[%s2 + $0x10] sm:$0xff] 0.0
    %18 = vst [vmem:[%s2 + $0x18] sm:$0xff] 0.0
    %19 = vst [vmem:[%s2 + $0x20] sm:$0xff] 0.0
    %20 = vst [vmem:[%s2 + $0x28] sm:$0xff] 0.0
    %21 = vst [vmem:[%s2 + $0x30] sm:$0xff] 0.0
    %22 = vst [vmem:[%s2 + $0x38] sm:$0xff] 0.0
  $region13: #{_lambda_.20} parent=0 // pred_fallthru
    _
  %v23 = vld [vmem:[%s1] sm:$0xff]
  %v24 = vld [vmem:[%s1 + $0x8] sm:$0xff]
  %v25 = vld [vmem:[%s1 + $0x10] sm:$0xff]
  %v26 = vld [vmem:[%s1 + $0x18] sm:$0xff]
  %v27 = vld [vmem:[%s1 + $0x20] sm:$0xff]
  %v28 = vld [vmem:[%s1 + $0x28] sm:$0xff]
  %v29 = vld [vmem:[%s1 + $0x30] sm:$0xff]
  %v30 = vld [vmem:[%s1 + $0x38] sm:$0xff]
  %v31 = vld [vmem:[%s1 + $0x40] sm:$0xff]
  %v32 = vld [vmem:[%s1 + $0x48] sm:$0xff]
  %v33 = vld [vmem:[%s1 + $0x50] sm:$0xff]
  %v34 = vld [vmem:[%s1 + $0x58] sm:$0xff]
  %v35 = vld [vmem:[%s1 + $0x60] sm:$0xff]
  %v36 = vld [vmem:[%s1 + $0x68] sm:$0xff]
  %v37 = vld [vmem:[%s1 + $0x70] sm:$0xff]
  %v38 = vld [vmem:[%s1 + $0x78] sm:$0xff]
  %v39 = vld [vmem:[%s0] sm:$0xff]
  %v40 = vld [vmem:[%s0 + $0x8] sm:$0xff]
  %v41 = vmul.f32 %v23, %v39
  %v42 = vmul.f32 %v25, %v39
  %v43 = vmul.f32 %v27, %v39
  %v44 = vmul.f32 %v29, %v39
  %v45 = vmul.f32 %v31, %v39
  %v46 = vmul.f32 %v33, %v39
  %v47 = vmul.f32 %v35, %v39
  %v48 = vmul.f32 %v37, %v39
  %v57 = vcombine.high %v41, %v41
  %v58 = vcombine.high %v42, %v42
  %v59 = vcombine.high %v43, %v43
  %v60 = vcombine.high %v44, %v44
  %v61 = vcombine.high %v45, %v45
  %v62 = vcombine.high %v46, %v46
  %v63 = vcombine.high %v47, %v47
  %v64 = vcombine.high %v48, %v48
  %vm73 = vcmask 1043456
  %v74 = vsel %vm73, %v41, 0.0
  %v75 = vrot.slane %v74, 4
  %v76 = vadd.f32 %v74, %v75
  %v77 = vrot.slane %v76, 2
  %v78 = vadd.f32 %v76, %v77
  %v79 = vrot.slane %v78, 1
  %v80 = vadd.f32 %v78, %v79
  %v81 = vsel %vm73, %v57, 0.0
  %v82 = vrot.slane %v81, 4
  %v83 = vadd.f32 %v81, %v82
  %v84 = vrot.slane %v83, 2
  %v85 = vadd.f32 %v83, %v84
  %v86 = vrot.slane %v85, 1
  %v87 = vadd.f32 %v85, %v86
  %v88 = vsel %vm73, %v42, 0.0
  %v89 = vrot.slane %v88, 4
  %v90 = vadd.f32 %v88, %v89
  %v91 = vrot.slane %v90, 2
  %v92 = vadd.f32 %v90, %v91
  %v93 = vrot.slane %v92, 1
  %v94 = vadd.f32 %v92, %v93
  %v95 = vsel %vm73, %v58, 0.0
  %v96 = vrot.slane %v95, 4
  %v97 = vadd.f32 %v95, %v96
  %v98 = vrot.slane %v97, 2
  %v99 = vadd.f32 %v97, %v98
  %v100 = vrot.slane %v99, 1
  %v101 = vadd.f32 %v99, %v100
  %v102 = vsel %vm73, %v43, 0.0
  %v103 = vrot.slane %v102, 4
  %v104 = vadd.f32 %v102, %v103
  %v105 = vrot.slane %v104, 2
  %v106 = vadd.f32 %v104, %v105
  %v107 = vrot.slane %v106, 1
  %v108 = vadd.f32 %v106, %v107
  %v109 = vsel %vm73, %v59, 0.0
  %v110 = vrot.slane %v109, 4
  %v111 = vadd.f32 %v109, %v110
  %v112 = vrot.slane %v111, 2
  %v113 = vadd.f32 %v111, %v112
  %v114 = vrot.slane %v113, 1
  %v115 = vadd.f32 %v113, %v114
  %v116 = vsel %vm73, %v44, 0.0
  %v117 = vrot.slane %v116, 4
  %v118 = vadd.f32 %v116, %v117
  %v119 = vrot.slane %v118, 2
  %v120 = vadd.f32 %v118, %v119
  %v121 = vrot.slane %v120, 1
  %v122 = vadd.f32 %v120, %v121
  %v123 = vsel %vm73, %v60, 0.0
  %v124 = vrot.slane %v123, 4
  %v125 = vadd.f32 %v123, %v124
  %v126 = vrot.slane %v125, 2
  %v127 = vadd.f32 %v125, %v126
  %v128 = vrot.slane %v127, 1
  %v129 = vadd.f32 %v127, %v128
  %v130 = vsel %vm73, %v45, 0.0
  %v131 = vrot.slane %v130, 4
  %v132 = vadd.f32 %v130, %v131
  %v133 = vrot.slane %v132, 2
  %v134 = vadd.f32 %v132, %v133
  %v135 = vrot.slane %v134, 1
  %v136 = vadd.f32 %v134, %v135
  %v137 = vsel %vm73, %v61, 0.0
  %v138 = vrot.slane %v137, 4
  %v139 = vadd.f32 %v137, %v138
  %v140 = vrot.slane %v139, 2
  %v141 = vadd.f32 %v139, %v140
  %v142 = vrot.slane %v141, 1
  %v143 = vadd.f32 %v141, %v142
  %v144 = vsel %vm73, %v46, 0.0
  %v145 = vrot.slane %v144, 4
  %v146 = vadd.f32 %v144, %v145
  %v147 = vrot.slane %v146, 2
  %v148 = vadd.f32 %v146, %v147
  %v149 = vrot.slane %v148, 1
  %v150 = vadd.f32 %v148, %v149
  %v151 = vsel %vm73, %v62, 0.0
  %v152 = vrot.slane %v151, 4
  %v153 = vadd.f32 %v151, %v152
  %v154 = vrot.slane %v153, 2
  %v155 = vadd.f32 %v153, %v154
  %v156 = vrot.slane %v155, 1
  %v157 = vadd.f32 %v155, %v156
  %v158 = vsel %vm73, %v47, 0.0
  %v159 = vrot.slane %v158, 4
  %v160 = vadd.f32 %v158, %v159
  %v161 = vrot.slane %v160, 2
  %v162 = vadd.f32 %v160, %v161
  %v163 = vrot.slane %v162, 1
  %v164 = vadd.f32 %v162, %v163
  %v165 = vsel %vm73, %v63, 0.0
  %v166 = vrot.slane %v165, 4
  %v167 = vadd.f32 %v165, %v166
  %v168 = vrot.slane %v167, 2
  %v169 = vadd.f32 %v167, %v168
  %v170 = vrot.slane %v169, 1
  %v171 = vadd.f32 %v169, %v170
  %v172 = vsel %vm73, %v48, 0.0
  %v173 = vrot.slane %v172, 4
  %v174 = vadd.f32 %v172, %v173
  %v175 = vrot.slane %v174, 2
  %v176 = vadd.f32 %v174, %v175
  %v177 = vrot.slane %v176, 1
  %v178 = vadd.f32 %v176, %v177
  %v179 = vsel %vm73, %v64, 0.0
  %v180 = vrot.slane %v179, 4
  %v181 = vadd.f32 %v179, %v180
  %v182 = vrot.slane %v181, 2
  %v183 = vadd.f32 %v181, %v182
  %v184 = vrot.slane %v183, 1
  %v185 = vadd.f32 %v183, %v184
  %v186 = vmul.f32 %v24, %v40
  %v187 = vmul.f32 %v26, %v40
  %v188 = vmul.f32 %v28, %v40
  %v189 = vmul.f32 %v30, %v40
  %v190 = vmul.f32 %v32, %v40
  %v191 = vmul.f32 %v34, %v40
  %v192 = vmul.f32 %v36, %v40
  %v193 = vmul.f32 %v38, %v40
  %v202 = vcombine.high %v186, %v186
  %v203 = vcombine.high %v187, %v187
  %v204 = vcombine.high %v188, %v188
  %v205 = vcombine.high %v189, %v189
  %v206 = vcombine.high %v190, %v190
  %v207 = vcombine.high %v191, %v191
  %v208 = vcombine.high %v192, %v192
  %v209 = vcombine.high %v193, %v193
  %v218 = vsel %vm73, %v186, 0.0
  %v219 = vrot.slane %v218, 4
  %v220 = vadd.f32 %v218, %v219
  %v221 = vrot.slane %v220, 2
  %v222 = vadd.f32 %v220, %v221
  %v223 = vrot.slane %v222, 1
  %v224 = vadd.f32 %v222, %v223
  %v225 = vsel %vm73, %v202, 0.0
  %v226 = vrot.slane %v225, 4
  %v227 = vadd.f32 %v225, %v226
  %v228 = vrot.slane %v227, 2
  %v229 = vadd.f32 %v227, %v228
  %v230 = vrot.slane %v229, 1
  %v231 = vadd.f32 %v229, %v230
  %v232 = vsel %vm73, %v187, 0.0
  %v233 = vrot.slane %v232, 4
  %v234 = vadd.f32 %v232, %v233
  %v235 = vrot.slane %v234, 2
  %v236 = vadd.f32 %v234, %v235
  %v237 = vrot.slane %v236, 1
  %v238 = vadd.f32 %v236, %v237
  %v239 = vsel %vm73, %v203, 0.0
  %v240 = vrot.slane %v239, 4
  %v241 = vadd.f32 %v239, %v240
  %v242 = vrot.slane %v241, 2
  %v243 = vadd.f32 %v241, %v242
  %v244 = vrot.slane %v243, 1
  %v245 = vadd.f32 %v243, %v244
  %v246 = vsel %vm73, %v188, 0.0
  %v247 = vrot.slane %v246, 4
  %v248 = vadd.f32 %v246, %v247
  %v249 = vrot.slane %v248, 2
  %v250 = vadd.f32 %v248, %v249
  %v251 = vrot.slane %v250, 1
  %v252 = vadd.f32 %v250, %v251
  %v253 = vsel %vm73, %v204, 0.0
  %v254 = vrot.slane %v253, 4
  %v255 = vadd.f32 %v253, %v254
  %v256 = vrot.slane %v255, 2
  %v257 = vadd.f32 %v255, %v256
  %v258 = vrot.slane %v257, 1
  %v259 = vadd.f32 %v257, %v258
  %v260 = vsel %vm73, %v189, 0.0
  %v261 = vrot.slane %v260, 4
  %v262 = vadd.f32 %v260, %v261
  %v263 = vrot.slane %v262, 2
  %v264 = vadd.f32 %v262, %v263
  %v265 = vrot.slane %v264, 1
  %v266 = vadd.f32 %v264, %v265
  %v267 = vsel %vm73, %v205, 0.0
  %v268 = vrot.slane %v267, 4
  %v269 = vadd.f32 %v267, %v268
  %v270 = vrot.slane %v269, 2
  %v271 = vadd.f32 %v269, %v270
  %v272 = vrot.slane %v271, 1
  %v273 = vadd.f32 %v271, %v272
  %v274 = vsel %vm73, %v190, 0.0
  %v275 = vrot.slane %v274, 4
  %v276 = vadd.f32 %v274, %v275
  %v277 = vrot.slane %v276, 2
  %v278 = vadd.f32 %v276, %v277
  %v279 = vrot.slane %v278, 1
  %v280 = vadd.f32 %v278, %v279
  %v281 = vsel %vm73, %v206, 0.0
  %v282 = vrot.slane %v281, 4
  %v283 = vadd.f32 %v281, %v282
  %v284 = vrot.slane %v283, 2
  %v285 = vadd.f32 %v283, %v284
  %v286 = vrot.slane %v285, 1
  %v287 = vadd.f32 %v285, %v286
  %v288 = vsel %vm73, %v191, 0.0
  %v289 = vrot.slane %v288, 4
  %v290 = vadd.f32 %v288, %v289
  %v291 = vrot.slane %v290, 2
  %v292 = vadd.f32 %v290, %v291
  %v293 = vrot.slane %v292, 1
  %v294 = vadd.f32 %v292, %v293
  %v295 = vsel %vm73, %v207, 0.0
  %v296 = vrot.slane %v295, 4
  %v297 = vadd.f32 %v295, %v296
  %v298 = vrot.slane %v297, 2
  %v299 = vadd.f32 %v297, %v298
  %v300 = vrot.slane %v299, 1
  %v301 = vadd.f32 %v299, %v300
  %v302 = vsel %vm73, %v192, 0.0
  %v303 = vrot.slane %v302, 4
  %v304 = vadd.f32 %v302, %v303
  %v305 = vrot.slane %v304, 2
  %v306 = vadd.f32 %v304, %v305
  %v307 = vrot.slane %v306, 1
  %v308 = vadd.f32 %v306, %v307
  %v309 = vsel %vm73, %v208, 0.0
  %v310 = vrot.slane %v309, 4
  %v311 = vadd.f32 %v309, %v310
  %v312 = vrot.slane %v311, 2
  %v313 = vadd.f32 %v311, %v312
  %v314 = vrot.slane %v313, 1
  %v315 = vadd.f32 %v313, %v314
  %v316 = vsel %vm73, %v193, 0.0
  %v317 = vrot.slane %v316, 4
  %v318 = vadd.f32 %v316, %v317
  %v319 = vrot.slane %v318, 2
  %v320 = vadd.f32 %v318, %v319
  %v321 = vrot.slane %v320, 1
  %v322 = vadd.f32 %v320, %v321
  %v323 = vsel %vm73, %v209, 0.0
  %v324 = vrot.slane %v323, 4
  %v325 = vadd.f32 %v323, %v324
  %v326 = vrot.slane %v325, 2
  %v327 = vadd.f32 %v325, %v326
  %v328 = vrot.slane %v327, 1
  %v329 = vadd.f32 %v327, %v328
  %v330 = vmul.f32 %v23, %v40
  %v331 = vmul.f32 %v25, %v40
  %v332 = vmul.f32 %v27, %v40
  %v333 = vmul.f32 %v29, %v40
  %v334 = vmul.f32 %v31, %v40
  %v335 = vmul.f32 %v33, %v40
  %v336 = vmul.f32 %v35, %v40
  %v337 = vmul.f32 %v37, %v40
  %v346 = vcombine.high %v330, %v330
  %v347 = vcombine.high %v331, %v331
  %v348 = vcombine.high %v332, %v332
  %v349 = vcombine.high %v333, %v333
  %v350 = vcombine.high %v334, %v334
  %v351 = vcombine.high %v335, %v335
  %v352 = vcombine.high %v336, %v336
  %v353 = vcombine.high %v337, %v337
  %v362 = vsel %vm73, %v330, 0.0
  %v363 = vrot.slane %v362, 4
  %v364 = vadd.f32 %v362, %v363
  %v365 = vrot.slane %v364, 2
  %v366 = vadd.f32 %v364, %v365
  %v367 = vrot.slane %v366, 1
  %v368 = vadd.f32 %v366, %v367
  %v369 = vsel %vm73, %v346, 0.0
  %v370 = vrot.slane %v369, 4
  %v371 = vadd.f32 %v369, %v370
  %v372 = vrot.slane %v371, 2
  %v373 = vadd.f32 %v371, %v372
  %v374 = vrot.slane %v373, 1
  %v375 = vadd.f32 %v373, %v374
  %v376 = vsel %vm73, %v331, 0.0
  %v377 = vrot.slane %v376, 4
  %v378 = vadd.f32 %v376, %v377
  %v379 = vrot.slane %v378, 2
  %v380 = vadd.f32 %v378, %v379
  %v381 = vrot.slane %v380, 1
  %v382 = vadd.f32 %v380, %v381
  %v383 = vsel %vm73, %v347, 0.0
  %v384 = vrot.slane %v383, 4
  %v385 = vadd.f32 %v383, %v384
  %v386 = vrot.slane %v385, 2
  %v387 = vadd.f32 %v385, %v386
  %v388 = vrot.slane %v387, 1
  %v389 = vadd.f32 %v387, %v388
  %v390 = vsel %vm73, %v332, 0.0
  %v391 = vrot.slane %v390, 4
  %v392 = vadd.f32 %v390, %v391
  %v393 = vrot.slane %v392, 2
  %v394 = vadd.f32 %v392, %v393
  %v395 = vrot.slane %v394, 1
  %v396 = vadd.f32 %v394, %v395
  %v397 = vsel %vm73, %v348, 0.0
  %v398 = vrot.slane %v397, 4
  %v399 = vadd.f32 %v397, %v398
  %v400 = vrot.slane %v399, 2
  %v401 = vadd.f32 %v399, %v400
  %v402 = vrot.slane %v401, 1
  %v403 = vadd.f32 %v401, %v402
  %v404 = vsel %vm73, %v333, 0.0
  %v405 = vrot.slane %v404, 4
  %v406 = vadd.f32 %v404, %v405
  %v407 = vrot.slane %v406, 2
  %v408 = vadd.f32 %v406, %v407
  %v409 = vrot.slane %v408, 1
  %v410 = vadd.f32 %v408, %v409
  %v411 = vsel %vm73, %v349, 0.0
  %v412 = vrot.slane %v411, 4
  %v413 = vadd.f32 %v411, %v412
  %v414 = vrot.slane %v413, 2
  %v415 = vadd.f32 %v413, %v414
  %v416 = vrot.slane %v415, 1
  %v417 = vadd.f32 %v415, %v416
  %v418 = vsel %vm73, %v334, 0.0
  %v419 = vrot.slane %v418, 4
  %v420 = vadd.f32 %v418, %v419
  %v421 = vrot.slane %v420, 2
  %v422 = vadd.f32 %v420, %v421
  %v423 = vrot.slane %v422, 1
  %v424 = vadd.f32 %v422, %v423
  %v425 = vsel %vm73, %v350, 0.0
  %v426 = vrot.slane %v425, 4
  %v427 = vadd.f32 %v425, %v426
  %v428 = vrot.slane %v427, 2
  %v429 = vadd.f32 %v427, %v428
  %v430 = vrot.slane %v429, 1
  %v431 = vadd.f32 %v429, %v430
  %v432 = vsel %vm73, %v335, 0.0
  %v433 = vrot.slane %v432, 4
  %v434 = vadd.f32 %v432, %v433
  %v435 = vrot.slane %v434, 2
  %v436 = vadd.f32 %v434, %v435
  %v437 = vrot.slane %v436, 1
  %v438 = vadd.f32 %v436, %v437
  %v439 = vsel %vm73, %v351, 0.0
  %v440 = vrot.slane %v439, 4
  %v441 = vadd.f32 %v439, %v440
  %v442 = vrot.slane %v441, 2
  %v443 = vadd.f32 %v441, %v442
  %v444 = vrot.slane %v443, 1
  %v445 = vadd.f32 %v443, %v444
  %v446 = vsel %vm73, %v336, 0.0
  %v447 = vrot.slane %v446, 4
  %v448 = vadd.f32 %v446, %v447
  %v449 = vrot.slane %v448, 2
  %v450 = vadd.f32 %v448, %v449
  %v451 = vrot.slane %v450, 1
  %v452 = vadd.f32 %v450, %v451
  %v453 = vsel %vm73, %v352, 0.0
  %v454 = vrot.slane %v453, 4
  %v455 = vadd.f32 %v453, %v454
  %v456 = vrot.slane %v455, 2
  %v457 = vadd.f32 %v455, %v456
  %v458 = vrot.slane %v457, 1
  %v459 = vadd.f32 %v457, %v458
  %v460 = vsel %vm73, %v337, 0.0
  %v461 = vrot.slane %v460, 4
  %v462 = vadd.f32 %v460, %v461
  %v463 = vrot.slane %v462, 2
  %v464 = vadd.f32 %v462, %v463
  %v465 = vrot.slane %v464, 1
  %v466 = vadd.f32 %v464, %v465
  %v467 = vsel %vm73, %v353, 0.0
  %v468 = vrot.slane %v467, 4
  %v469 = vadd.f32 %v467, %v468
  %v470 = vrot.slane %v469, 2
  %v471 = vadd.f32 %v469, %v470
  %v472 = vrot.slane %v471, 1
  %v473 = vadd.f32 %v471, %v472
  %v474 = vmul.f32 %v24, %v39
  %v475 = vmul.f32 %v26, %v39
  %v476 = vmul.f32 %v28, %v39
  %v477 = vmul.f32 %v30, %v39
  %v478 = vmul.f32 %v32, %v39
  %v479 = vmul.f32 %v34, %v39
  %v480 = vmul.f32 %v36, %v39
  %v481 = vmul.f32 %v38, %v39
  %v490 = vcombine.high %v474, %v474
  %v491 = vcombine.high %v475, %v475
  %v492 = vcombine.high %v476, %v476
  %v493 = vcombine.high %v477, %v477
  %v494 = vcombine.high %v478, %v478
  %v495 = vcombine.high %v479, %v479
  %v496 = vcombine.high %v480, %v480
  %v497 = vcombine.high %v481, %v481
  %v506 = vsel %vm73, %v474, 0.0
  %v507 = vrot.slane %v506, 4
  %v508 = vadd.f32 %v506, %v507
  %v509 = vrot.slane %v508, 2
  %v510 = vadd.f32 %v508, %v509
  %v511 = vrot.slane %v510, 1
  %v512 = vadd.f32 %v510, %v511
  %v513 = vsel %vm73, %v490, 0.0
  %v514 = vrot.slane %v513, 4
  %v515 = vadd.f32 %v513, %v514
  %v516 = vrot.slane %v515, 2
  %v517 = vadd.f32 %v515, %v516
  %v518 = vrot.slane %v517, 1
  %v519 = vadd.f32 %v517, %v518
  %v520 = vsel %vm73, %v475, 0.0
  %v521 = vrot.slane %v520, 4
  %v522 = vadd.f32 %v520, %v521
  %v523 = vrot.slane %v522, 2
  %v524 = vadd.f32 %v522, %v523
  %v525 = vrot.slane %v524, 1
  %v526 = vadd.f32 %v524, %v525
  %v527 = vsel %vm73, %v491, 0.0
  %v528 = vrot.slane %v527, 4
  %v529 = vadd.f32 %v527, %v528
  %v530 = vrot.slane %v529, 2
  %v531 = vadd.f32 %v529, %v530
  %v532 = vrot.slane %v531, 1
  %v533 = vadd.f32 %v531, %v532
  %v534 = vsel %vm73, %v476, 0.0
  %v535 = vrot.slane %v534, 4
  %v536 = vadd.f32 %v534, %v535
  %v537 = vrot.slane %v536, 2
  %v538 = vadd.f32 %v536, %v537
  %v539 = vrot.slane %v538, 1
  %v540 = vadd.f32 %v538, %v539
  %v541 = vsel %vm73, %v492, 0.0
  %v542 = vrot.slane %v541, 4
  %v543 = vadd.f32 %v541, %v542
  %v544 = vrot.slane %v543, 2
  %v545 = vadd.f32 %v543, %v544
  %v546 = vrot.slane %v545, 1
  %v547 = vadd.f32 %v545, %v546
  %v548 = vsel %vm73, %v477, 0.0
  %v549 = vrot.slane %v548, 4
  %v550 = vadd.f32 %v548, %v549
  %v551 = vrot.slane %v550, 2
  %v552 = vadd.f32 %v550, %v551
  %v553 = vrot.slane %v552, 1
  %v554 = vadd.f32 %v552, %v553
  %v555 = vsel %vm73, %v493, 0.0
  %v556 = vrot.slane %v555, 4
  %v557 = vadd.f32 %v555, %v556
  %v558 = vrot.slane %v557, 2
  %v559 = vadd.f32 %v557, %v558
  %v560 = vrot.slane %v559, 1
  %v561 = vadd.f32 %v559, %v560
  %v562 = vsel %vm73, %v478, 0.0
  %v563 = vrot.slane %v562, 4
  %v564 = vadd.f32 %v562, %v563
  %v565 = vrot.slane %v564, 2
  %v566 = vadd.f32 %v564, %v565
  %v567 = vrot.slane %v566, 1
  %v568 = vadd.f32 %v566, %v567
  %v569 = vsel %vm73, %v494, 0.0
  %v570 = vrot.slane %v569, 4
  %v571 = vadd.f32 %v569, %v570
  %v572 = vrot.slane %v571, 2
  %v573 = vadd.f32 %v571, %v572
  %v574 = vrot.slane %v573, 1
  %v575 = vadd.f32 %v573, %v574
  %v576 = vsel %vm73, %v479, 0.0
  %v577 = vrot.slane %v576, 4
  %v578 = vadd.f32 %v576, %v577
  %v579 = vrot.slane %v578, 2
  %v580 = vadd.f32 %v578, %v579
  %v581 = vrot.slane %v580, 1
  %v582 = vadd.f32 %v580, %v581
  %v583 = vsel %vm73, %v495, 0.0
  %v584 = vrot.slane %v583, 4
  %v585 = vadd.f32 %v583, %v584
  %v586 = vrot.slane %v585, 2
  %v587 = vadd.f32 %v585, %v586
  %v588 = vrot.slane %v587, 1
  %v589 = vadd.f32 %v587, %v588
  %v590 = vsel %vm73, %v480, 0.0
  %v591 = vrot.slane %v590, 4
  %v592 = vadd.f32 %v590, %v591
  %v593 = vrot.slane %v592, 2
  %v594 = vadd.f32 %v592, %v593
  %v595 = vrot.slane %v594, 1
  %v596 = vadd.f32 %v594, %v595
  %v597 = vsel %vm73, %v496, 0.0
  %v598 = vrot.slane %v597, 4
  %v599 = vadd.f32 %v597, %v598
  %v600 = vrot.slane %v599, 2
  %v601 = vadd.f32 %v599, %v600
  %v602 = vrot.slane %v601, 1
  %v603 = vadd.f32 %v601, %v602
  %v604 = vsel %vm73, %v481, 0.0
  %v605 = vrot.slane %v604, 4
  %v606 = vadd.f32 %v604, %v605
  %v607 = vrot.slane %v606, 2
  %v608 = vadd.f32 %v606, %v607
  %v609 = vrot.slane %v608, 1
  %v610 = vadd.f32 %v608, %v609
  %v611 = vsel %vm73, %v497, 0.0
  %v612 = vrot.slane %v611, 4
  %v613 = vadd.f32 %v611, %v612
  %v614 = vrot.slane %v613, 2
  %v615 = vadd.f32 %v613, %v614
  %v616 = vrot.slane %v615, 1
  %v617 = vadd.f32 %v615, %v616
  %v618 = vld [vmem:[%s2] sm:$0xff]
  %v619 = vld [vmem:[%s2 + $0x8] sm:$0xff]
  %v620 = vsub.f32 %v80, %v224
  %v621 = vsub.f32 %v87, %v231
  %v622 = vsub.f32 %v94, %v238
  %v623 = vsub.f32 %v101, %v245
  %v624 = vsub.f32 %v108, %v252
  %v625 = vsub.f32 %v115, %v259
  %v626 = vsub.f32 %v122, %v266
  %v627 = vsub.f32 %v129, %v273
  %v628 = vsub.f32 %v136, %v280
  %v629 = vsub.f32 %v143, %v287
  %v630 = vsub.f32 %v150, %v294
  %v631 = vsub.f32 %v157, %v301
  %v632 = vsub.f32 %v164, %v308
  %v633 = vsub.f32 %v171, %v315
  %v634 = vsub.f32 %v178, %v322
  %v635 = vsub.f32 %v185, %v329
  %vm652 = vcmask 1041409
  %v653 = vsel %vm652, %v622, %v620
  %vm654 = vcmask 1042434
  %v655 = vsel %vm654, %v624, %v653
  %vm656 = vcmask 1043459
  %v657 = vsel %vm656, %v626, %v655
  %vm658 = vcmask 1044484
  %v659 = vsel %vm658, %v628, %v657
  %vm660 = vcmask 1045509
  %v661 = vsel %vm660, %v630, %v659
  %vm662 = vcmask 1046534
  %v663 = vsel %vm662, %v632, %v661
  %vm664 = vcmask 1047559
  %v665 = vsel %vm664, %v634, %v663
  %v666 = vsel %vm652, %v623, %v621
  %v667 = vsel %vm654, %v625, %v666
  %v668 = vsel %vm656, %v627, %v667
  %v669 = vsel %vm658, %v629, %v668
  %v670 = vsel %vm660, %v631, %v669
  %v671 = vsel %vm662, %v633, %v670
  %v672 = vsel %vm664, %v635, %v671
  %v675 = vadd.f32 %v618, %v665
  %v676 = vadd.f32 %v619, %v672
  %677 = vst [vmem:[%s2] sm:$0xff] %v675
  %678 = vst [vmem:[%s2 + $0x8] sm:$0xff] %v676
  %v679 = vld [vmem:[%s2 + $0x10] sm:$0xff]
  %v680 = vld [vmem:[%s2 + $0x18] sm:$0xff]
  %v681 = vadd.f32 %v368, %v512
  %v682 = vadd.f32 %v375, %v519
  %v683 = vadd.f32 %v382, %v526
  %v684 = vadd.f32 %v389, %v533
  %v685 = vadd.f32 %v396, %v540
  %v686 = vadd.f32 %v403, %v547
  %v687 = vadd.f32 %v410, %v554
  %v688 = vadd.f32 %v417, %v561
  %v689 = vadd.f32 %v424, %v568
  %v690 = vadd.f32 %v431, %v575
  %v691 = vadd.f32 %v438, %v582
  %v692 = vadd.f32 %v445, %v589
  %v693 = vadd.f32 %v452, %v596
  %v694 = vadd.f32 %v459, %v603
  %v695 = vadd.f32 %v466, %v610
  %v696 = vadd.f32 %v473, %v617
  %v713 = vsel %vm652, %v683, %v681
  %v714 = vsel %vm654, %v685, %v713
  %v715 = vsel %vm656, %v687, %v714
  %v716 = vsel %vm658, %v689, %v715
  %v717 = vsel %vm660, %v691, %v716
  %v718 = vsel %vm662, %v693, %v717
  %v719 = vsel %vm664, %v695, %v718
  %v720 = vsel %vm652, %v684, %v682
  %v721 = vsel %vm654, %v686, %v720
  %v722 = vsel %vm656, %v688, %v721
  %v723 = vsel %vm658, %v690, %v722
  %v724 = vsel %vm660, %v692, %v723
  %v725 = vsel %vm662, %v694, %v724
  %v726 = vsel %vm664, %v696, %v725
  %v729 = vadd.f32 %v679, %v719
  %v730 = vadd.f32 %v680, %v726
  %731 = vst [vmem:[%s2 + $0x10] sm:$0xff] %v729
  %732 = vst [vmem:[%s2 + $0x18] sm:$0xff] %v730
  %s733 = scalar_lea.vmem %s0, 16
  %v734 = vld [vmem:[%s733] sm:$0xff]
  %v735 = vld [vmem:[%s733 + $0x8] sm:$0xff]
  %v736 = vmul.f32 %v23, %v734
  %v737 = vmul.f32 %v25, %v734
  %v738 = vmul.f32 %v27, %v734
  %v739 = vmul.f32 %v29, %v734
  %v740 = vmul.f32 %v31, %v734
  %v741 = vmul.f32 %v33, %v734
  %v742 = vmul.f32 %v35, %v734
  %v743 = vmul.f32 %v37, %v734
  %v752 = vcombine.high %v736, %v736
  %v753 = vcombine.high %v737, %v737
  %v754 = vcombine.high %v738, %v738
  %v755 = vcombine.high %v739, %v739
  %v756 = vcombine.high %v740, %v740
  %v757 = vcombine.high %v741, %v741
  %v758 = vcombine.high %v742, %v742
  %v759 = vcombine.high %v743, %v743
  %v768 = vsel %vm73, %v736, 0.0
  %v769 = vrot.slane %v768, 4
  %v770 = vadd.f32 %v768, %v769
  %v771 = vrot.slane %v770, 2
  %v772 = vadd.f32 %v770, %v771
  %v773 = vrot.slane %v772, 1
  %v774 = vadd.f32 %v772, %v773
  %v775 = vsel %vm73, %v752, 0.0
  %v776 = vrot.slane %v775, 4
  %v777 = vadd.f32 %v775, %v776
  %v778 = vrot.slane %v777, 2
  %v779 = vadd.f32 %v777, %v778
  %v780 = vrot.slane %v779, 1
  %v781 = vadd.f32 %v779, %v780
  %v782 = vsel %vm73, %v737, 0.0
  %v783 = vrot.slane %v782, 4
  %v784 = vadd.f32 %v782, %v783
  %v785 = vrot.slane %v784, 2
  %v786 = vadd.f32 %v784, %v785
  %v787 = vrot.slane %v786, 1
  %v788 = vadd.f32 %v786, %v787
  %v789 = vsel %vm73, %v753, 0.0
  %v790 = vrot.slane %v789, 4
  %v791 = vadd.f32 %v789, %v790
  %v792 = vrot.slane %v791, 2
  %v793 = vadd.f32 %v791, %v792
  %v794 = vrot.slane %v793, 1
  %v795 = vadd.f32 %v793, %v794
  %v796 = vsel %vm73, %v738, 0.0
  %v797 = vrot.slane %v796, 4
  %v798 = vadd.f32 %v796, %v797
  %v799 = vrot.slane %v798, 2
  %v800 = vadd.f32 %v798, %v799
  %v801 = vrot.slane %v800, 1
  %v802 = vadd.f32 %v800, %v801
  %v803 = vsel %vm73, %v754, 0.0
  %v804 = vrot.slane %v803, 4
  %v805 = vadd.f32 %v803, %v804
  %v806 = vrot.slane %v805, 2
  %v807 = vadd.f32 %v805, %v806
  %v808 = vrot.slane %v807, 1
  %v809 = vadd.f32 %v807, %v808
  %v810 = vsel %vm73, %v739, 0.0
  %v811 = vrot.slane %v810, 4
  %v812 = vadd.f32 %v810, %v811
  %v813 = vrot.slane %v812, 2
  %v814 = vadd.f32 %v812, %v813
  %v815 = vrot.slane %v814, 1
  %v816 = vadd.f32 %v814, %v815
  %v817 = vsel %vm73, %v755, 0.0
  %v818 = vrot.slane %v817, 4
  %v819 = vadd.f32 %v817, %v818
  %v820 = vrot.slane %v819, 2
  %v821 = vadd.f32 %v819, %v820
  %v822 = vrot.slane %v821, 1
  %v823 = vadd.f32 %v821, %v822
  %v824 = vsel %vm73, %v740, 0.0
  %v825 = vrot.slane %v824, 4
  %v826 = vadd.f32 %v824, %v825
  %v827 = vrot.slane %v826, 2
  %v828 = vadd.f32 %v826, %v827
  %v829 = vrot.slane %v828, 1
  %v830 = vadd.f32 %v828, %v829
  %v831 = vsel %vm73, %v756, 0.0
  %v832 = vrot.slane %v831, 4
  %v833 = vadd.f32 %v831, %v832
  %v834 = vrot.slane %v833, 2
  %v835 = vadd.f32 %v833, %v834
  %v836 = vrot.slane %v835, 1
  %v837 = vadd.f32 %v835, %v836
  %v838 = vsel %vm73, %v741, 0.0
  %v839 = vrot.slane %v838, 4
  %v840 = vadd.f32 %v838, %v839
  %v841 = vrot.slane %v840, 2
  %v842 = vadd.f32 %v840, %v841
  %v843 = vrot.slane %v842, 1
  %v844 = vadd.f32 %v842, %v843
  %v845 = vsel %vm73, %v757, 0.0
  %v846 = vrot.slane %v845, 4
  %v847 = vadd.f32 %v845, %v846
  %v848 = vrot.slane %v847, 2
  %v849 = vadd.f32 %v847, %v848
  %v850 = vrot.slane %v849, 1
  %v851 = vadd.f32 %v849, %v850
  %v852 = vsel %vm73, %v742, 0.0
  %v853 = vrot.slane %v852, 4
  %v854 = vadd.f32 %v852, %v853
  %v855 = vrot.slane %v854, 2
  %v856 = vadd.f32 %v854, %v855
  %v857 = vrot.slane %v856, 1
  %v858 = vadd.f32 %v856, %v857
  %v859 = vsel %vm73, %v758, 0.0
  %v860 = vrot.slane %v859, 4
  %v861 = vadd.f32 %v859, %v860
  %v862 = vrot.slane %v861, 2
  %v863 = vadd.f32 %v861, %v862
  %v864 = vrot.slane %v863, 1
  %v865 = vadd.f32 %v863, %v864
  %v866 = vsel %vm73, %v743, 0.0
  %v867 = vrot.slane %v866, 4
  %v868 = vadd.f32 %v866, %v867
  %v869 = vrot.slane %v868, 2
  %v870 = vadd.f32 %v868, %v869
  %v871 = vrot.slane %v870, 1
  %v872 = vadd.f32 %v870, %v871
  %v873 = vsel %vm73, %v759, 0.0
  %v874 = vrot.slane %v873, 4
  %v875 = vadd.f32 %v873, %v874
  %v876 = vrot.slane %v875, 2
  %v877 = vadd.f32 %v875, %v876
  %v878 = vrot.slane %v877, 1
  %v879 = vadd.f32 %v877, %v878
  %v880 = vmul.f32 %v24, %v735
  %v881 = vmul.f32 %v26, %v735
  %v882 = vmul.f32 %v28, %v735
  %v883 = vmul.f32 %v30, %v735
  %v884 = vmul.f32 %v32, %v735
  %v885 = vmul.f32 %v34, %v735
  %v886 = vmul.f32 %v36, %v735
  %v887 = vmul.f32 %v38, %v735
  %v896 = vcombine.high %v880, %v880
  %v897 = vcombine.high %v881, %v881
  %v898 = vcombine.high %v882, %v882
  %v899 = vcombine.high %v883, %v883
  %v900 = vcombine.high %v884, %v884
  %v901 = vcombine.high %v885, %v885
  %v902 = vcombine.high %v886, %v886
  %v903 = vcombine.high %v887, %v887
  %v912 = vsel %vm73, %v880, 0.0
  %v913 = vrot.slane %v912, 4
  %v914 = vadd.f32 %v912, %v913
  %v915 = vrot.slane %v914, 2
  %v916 = vadd.f32 %v914, %v915
  %v917 = vrot.slane %v916, 1
  %v918 = vadd.f32 %v916, %v917
  %v919 = vsel %vm73, %v896, 0.0
  %v920 = vrot.slane %v919, 4
  %v921 = vadd.f32 %v919, %v920
  %v922 = vrot.slane %v921, 2
  %v923 = vadd.f32 %v921, %v922
  %v924 = vrot.slane %v923, 1
  %v925 = vadd.f32 %v923, %v924
  %v926 = vsel %vm73, %v881, 0.0
  %v927 = vrot.slane %v926, 4
  %v928 = vadd.f32 %v926, %v927
  %v929 = vrot.slane %v928, 2
  %v930 = vadd.f32 %v928, %v929
  %v931 = vrot.slane %v930, 1
  %v932 = vadd.f32 %v930, %v931
  %v933 = vsel %vm73, %v897, 0.0
  %v934 = vrot.slane %v933, 4
  %v935 = vadd.f32 %v933, %v934
  %v936 = vrot.slane %v935, 2
  %v937 = vadd.f32 %v935, %v936
  %v938 = vrot.slane %v937, 1
  %v939 = vadd.f32 %v937, %v938
  %v940 = vsel %vm73, %v882, 0.0
  %v941 = vrot.slane %v940, 4
  %v942 = vadd.f32 %v940, %v941
  %v943 = vrot.slane %v942, 2
  %v944 = vadd.f32 %v942, %v943
  %v945 = vrot.slane %v944, 1
  %v946 = vadd.f32 %v944, %v945
  %v947 = vsel %vm73, %v898, 0.0
  %v948 = vrot.slane %v947, 4
  %v949 = vadd.f32 %v947, %v948
  %v950 = vrot.slane %v949, 2
  %v951 = vadd.f32 %v949, %v950
  %v952 = vrot.slane %v951, 1
  %v953 = vadd.f32 %v951, %v952
  %v954 = vsel %vm73, %v883, 0.0
  %v955 = vrot.slane %v954, 4
  %v956 = vadd.f32 %v954, %v955
  %v957 = vrot.slane %v956, 2
  %v958 = vadd.f32 %v956, %v957
  %v959 = vrot.slane %v958, 1
  %v960 = vadd.f32 %v958, %v959
  %v961 = vsel %vm73, %v899, 0.0
  %v962 = vrot.slane %v961, 4
  %v963 = vadd.f32 %v961, %v962
  %v964 = vrot.slane %v963, 2
  %v965 = vadd.f32 %v963, %v964
  %v966 = vrot.slane %v965, 1
  %v967 = vadd.f32 %v965, %v966
  %v968 = vsel %vm73, %v884, 0.0
  %v969 = vrot.slane %v968, 4
  %v970 = vadd.f32 %v968, %v969
  %v971 = vrot.slane %v970, 2
  %v972 = vadd.f32 %v970, %v971
  %v973 = vrot.slane %v972, 1
  %v974 = vadd.f32 %v972, %v973
  %v975 = vsel %vm73, %v900, 0.0
  %v976 = vrot.slane %v975, 4
  %v977 = vadd.f32 %v975, %v976
  %v978 = vrot.slane %v977, 2
  %v979 = vadd.f32 %v977, %v978
  %v980 = vrot.slane %v979, 1
  %v981 = vadd.f32 %v979, %v980
  %v982 = vsel %vm73, %v885, 0.0
  %v983 = vrot.slane %v982, 4
  %v984 = vadd.f32 %v982, %v983
  %v985 = vrot.slane %v984, 2
  %v986 = vadd.f32 %v984, %v985
  %v987 = vrot.slane %v986, 1
  %v988 = vadd.f32 %v986, %v987
  %v989 = vsel %vm73, %v901, 0.0
  %v990 = vrot.slane %v989, 4
  %v991 = vadd.f32 %v989, %v990
  %v992 = vrot.slane %v991, 2
  %v993 = vadd.f32 %v991, %v992
  %v994 = vrot.slane %v993, 1
  %v995 = vadd.f32 %v993, %v994
  %v996 = vsel %vm73, %v886, 0.0
  %v997 = vrot.slane %v996, 4
  %v998 = vadd.f32 %v996, %v997
  %v999 = vrot.slane %v998, 2
  %v1000 = vadd.f32 %v998, %v999
  %v1001 = vrot.slane %v1000, 1
  %v1002 = vadd.f32 %v1000, %v1001
  %v1003 = vsel %vm73, %v902, 0.0
  %v1004 = vrot.slane %v1003, 4
  %v1005 = vadd.f32 %v1003, %v1004
  %v1006 = vrot.slane %v1005, 2
  %v1007 = vadd.f32 %v1005, %v1006
  %v1008 = vrot.slane %v1007, 1
  %v1009 = vadd.f32 %v1007, %v1008
  %v1010 = vsel %vm73, %v887, 0.0
  %v1011 = vrot.slane %v1010, 4
  %v1012 = vadd.f32 %v1010, %v1011
  %v1013 = vrot.slane %v1012, 2
  %v1014 = vadd.f32 %v1012, %v1013
  %v1015 = vrot.slane %v1014, 1
  %v1016 = vadd.f32 %v1014, %v1015
  %v1017 = vsel %vm73, %v903, 0.0
  %v1018 = vrot.slane %v1017, 4
  %v1019 = vadd.f32 %v1017, %v1018
  %v1020 = vrot.slane %v1019, 2
  %v1021 = vadd.f32 %v1019, %v1020
  %v1022 = vrot.slane %v1021, 1
  %v1023 = vadd.f32 %v1021, %v1022
  %v1024 = vmul.f32 %v23, %v735
  %v1025 = vmul.f32 %v25, %v735
  %v1026 = vmul.f32 %v27, %v735
  %v1027 = vmul.f32 %v29, %v735
  %v1028 = vmul.f32 %v31, %v735
  %v1029 = vmul.f32 %v33, %v735
  %v1030 = vmul.f32 %v35, %v735
  %v1031 = vmul.f32 %v37, %v735
  %v1040 = vcombine.high %v1024, %v1024
  %v1041 = vcombine.high %v1025, %v1025
  %v1042 = vcombine.high %v1026, %v1026
  %v1043 = vcombine.high %v1027, %v1027
  %v1044 = vcombine.high %v1028, %v1028
  %v1045 = vcombine.high %v1029, %v1029
  %v1046 = vcombine.high %v1030, %v1030
  %v1047 = vcombine.high %v1031, %v1031
  %v1056 = vsel %vm73, %v1024, 0.0
  %v1057 = vrot.slane %v1056, 4
  %v1058 = vadd.f32 %v1056, %v1057
  %v1059 = vrot.slane %v1058, 2
  %v1060 = vadd.f32 %v1058, %v1059
  %v1061 = vrot.slane %v1060, 1
  %v1062 = vadd.f32 %v1060, %v1061
  %v1063 = vsel %vm73, %v1040, 0.0
  %v1064 = vrot.slane %v1063, 4
  %v1065 = vadd.f32 %v1063, %v1064
  %v1066 = vrot.slane %v1065, 2
  %v1067 = vadd.f32 %v1065, %v1066
  %v1068 = vrot.slane %v1067, 1
  %v1069 = vadd.f32 %v1067, %v1068
  %v1070 = vsel %vm73, %v1025, 0.0
  %v1071 = vrot.slane %v1070, 4
  %v1072 = vadd.f32 %v1070, %v1071
  %v1073 = vrot.slane %v1072, 2
  %v1074 = vadd.f32 %v1072, %v1073
  %v1075 = vrot.slane %v1074, 1
  %v1076 = vadd.f32 %v1074, %v1075
  %v1077 = vsel %vm73, %v1041, 0.0
  %v1078 = vrot.slane %v1077, 4
  %v1079 = vadd.f32 %v1077, %v1078
  %v1080 = vrot.slane %v1079, 2
  %v1081 = vadd.f32 %v1079, %v1080
  %v1082 = vrot.slane %v1081, 1
  %v1083 = vadd.f32 %v1081, %v1082
  %v1084 = vsel %vm73, %v1026, 0.0
  %v1085 = vrot.slane %v1084, 4
  %v1086 = vadd.f32 %v1084, %v1085
  %v1087 = vrot.slane %v1086, 2
  %v1088 = vadd.f32 %v1086, %v1087
  %v1089 = vrot.slane %v1088, 1
  %v1090 = vadd.f32 %v1088, %v1089
  %v1091 = vsel %vm73, %v1042, 0.0
  %v1092 = vrot.slane %v1091, 4
  %v1093 = vadd.f32 %v1091, %v1092
  %v1094 = vrot.slane %v1093, 2
  %v1095 = vadd.f32 %v1093, %v1094
  %v1096 = vrot.slane %v1095, 1
  %v1097 = vadd.f32 %v1095, %v1096
  %v1098 = vsel %vm73, %v1027, 0.0
  %v1099 = vrot.slane %v1098, 4
  %v1100 = vadd.f32 %v1098, %v1099
  %v1101 = vrot.slane %v1100, 2
  %v1102 = vadd.f32 %v1100, %v1101
  %v1103 = vrot.slane %v1102, 1
  %v1104 = vadd.f32 %v1102, %v1103
  %v1105 = vsel %vm73, %v1043, 0.0
  %v1106 = vrot.slane %v1105, 4
  %v1107 = vadd.f32 %v1105, %v1106
  %v1108 = vrot.slane %v1107, 2
  %v1109 = vadd.f32 %v1107, %v1108
  %v1110 = vrot.slane %v1109, 1
  %v1111 = vadd.f32 %v1109, %v1110
  %v1112 = vsel %vm73, %v1028, 0.0
  %v1113 = vrot.slane %v1112, 4
  %v1114 = vadd.f32 %v1112, %v1113
  %v1115 = vrot.slane %v1114, 2
  %v1116 = vadd.f32 %v1114, %v1115
  %v1117 = vrot.slane %v1116, 1
  %v1118 = vadd.f32 %v1116, %v1117
  %v1119 = vsel %vm73, %v1044, 0.0
  %v1120 = vrot.slane %v1119, 4
  %v1121 = vadd.f32 %v1119, %v1120
  %v1122 = vrot.slane %v1121, 2
  %v1123 = vadd.f32 %v1121, %v1122
  %v1124 = vrot.slane %v1123, 1
  %v1125 = vadd.f32 %v1123, %v1124
  %v1126 = vsel %vm73, %v1029, 0.0
  %v1127 = vrot.slane %v1126, 4
  %v1128 = vadd.f32 %v1126, %v1127
  %v1129 = vrot.slane %v1128, 2
  %v1130 = vadd.f32 %v1128, %v1129
  %v1131 = vrot.slane %v1130, 1
  %v1132 = vadd.f32 %v1130, %v1131
  %v1133 = vsel %vm73, %v1045, 0.0
  %v1134 = vrot.slane %v1133, 4
  %v1135 = vadd.f32 %v1133, %v1134
  %v1136 = vrot.slane %v1135, 2
  %v1137 = vadd.f32 %v1135, %v1136
  %v1138 = vrot.slane %v1137, 1
  %v1139 = vadd.f32 %v1137, %v1138
  %v1140 = vsel %vm73, %v1030, 0.0
  %v1141 = vrot.slane %v1140, 4
  %v1142 = vadd.f32 %v1140, %v1141
  %v1143 = vrot.slane %v1142, 2
  %v1144 = vadd.f32 %v1142, %v1143
  %v1145 = vrot.slane %v1144, 1
  %v1146 = vadd.f32 %v1144, %v1145
  %v1147 = vsel %vm73, %v1046, 0.0
  %v1148 = vrot.slane %v1147, 4
  %v1149 = vadd.f32 %v1147, %v1148
  %v1150 = vrot.slane %v1149, 2
  %v1151 = vadd.f32 %v1149, %v1150
  %v1152 = vrot.slane %v1151, 1
  %v1153 = vadd.f32 %v1151, %v1152
  %v1154 = vsel %vm73, %v1031, 0.0
  %v1155 = vrot.slane %v1154, 4
  %v1156 = vadd.f32 %v1154, %v1155
  %v1157 = vrot.slane %v1156, 2
  %v1158 = vadd.f32 %v1156, %v1157
  %v1159 = vrot.slane %v1158, 1
  %v1160 = vadd.f32 %v1158, %v1159
  %v1161 = vsel %vm73, %v1047, 0.0
  %v1162 = vrot.slane %v1161, 4
  %v1163 = vadd.f32 %v1161, %v1162
  %v1164 = vrot.slane %v1163, 2
  %v1165 = vadd.f32 %v1163, %v1164
  %v1166 = vrot.slane %v1165, 1
  %v1167 = vadd.f32 %v1165, %v1166
  %v1168 = vmul.f32 %v24, %v734
  %v1169 = vmul.f32 %v26, %v734
  %v1170 = vmul.f32 %v28, %v734
  %v1171 = vmul.f32 %v30, %v734
  %v1172 = vmul.f32 %v32, %v734
  %v1173 = vmul.f32 %v34, %v734
  %v1174 = vmul.f32 %v36, %v734
  %v1175 = vmul.f32 %v38, %v734
  %v1184 = vcombine.high %v1168, %v1168
  %v1185 = vcombine.high %v1169, %v1169
  %v1186 = vcombine.high %v1170, %v1170
  %v1187 = vcombine.high %v1171, %v1171
  %v1188 = vcombine.high %v1172, %v1172
  %v1189 = vcombine.high %v1173, %v1173
  %v1190 = vcombine.high %v1174, %v1174
  %v1191 = vcombine.high %v1175, %v1175
  %v1200 = vsel %vm73, %v1168, 0.0
  %v1201 = vrot.slane %v1200, 4
  %v1202 = vadd.f32 %v1200, %v1201
  %v1203 = vrot.slane %v1202, 2
  %v1204 = vadd.f32 %v1202, %v1203
  %v1205 = vrot.slane %v1204, 1
  %v1206 = vadd.f32 %v1204, %v1205
  %v1207 = vsel %vm73, %v1184, 0.0
  %v1208 = vrot.slane %v1207, 4
  %v1209 = vadd.f32 %v1207, %v1208
  %v1210 = vrot.slane %v1209, 2
  %v1211 = vadd.f32 %v1209, %v1210
  %v1212 = vrot.slane %v1211, 1
  %v1213 = vadd.f32 %v1211, %v1212
  %v1214 = vsel %vm73, %v1169, 0.0
  %v1215 = vrot.slane %v1214, 4
  %v1216 = vadd.f32 %v1214, %v1215
  %v1217 = vrot.slane %v1216, 2
  %v1218 = vadd.f32 %v1216, %v1217
  %v1219 = vrot.slane %v1218, 1
  %v1220 = vadd.f32 %v1218, %v1219
  %v1221 = vsel %vm73, %v1185, 0.0
  %v1222 = vrot.slane %v1221, 4
  %v1223 = vadd.f32 %v1221, %v1222
  %v1224 = vrot.slane %v1223, 2
  %v1225 = vadd.f32 %v1223, %v1224
  %v1226 = vrot.slane %v1225, 1
  %v1227 = vadd.f32 %v1225, %v1226
  %v1228 = vsel %vm73, %v1170, 0.0
  %v1229 = vrot.slane %v1228, 4
  %v1230 = vadd.f32 %v1228, %v1229
  %v1231 = vrot.slane %v1230, 2
  %v1232 = vadd.f32 %v1230, %v1231
  %v1233 = vrot.slane %v1232, 1
  %v1234 = vadd.f32 %v1232, %v1233
  %v1235 = vsel %vm73, %v1186, 0.0
  %v1236 = vrot.slane %v1235, 4
  %v1237 = vadd.f32 %v1235, %v1236
  %v1238 = vrot.slane %v1237, 2
  %v1239 = vadd.f32 %v1237, %v1238
  %v1240 = vrot.slane %v1239, 1
  %v1241 = vadd.f32 %v1239, %v1240
  %v1242 = vsel %vm73, %v1171, 0.0
  %v1243 = vrot.slane %v1242, 4
  %v1244 = vadd.f32 %v1242, %v1243
  %v1245 = vrot.slane %v1244, 2
  %v1246 = vadd.f32 %v1244, %v1245
  %v1247 = vrot.slane %v1246, 1
  %v1248 = vadd.f32 %v1246, %v1247
  %v1249 = vsel %vm73, %v1187, 0.0
  %v1250 = vrot.slane %v1249, 4
  %v1251 = vadd.f32 %v1249, %v1250
  %v1252 = vrot.slane %v1251, 2
  %v1253 = vadd.f32 %v1251, %v1252
  %v1254 = vrot.slane %v1253, 1
  %v1255 = vadd.f32 %v1253, %v1254
  %v1256 = vsel %vm73, %v1172, 0.0
  %v1257 = vrot.slane %v1256, 4
  %v1258 = vadd.f32 %v1256, %v1257
  %v1259 = vrot.slane %v1258, 2
  %v1260 = vadd.f32 %v1258, %v1259
  %v1261 = vrot.slane %v1260, 1
  %v1262 = vadd.f32 %v1260, %v1261
  %v1263 = vsel %vm73, %v1188, 0.0
  %v1264 = vrot.slane %v1263, 4
  %v1265 = vadd.f32 %v1263, %v1264
  %v1266 = vrot.slane %v1265, 2
  %v1267 = vadd.f32 %v1265, %v1266
  %v1268 = vrot.slane %v1267, 1
  %v1269 = vadd.f32 %v1267, %v1268
  %v1270 = vsel %vm73, %v1173, 0.0
  %v1271 = vrot.slane %v1270, 4
  %v1272 = vadd.f32 %v1270, %v1271
  %v1273 = vrot.slane %v1272, 2
  %v1274 = vadd.f32 %v1272, %v1273
  %v1275 = vrot.slane %v1274, 1
  %v1276 = vadd.f32 %v1274, %v1275
  %v1277 = vsel %vm73, %v1189, 0.0
  %v1278 = vrot.slane %v1277, 4
  %v1279 = vadd.f32 %v1277, %v1278
  %v1280 = vrot.slane %v1279, 2
  %v1281 = vadd.f32 %v1279, %v1280
  %v1282 = vrot.slane %v1281, 1
  %v1283 = vadd.f32 %v1281, %v1282
  %v1284 = vsel %vm73, %v1174, 0.0
  %v1285 = vrot.slane %v1284, 4
  %v1286 = vadd.f32 %v1284, %v1285
  %v1287 = vrot.slane %v1286, 2
  %v1288 = vadd.f32 %v1286, %v1287
  %v1289 = vrot.slane %v1288, 1
  %v1290 = vadd.f32 %v1288, %v1289
  %v1291 = vsel %vm73, %v1190, 0.0
  %v1292 = vrot.slane %v1291, 4
  %v1293 = vadd.f32 %v1291, %v1292
  %v1294 = vrot.slane %v1293, 2
  %v1295 = vadd.f32 %v1293, %v1294
  %v1296 = vrot.slane %v1295, 1
  %v1297 = vadd.f32 %v1295, %v1296
  %v1298 = vsel %vm73, %v1175, 0.0
  %v1299 = vrot.slane %v1298, 4
  %v1300 = vadd.f32 %v1298, %v1299
  %v1301 = vrot.slane %v1300, 2
  %v1302 = vadd.f32 %v1300, %v1301
  %v1303 = vrot.slane %v1302, 1
  %v1304 = vadd.f32 %v1302, %v1303
  %v1305 = vsel %vm73, %v1191, 0.0
  %v1306 = vrot.slane %v1305, 4
  %v1307 = vadd.f32 %v1305, %v1306
  %v1308 = vrot.slane %v1307, 2
  %v1309 = vadd.f32 %v1307, %v1308
  %v1310 = vrot.slane %v1309, 1
  %v1311 = vadd.f32 %v1309, %v1310
  %s1312 = scalar_lea.vmem %s2, 32
  %v1313 = vld [vmem:[%s1312] sm:$0xff]
  %v1314 = vld [vmem:[%s1312 + $0x8] sm:$0xff]
  %v1315 = vsub.f32 %v774, %v918
  %v1316 = vsub.f32 %v781, %v925
  %v1317 = vsub.f32 %v788, %v932
  %v1318 = vsub.f32 %v795, %v939
  %v1319 = vsub.f32 %v802, %v946
  %v1320 = vsub.f32 %v809, %v953
  %v1321 = vsub.f32 %v816, %v960
  %v1322 = vsub.f32 %v823, %v967
  %v1323 = vsub.f32 %v830, %v974
  %v1324 = vsub.f32 %v837, %v981
  %v1325 = vsub.f32 %v844, %v988
  %v1326 = vsub.f32 %v851, %v995
  %v1327 = vsub.f32 %v858, %v1002
  %v1328 = vsub.f32 %v865, %v1009
  %v1329 = vsub.f32 %v872, %v1016
  %v1330 = vsub.f32 %v879, %v1023
  %v1347 = vsel %vm652, %v1317, %v1315
  %v1348 = vsel %vm654, %v1319, %v1347
  %v1349 = vsel %vm656, %v1321, %v1348
  %v1350 = vsel %vm658, %v1323, %v1349
  %v1351 = vsel %vm660, %v1325, %v1350
  %v1352 = vsel %vm662, %v1327, %v1351
  %v1353 = vsel %vm664, %v1329, %v1352
  %v1354 = vsel %vm652, %v1318, %v1316
  %v1355 = vsel %vm654, %v1320, %v1354
  %v1356 = vsel %vm656, %v1322, %v1355
  %v1357 = vsel %vm658, %v1324, %v1356
  %v1358 = vsel %vm660, %v1326, %v1357
  %v1359 = vsel %vm662, %v1328, %v1358
  %v1360 = vsel %vm664, %v1330, %v1359
  %v1363 = vadd.f32 %v1313, %v1353
  %v1364 = vadd.f32 %v1314, %v1360
  %1365 = vst [vmem:[%s1312] sm:$0xff] %v1363
  %1366 = vst [vmem:[%s1312 + $0x8] sm:$0xff] %v1364
  %v1367 = vld [vmem:[%s1312 + $0x10] sm:$0xff]
  %v1368 = vld [vmem:[%s1312 + $0x18] sm:$0xff]
  %v1369 = vadd.f32 %v1062, %v1206
  %v1370 = vadd.f32 %v1069, %v1213
  %v1371 = vadd.f32 %v1076, %v1220
  %v1372 = vadd.f32 %v1083, %v1227
  %v1373 = vadd.f32 %v1090, %v1234
  %v1374 = vadd.f32 %v1097, %v1241
  %v1375 = vadd.f32 %v1104, %v1248
  %v1376 = vadd.f32 %v1111, %v1255
  %v1377 = vadd.f32 %v1118, %v1262
  %v1378 = vadd.f32 %v1125, %v1269
  %v1379 = vadd.f32 %v1132, %v1276
  %v1380 = vadd.f32 %v1139, %v1283
  %v1381 = vadd.f32 %v1146, %v1290
  %v1382 = vadd.f32 %v1153, %v1297
  %v1383 = vadd.f32 %v1160, %v1304
  %v1384 = vadd.f32 %v1167, %v1311
  %v1401 = vsel %vm652, %v1371, %v1369
  %v1402 = vsel %vm654, %v1373, %v1401
  %v1403 = vsel %vm656, %v1375, %v1402
  %v1404 = vsel %vm658, %v1377, %v1403
  %v1405 = vsel %vm660, %v1379, %v1404
  %v1406 = vsel %vm662, %v1381, %v1405
  %v1407 = vsel %vm664, %v1383, %v1406
  %v1408 = vsel %vm652, %v1372, %v1370
  %v1409 = vsel %vm654, %v1374, %v1408
  %v1410 = vsel %vm656, %v1376, %v1409
  %v1411 = vsel %vm658, %v1378, %v1410
  %v1412 = vsel %vm660, %v1380, %v1411
  %v1413 = vsel %vm662, %v1382, %v1412
  %v1414 = vsel %vm664, %v1384, %v1413
  %v1417 = vadd.f32 %v1367, %v1407
  %v1418 = vadd.f32 %v1368, %v1414
  %1419 = vst [vmem:[%s1312 + $0x10] sm:$0xff] %v1417
  %1420 = vst [vmem:[%s1312 + $0x18] sm:$0xff] %v1418
  // Predicated region
  $region14: #{_lambda_.20} parent=0 // pred_check
    _
  $region15: #{_lambda_.20} parent=0 // pred_check_branch
    %1422 = sbr.rel (0) target = $region17
  $region16: #{_lambda_.20} parent=0 // pred_region
    _
  $region17: #{_lambda_.20} parent=0 // pred_fallthru
    _
  // Predicated region
  $region18: #{_lambda_.20} parent=0 // pred_check
    _
  $region19: #{_lambda_.20} parent=0 // pred_check_branch
    %1424 = sbr.rel (0) target = $region21
  $region20: #{_lambda_.20} parent=0 // pred_region
    _
  $region21: #{_lambda_.20} parent=0 // pred_fallthru
    _

// kernel: reverse.17
$region0: #{reverse.17}
  %s0 = inlined_call_operand.vmem [shape: f32[2,8,16,7], index: 0, kind: input, shape index: {}]
  %s1 = inlined_call_operand.vmem [shape: f32[2,8,16,7], index: 1, kind: output, shape index: {}]
  $region1: #{reverse.17} parent=0
    #allocation0 [shape = 'u8[131072]{0}', space=vmem, size = 0x20000, scoped, tag = 'operand span for operand 0']
    #allocation1 [shape = 'u8[65536]{0}', space=vmem, size = 0x10000, scoped, tag = 'operand span for operand 1']
    %s2 = scalar_lea.vmem [#allocation0], 8
    // Predicated region
    $region2: #{reverse.17} parent=1 // pred_check
      _
    $region3: #{reverse.17} parent=1 // pred_check_branch
      %4 = sbr.rel (0) target = $region5
    $region4: #{reverse.17} parent=1 // pred_region
      // Predicated region
      $region6: #{reverse.17} parent=4 // pred_check
        _
      $region7: #{reverse.17} parent=4 // pred_check_branch
        %6 = sbr.rel (0) target = $region9
      $region8: #{reverse.17} parent=4 // pred_region
        // Predicated region
        $region21: #{reverse.17} parent=8 // pred_check
          _
        $region22: #{reverse.17} parent=8 // pred_check_branch
          %52 = sbr.rel (0) target = $region24
        $region23: #{reverse.17} parent=8 // pred_region
          loop: start=0, step=1, limit=1
          $region25: #{reverse.17} parent=23 // loop_pre_header
            _
          $region26: #{reverse.17} parent=23 // loop_header
            %s54 = sphi 0, %s58
            %p55 = scmp.ge.s32.totalorder %s54, 1
            %s59 = sphi %s0, %s0
            %s60 = sphi %s2, %s2
          $region27: #{reverse.17} parent=23 // loop_header_branch
            %57 = sbr.rel (%p55) target = $region31
          $region28: #{reverse.17} parent=23 // loop_body
            %v61 = vld [vmem:[%s59] sm:$0xff]
            %62 = vst [vmem:[%s60] sm:$0xff] %v61
            %v63 = vld [vmem:[%s59 + $0x8] sm:$0xff]
            %64 = vst [vmem:[%s60 + $0x10] sm:$0xff] %v63
            %v65 = vld [vmem:[%s59 + $0x10] sm:$0xff]
            %66 = vst [vmem:[%s60 + $0x20] sm:$0xff] %v65
            %v67 = vld [vmem:[%s59 + $0x18] sm:$0xff]
            %68 = vst [vmem:[%s60 + $0x30] sm:$0xff] %v67
            %v69 = vld [vmem:[%s59 + $0x20] sm:$0xff]
            %70 = vst [vmem:[%s60 + $0x40] sm:$0xff] %v69
            %v71 = vld [vmem:[%s59 + $0x28] sm:$0xff]
            %72 = vst [vmem:[%s60 + $0x50] sm:$0xff] %v71
            %v73 = vld [vmem:[%s59 + $0x30] sm:$0xff]
            %74 = vst [vmem:[%s60 + $0x60] sm:$0xff] %v73
            %v75 = vld [vmem:[%s59 + $0x38] sm:$0xff]
            %76 = vst [vmem:[%s60 + $0x70] sm:$0xff] %v75
            %v77 = vld [vmem:[%s59 + $0x40] sm:$0xff]
            %78 = vst [vmem:[%s60 + $0x80] sm:$0xff] %v77
            %v79 = vld [vmem:[%s59 + $0x48] sm:$0xff]
            %80 = vst [vmem:[%s60 + $0x90] sm:$0xff] %v79
            %v81 = vld [vmem:[%s59 + $0x50] sm:$0xff]
            %82 = vst [vmem:[%s60 + $0xa0] sm:$0xff] %v81
            %v83 = vld [vmem:[%s59 + $0x58] sm:$0xff]
            %84 = vst [vmem:[%s60 + $0xb0] sm:$0xff] %v83
            %v85 = vld [vmem:[%s59 + $0x60] sm:$0xff]
            %86 = vst [vmem:[%s60 + $0xc0] sm:$0xff] %v85
            %v87 = vld [vmem:[%s59 + $0x68] sm:$0xff]
            %88 = vst [vmem:[%s60 + $0xd0] sm:$0xff] %v87
            %v89 = vld [vmem:[%s59 + $0x70] sm:$0xff]
            %90 = vst [vmem:[%s60 + $0xe0] sm:$0xff] %v89
            %v91 = vld [vmem:[%s59 + $0x78] sm:$0xff]
            %92 = vst [vmem:[%s60 + $0xf0] sm:$0xff] %v91
          $region29: #{reverse.17} parent=23 // loop_footer
            %s58 = sadd.s32 1, %s54
          $region30: #{reverse.17} parent=23 // loop_footer_branch
            %53 = sbr.rel target = $region26
          $region31: #{reverse.17} parent=23 // loop_exit
            _
        $region24: #{reverse.17} parent=8 // pred_fallthru
          _
        // Predicated region
        $region32: #{reverse.17} parent=8 // pred_check
          _
        $region33: #{reverse.17} parent=8 // pred_check_branch
          %94 = sbr.rel target = $region35
        $region34: #{reverse.17} parent=8 // pred_region
          _
        $region35: #{reverse.17} parent=8 // pred_fallthru
          _
      $region9: #{reverse.17} parent=4 // pred_fallthru
        _
      // Predicated region
      $region10: #{reverse.17} parent=4 // pred_check
        _
      $region11: #{reverse.17} parent=4 // pred_check_branch
        %8 = sbr.rel target = $region13
      $region12: #{reverse.17} parent=4 // pred_region
        %s10 = ssub.s32 256, 1
        loop: start=0, step=1, limit=1
        $region14: #{reverse.17} parent=12 // loop_pre_header
          _
        $region15: #{reverse.17} parent=12 // loop_header
          %s12 = sphi 0, %s16
          %p13 = scmp.ge.s32.totalorder %s12, 1
          %s17 = sphi %s0, %s0
          %s18 = sphi %s2, %s2
        $region16: #{reverse.17} parent=12 // loop_header_branch
          %15 = sbr.rel (%p13) target = $region20
        $region17: #{reverse.17} parent=12 // loop_body
          %v19 = vld [vmem:[%s17] sm:%s10]
          %20 = vst [vmem:[%s18] sm:%s10] %v19
          %v21 = vld [vmem:[%s17 + $0x8] sm:%s10]
          %22 = vst [vmem:[%s18 + $0x10] sm:%s10] %v21
          %v23 = vld [vmem:[%s17 + $0x10] sm:%s10]
          %24 = vst [vmem:[%s18 + $0x20] sm:%s10] %v23
          %v25 = vld [vmem:[%s17 + $0x18] sm:%s10]
          %26 = vst [vmem:[%s18 + $0x30] sm:%s10] %v25
          %v27 = vld [vmem:[%s17 + $0x20] sm:%s10]
          %28 = vst [vmem:[%s18 + $0x40] sm:%s10] %v27
          %v29 = vld [vmem:[%s17 + $0x28] sm:%s10]
          %30 = vst [vmem:[%s18 + $0x50] sm:%s10] %v29
          %v31 = vld [vmem:[%s17 + $0x30] sm:%s10]
          %32 = vst [vmem:[%s18 + $0x60] sm:%s10] %v31
          %v33 = vld [vmem:[%s17 + $0x38] sm:%s10]
          %34 = vst [vmem:[%s18 + $0x70] sm:%s10] %v33
          %v35 = vld [vmem:[%s17 + $0x40] sm:%s10]
          %36 = vst [vmem:[%s18 + $0x80] sm:%s10] %v35
          %v37 = vld [vmem:[%s17 + $0x48] sm:%s10]
          %38 = vst [vmem:[%s18 + $0x90] sm:%s10] %v37
          %v39 = vld [vmem:[%s17 + $0x50] sm:%s10]
          %40 = vst [vmem:[%s18 + $0xa0] sm:%s10] %v39
          %v41 = vld [vmem:[%s17 + $0x58] sm:%s10]
          %42 = vst [vmem:[%s18 + $0xb0] sm:%s10] %v41
          %v43 = vld [vmem:[%s17 + $0x60] sm:%s10]
          %44 = vst [vmem:[%s18 + $0xc0] sm:%s10] %v43
          %v45 = vld [vmem:[%s17 + $0x68] sm:%s10]
          %46 = vst [vmem:[%s18 + $0xd0] sm:%s10] %v45
          %v47 = vld [vmem:[%s17 + $0x70] sm:%s10]
          %48 = vst [vmem:[%s18 + $0xe0] sm:%s10] %v47
          %v49 = vld [vmem:[%s17 + $0x78] sm:%s10]
          %50 = vst [vmem:[%s18 + $0xf0] sm:%s10] %v49
        $region18: #{reverse.17} parent=12 // loop_footer
          %s16 = sadd.s32 1, %s12
        $region19: #{reverse.17} parent=12 // loop_footer_branch
          %11 = sbr.rel target = $region15
        $region20: #{reverse.17} parent=12 // loop_exit
          _
      $region13: #{reverse.17} parent=4 // pred_fallthru
        _
    $region5: #{reverse.17} parent=1 // pred_fallthru
      _
    %95 = vnop
    %s96 = scalar_lea.vmem [#allocation0], 7
    %v97 = vld [vmem:[%s96] ss:$-1 sm:$0xff]
    %v98 = vrot.slane %v97, 1
    %99 = vst [vmem:[#allocation1] sm:$0xff] %v98
    %s100 = scalar_lea.vmem [#allocation0], 8
    %s101 = scalar_lea.vmem %s100, 7 [#allocation0]
    %v102 = vld [vmem:[%s101] ss:$-1 sm:$0xff]
    %v103 = vrot.slane %v102, 1
    %v104 = vlaneseq
    %v105 = vshrl.u32 %v104, 7
    %vm106 = vcmp.lt.s32.totalorder %v105, 7
    %107 = vst.msk [vmem:[#allocation1] sm:$0xff] %vm106, %v103
    %s108 = scalar_lea.vmem [#allocation1], 8
    %s109 = scalar_lea.vmem [#allocation0], 16
    %s110 = scalar_lea.vmem %s109, 7 [#allocation0]
    %v111 = vld [vmem:[%s110] ss:$-1 sm:$0xff]
    %v112 = vrot.slane %v111, 1
    %113 = vst [vmem:[%s108] sm:$0xff] %v112
    %s114 = scalar_lea.vmem %s109, 8 [#allocation0]
    %s115 = scalar_lea.vmem %s114, 7 [#allocation0]
    %v116 = vld [vmem:[%s115] ss:$-1 sm:$0xff]
    %v117 = vrot.slane %v116, 1
    %v118 = vlaneseq
    %v119 = vshrl.u32 %v118, 7
    %vm120 = vcmp.lt.s32.totalorder %v119, 7
    %121 = vst.msk [vmem:[%s108] sm:$0xff] %vm120, %v117
    %s122 = scalar_lea.vmem [#allocation1], 16
    %s123 = scalar_lea.vmem [#allocation0], 32
    %s124 = scalar_lea.vmem %s123, 7 [#allocation0]
    %v125 = vld [vmem:[%s124] ss:$-1 sm:$0xff]
    %v126 = vrot.slane %v125, 1
    %127 = vst [vmem:[%s122] sm:$0xff] %v126
    %s128 = scalar_lea.vmem %s123, 8 [#allocation0]
    %s129 = scalar_lea.vmem %s128, 7 [#allocation0]
    %v130 = vld [vmem:[%s129] ss:$-1 sm:$0xff]
    %v131 = vrot.slane %v130, 1
    %v132 = vlaneseq
    %v133 = vshrl.u32 %v132, 7
    %vm134 = vcmp.lt.s32.totalorder %v133, 7
    %135 = vst.msk [vmem:[%s122] sm:$0xff] %vm134, %v131
    %s136 = scalar_lea.vmem [#allocation1], 24
    %s137 = scalar_lea.vmem [#allocation0], 48
    %s138 = scalar_lea.vmem %s137, 7 [#allocation0]
    %v139 = vld [vmem:[%s138] ss:$-1 sm:$0xff]
    %v140 = vrot.slane %v139, 1
    %141 = vst [vmem:[%s136] sm:$0xff] %v140
    %s142 = scalar_lea.vmem %s137, 8 [#allocation0]
    %s143 = scalar_lea.vmem %s142, 7 [#allocation0]
    %v144 = vld [vmem:[%s143] ss:$-1 sm:$0xff]
    %v145 = vrot.slane %v144, 1
    %v146 = vlaneseq
    %v147 = vshrl.u32 %v146, 7
    %vm148 = vcmp.lt.s32.totalorder %v147, 7
    %149 = vst.msk [vmem:[%s136] sm:$0xff] %vm148, %v145
    %s150 = scalar_lea.vmem [#allocation1], 32
    %s151 = scalar_lea.vmem [#allocation0], 64
    %s152 = scalar_lea.vmem %s151, 7 [#allocation0]
    %v153 = vld [vmem:[%s152] ss:$-1 sm:$0xff]
    %v154 = vrot.slane %v153, 1
    %155 = vst [vmem:[%s150] sm:$0xff] %v154
    %s156 = scalar_lea.vmem %s151, 8 [#allocation0]
    %s157 = scalar_lea.vmem %s156, 7 [#allocation0]
    %v158 = vld [vmem:[%s157] ss:$-1 sm:$0xff]
    %v159 = vrot.slane %v158, 1
    %v160 = vlaneseq
    %v161 = vshrl.u32 %v160, 7
    %vm162 = vcmp.lt.s32.totalorder %v161, 7
    %163 = vst.msk [vmem:[%s150] sm:$0xff] %vm162, %v159
    %s164 = scalar_lea.vmem [#allocation1], 40
    %s165 = scalar_lea.vmem [#allocation0], 80
    %s166 = scalar_lea.vmem %s165, 7 [#allocation0]
    %v167 = vld [vmem:[%s166] ss:$-1 sm:$0xff]
    %v168 = vrot.slane %v167, 1
    %169 = vst [vmem:[%s164] sm:$0xff] %v168
    %s170 = scalar_lea.vmem %s165, 8 [#allocation0]
    %s171 = scalar_lea.vmem %s170, 7 [#allocation0]
    %v172 = vld [vmem:[%s171] ss:$-1 sm:$0xff]
    %v173 = vrot.slane %v172, 1
    %v174 = vlaneseq
    %v175 = vshrl.u32 %v174, 7
    %vm176 = vcmp.lt.s32.totalorder %v175, 7
    %177 = vst.msk [vmem:[%s164] sm:$0xff] %vm176, %v173
    %s178 = scalar_lea.vmem [#allocation1], 48
    %s179 = scalar_lea.vmem [#allocation0], 96
    %s180 = scalar_lea.vmem %s179, 7 [#allocation0]
    %v181 = vld [vmem:[%s180] ss:$-1 sm:$0xff]
    %v182 = vrot.slane %v181, 1
    %183 = vst [vmem:[%s178] sm:$0xff] %v182
    %s184 = scalar_lea.vmem %s179, 8 [#allocation0]
    %s185 = scalar_lea.vmem %s184, 7 [#allocation0]
    %v186 = vld [vmem:[%s185] ss:$-1 sm:$0xff]
    %v187 = vrot.slane %v186, 1
    %v188 = vlaneseq
    %v189 = vshrl.u32 %v188, 7
    %vm190 = vcmp.lt.s32.totalorder %v189, 7
    %191 = vst.msk [vmem:[%s178] sm:$0xff] %vm190, %v187
    %s192 = scalar_lea.vmem [#allocation1], 56
    %s193 = scalar_lea.vmem [#allocation0], 112
    %s194 = scalar_lea.vmem %s193, 7 [#allocation0]
    %v195 = vld [vmem:[%s194] ss:$-1 sm:$0xff]
    %v196 = vrot.slane %v195, 1
    %197 = vst [vmem:[%s192] sm:$0xff] %v196
    %s198 = scalar_lea.vmem %s193, 8 [#allocation0]
    %s199 = scalar_lea.vmem %s198, 7 [#allocation0]
    %v200 = vld [vmem:[%s199] ss:$-1 sm:$0xff]
    %v201 = vrot.slane %v200, 1
    %v202 = vlaneseq
    %v203 = vshrl.u32 %v202, 7
    %vm204 = vcmp.lt.s32.totalorder %v203, 7
    %205 = vst.msk [vmem:[%s192] sm:$0xff] %vm204, %v201
    %s206 = scalar_lea.vmem [#allocation1], 64
    %s207 = scalar_lea.vmem [#allocation0], 128
    %s208 = scalar_lea.vmem %s207, 7 [#allocation0]
    %v209 = vld [vmem:[%s208] ss:$-1 sm:$0xff]
    %v210 = vrot.slane %v209, 1
    %211 = vst [vmem:[%s206] sm:$0xff] %v210
    %s212 = scalar_lea.vmem %s207, 8 [#allocation0]
    %s213 = scalar_lea.vmem %s212, 7 [#allocation0]
    %v214 = vld [vmem:[%s213] ss:$-1 sm:$0xff]
    %v215 = vrot.slane %v214, 1
    %v216 = vlaneseq
    %v217 = vshrl.u32 %v216, 7
    %vm218 = vcmp.lt.s32.totalorder %v217, 7
    %219 = vst.msk [vmem:[%s206] sm:$0xff] %vm218, %v215
    %s220 = scalar_lea.vmem [#allocation1], 72
    %s221 = scalar_lea.vmem [#allocation0], 144
    %s222 = scalar_lea.vmem %s221, 7 [#allocation0]
    %v223 = vld [vmem:[%s222] ss:$-1 sm:$0xff]
    %v224 = vrot.slane %v223, 1
    %225 = vst [vmem:[%s220] sm:$0xff] %v224
    %s226 = scalar_lea.vmem %s221, 8 [#allocation0]
    %s227 = scalar_lea.vmem %s226, 7 [#allocation0]
    %v228 = vld [vmem:[%s227] ss:$-1 sm:$0xff]
    %v229 = vrot.slane %v228, 1
    %v230 = vlaneseq
    %v231 = vshrl.u32 %v230, 7
    %vm232 = vcmp.lt.s32.totalorder %v231, 7
    %233 = vst.msk [vmem:[%s220] sm:$0xff] %vm232, %v229
    %s234 = scalar_lea.vmem [#allocation1], 80
    %s235 = scalar_lea.vmem [#allocation0], 160
    %s236 = scalar_lea.vmem %s235, 7 [#allocation0]
    %v237 = vld [vmem:[%s236] ss:$-1 sm:$0xff]
    %v238 = vrot.slane %v237, 1
    %239 = vst [vmem:[%s234] sm:$0xff] %v238
    %s240 = scalar_lea.vmem %s235, 8 [#allocation0]
    %s241 = scalar_lea.vmem %s240, 7 [#allocation0]
    %v242 = vld [vmem:[%s241] ss:$-1 sm:$0xff]
    %v243 = vrot.slane %v242, 1
    %v244 = vlaneseq
    %v245 = vshrl.u32 %v244, 7
    %vm246 = vcmp.lt.s32.totalorder %v245, 7
    %247 = vst.msk [vmem:[%s234] sm:$0xff] %vm246, %v243
    %s248 = scalar_lea.vmem [#allocation1], 88
    %s249 = scalar_lea.vmem [#allocation0], 176
    %s250 = scalar_lea.vmem %s249, 7 [#allocation0]
    %v251 = vld [vmem:[%s250] ss:$-1 sm:$0xff]
    %v252 = vrot.slane %v251, 1
    %253 = vst [vmem:[%s248] sm:$0xff] %v252
    %s254 = scalar_lea.vmem %s249, 8 [#allocation0]
    %s255 = scalar_lea.vmem %s254, 7 [#allocation0]
    %v256 = vld [vmem:[%s255] ss:$-1 sm:$0xff]
    %v257 = vrot.slane %v256, 1
    %v258 = vlaneseq
    %v259 = vshrl.u32 %v258, 7
    %vm260 = vcmp.lt.s32.totalorder %v259, 7
    %261 = vst.msk [vmem:[%s248] sm:$0xff] %vm260, %v257
    %s262 = scalar_lea.vmem [#allocation1], 96
    %s263 = scalar_lea.vmem [#allocation0], 192
    %s264 = scalar_lea.vmem %s263, 7 [#allocation0]
    %v265 = vld [vmem:[%s264] ss:$-1 sm:$0xff]
    %v266 = vrot.slane %v265, 1
    %267 = vst [vmem:[%s262] sm:$0xff] %v266
    %s268 = scalar_lea.vmem %s263, 8 [#allocation0]
    %s269 = scalar_lea.vmem %s268, 7 [#allocation0]
    %v270 = vld [vmem:[%s269] ss:$-1 sm:$0xff]
    %v271 = vrot.slane %v270, 1
    %v272 = vlaneseq
    %v273 = vshrl.u32 %v272, 7
    %vm274 = vcmp.lt.s32.totalorder %v273, 7
    %275 = vst.msk [vmem:[%s262] sm:$0xff] %vm274, %v271
    %s276 = scalar_lea.vmem [#allocation1], 104
    %s277 = scalar_lea.vmem [#allocation0], 208
    %s278 = scalar_lea.vmem %s277, 7 [#allocation0]
    %v279 = vld [vmem:[%s278] ss:$-1 sm:$0xff]
    %v280 = vrot.slane %v279, 1
    %281 = vst [vmem:[%s276] sm:$0xff] %v280
    %s282 = scalar_lea.vmem %s277, 8 [#allocation0]
    %s283 = scalar_lea.vmem %s282, 7 [#allocation0]
    %v284 = vld [vmem:[%s283] ss:$-1 sm:$0xff]
    %v285 = vrot.slane %v284, 1
    %v286 = vlaneseq
    %v287 = vshrl.u32 %v286, 7
    %vm288 = vcmp.lt.s32.totalorder %v287, 7
    %289 = vst.msk [vmem:[%s276] sm:$0xff] %vm288, %v285
    %s290 = scalar_lea.vmem [#allocation1], 112
    %s291 = scalar_lea.vmem [#allocation0], 224
    %s292 = scalar_lea.vmem %s291, 7 [#allocation0]
    %v293 = vld [vmem:[%s292] ss:$-1 sm:$0xff]
    %v294 = vrot.slane %v293, 1
    %295 = vst [vmem:[%s290] sm:$0xff] %v294
    %s296 = scalar_lea.vmem %s291, 8 [#allocation0]
    %s297 = scalar_lea.vmem %s296, 7 [#allocation0]
    %v298 = vld [vmem:[%s297] ss:$-1 sm:$0xff]
    %v299 = vrot.slane %v298, 1
    %v300 = vlaneseq
    %v301 = vshrl.u32 %v300, 7
    %vm302 = vcmp.lt.s32.totalorder %v301, 7
    %303 = vst.msk [vmem:[%s290] sm:$0xff] %vm302, %v299
    %s304 = scalar_lea.vmem [#allocation1], 120
    %s305 = scalar_lea.vmem [#allocation0], 240
    %s306 = scalar_lea.vmem %s305, 7 [#allocation0]
    %v307 = vld [vmem:[%s306] ss:$-1 sm:$0xff]
    %v308 = vrot.slane %v307, 1
    %309 = vst [vmem:[%s304] sm:$0xff] %v308
    %s310 = scalar_lea.vmem %s305, 8 [#allocation0]
    %s311 = scalar_lea.vmem %s310, 7 [#allocation0]
    %v312 = vld [vmem:[%s311] ss:$-1 sm:$0xff]
    %v313 = vrot.slane %v312, 1
    %v314 = vlaneseq
    %v315 = vshrl.u32 %v314, 7
    %vm316 = vcmp.lt.s32.totalorder %v315, 7
    %317 = vst.msk [vmem:[%s304] sm:$0xff] %vm316, %v313
    // Predicated region
    $region36: #{reverse.17} parent=1 // pred_check
      _
    $region37: #{reverse.17} parent=1 // pred_check_branch
      %319 = sbr.rel (0) target = $region39
    $region38: #{reverse.17} parent=1 // pred_region
      // Predicated region
      $region40: #{reverse.17} parent=38 // pred_check
        _
      $region41: #{reverse.17} parent=38 // pred_check_branch
        %321 = sbr.rel (0) target = $region43
      $region42: #{reverse.17} parent=38 // pred_region
        // Predicated region
        $region55: #{reverse.17} parent=42 // pred_check
          _
        $region56: #{reverse.17} parent=42 // pred_check_branch
          %367 = sbr.rel (0) target = $region58
        $region57: #{reverse.17} parent=42 // pred_region
          loop: start=0, step=1, limit=1
          $region59: #{reverse.17} parent=57 // loop_pre_header
            _
          $region60: #{reverse.17} parent=57 // loop_header
            %s369 = sphi 0, %s373
            %p370 = scmp.ge.s32.totalorder %s369, 1
            %s374 = sphi [#allocation1], [#allocation1]
            %s375 = sphi %s1, %s1
          $region61: #{reverse.17} parent=57 // loop_header_branch
            %372 = sbr.rel (%p370) target = $region65
          $region62: #{reverse.17} parent=57 // loop_body
            %v376 = vld [vmem:[%s374] sm:$0xff]
            %377 = vst [vmem:[%s375] sm:$0xff] %v376
            %v378 = vld [vmem:[%s374 + $0x8] sm:$0xff]
            %379 = vst [vmem:[%s375 + $0x8] sm:$0xff] %v378
            %v380 = vld [vmem:[%s374 + $0x10] sm:$0xff]
            %381 = vst [vmem:[%s375 + $0x10] sm:$0xff] %v380
            %v382 = vld [vmem:[%s374 + $0x18] sm:$0xff]
            %383 = vst [vmem:[%s375 + $0x18] sm:$0xff] %v382
            %v384 = vld [vmem:[%s374 + $0x20] sm:$0xff]
            %385 = vst [vmem:[%s375 + $0x20] sm:$0xff] %v384
            %v386 = vld [vmem:[%s374 + $0x28] sm:$0xff]
            %387 = vst [vmem:[%s375 + $0x28] sm:$0xff] %v386
            %v388 = vld [vmem:[%s374 + $0x30] sm:$0xff]
            %389 = vst [vmem:[%s375 + $0x30] sm:$0xff] %v388
            %v390 = vld [vmem:[%s374 + $0x38] sm:$0xff]
            %391 = vst [vmem:[%s375 + $0x38] sm:$0xff] %v390
            %v392 = vld [vmem:[%s374 + $0x40] sm:$0xff]
            %393 = vst [vmem:[%s375 + $0x40] sm:$0xff] %v392
            %v394 = vld [vmem:[%s374 + $0x48] sm:$0xff]
            %395 = vst [vmem:[%s375 + $0x48] sm:$0xff] %v394
            %v396 = vld [vmem:[%s374 + $0x50] sm:$0xff]
            %397 = vst [vmem:[%s375 + $0x50] sm:$0xff] %v396
            %v398 = vld [vmem:[%s374 + $0x58] sm:$0xff]
            %399 = vst [vmem:[%s375 + $0x58] sm:$0xff] %v398
            %v400 = vld [vmem:[%s374 + $0x60] sm:$0xff]
            %401 = vst [vmem:[%s375 + $0x60] sm:$0xff] %v400
            %v402 = vld [vmem:[%s374 + $0x68] sm:$0xff]
            %403 = vst [vmem:[%s375 + $0x68] sm:$0xff] %v402
            %v404 = vld [vmem:[%s374 + $0x70] sm:$0xff]
            %405 = vst [vmem:[%s375 + $0x70] sm:$0xff] %v404
            %v406 = vld [vmem:[%s374 + $0x78] sm:$0xff]
            %407 = vst [vmem:[%s375 + $0x78] sm:$0xff] %v406
          $region63: #{reverse.17} parent=57 // loop_footer
            %s373 = sadd.s32 1, %s369
          $region64: #{reverse.17} parent=57 // loop_footer_branch
            %368 = sbr.rel target = $region60
          $region65: #{reverse.17} parent=57 // loop_exit
            _
        $region58: #{reverse.17} parent=42 // pred_fallthru
          _
        // Predicated region
        $region66: #{reverse.17} parent=42 // pred_check
          _
        $region67: #{reverse.17} parent=42 // pred_check_branch
          %409 = sbr.rel target = $region69
        $region68: #{reverse.17} parent=42 // pred_region
          _
        $region69: #{reverse.17} parent=42 // pred_fallthru
          _
      $region43: #{reverse.17} parent=38 // pred_fallthru
        _
      // Predicated region
      $region44: #{reverse.17} parent=38 // pred_check
        _
      $region45: #{reverse.17} parent=38 // pred_check_branch
        %323 = sbr.rel target = $region47
      $region46: #{reverse.17} parent=38 // pred_region
        %s325 = ssub.s32 256, 1
        loop: start=0, step=1, limit=1
        $region48: #{reverse.17} parent=46 // loop_pre_header
          _
        $region49: #{reverse.17} parent=46 // loop_header
          %s327 = sphi 0, %s331
          %p328 = scmp.ge.s32.totalorder %s327, 1
          %s332 = sphi [#allocation1], [#allocation1]
          %s333 = sphi %s1, %s1
        $region50: #{reverse.17} parent=46 // loop_header_branch
          %330 = sbr.rel (%p328) target = $region54
        $region51: #{reverse.17} parent=46 // loop_body
          %v334 = vld [vmem:[%s332] sm:%s325]
          %335 = vst [vmem:[%s333] sm:%s325] %v334
          %v336 = vld [vmem:[%s332 + $0x8] sm:%s325]
          %337 = vst [vmem:[%s333 + $0x8] sm:%s325] %v336
          %v338 = vld [vmem:[%s332 + $0x10] sm:%s325]
          %339 = vst [vmem:[%s333 + $0x10] sm:%s325] %v338
          %v340 = vld [vmem:[%s332 + $0x18] sm:%s325]
          %341 = vst [vmem:[%s333 + $0x18] sm:%s325] %v340
          %v342 = vld [vmem:[%s332 + $0x20] sm:%s325]
          %343 = vst [vmem:[%s333 + $0x20] sm:%s325] %v342
          %v344 = vld [vmem:[%s332 + $0x28] sm:%s325]
          %345 = vst [vmem:[%s333 + $0x28] sm:%s325] %v344
          %v346 = vld [vmem:[%s332 + $0x30] sm:%s325]
          %347 = vst [vmem:[%s333 + $0x30] sm:%s325] %v346
          %v348 = vld [vmem:[%s332 + $0x38] sm:%s325]
          %349 = vst [vmem:[%s333 + $0x38] sm:%s325] %v348
          %v350 = vld [vmem:[%s332 + $0x40] sm:%s325]
          %351 = vst [vmem:[%s333 + $0x40] sm:%s325] %v350
          %v352 = vld [vmem:[%s332 + $0x48] sm:%s325]
          %353 = vst [vmem:[%s333 + $0x48] sm:%s325] %v352
          %v354 = vld [vmem:[%s332 + $0x50] sm:%s325]
          %355 = vst [vmem:[%s333 + $0x50] sm:%s325] %v354
          %v356 = vld [vmem:[%s332 + $0x58] sm:%s325]
          %357 = vst [vmem:[%s333 + $0x58] sm:%s325] %v356
          %v358 = vld [vmem:[%s332 + $0x60] sm:%s325]
          %359 = vst [vmem:[%s333 + $0x60] sm:%s325] %v358
          %v360 = vld [vmem:[%s332 + $0x68] sm:%s325]
          %361 = vst [vmem:[%s333 + $0x68] sm:%s325] %v360
          %v362 = vld [vmem:[%s332 + $0x70] sm:%s325]
          %363 = vst [vmem:[%s333 + $0x70] sm:%s325] %v362
          %v364 = vld [vmem:[%s332 + $0x78] sm:%s325]
          %365 = vst [vmem:[%s333 + $0x78] sm:%s325] %v364
        $region52: #{reverse.17} parent=46 // loop_footer
          %s331 = sadd.s32 1, %s327
        $region53: #{reverse.17} parent=46 // loop_footer_branch
          %326 = sbr.rel target = $region49
        $region54: #{reverse.17} parent=46 // loop_exit
          _
      $region47: #{reverse.17} parent=38 // pred_fallthru
        _
    $region39: #{reverse.17} parent=1 // pred_fallthru
      _
    %410 = vnop

// kernel: _lambda_.21
$region0: #{_lambda_.21}
  #allocation0 [shape = 'u32[]', space=smem, size = 0x4, offset = 0x4, fixed_abs, tag = 'smem constant byte address 0x4 - core index']
  #allocation1 [shape = 'u32[144,128]{1,0:T(1,128)}', space=vmem, size = 0x12000, scoped, tag = 'internal scratch']
  %s0 = inlined_call_operand.vmem [shape: f32[2,8,256], index: 0, kind: input, shape index: {}]
  %s1 = inlined_call_operand.vmem [shape: f32[1,8,1], index: 1, kind: input, shape index: {}]
  %s2 = inlined_call_operand.vmem [shape: f32[1,8,1], index: 2, kind: input, shape index: {}]
  %s3 = inlined_call_operand.vmem [shape: f32[2,8,256], index: 3, kind: output, shape index: {}]
  %s4 = sld [smem:[#allocation0]]
  $region22: #{_lambda_.21} parent=0
    _
  %s6 = ssub.s32 1, %s4
  %s7 = scalar_select 0, %s6, %s4
  // Predicated region
  $region2: #{_lambda_.21} parent=0 // pred_check
    _
  $region3: #{_lambda_.21} parent=0 // pred_check_branch
    %9 = sbr.rel (0) target = $region5
  $region4: #{_lambda_.21} parent=0 // pred_region
    _
  $region5: #{_lambda_.21} parent=0 // pred_fallthru
    _
  // Predicated region
  $region6: #{_lambda_.21} parent=0 // pred_check
    _
  $region7: #{_lambda_.21} parent=0 // pred_check_branch
    %11 = sbr.rel (0) target = $region9
  $region8: #{_lambda_.21} parent=0 // pred_region
    _
  $region9: #{_lambda_.21} parent=0 // pred_fallthru
    _
  // Predicated region
  $region10: #{_lambda_.21} parent=0 // pred_check
    _
  $region11: #{_lambda_.21} parent=0 // pred_check_branch
    %13 = sbr.rel (0) target = $region13
  $region12: #{_lambda_.21} parent=0 // pred_region
    _
  $region13: #{_lambda_.21} parent=0 // pred_fallthru
    _
  %v14 = vld [vmem:[%s0] sm:$0xff]
  %v15 = vld [vmem:[%s0 + $0x8] sm:$0xff]
  %v16 = vld [vmem:[%s0 + $0x10] sm:$0xff]
  %v17 = vld [vmem:[%s0 + $0x18] sm:$0xff]
  %v18 = vld [vmem:[%s1] sm:$0xff]
  %v19 = vld [vmem:[%s2] sm:$0xff]
  %v20 = vadd.f32 %v14, %v15
  %21 = vadd.xlane.f32.xlu0 %v20
  %v22 = vpop.xlane.xlu0 %21
  %v23 = vadd.f32 %v16, %v17
  %24 = vadd.xlane.f32.xlu0 %v23
  %v25 = vpop.xlane.xlu0 %24
  %v26 = vadd.f32 %v22, %v25
  %v27 = vmul.f32 %v14, %v14
  %v28 = vmul.f32 %v15, %v15
  %v29 = vmul.f32 %v16, %v16
  %v30 = vmul.f32 %v17, %v17
  %v31 = vadd.f32 %v27, %v28
  %32 = vadd.xlane.f32.xlu0 %v31
  %v33 = vpop.xlane.xlu0 %32
  %v34 = vadd.f32 %v29, %v30
  %35 = vadd.xlane.f32.xlu0 %v34
  %v36 = vpop.xlane.xlu0 %35
  %v37 = vadd.f32 %v33, %v36
  %v38 = vmul.f32 %v26, 0.001953125
  %v39 = vmul.f32 %v37, 0.001953125
  %v40 = vmul.f32 %v38, %v38
  %v41 = vsub.f32 %v39, %v40
  %v42 = vadd.f32 %v41, 1e-05
  %v43 = vrsqrt.pop %v42
  %v44 = vmul.f32 %v18, %v43
  %v45 = vmul.f32 %v38, %v44
  %v46 = vsub.f32 %v19, %v45
  %48 = vset.pattern.permute.xlu0 0
  %49 = vperm.xlu0 %48, %v44
  %v50 = vpop.permute.xlu0 %49
  %v52 = vmul.f32 %v14, %v50
  %v53 = vmul.f32 %v15, %v50
  %v54 = vmul.f32 %v16, %v50
  %v55 = vmul.f32 %v17, %v50
  %57 = vset.pattern.permute.xlu0 0
  %58 = vperm.xlu0 %57, %v46
  %v59 = vpop.permute.xlu0 %58
  %v61 = vadd.f32 %v52, %v59
  %v62 = vadd.f32 %v53, %v59
  %v63 = vadd.f32 %v54, %v59
  %v64 = vadd.f32 %v55, %v59
  %v65 = vmax.f32 %v61, 0.0
  %v66 = vmax.f32 %v62, 0.0
  %v67 = vmax.f32 %v63, 0.0
  %v68 = vmax.f32 %v64, 0.0
  %69 = vst [vmem:[%s3] sm:$0xff] %v65
  %70 = vst [vmem:[%s3 + $0x8] sm:$0xff] %v66
  %71 = vst [vmem:[%s3 + $0x10] sm:$0xff] %v67
  %72 = vst [vmem:[%s3 + $0x18] sm:$0xff] %v68
  // Predicated region
  $region14: #{_lambda_.21} parent=0 // pred_check
    _
  $region15: #{_lambda_.21} parent=0 // pred_check_branch
    %74 = sbr.rel (0) target = $region17
  $region16: #{_lambda_.21} parent=0 // pred_region
    _
  $region17: #{_lambda_.21} parent=0 // pred_fallthru
    _
  // Predicated region
  $region18: #{_lambda_.21} parent=0 // pred_check
    _
  $region19: #{_lambda_.21} parent=0 // pred_check_branch
    %76 = sbr.rel (0) target = $region21
  $region20: #{_lambda_.21} parent=0 // pred_region
    _
  $region21: #{_lambda_.21} parent=0 // pred_fallthru
    _

// kernel: _lambda_.23
$region0: #{_lambda_.23}
  #allocation0 [shape = 'u32[]', space=smem, size = 0x4, offset = 0x4, fixed_abs, tag = 'smem constant byte address 0x4 - core index']
  #allocation1 [shape = 'u32[144,128]{1,0:T(1,128)}', space=vmem, size = 0x12000, scoped, tag = 'internal scratch']
  %s0 = inlined_call_operand.vmem [shape: f32[8,4], index: 0, kind: input, shape index: {}]
  %s1 = inlined_call_operand.vmem [shape: f32[4,512], index: 1, kind: input, shape index: {}]
  %s2 = inlined_call_operand.vmem [shape: f32[8,1], index: 2, kind: input, shape index: {}]
  %s3 = inlined_call_operand.vmem [shape: f32[8,512], index: 3, kind: output, shape index: {}]
  %s4 = sld [smem:[#allocation0]]
  $region22: #{_lambda_.23} parent=0
    _
  %s6 = ssub.s32 1, %s4
  %s7 = scalar_select 0, %s6, %s4
  // Predicated region
  $region2: #{_lambda_.23} parent=0 // pred_check
    _
  $region3: #{_lambda_.23} parent=0 // pred_check_branch
    %9 = sbr.rel (0) target = $region5
  $region4: #{_lambda_.23} parent=0 // pred_region
    _
  $region5: #{_lambda_.23} parent=0 // pred_fallthru
    _
  // Predicated region
  $region6: #{_lambda_.23} parent=0 // pred_check
    _
  $region7: #{_lambda_.23} parent=0 // pred_check_branch
    %11 = sbr.rel (0) target = $region9
  $region8: #{_lambda_.23} parent=0 // pred_region
    _
  $region9: #{_lambda_.23} parent=0 // pred_fallthru
    _
  // Predicated region
  $region10: #{_lambda_.23} parent=0 // pred_check
    _
  $region11: #{_lambda_.23} parent=0 // pred_check_branch
    %13 = sbr.rel (0) target = $region13
  $region12: #{_lambda_.23} parent=0 // pred_region
    _
  $region13: #{_lambda_.23} parent=0 // pred_fallthru
    _
  %v14 = vld [vmem:[%s0] sm:$0xff]
  %v15 = vld [vmem:[%s1] sm:$0xff]
  %v16 = vld [vmem:[%s1 + $0x8] sm:$0xff]
  %v17 = vld [vmem:[%s2] sm:$0xff]
  %19 = vset.pattern.permute.xlu0 0
  %20 = vperm.xlu0 %19, %v17
  %v21 = vpop.permute.xlu0 %20
  %v25 = vcombine.high %v15, %v15
  %v26 = vcombine.high %v16, %v16
  %vm27 = vcmask 31744
  %v29 = vsel %vm27, %v14, 0
  %vm31 = vcmask 1043456
  %v32 = vsel %vm31, %v15, 0
  %v34 = vsel %vm31, %v25, 0
  %v36 = vsel %vm31, %v16, 0
  %v38 = vsel %vm31, %v26, 0
  %40 = vmatprep.subr.mxu0 0.0
  %41 = vmatpush1.msra.mxu0 0.0
  %42 = vmatprep.subr.mxu0 0.0
  %43 = vmatpush1.msra.mxu0 0.0
  %44 = vmatprep.subr.mxu0 0.0
  %45 = vmatpush1.msra.mxu0 0.0
  %46 = vmatprep.subr.mxu0 0.0
  %47 = vmatpush1.msra.mxu0 0.0
  %48 = vmatprep.subr.mxu0 0.0
  %49 = vmatpush1.msra.mxu0 0.0
  %50 = vmatprep.subr.mxu0 0.0
  %51 = vmatpush1.msra.mxu0 0.0
  %52 = vmatprep.subr.mxu0 0.0
  %53 = vmatpush1.msra.mxu0 0.0
  %54 = vmatprep.subr.mxu0 0.0
  %55 = vmatpush1.msra.mxu0 0.0
  %56 = vmatprep.subr.mxu0 0.0
  %57 = vmatpush1.msra.mxu0 0.0
  %58 = vmatprep.subr.mxu0 0.0
  %59 = vmatpush1.msra.mxu0 0.0
  %60 = vmatprep.subr.mxu0 0.0
  %61 = vmatpush1.msra.mxu0 0.0
  %62 = vmatprep.subr.mxu0 0.0
  %63 = vmatpush1.msra.mxu0 0.0
  %64 = vmatprep.subr.mxu0 0.0
  %65 = vmatpush1.msra.mxu0 0.0
  %66 = vmatprep.subr.mxu0 0.0
  %67 = vmatpush1.msra.mxu0 0.0
  %68 = vmatprep.subr.mxu0 0.0
  %69 = vmatpush1.msra.mxu0 0.0
  %70 = vmatprep.subr.mxu0 %v34
  %71 = vmatpush1.msra.mxu0 %v32
  %72 = vmatprep.subr.mxu0 0.0
  %73 = vmatpush2.msra.mxu0 0.0
  %74 = vmatprep.subr.mxu0 0.0
  %75 = vmatpush2.msra.mxu0 0.0
  %76 = vmatprep.subr.mxu0 0.0
  %77 = vmatpush2.msra.mxu0 0.0
  %78 = vmatprep.subr.mxu0 0.0
  %79 = vmatpush2.msra.mxu0 0.0
  %80 = vmatprep.subr.mxu0 0.0
  %81 = vmatpush2.msra.mxu0 0.0
  %82 = vmatprep.subr.mxu0 0.0
  %83 = vmatpush2.msra.mxu0 0.0
  %84 = vmatprep.subr.mxu0 0.0
  %85 = vmatpush2.msra.mxu0 0.0
  %86 = vmatprep.subr.mxu0 0.0
  %87 = vmatpush2.msra.mxu0 0.0
  %88 = vmatprep.subr.mxu0 0.0
  %89 = vmatpush2.msra.mxu0 0.0
  %90 = vmatprep.subr.mxu0 0.0
  %91 = vmatpush2.msra.mxu0 0.0
  %92 = vmatprep.subr.mxu0 0.0
  %93 = vmatpush2.msra.mxu0 0.0
  %94 = vmatprep.subr.mxu0 0.0
  %95 = vmatpush2.msra.mxu0 0.0
  %96 = vmatprep.subr.mxu0 0.0
  %97 = vmatpush2.msra.mxu0 0.0
  %98 = vmatprep.subr.mxu0 0.0
  %99 = vmatpush2.msra.mxu0 0.0
  %100 = vmatprep.subr.mxu0 0.0
  %101 = vmatpush2.msra.mxu0 0.0
  %102 = vmatprep.subr.mxu0 0.0
  %103 = vmatpush2.msra.mxu0 0.0
  %104 = vmatprep.mubr.f32.mxu0 0.0
  %105 = vmatmul.mubr.f32.gmra.mxu0 %v29
  %v106 = vpop.f32.mrf.mxu0
  %v107 = vadd.f32 %v21, %v106
  %v108 = vpop.f32.mrf.mxu0
  %v109 = vadd.f32 %v21, %v108
  %110 = vdwg.mxu0
  %111 = vmatprep.subr.mxu0 0.0
  %112 = vmatpush1.msra.mxu0 0.0
  %113 = vmatprep.subr.mxu0 0.0
  %114 = vmatpush1.msra.mxu0 0.0
  %115 = vmatprep.subr.mxu0 0.0
  %116 = vmatpush1.msra.mxu0 0.0
  %117 = vmatprep.subr.mxu0 0.0
  %118 = vmatpush1.msra.mxu0 0.0
  %119 = vmatprep.subr.mxu0 0.0
  %120 = vmatpush1.msra.mxu0 0.0
  %121 = vmatprep.subr.mxu0 0.0
  %122 = vmatpush1.msra.mxu0 0.0
  %123 = vmatprep.subr.mxu0 0.0
  %124 = vmatpush1.msra.mxu0 0.0
  %125 = vmatprep.subr.mxu0 0.0
  %126 = vmatpush1.msra.mxu0 0.0
  %127 = vmatprep.subr.mxu0 0.0
  %128 = vmatpush1.msra.mxu0 0.0
  %129 = vmatprep.subr.mxu0 0.0
  %130 = vmatpush1.msra.mxu0 0.0
  %131 = vmatprep.subr.mxu0 0.0
  %132 = vmatpush1.msra.mxu0 0.0
  %133 = vmatprep.subr.mxu0 0.0
  %134 = vmatpush1.msra.mxu0 0.0
  %135 = vmatprep.subr.mxu0 0.0
  %136 = vmatpush1.msra.mxu0 0.0
  %137 = vmatprep.subr.mxu0 0.0
  %138 = vmatpush1.msra.mxu0 0.0
  %139 = vmatprep.subr.mxu0 0.0
  %140 = vmatpush1.msra.mxu0 0.0
  %141 = vmatprep.subr.mxu0 %v38
  %142 = vmatpush1.msra.mxu0 %v36
  %143 = vmatprep.subr.mxu0 0.0
  %144 = vmatpush2.msra.mxu0 0.0
  %145 = vmatprep.subr.mxu0 0.0
  %146 = vmatpush2.msra.mxu0 0.0
  %147 = vmatprep.subr.mxu0 0.0
  %148 = vmatpush2.msra.mxu0 0.0
  %149 = vmatprep.subr.mxu0 0.0
  %150 = vmatpush2.msra.mxu0 0.0
  %151 = vmatprep.subr.mxu0 0.0
  %152 = vmatpush2.msra.mxu0 0.0
  %153 = vmatprep.subr.mxu0 0.0
  %154 = vmatpush2.msra.mxu0 0.0
  %155 = vmatprep.subr.mxu0 0.0
  %156 = vmatpush2.msra.mxu0 0.0
  %157 = vmatprep.subr.mxu0 0.0
  %158 = vmatpush2.msra.mxu0 0.0
  %159 = vmatprep.subr.mxu0 0.0
  %160 = vmatpush2.msra.mxu0 0.0
  %161 = vmatprep.subr.mxu0 0.0
  %162 = vmatpush2.msra.mxu0 0.0
  %163 = vmatprep.subr.mxu0 0.0
  %164 = vmatpush2.msra.mxu0 0.0
  %165 = vmatprep.subr.mxu0 0.0
  %166 = vmatpush2.msra.mxu0 0.0
  %167 = vmatprep.subr.mxu0 0.0
  %168 = vmatpush2.msra.mxu0 0.0
  %169 = vmatprep.subr.mxu0 0.0
  %170 = vmatpush2.msra.mxu0 0.0
  %171 = vmatprep.subr.mxu0 0.0
  %172 = vmatpush2.msra.mxu0 0.0
  %173 = vmatprep.subr.mxu0 0.0
  %174 = vmatpush2.msra.mxu0 0.0
  %175 = vmatprep.mubr.f32.mxu0 0.0
  %176 = vmatmul.mubr.f32.gmra.mxu0 %v29
  %v177 = vpop.f32.mrf.mxu0
  %v178 = vadd.f32 %v21, %v177
  %v179 = vpop.f32.mrf.mxu0
  %v180 = vadd.f32 %v21, %v179
  %181 = vdwg.mxu0
  %182 = vst [vmem:[%s3] sm:$0xff] %v107
  %183 = vst [vmem:[%s3 + $0x8] sm:$0xff] %v109
  %184 = vst [vmem:[%s3 + $0x10] sm:$0xff] %v178
  %185 = vst [vmem:[%s3 + $0x18] sm:$0xff] %v180
  // Predicated region
  $region14: #{_lambda_.23} parent=0 // pred_check
    _
  $region15: #{_lambda_.23} parent=0 // pred_check_branch
    %187 = sbr.rel (0) target = $region17
  $region16: #{_lambda_.23} parent=0 // pred_region
    _
  $region17: #{_lambda_.23} parent=0 // pred_fallthru
    _
  // Predicated region
  $region18: #{_lambda_.23} parent=0 // pred_check
    _
  $region19: #{_lambda_.23} parent=0 // pred_check_branch
    %189 = sbr.rel (0) target = $region21
  $region20: #{_lambda_.23} parent=0 // pred_region
    _
  $region21: #{_lambda_.23} parent=0 // pred_fallthru
    _

// kernel: _lambda_.24
$region0: #{_lambda_.24}
  #allocation0 [shape = 'u32[]', space=smem, size = 0x4, offset = 0x4, fixed_abs, tag = 'smem constant byte address 0x4 - core index']
  #allocation1 [shape = 'u32[144,128]{1,0:T(1,128)}', space=vmem, size = 0x12000, scoped, tag = 'internal scratch']
  %s0 = inlined_call_operand.vmem [shape: f32[2,8,256], index: 0, kind: input, shape index: {}]
  %s1 = inlined_call_operand.vmem [shape: f32[2,8,256], index: 1, kind: input, shape index: {}]
  %s2 = inlined_call_operand.vmem [shape: f32[1,8,1], index: 2, kind: input, shape index: {}]
  %s3 = inlined_call_operand.vmem [shape: f32[1,8,1], index: 3, kind: input, shape index: {}]
  %s4 = inlined_call_operand.vmem [shape: f32[2,8,256], index: 4, kind: output, shape index: {}]
  %s5 = sld [smem:[#allocation0]]
  $region26: #{_lambda_.24} parent=0
    _
  %s7 = ssub.s32 1, %s5
  %s8 = scalar_select 0, %s7, %s5
  // Predicated region
  $region2: #{_lambda_.24} parent=0 // pred_check
    _
  $region3: #{_lambda_.24} parent=0 // pred_check_branch
    %10 = sbr.rel (0) target = $region5
  $region4: #{_lambda_.24} parent=0 // pred_region
    _
  $region5: #{_lambda_.24} parent=0 // pred_fallthru
    _
  // Predicated region
  $region6: #{_lambda_.24} parent=0 // pred_check
    _
  $region7: #{_lambda_.24} parent=0 // pred_check_branch
    %12 = sbr.rel (0) target = $region9
  $region8: #{_lambda_.24} parent=0 // pred_region
    _
  $region9: #{_lambda_.24} parent=0 // pred_fallthru
    _
  // Predicated region
  $region10: #{_lambda_.24} parent=0 // pred_check
    _
  $region11: #{_lambda_.24} parent=0 // pred_check_branch
    %14 = sbr.rel (0) target = $region13
  $region12: #{_lambda_.24} parent=0 // pred_region
    _
  $region13: #{_lambda_.24} parent=0 // pred_fallthru
    _
  // Predicated region
  $region14: #{_lambda_.24} parent=0 // pred_check
    _
  $region15: #{_lambda_.24} parent=0 // pred_check_branch
    %16 = sbr.rel (0) target = $region17
  $region16: #{_lambda_.24} parent=0 // pred_region
    _
  $region17: #{_lambda_.24} parent=0 // pred_fallthru
    _
  %v17 = vld [vmem:[%s0] sm:$0xff]
  %v18 = vld [vmem:[%s0 + $0x8] sm:$0xff]
  %v19 = vld [vmem:[%s0 + $0x10] sm:$0xff]
  %v20 = vld [vmem:[%s0 + $0x18] sm:$0xff]
  %v21 = vld [vmem:[%s2] sm:$0xff]
  %v22 = vld [vmem:[%s3] sm:$0xff]
  %v23 = vadd.f32 %v17, %v18
  %24 = vadd.xlane.f32.xlu0 %v23
  %v25 = vpop.xlane.xlu0 %24
  %v26 = vadd.f32 %v19, %v20
  %27 = vadd.xlane.f32.xlu0 %v26
  %v28 = vpop.xlane.xlu0 %27
  %v29 = vadd.f32 %v25, %v28
  %v30 = vmul.f32 %v17, %v17
  %v31 = vmul.f32 %v18, %v18
  %v32 = vmul.f32 %v19, %v19
  %v33 = vmul.f32 %v20, %v20
  %v34 = vadd.f32 %v30, %v31
  %35 = vadd.xlane.f32.xlu0 %v34
  %v36 = vpop.xlane.xlu0 %35
  %v37 = vadd.f32 %v32, %v33
  %38 = vadd.xlane.f32.xlu0 %v37
  %v39 = vpop.xlane.xlu0 %38
  %v40 = vadd.f32 %v36, %v39
  %v41 = vmul.f32 %v29, 0.001953125
  %v42 = vmul.f32 %v40, 0.001953125
  %v43 = vmul.f32 %v41, %v41
  %v44 = vsub.f32 %v42, %v43
  %v45 = vadd.f32 %v44, 1e-05
  %v46 = vrsqrt.pop %v45
  %v47 = vmul.f32 %v21, %v46
  %v48 = vmul.f32 %v41, %v47
  %v49 = vsub.f32 %v22, %v48
  %51 = vset.pattern.permute.xlu0 0
  %52 = vperm.xlu0 %51, %v47
  %v53 = vpop.permute.xlu0 %52
  %v55 = vmul.f32 %v17, %v53
  %v56 = vmul.f32 %v18, %v53
  %v57 = vmul.f32 %v19, %v53
  %v58 = vmul.f32 %v20, %v53
  %60 = vset.pattern.permute.xlu0 0
  %61 = vperm.xlu0 %60, %v49
  %v62 = vpop.permute.xlu0 %61
  %v64 = vadd.f32 %v55, %v62
  %v65 = vadd.f32 %v56, %v62
  %v66 = vadd.f32 %v57, %v62
  %v67 = vadd.f32 %v58, %v62
  %v68 = vld [vmem:[%s1] sm:$0xff]
  %v69 = vld [vmem:[%s1 + $0x8] sm:$0xff]
  %v70 = vld [vmem:[%s1 + $0x10] sm:$0xff]
  %v71 = vld [vmem:[%s1 + $0x18] sm:$0xff]
  %v72 = vadd.f32 %v64, %v68
  %v73 = vadd.f32 %v65, %v69
  %v74 = vadd.f32 %v66, %v70
  %v75 = vadd.f32 %v67, %v71
  %v76 = vmax.f32 %v72, 0.0
  %v77 = vmax.f32 %v73, 0.0
  %v78 = vmax.f32 %v74, 0.0
  %v79 = vmax.f32 %v75, 0.0
  %80 = vst [vmem:[%s4] sm:$0xff] %v76
  %81 = vst [vmem:[%s4 + $0x8] sm:$0xff] %v77
  %82 = vst [vmem:[%s4 + $0x10] sm:$0xff] %v78
  %83 = vst [vmem:[%s4 + $0x18] sm:$0xff] %v79
  // Predicated region
  $region18: #{_lambda_.24} parent=0 // pred_check
    _
  $region19: #{_lambda_.24} parent=0 // pred_check_branch
    %85 = sbr.rel (0) target = $region21
  $region20: #{_lambda_.24} parent=0 // pred_region
    _
  $region21: #{_lambda_.24} parent=0 // pred_fallthru
    _
  // Predicated region
  $region22: #{_lambda_.24} parent=0 // pred_check
    _
  $region23: #{_lambda_.24} parent=0 // pred_check_branch
    %87 = sbr.rel (0) target = $region25
  $region24: #{_lambda_.24} parent=0 // pred_region
    _
  $region25: #{_lambda_.24} parent=0 // pred_fallthru
    _

// kernel: _lambda_.22
$region0: #{_lambda_.22}
  #allocation0 [shape = 'u32[]', space=smem, size = 0x4, offset = 0x4, fixed_abs, tag = 'smem constant byte address 0x4 - core index']
  #allocation1 [shape = 'u32[144,128]{1,0:T(1,128)}', space=vmem, size = 0x12000, scoped, tag = 'internal scratch']
  %s0 = inlined_call_operand.vmem [shape: f32[2,8,512], index: 0, kind: input, shape index: {}]
  %s1 = inlined_call_operand.vmem [shape: f32[8,8,512], index: 1, kind: input, shape index: {}]
  %s2 = inlined_call_operand.vmem [shape: f32[2,8,512], index: 2, kind: output, shape index: {}]
  %s3 = sld [smem:[#allocation0]]
  $region22: #{_lambda_.22} parent=0
    _
  %s5 = ssub.s32 1, %s3
  %s6 = scalar_select 0, %s5, %s3
  // Predicated region
  $region2: #{_lambda_.22} parent=0 // pred_check
    _
  $region3: #{_lambda_.22} parent=0 // pred_check_branch
    %8 = sbr.rel (0) target = $region5
  $region4: #{_lambda_.22} parent=0 // pred_region
    _
  $region5: #{_lambda_.22} parent=0 // pred_fallthru
    _
  // Predicated region
  $region6: #{_lambda_.22} parent=0 // pred_check
    _
  $region7: #{_lambda_.22} parent=0 // pred_check_branch
    %10 = sbr.rel (0) target = $region9
  $region8: #{_lambda_.22} parent=0 // pred_region
    _
  $region9: #{_lambda_.22} parent=0 // pred_fallthru
    _
  %p11 = scmp.eq.s32.totalorder 0, 0
  // Predicated region
  $region10: #{_lambda_.22} parent=0 // pred_check
    %p12 = pneg %p11
  $region11: #{_lambda_.22} parent=0 // pred_check_branch
    %14 = sbr.rel (%p12) target = $region13
  $region12: #{_lambda_.22} parent=0 // pred_region
    %15 = vst [vmem:[%s2] sm:$0xff] 0.0
    %16 = vst [vmem:[%s2 + $0x8] sm:$0xff] 0.0
    %17 = vst [vmem:[%s2 + $0x10] sm:$0xff] 0.0
    %18 = vst [vmem:[%s2 + $0x18] sm:$0xff] 0.0
    %19 = vst [vmem:[%s2 + $0x20] sm:$0xff] 0.0
    %20 = vst [vmem:[%s2 + $0x28] sm:$0xff] 0.0
    %21 = vst [vmem:[%s2 + $0x30] sm:$0xff] 0.0
    %22 = vst [vmem:[%s2 + $0x38] sm:$0xff] 0.0
  $region13: #{_lambda_.22} parent=0 // pred_fallthru
    _
  %v23 = vld [vmem:[%s1] sm:$0xff]
  %v24 = vld [vmem:[%s1 + $0x8] sm:$0xff]
  %v25 = vld [vmem:[%s1 + $0x10] sm:$0xff]
  %v26 = vld [vmem:[%s1 + $0x18] sm:$0xff]
  %v27 = vld [vmem:[%s1 + $0x20] sm:$0xff]
  %v28 = vld [vmem:[%s1 + $0x28] sm:$0xff]
  %v29 = vld [vmem:[%s1 + $0x30] sm:$0xff]
  %v30 = vld [vmem:[%s1 + $0x38] sm:$0xff]
  %v31 = vld [vmem:[%s1 + $0x40] sm:$0xff]
  %v32 = vld [vmem:[%s1 + $0x48] sm:$0xff]
  %v33 = vld [vmem:[%s1 + $0x50] sm:$0xff]
  %v34 = vld [vmem:[%s1 + $0x58] sm:$0xff]
  %v35 = vld [vmem:[%s1 + $0x60] sm:$0xff]
  %v36 = vld [vmem:[%s1 + $0x68] sm:$0xff]
  %v37 = vld [vmem:[%s1 + $0x70] sm:$0xff]
  %v38 = vld [vmem:[%s1 + $0x78] sm:$0xff]
  %v39 = vld [vmem:[%s1 + $0x80] sm:$0xff]
  %v40 = vld [vmem:[%s1 + $0x88] sm:$0xff]
  %v41 = vld [vmem:[%s1 + $0x90] sm:$0xff]
  %v42 = vld [vmem:[%s1 + $0x98] sm:$0xff]
  %v43 = vld [vmem:[%s1 + $0xa0] sm:$0xff]
  %v44 = vld [vmem:[%s1 + $0xa8] sm:$0xff]
  %v45 = vld [vmem:[%s1 + $0xb0] sm:$0xff]
  %v46 = vld [vmem:[%s1 + $0xb8] sm:$0xff]
  %v47 = vld [vmem:[%s1 + $0xc0] sm:$0xff]
  %v48 = vld [vmem:[%s1 + $0xc8] sm:$0xff]
  %v49 = vld [vmem:[%s1 + $0xd0] sm:$0xff]
  %v50 = vld [vmem:[%s1 + $0xd8] sm:$0xff]
  %v51 = vld [vmem:[%s1 + $0xe0] sm:$0xff]
  %v52 = vld [vmem:[%s1 + $0xe8] sm:$0xff]
  %v53 = vld [vmem:[%s1 + $0xf0] sm:$0xff]
  %v54 = vld [vmem:[%s1 + $0xf8] sm:$0xff]
  %v55 = vld [vmem:[%s0] sm:$0xff]
  %v56 = vld [vmem:[%s0 + $0x8] sm:$0xff]
  %v57 = vld [vmem:[%s0 + $0x10] sm:$0xff]
  %v58 = vld [vmem:[%s0 + $0x18] sm:$0xff]
  %v59 = vmul.f32 %v23, %v55
  %v60 = vmul.f32 %v24, %v56
  %v61 = vmul.f32 %v27, %v55
  %v62 = vmul.f32 %v28, %v56
  %v63 = vmul.f32 %v31, %v55
  %v64 = vmul.f32 %v32, %v56
  %v65 = vmul.f32 %v35, %v55
  %v66 = vmul.f32 %v36, %v56
  %v67 = vmul.f32 %v39, %v55
  %v68 = vmul.f32 %v40, %v56
  %v69 = vmul.f32 %v43, %v55
  %v70 = vmul.f32 %v44, %v56
  %v71 = vmul.f32 %v47, %v55
  %v72 = vmul.f32 %v48, %v56
  %v73 = vmul.f32 %v51, %v55
  %v74 = vmul.f32 %v52, %v56
  %v75 = vrot.slane %v59, 4
  %v76 = vadd.f32 %v59, %v75
  %v77 = vrot.slane %v76, 2
  %v78 = vadd.f32 %v76, %v77
  %v79 = vrot.slane %v78, 1
  %v80 = vadd.f32 %v78, %v79
  %v81 = vrot.slane %v60, 4
  %v82 = vadd.f32 %v60, %v81
  %v83 = vrot.slane %v82, 2
  %v84 = vadd.f32 %v82, %v83
  %v85 = vrot.slane %v84, 1
  %v86 = vadd.f32 %v84, %v85
  %v87 = vrot.slane %v61, 4
  %v88 = vadd.f32 %v61, %v87
  %v89 = vrot.slane %v88, 2
  %v90 = vadd.f32 %v88, %v89
  %v91 = vrot.slane %v90, 1
  %v92 = vadd.f32 %v90, %v91
  %v93 = vrot.slane %v62, 4
  %v94 = vadd.f32 %v62, %v93
  %v95 = vrot.slane %v94, 2
  %v96 = vadd.f32 %v94, %v95
  %v97 = vrot.slane %v96, 1
  %v98 = vadd.f32 %v96, %v97
  %v99 = vrot.slane %v63, 4
  %v100 = vadd.f32 %v63, %v99
  %v101 = vrot.slane %v100, 2
  %v102 = vadd.f32 %v100, %v101
  %v103 = vrot.slane %v102, 1
  %v104 = vadd.f32 %v102, %v103
  %v105 = vrot.slane %v64, 4
  %v106 = vadd.f32 %v64, %v105
  %v107 = vrot.slane %v106, 2
  %v108 = vadd.f32 %v106, %v107
  %v109 = vrot.slane %v108, 1
  %v110 = vadd.f32 %v108, %v109
  %v111 = vrot.slane %v65, 4
  %v112 = vadd.f32 %v65, %v111
  %v113 = vrot.slane %v112, 2
  %v114 = vadd.f32 %v112, %v113
  %v115 = vrot.slane %v114, 1
  %v116 = vadd.f32 %v114, %v115
  %v117 = vrot.slane %v66, 4
  %v118 = vadd.f32 %v66, %v117
  %v119 = vrot.slane %v118, 2
  %v120 = vadd.f32 %v118, %v119
  %v121 = vrot.slane %v120, 1
  %v122 = vadd.f32 %v120, %v121
  %v123 = vrot.slane %v67, 4
  %v124 = vadd.f32 %v67, %v123
  %v125 = vrot.slane %v124, 2
  %v126 = vadd.f32 %v124, %v125
  %v127 = vrot.slane %v126, 1
  %v128 = vadd.f32 %v126, %v127
  %v129 = vrot.slane %v68, 4
  %v130 = vadd.f32 %v68, %v129
  %v131 = vrot.slane %v130, 2
  %v132 = vadd.f32 %v130, %v131
  %v133 = vrot.slane %v132, 1
  %v134 = vadd.f32 %v132, %v133
  %v135 = vrot.slane %v69, 4
  %v136 = vadd.f32 %v69, %v135
  %v137 = vrot.slane %v136, 2
  %v138 = vadd.f32 %v136, %v137
  %v139 = vrot.slane %v138, 1
  %v140 = vadd.f32 %v138, %v139
  %v141 = vrot.slane %v70, 4
  %v142 = vadd.f32 %v70, %v141
  %v143 = vrot.slane %v142, 2
  %v144 = vadd.f32 %v142, %v143
  %v145 = vrot.slane %v144, 1
  %v146 = vadd.f32 %v144, %v145
  %v147 = vrot.slane %v71, 4
  %v148 = vadd.f32 %v71, %v147
  %v149 = vrot.slane %v148, 2
  %v150 = vadd.f32 %v148, %v149
  %v151 = vrot.slane %v150, 1
  %v152 = vadd.f32 %v150, %v151
  %v153 = vrot.slane %v72, 4
  %v154 = vadd.f32 %v72, %v153
  %v155 = vrot.slane %v154, 2
  %v156 = vadd.f32 %v154, %v155
  %v157 = vrot.slane %v156, 1
  %v158 = vadd.f32 %v156, %v157
  %v159 = vrot.slane %v73, 4
  %v160 = vadd.f32 %v73, %v159
  %v161 = vrot.slane %v160, 2
  %v162 = vadd.f32 %v160, %v161
  %v163 = vrot.slane %v162, 1
  %v164 = vadd.f32 %v162, %v163
  %v165 = vrot.slane %v74, 4
  %v166 = vadd.f32 %v74, %v165
  %v167 = vrot.slane %v166, 2
  %v168 = vadd.f32 %v166, %v167
  %v169 = vrot.slane %v168, 1
  %v170 = vadd.f32 %v168, %v169
  %v171 = vmul.f32 %v25, %v57
  %v172 = vmul.f32 %v26, %v58
  %v173 = vmul.f32 %v29, %v57
  %v174 = vmul.f32 %v30, %v58
  %v175 = vmul.f32 %v33, %v57
  %v176 = vmul.f32 %v34, %v58
  %v177 = vmul.f32 %v37, %v57
  %v178 = vmul.f32 %v38, %v58
  %v179 = vmul.f32 %v41, %v57
  %v180 = vmul.f32 %v42, %v58
  %v181 = vmul.f32 %v45, %v57
  %v182 = vmul.f32 %v46, %v58
  %v183 = vmul.f32 %v49, %v57
  %v184 = vmul.f32 %v50, %v58
  %v185 = vmul.f32 %v53, %v57
  %v186 = vmul.f32 %v54, %v58
  %v187 = vrot.slane %v171, 4
  %v188 = vadd.f32 %v171, %v187
  %v189 = vrot.slane %v188, 2
  %v190 = vadd.f32 %v188, %v189
  %v191 = vrot.slane %v190, 1
  %v192 = vadd.f32 %v190, %v191
  %v193 = vrot.slane %v172, 4
  %v194 = vadd.f32 %v172, %v193
  %v195 = vrot.slane %v194, 2
  %v196 = vadd.f32 %v194, %v195
  %v197 = vrot.slane %v196, 1
  %v198 = vadd.f32 %v196, %v197
  %v199 = vrot.slane %v173, 4
  %v200 = vadd.f32 %v173, %v199
  %v201 = vrot.slane %v200, 2
  %v202 = vadd.f32 %v200, %v201
  %v203 = vrot.slane %v202, 1
  %v204 = vadd.f32 %v202, %v203
  %v205 = vrot.slane %v174, 4
  %v206 = vadd.f32 %v174, %v205
  %v207 = vrot.slane %v206, 2
  %v208 = vadd.f32 %v206, %v207
  %v209 = vrot.slane %v208, 1
  %v210 = vadd.f32 %v208, %v209
  %v211 = vrot.slane %v175, 4
  %v212 = vadd.f32 %v175, %v211
  %v213 = vrot.slane %v212, 2
  %v214 = vadd.f32 %v212, %v213
  %v215 = vrot.slane %v214, 1
  %v216 = vadd.f32 %v214, %v215
  %v217 = vrot.slane %v176, 4
  %v218 = vadd.f32 %v176, %v217
  %v219 = vrot.slane %v218, 2
  %v220 = vadd.f32 %v218, %v219
  %v221 = vrot.slane %v220, 1
  %v222 = vadd.f32 %v220, %v221
  %v223 = vrot.slane %v177, 4
  %v224 = vadd.f32 %v177, %v223
  %v225 = vrot.slane %v224, 2
  %v226 = vadd.f32 %v224, %v225
  %v227 = vrot.slane %v226, 1
  %v228 = vadd.f32 %v226, %v227
  %v229 = vrot.slane %v178, 4
  %v230 = vadd.f32 %v178, %v229
  %v231 = vrot.slane %v230, 2
  %v232 = vadd.f32 %v230, %v231
  %v233 = vrot.slane %v232, 1
  %v234 = vadd.f32 %v232, %v233
  %v235 = vrot.slane %v179, 4
  %v236 = vadd.f32 %v179, %v235
  %v237 = vrot.slane %v236, 2
  %v238 = vadd.f32 %v236, %v237
  %v239 = vrot.slane %v238, 1
  %v240 = vadd.f32 %v238, %v239
  %v241 = vrot.slane %v180, 4
  %v242 = vadd.f32 %v180, %v241
  %v243 = vrot.slane %v242, 2
  %v244 = vadd.f32 %v242, %v243
  %v245 = vrot.slane %v244, 1
  %v246 = vadd.f32 %v244, %v245
  %v247 = vrot.slane %v181, 4
  %v248 = vadd.f32 %v181, %v247
  %v249 = vrot.slane %v248, 2
  %v250 = vadd.f32 %v248, %v249
  %v251 = vrot.slane %v250, 1
  %v252 = vadd.f32 %v250, %v251
  %v253 = vrot.slane %v182, 4
  %v254 = vadd.f32 %v182, %v253
  %v255 = vrot.slane %v254, 2
  %v256 = vadd.f32 %v254, %v255
  %v257 = vrot.slane %v256, 1
  %v258 = vadd.f32 %v256, %v257
  %v259 = vrot.slane %v183, 4
  %v260 = vadd.f32 %v183, %v259
  %v261 = vrot.slane %v260, 2
  %v262 = vadd.f32 %v260, %v261
  %v263 = vrot.slane %v262, 1
  %v264 = vadd.f32 %v262, %v263
  %v265 = vrot.slane %v184, 4
  %v266 = vadd.f32 %v184, %v265
  %v267 = vrot.slane %v266, 2
  %v268 = vadd.f32 %v266, %v267
  %v269 = vrot.slane %v268, 1
  %v270 = vadd.f32 %v268, %v269
  %v271 = vrot.slane %v185, 4
  %v272 = vadd.f32 %v185, %v271
  %v273 = vrot.slane %v272, 2
  %v274 = vadd.f32 %v272, %v273
  %v275 = vrot.slane %v274, 1
  %v276 = vadd.f32 %v274, %v275
  %v277 = vrot.slane %v186, 4
  %v278 = vadd.f32 %v186, %v277
  %v279 = vrot.slane %v278, 2
  %v280 = vadd.f32 %v278, %v279
  %v281 = vrot.slane %v280, 1
  %v282 = vadd.f32 %v280, %v281
  %v283 = vmul.f32 %v23, %v57
  %v284 = vmul.f32 %v24, %v58
  %v285 = vmul.f32 %v27, %v57
  %v286 = vmul.f32 %v28, %v58
  %v287 = vmul.f32 %v31, %v57
  %v288 = vmul.f32 %v32, %v58
  %v289 = vmul.f32 %v35, %v57
  %v290 = vmul.f32 %v36, %v58
  %v291 = vmul.f32 %v39, %v57
  %v292 = vmul.f32 %v40, %v58
  %v293 = vmul.f32 %v43, %v57
  %v294 = vmul.f32 %v44, %v58
  %v295 = vmul.f32 %v47, %v57
  %v296 = vmul.f32 %v48, %v58
  %v297 = vmul.f32 %v51, %v57
  %v298 = vmul.f32 %v52, %v58
  %v299 = vrot.slane %v283, 4
  %v300 = vadd.f32 %v283, %v299
  %v301 = vrot.slane %v300, 2
  %v302 = vadd.f32 %v300, %v301
  %v303 = vrot.slane %v302, 1
  %v304 = vadd.f32 %v302, %v303
  %v305 = vrot.slane %v284, 4
  %v306 = vadd.f32 %v284, %v305
  %v307 = vrot.slane %v306, 2
  %v308 = vadd.f32 %v306, %v307
  %v309 = vrot.slane %v308, 1
  %v310 = vadd.f32 %v308, %v309
  %v311 = vrot.slane %v285, 4
  %v312 = vadd.f32 %v285, %v311
  %v313 = vrot.slane %v312, 2
  %v314 = vadd.f32 %v312, %v313
  %v315 = vrot.slane %v314, 1
  %v316 = vadd.f32 %v314, %v315
  %v317 = vrot.slane %v286, 4
  %v318 = vadd.f32 %v286, %v317
  %v319 = vrot.slane %v318, 2
  %v320 = vadd.f32 %v318, %v319
  %v321 = vrot.slane %v320, 1
  %v322 = vadd.f32 %v320, %v321
  %v323 = vrot.slane %v287, 4
  %v324 = vadd.f32 %v287, %v323
  %v325 = vrot.slane %v324, 2
  %v326 = vadd.f32 %v324, %v325
  %v327 = vrot.slane %v326, 1
  %v328 = vadd.f32 %v326, %v327
  %v329 = vrot.slane %v288, 4
  %v330 = vadd.f32 %v288, %v329
  %v331 = vrot.slane %v330, 2
  %v332 = vadd.f32 %v330, %v331
  %v333 = vrot.slane %v332, 1
  %v334 = vadd.f32 %v332, %v333
  %v335 = vrot.slane %v289, 4
  %v336 = vadd.f32 %v289, %v335
  %v337 = vrot.slane %v336, 2
  %v338 = vadd.f32 %v336, %v337
  %v339 = vrot.slane %v338, 1
  %v340 = vadd.f32 %v338, %v339
  %v341 = vrot.slane %v290, 4
  %v342 = vadd.f32 %v290, %v341
  %v343 = vrot.slane %v342, 2
  %v344 = vadd.f32 %v342, %v343
  %v345 = vrot.slane %v344, 1
  %v346 = vadd.f32 %v344, %v345
  %v347 = vrot.slane %v291, 4
  %v348 = vadd.f32 %v291, %v347
  %v349 = vrot.slane %v348, 2
  %v350 = vadd.f32 %v348, %v349
  %v351 = vrot.slane %v350, 1
  %v352 = vadd.f32 %v350, %v351
  %v353 = vrot.slane %v292, 4
  %v354 = vadd.f32 %v292, %v353
  %v355 = vrot.slane %v354, 2
  %v356 = vadd.f32 %v354, %v355
  %v357 = vrot.slane %v356, 1
  %v358 = vadd.f32 %v356, %v357
  %v359 = vrot.slane %v293, 4
  %v360 = vadd.f32 %v293, %v359
  %v361 = vrot.slane %v360, 2
  %v362 = vadd.f32 %v360, %v361
  %v363 = vrot.slane %v362, 1
  %v364 = vadd.f32 %v362, %v363
  %v365 = vrot.slane %v294, 4
  %v366 = vadd.f32 %v294, %v365
  %v367 = vrot.slane %v366, 2
  %v368 = vadd.f32 %v366, %v367
  %v369 = vrot.slane %v368, 1
  %v370 = vadd.f32 %v368, %v369
  %v371 = vrot.slane %v295, 4
  %v372 = vadd.f32 %v295, %v371
  %v373 = vrot.slane %v372, 2
  %v374 = vadd.f32 %v372, %v373
  %v375 = vrot.slane %v374, 1
  %v376 = vadd.f32 %v374, %v375
  %v377 = vrot.slane %v296, 4
  %v378 = vadd.f32 %v296, %v377
  %v379 = vrot.slane %v378, 2
  %v380 = vadd.f32 %v378, %v379
  %v381 = vrot.slane %v380, 1
  %v382 = vadd.f32 %v380, %v381
  %v383 = vrot.slane %v297, 4
  %v384 = vadd.f32 %v297, %v383
  %v385 = vrot.slane %v384, 2
  %v386 = vadd.f32 %v384, %v385
  %v387 = vrot.slane %v386, 1
  %v388 = vadd.f32 %v386, %v387
  %v389 = vrot.slane %v298, 4
  %v390 = vadd.f32 %v298, %v389
  %v391 = vrot.slane %v390, 2
  %v392 = vadd.f32 %v390, %v391
  %v393 = vrot.slane %v392, 1
  %v394 = vadd.f32 %v392, %v393
  %v395 = vmul.f32 %v25, %v55
  %v396 = vmul.f32 %v26, %v56
  %v397 = vmul.f32 %v29, %v55
  %v398 = vmul.f32 %v30, %v56
  %v399 = vmul.f32 %v33, %v55
  %v400 = vmul.f32 %v34, %v56
  %v401 = vmul.f32 %v37, %v55
  %v402 = vmul.f32 %v38, %v56
  %v403 = vmul.f32 %v41, %v55
  %v404 = vmul.f32 %v42, %v56
  %v405 = vmul.f32 %v45, %v55
  %v406 = vmul.f32 %v46, %v56
  %v407 = vmul.f32 %v49, %v55
  %v408 = vmul.f32 %v50, %v56
  %v409 = vmul.f32 %v53, %v55
  %v410 = vmul.f32 %v54, %v56
  %v411 = vrot.slane %v395, 4
  %v412 = vadd.f32 %v395, %v411
  %v413 = vrot.slane %v412, 2
  %v414 = vadd.f32 %v412, %v413
  %v415 = vrot.slane %v414, 1
  %v416 = vadd.f32 %v414, %v415
  %v417 = vrot.slane %v396, 4
  %v418 = vadd.f32 %v396, %v417
  %v419 = vrot.slane %v418, 2
  %v420 = vadd.f32 %v418, %v419
  %v421 = vrot.slane %v420, 1
  %v422 = vadd.f32 %v420, %v421
  %v423 = vrot.slane %v397, 4
  %v424 = vadd.f32 %v397, %v423
  %v425 = vrot.slane %v424, 2
  %v426 = vadd.f32 %v424, %v425
  %v427 = vrot.slane %v426, 1
  %v428 = vadd.f32 %v426, %v427
  %v429 = vrot.slane %v398, 4
  %v430 = vadd.f32 %v398, %v429
  %v431 = vrot.slane %v430, 2
  %v432 = vadd.f32 %v430, %v431
  %v433 = vrot.slane %v432, 1
  %v434 = vadd.f32 %v432, %v433
  %v435 = vrot.slane %v399, 4
  %v436 = vadd.f32 %v399, %v435
  %v437 = vrot.slane %v436, 2
  %v438 = vadd.f32 %v436, %v437
  %v439 = vrot.slane %v438, 1
  %v440 = vadd.f32 %v438, %v439
  %v441 = vrot.slane %v400, 4
  %v442 = vadd.f32 %v400, %v441
  %v443 = vrot.slane %v442, 2
  %v444 = vadd.f32 %v442, %v443
  %v445 = vrot.slane %v444, 1
  %v446 = vadd.f32 %v444, %v445
  %v447 = vrot.slane %v401, 4
  %v448 = vadd.f32 %v401, %v447
  %v449 = vrot.slane %v448, 2
  %v450 = vadd.f32 %v448, %v449
  %v451 = vrot.slane %v450, 1
  %v452 = vadd.f32 %v450, %v451
  %v453 = vrot.slane %v402, 4
  %v454 = vadd.f32 %v402, %v453
  %v455 = vrot.slane %v454, 2
  %v456 = vadd.f32 %v454, %v455
  %v457 = vrot.slane %v456, 1
  %v458 = vadd.f32 %v456, %v457
  %v459 = vrot.slane %v403, 4
  %v460 = vadd.f32 %v403, %v459
  %v461 = vrot.slane %v460, 2
  %v462 = vadd.f32 %v460, %v461
  %v463 = vrot.slane %v462, 1
  %v464 = vadd.f32 %v462, %v463
  %v465 = vrot.slane %v404, 4
  %v466 = vadd.f32 %v404, %v465
  %v467 = vrot.slane %v466, 2
  %v468 = vadd.f32 %v466, %v467
  %v469 = vrot.slane %v468, 1
  %v470 = vadd.f32 %v468, %v469
  %v471 = vrot.slane %v405, 4
  %v472 = vadd.f32 %v405, %v471
  %v473 = vrot.slane %v472, 2
  %v474 = vadd.f32 %v472, %v473
  %v475 = vrot.slane %v474, 1
  %v476 = vadd.f32 %v474, %v475
  %v477 = vrot.slane %v406, 4
  %v478 = vadd.f32 %v406, %v477
  %v479 = vrot.slane %v478, 2
  %v480 = vadd.f32 %v478, %v479
  %v481 = vrot.slane %v480, 1
  %v482 = vadd.f32 %v480, %v481
  %v483 = vrot.slane %v407, 4
  %v484 = vadd.f32 %v407, %v483
  %v485 = vrot.slane %v484, 2
  %v486 = vadd.f32 %v484, %v485
  %v487 = vrot.slane %v486, 1
  %v488 = vadd.f32 %v486, %v487
  %v489 = vrot.slane %v408, 4
  %v490 = vadd.f32 %v408, %v489
  %v491 = vrot.slane %v490, 2
  %v492 = vadd.f32 %v490, %v491
  %v493 = vrot.slane %v492, 1
  %v494 = vadd.f32 %v492, %v493
  %v495 = vrot.slane %v409, 4
  %v496 = vadd.f32 %v409, %v495
  %v497 = vrot.slane %v496, 2
  %v498 = vadd.f32 %v496, %v497
  %v499 = vrot.slane %v498, 1
  %v500 = vadd.f32 %v498, %v499
  %v501 = vrot.slane %v410, 4
  %v502 = vadd.f32 %v410, %v501
  %v503 = vrot.slane %v502, 2
  %v504 = vadd.f32 %v502, %v503
  %v505 = vrot.slane %v504, 1
  %v506 = vadd.f32 %v504, %v505
  %v507 = vld [vmem:[%s2] sm:$0xff]
  %v508 = vld [vmem:[%s2 + $0x8] sm:$0xff]
  %v509 = vsub.f32 %v80, %v192
  %v510 = vsub.f32 %v86, %v198
  %v511 = vsub.f32 %v92, %v204
  %v512 = vsub.f32 %v98, %v210
  %v513 = vsub.f32 %v104, %v216
  %v514 = vsub.f32 %v110, %v222
  %v515 = vsub.f32 %v116, %v228
  %v516 = vsub.f32 %v122, %v234
  %v517 = vsub.f32 %v128, %v240
  %v518 = vsub.f32 %v134, %v246
  %v519 = vsub.f32 %v140, %v252
  %v520 = vsub.f32 %v146, %v258
  %v521 = vsub.f32 %v152, %v264
  %v522 = vsub.f32 %v158, %v270
  %v523 = vsub.f32 %v164, %v276
  %v524 = vsub.f32 %v170, %v282
  %vm541 = vcmask 1041409
  %v542 = vsel %vm541, %v511, %v509
  %vm543 = vcmask 1042434
  %v544 = vsel %vm543, %v513, %v542
  %vm545 = vcmask 1043459
  %v546 = vsel %vm545, %v515, %v544
  %vm547 = vcmask 1044484
  %v548 = vsel %vm547, %v517, %v546
  %vm549 = vcmask 1045509
  %v550 = vsel %vm549, %v519, %v548
  %vm551 = vcmask 1046534
  %v552 = vsel %vm551, %v521, %v550
  %vm553 = vcmask 1047559
  %v554 = vsel %vm553, %v523, %v552
  %v555 = vsel %vm541, %v512, %v510
  %v556 = vsel %vm543, %v514, %v555
  %v557 = vsel %vm545, %v516, %v556
  %v558 = vsel %vm547, %v518, %v557
  %v559 = vsel %vm549, %v520, %v558
  %v560 = vsel %vm551, %v522, %v559
  %v561 = vsel %vm553, %v524, %v560
  %v564 = vadd.f32 %v507, %v554
  %v565 = vadd.f32 %v508, %v561
  %566 = vst [vmem:[%s2] sm:$0xff] %v564
  %567 = vst [vmem:[%s2 + $0x8] sm:$0xff] %v565
  %v568 = vld [vmem:[%s2 + $0x10] sm:$0xff]
  %v569 = vld [vmem:[%s2 + $0x18] sm:$0xff]
  %v570 = vadd.f32 %v304, %v416
  %v571 = vadd.f32 %v310, %v422
  %v572 = vadd.f32 %v316, %v428
  %v573 = vadd.f32 %v322, %v434
  %v574 = vadd.f32 %v328, %v440
  %v575 = vadd.f32 %v334, %v446
  %v576 = vadd.f32 %v340, %v452
  %v577 = vadd.f32 %v346, %v458
  %v578 = vadd.f32 %v352, %v464
  %v579 = vadd.f32 %v358, %v470
  %v580 = vadd.f32 %v364, %v476
  %v581 = vadd.f32 %v370, %v482
  %v582 = vadd.f32 %v376, %v488
  %v583 = vadd.f32 %v382, %v494
  %v584 = vadd.f32 %v388, %v500
  %v585 = vadd.f32 %v394, %v506
  %v602 = vsel %vm541, %v572, %v570
  %v603 = vsel %vm543, %v574, %v602
  %v604 = vsel %vm545, %v576, %v603
  %v605 = vsel %vm547, %v578, %v604
  %v606 = vsel %vm549, %v580, %v605
  %v607 = vsel %vm551, %v582, %v606
  %v608 = vsel %vm553, %v584, %v607
  %v609 = vsel %vm541, %v573, %v571
  %v610 = vsel %vm543, %v575, %v609
  %v611 = vsel %vm545, %v577, %v610
  %v612 = vsel %vm547, %v579, %v611
  %v613 = vsel %vm549, %v581, %v612
  %v614 = vsel %vm551, %v583, %v613
  %v615 = vsel %vm553, %v585, %v614
  %v618 = vadd.f32 %v568, %v608
  %v619 = vadd.f32 %v569, %v615
  %620 = vst [vmem:[%s2 + $0x10] sm:$0xff] %v618
  %621 = vst [vmem:[%s2 + $0x18] sm:$0xff] %v619
  %s622 = scalar_lea.vmem %s0, 32
  %v623 = vld [vmem:[%s622] sm:$0xff]
  %v624 = vld [vmem:[%s622 + $0x8] sm:$0xff]
  %v625 = vld [vmem:[%s622 + $0x10] sm:$0xff]
  %v626 = vld [vmem:[%s622 + $0x18] sm:$0xff]
  %v627 = vmul.f32 %v23, %v623
  %v628 = vmul.f32 %v24, %v624
  %v629 = vmul.f32 %v27, %v623
  %v630 = vmul.f32 %v28, %v624
  %v631 = vmul.f32 %v31, %v623
  %v632 = vmul.f32 %v32, %v624
  %v633 = vmul.f32 %v35, %v623
  %v634 = vmul.f32 %v36, %v624
  %v635 = vmul.f32 %v39, %v623
  %v636 = vmul.f32 %v40, %v624
  %v637 = vmul.f32 %v43, %v623
  %v638 = vmul.f32 %v44, %v624
  %v639 = vmul.f32 %v47, %v623
  %v640 = vmul.f32 %v48, %v624
  %v641 = vmul.f32 %v51, %v623
  %v642 = vmul.f32 %v52, %v624
  %v643 = vrot.slane %v627, 4
  %v644 = vadd.f32 %v627, %v643
  %v645 = vrot.slane %v644, 2
  %v646 = vadd.f32 %v644, %v645
  %v647 = vrot.slane %v646, 1
  %v648 = vadd.f32 %v646, %v647
  %v649 = vrot.slane %v628, 4
  %v650 = vadd.f32 %v628, %v649
  %v651 = vrot.slane %v650, 2
  %v652 = vadd.f32 %v650, %v651
  %v653 = vrot.slane %v652, 1
  %v654 = vadd.f32 %v652, %v653
  %v655 = vrot.slane %v629, 4
  %v656 = vadd.f32 %v629, %v655
  %v657 = vrot.slane %v656, 2
  %v658 = vadd.f32 %v656, %v657
  %v659 = vrot.slane %v658, 1
  %v660 = vadd.f32 %v658, %v659
  %v661 = vrot.slane %v630, 4
  %v662 = vadd.f32 %v630, %v661
  %v663 = vrot.slane %v662, 2
  %v664 = vadd.f32 %v662, %v663
  %v665 = vrot.slane %v664, 1
  %v666 = vadd.f32 %v664, %v665
  %v667 = vrot.slane %v631, 4
  %v668 = vadd.f32 %v631, %v667
  %v669 = vrot.slane %v668, 2
  %v670 = vadd.f32 %v668, %v669
  %v671 = vrot.slane %v670, 1
  %v672 = vadd.f32 %v670, %v671
  %v673 = vrot.slane %v632, 4
  %v674 = vadd.f32 %v632, %v673
  %v675 = vrot.slane %v674, 2
  %v676 = vadd.f32 %v674, %v675
  %v677 = vrot.slane %v676, 1
  %v678 = vadd.f32 %v676, %v677
  %v679 = vrot.slane %v633, 4
  %v680 = vadd.f32 %v633, %v679
  %v681 = vrot.slane %v680, 2
  %v682 = vadd.f32 %v680, %v681
  %v683 = vrot.slane %v682, 1
  %v684 = vadd.f32 %v682, %v683
  %v685 = vrot.slane %v634, 4
  %v686 = vadd.f32 %v634, %v685
  %v687 = vrot.slane %v686, 2
  %v688 = vadd.f32 %v686, %v687
  %v689 = vrot.slane %v688, 1
  %v690 = vadd.f32 %v688, %v689
  %v691 = vrot.slane %v635, 4
  %v692 = vadd.f32 %v635, %v691
  %v693 = vrot.slane %v692, 2
  %v694 = vadd.f32 %v692, %v693
  %v695 = vrot.slane %v694, 1
  %v696 = vadd.f32 %v694, %v695
  %v697 = vrot.slane %v636, 4
  %v698 = vadd.f32 %v636, %v697
  %v699 = vrot.slane %v698, 2
  %v700 = vadd.f32 %v698, %v699
  %v701 = vrot.slane %v700, 1
  %v702 = vadd.f32 %v700, %v701
  %v703 = vrot.slane %v637, 4
  %v704 = vadd.f32 %v637, %v703
  %v705 = vrot.slane %v704, 2
  %v706 = vadd.f32 %v704, %v705
  %v707 = vrot.slane %v706, 1
  %v708 = vadd.f32 %v706, %v707
  %v709 = vrot.slane %v638, 4
  %v710 = vadd.f32 %v638, %v709
  %v711 = vrot.slane %v710, 2
  %v712 = vadd.f32 %v710, %v711
  %v713 = vrot.slane %v712, 1
  %v714 = vadd.f32 %v712, %v713
  %v715 = vrot.slane %v639, 4
  %v716 = vadd.f32 %v639, %v715
  %v717 = vrot.slane %v716, 2
  %v718 = vadd.f32 %v716, %v717
  %v719 = vrot.slane %v718, 1
  %v720 = vadd.f32 %v718, %v719
  %v721 = vrot.slane %v640, 4
  %v722 = vadd.f32 %v640, %v721
  %v723 = vrot.slane %v722, 2
  %v724 = vadd.f32 %v722, %v723
  %v725 = vrot.slane %v724, 1
  %v726 = vadd.f32 %v724, %v725
  %v727 = vrot.slane %v641, 4
  %v728 = vadd.f32 %v641, %v727
  %v729 = vrot.slane %v728, 2
  %v730 = vadd.f32 %v728, %v729
  %v731 = vrot.slane %v730, 1
  %v732 = vadd.f32 %v730, %v731
  %v733 = vrot.slane %v642, 4
  %v734 = vadd.f32 %v642, %v733
  %v735 = vrot.slane %v734, 2
  %v736 = vadd.f32 %v734, %v735
  %v737 = vrot.slane %v736, 1
  %v738 = vadd.f32 %v736, %v737
  %v739 = vmul.f32 %v25, %v625
  %v740 = vmul.f32 %v26, %v626
  %v741 = vmul.f32 %v29, %v625
  %v742 = vmul.f32 %v30, %v626
  %v743 = vmul.f32 %v33, %v625
  %v744 = vmul.f32 %v34, %v626
  %v745 = vmul.f32 %v37, %v625
  %v746 = vmul.f32 %v38, %v626
  %v747 = vmul.f32 %v41, %v625
  %v748 = vmul.f32 %v42, %v626
  %v749 = vmul.f32 %v45, %v625
  %v750 = vmul.f32 %v46, %v626
  %v751 = vmul.f32 %v49, %v625
  %v752 = vmul.f32 %v50, %v626
  %v753 = vmul.f32 %v53, %v625
  %v754 = vmul.f32 %v54, %v626
  %v755 = vrot.slane %v739, 4
  %v756 = vadd.f32 %v739, %v755
  %v757 = vrot.slane %v756, 2
  %v758 = vadd.f32 %v756, %v757
  %v759 = vrot.slane %v758, 1
  %v760 = vadd.f32 %v758, %v759
  %v761 = vrot.slane %v740, 4
  %v762 = vadd.f32 %v740, %v761
  %v763 = vrot.slane %v762, 2
  %v764 = vadd.f32 %v762, %v763
  %v765 = vrot.slane %v764, 1
  %v766 = vadd.f32 %v764, %v765
  %v767 = vrot.slane %v741, 4
  %v768 = vadd.f32 %v741, %v767
  %v769 = vrot.slane %v768, 2
  %v770 = vadd.f32 %v768, %v769
  %v771 = vrot.slane %v770, 1
  %v772 = vadd.f32 %v770, %v771
  %v773 = vrot.slane %v742, 4
  %v774 = vadd.f32 %v742, %v773
  %v775 = vrot.slane %v774, 2
  %v776 = vadd.f32 %v774, %v775
  %v777 = vrot.slane %v776, 1
  %v778 = vadd.f32 %v776, %v777
  %v779 = vrot.slane %v743, 4
  %v780 = vadd.f32 %v743, %v779
  %v781 = vrot.slane %v780, 2
  %v782 = vadd.f32 %v780, %v781
  %v783 = vrot.slane %v782, 1
  %v784 = vadd.f32 %v782, %v783
  %v785 = vrot.slane %v744, 4
  %v786 = vadd.f32 %v744, %v785
  %v787 = vrot.slane %v786, 2
  %v788 = vadd.f32 %v786, %v787
  %v789 = vrot.slane %v788, 1
  %v790 = vadd.f32 %v788, %v789
  %v791 = vrot.slane %v745, 4
  %v792 = vadd.f32 %v745, %v791
  %v793 = vrot.slane %v792, 2
  %v794 = vadd.f32 %v792, %v793
  %v795 = vrot.slane %v794, 1
  %v796 = vadd.f32 %v794, %v795
  %v797 = vrot.slane %v746, 4
  %v798 = vadd.f32 %v746, %v797
  %v799 = vrot.slane %v798, 2
  %v800 = vadd.f32 %v798, %v799
  %v801 = vrot.slane %v800, 1
  %v802 = vadd.f32 %v800, %v801
  %v803 = vrot.slane %v747, 4
  %v804 = vadd.f32 %v747, %v803
  %v805 = vrot.slane %v804, 2
  %v806 = vadd.f32 %v804, %v805
  %v807 = vrot.slane %v806, 1
  %v808 = vadd.f32 %v806, %v807
  %v809 = vrot.slane %v748, 4
  %v810 = vadd.f32 %v748, %v809
  %v811 = vrot.slane %v810, 2
  %v812 = vadd.f32 %v810, %v811
  %v813 = vrot.slane %v812, 1
  %v814 = vadd.f32 %v812, %v813
  %v815 = vrot.slane %v749, 4
  %v816 = vadd.f32 %v749, %v815
  %v817 = vrot.slane %v816, 2
  %v818 = vadd.f32 %v816, %v817
  %v819 = vrot.slane %v818, 1
  %v820 = vadd.f32 %v818, %v819
  %v821 = vrot.slane %v750, 4
  %v822 = vadd.f32 %v750, %v821
  %v823 = vrot.slane %v822, 2
  %v824 = vadd.f32 %v822, %v823
  %v825 = vrot.slane %v824, 1
  %v826 = vadd.f32 %v824, %v825
  %v827 = vrot.slane %v751, 4
  %v828 = vadd.f32 %v751, %v827
  %v829 = vrot.slane %v828, 2
  %v830 = vadd.f32 %v828, %v829
  %v831 = vrot.slane %v830, 1
  %v832 = vadd.f32 %v830, %v831
  %v833 = vrot.slane %v752, 4
  %v834 = vadd.f32 %v752, %v833
  %v835 = vrot.slane %v834, 2
  %v836 = vadd.f32 %v834, %v835
  %v837 = vrot.slane %v836, 1
  %v838 = vadd.f32 %v836, %v837
  %v839 = vrot.slane %v753, 4
  %v840 = vadd.f32 %v753, %v839
  %v841 = vrot.slane %v840, 2
  %v842 = vadd.f32 %v840, %v841
  %v843 = vrot.slane %v842, 1
  %v844 = vadd.f32 %v842, %v843
  %v845 = vrot.slane %v754, 4
  %v846 = vadd.f32 %v754, %v845
  %v847 = vrot.slane %v846, 2
  %v848 = vadd.f32 %v846, %v847
  %v849 = vrot.slane %v848, 1
  %v850 = vadd.f32 %v848, %v849
  %v851 = vmul.f32 %v23, %v625
  %v852 = vmul.f32 %v24, %v626
  %v853 = vmul.f32 %v27, %v625
  %v854 = vmul.f32 %v28, %v626
  %v855 = vmul.f32 %v31, %v625
  %v856 = vmul.f32 %v32, %v626
  %v857 = vmul.f32 %v35, %v625
  %v858 = vmul.f32 %v36, %v626
  %v859 = vmul.f32 %v39, %v625
  %v860 = vmul.f32 %v40, %v626
  %v861 = vmul.f32 %v43, %v625
  %v862 = vmul.f32 %v44, %v626
  %v863 = vmul.f32 %v47, %v625
  %v864 = vmul.f32 %v48, %v626
  %v865 = vmul.f32 %v51, %v625
  %v866 = vmul.f32 %v52, %v626
  %v867 = vrot.slane %v851, 4
  %v868 = vadd.f32 %v851, %v867
  %v869 = vrot.slane %v868, 2
  %v870 = vadd.f32 %v868, %v869
  %v871 = vrot.slane %v870, 1
  %v872 = vadd.f32 %v870, %v871
  %v873 = vrot.slane %v852, 4
  %v874 = vadd.f32 %v852, %v873
  %v875 = vrot.slane %v874, 2
  %v876 = vadd.f32 %v874, %v875
  %v877 = vrot.slane %v876, 1
  %v878 = vadd.f32 %v876, %v877
  %v879 = vrot.slane %v853, 4
  %v880 = vadd.f32 %v853, %v879
  %v881 = vrot.slane %v880, 2
  %v882 = vadd.f32 %v880, %v881
  %v883 = vrot.slane %v882, 1
  %v884 = vadd.f32 %v882, %v883
  %v885 = vrot.slane %v854, 4
  %v886 = vadd.f32 %v854, %v885
  %v887 = vrot.slane %v886, 2
  %v888 = vadd.f32 %v886, %v887
  %v889 = vrot.slane %v888, 1
  %v890 = vadd.f32 %v888, %v889
  %v891 = vrot.slane %v855, 4
  %v892 = vadd.f32 %v855, %v891
  %v893 = vrot.slane %v892, 2
  %v894 = vadd.f32 %v892, %v893
  %v895 = vrot.slane %v894, 1
  %v896 = vadd.f32 %v894, %v895
  %v897 = vrot.slane %v856, 4
  %v898 = vadd.f32 %v856, %v897
  %v899 = vrot.slane %v898, 2
  %v900 = vadd.f32 %v898, %v899
  %v901 = vrot.slane %v900, 1
  %v902 = vadd.f32 %v900, %v901
  %v903 = vrot.slane %v857, 4
  %v904 = vadd.f32 %v857, %v903
  %v905 = vrot.slane %v904, 2
  %v906 = vadd.f32 %v904, %v905
  %v907 = vrot.slane %v906, 1
  %v908 = vadd.f32 %v906, %v907
  %v909 = vrot.slane %v858, 4
  %v910 = vadd.f32 %v858, %v909
  %v911 = vrot.slane %v910, 2
  %v912 = vadd.f32 %v910, %v911
  %v913 = vrot.slane %v912, 1
  %v914 = vadd.f32 %v912, %v913
  %v915 = vrot.slane %v859, 4
  %v916 = vadd.f32 %v859, %v915
  %v917 = vrot.slane %v916, 2
  %v918 = vadd.f32 %v916, %v917
  %v919 = vrot.slane %v918, 1
  %v920 = vadd.f32 %v918, %v919
  %v921 = vrot.slane %v860, 4
  %v922 = vadd.f32 %v860, %v921
  %v923 = vrot.slane %v922, 2
  %v924 = vadd.f32 %v922, %v923
  %v925 = vrot.slane %v924, 1
  %v926 = vadd.f32 %v924, %v925
  %v927 = vrot.slane %v861, 4
  %v928 = vadd.f32 %v861, %v927
  %v929 = vrot.slane %v928, 2
  %v930 = vadd.f32 %v928, %v929
  %v931 = vrot.slane %v930, 1
  %v932 = vadd.f32 %v930, %v931
  %v933 = vrot.slane %v862, 4
  %v934 = vadd.f32 %v862, %v933
  %v935 = vrot.slane %v934, 2
  %v936 = vadd.f32 %v934, %v935
  %v937 = vrot.slane %v936, 1
  %v938 = vadd.f32 %v936, %v937
  %v939 = vrot.slane %v863, 4
  %v940 = vadd.f32 %v863, %v939
  %v941 = vrot.slane %v940, 2
  %v942 = vadd.f32 %v940, %v941
  %v943 = vrot.slane %v942, 1
  %v944 = vadd.f32 %v942, %v943
  %v945 = vrot.slane %v864, 4
  %v946 = vadd.f32 %v864, %v945
  %v947 = vrot.slane %v946, 2
  %v948 = vadd.f32 %v946, %v947
  %v949 = vrot.slane %v948, 1
  %v950 = vadd.f32 %v948, %v949
  %v951 = vrot.slane %v865, 4
  %v952 = vadd.f32 %v865, %v951
  %v953 = vrot.slane %v952, 2
  %v954 = vadd.f32 %v952, %v953
  %v955 = vrot.slane %v954, 1
  %v956 = vadd.f32 %v954, %v955
  %v957 = vrot.slane %v866, 4
  %v958 = vadd.f32 %v866, %v957
  %v959 = vrot.slane %v958, 2
  %v960 = vadd.f32 %v958, %v959
  %v961 = vrot.slane %v960, 1
  %v962 = vadd.f32 %v960, %v961
  %v963 = vmul.f32 %v25, %v623
  %v964 = vmul.f32 %v26, %v624
  %v965 = vmul.f32 %v29, %v623
  %v966 = vmul.f32 %v30, %v624
  %v967 = vmul.f32 %v33, %v623
  %v968 = vmul.f32 %v34, %v624
  %v969 = vmul.f32 %v37, %v623
  %v970 = vmul.f32 %v38, %v624
  %v971 = vmul.f32 %v41, %v623
  %v972 = vmul.f32 %v42, %v624
  %v973 = vmul.f32 %v45, %v623
  %v974 = vmul.f32 %v46, %v624
  %v975 = vmul.f32 %v49, %v623
  %v976 = vmul.f32 %v50, %v624
  %v977 = vmul.f32 %v53, %v623
  %v978 = vmul.f32 %v54, %v624
  %v979 = vrot.slane %v963, 4
  %v980 = vadd.f32 %v963, %v979
  %v981 = vrot.slane %v980, 2
  %v982 = vadd.f32 %v980, %v981
  %v983 = vrot.slane %v982, 1
  %v984 = vadd.f32 %v982, %v983
  %v985 = vrot.slane %v964, 4
  %v986 = vadd.f32 %v964, %v985
  %v987 = vrot.slane %v986, 2
  %v988 = vadd.f32 %v986, %v987
  %v989 = vrot.slane %v988, 1
  %v990 = vadd.f32 %v988, %v989
  %v991 = vrot.slane %v965, 4
  %v992 = vadd.f32 %v965, %v991
  %v993 = vrot.slane %v992, 2
  %v994 = vadd.f32 %v992, %v993
  %v995 = vrot.slane %v994, 1
  %v996 = vadd.f32 %v994, %v995
  %v997 = vrot.slane %v966, 4
  %v998 = vadd.f32 %v966, %v997
  %v999 = vrot.slane %v998, 2
  %v1000 = vadd.f32 %v998, %v999
  %v1001 = vrot.slane %v1000, 1
  %v1002 = vadd.f32 %v1000, %v1001
  %v1003 = vrot.slane %v967, 4
  %v1004 = vadd.f32 %v967, %v1003
  %v1005 = vrot.slane %v1004, 2
  %v1006 = vadd.f32 %v1004, %v1005
  %v1007 = vrot.slane %v1006, 1
  %v1008 = vadd.f32 %v1006, %v1007
  %v1009 = vrot.slane %v968, 4
  %v1010 = vadd.f32 %v968, %v1009
  %v1011 = vrot.slane %v1010, 2
  %v1012 = vadd.f32 %v1010, %v1011
  %v1013 = vrot.slane %v1012, 1
  %v1014 = vadd.f32 %v1012, %v1013
  %v1015 = vrot.slane %v969, 4
  %v1016 = vadd.f32 %v969, %v1015
  %v1017 = vrot.slane %v1016, 2
  %v1018 = vadd.f32 %v1016, %v1017
  %v1019 = vrot.slane %v1018, 1
  %v1020 = vadd.f32 %v1018, %v1019
  %v1021 = vrot.slane %v970, 4
  %v1022 = vadd.f32 %v970, %v1021
  %v1023 = vrot.slane %v1022, 2
  %v1024 = vadd.f32 %v1022, %v1023
  %v1025 = vrot.slane %v1024, 1
  %v1026 = vadd.f32 %v1024, %v1025
  %v1027 = vrot.slane %v971, 4
  %v1028 = vadd.f32 %v971, %v1027
  %v1029 = vrot.slane %v1028, 2
  %v1030 = vadd.f32 %v1028, %v1029
  %v1031 = vrot.slane %v1030, 1
  %v1032 = vadd.f32 %v1030, %v1031
  %v1033 = vrot.slane %v972, 4
  %v1034 = vadd.f32 %v972, %v1033
  %v1035 = vrot.slane %v1034, 2
  %v1036 = vadd.f32 %v1034, %v1035
  %v1037 = vrot.slane %v1036, 1
  %v1038 = vadd.f32 %v1036, %v1037
  %v1039 = vrot.slane %v973, 4
  %v1040 = vadd.f32 %v973, %v1039
  %v1041 = vrot.slane %v1040, 2
  %v1042 = vadd.f32 %v1040, %v1041
  %v1043 = vrot.slane %v1042, 1
  %v1044 = vadd.f32 %v1042, %v1043
  %v1045 = vrot.slane %v974, 4
  %v1046 = vadd.f32 %v974, %v1045
  %v1047 = vrot.slane %v1046, 2
  %v1048 = vadd.f32 %v1046, %v1047
  %v1049 = vrot.slane %v1048, 1
  %v1050 = vadd.f32 %v1048, %v1049
  %v1051 = vrot.slane %v975, 4
  %v1052 = vadd.f32 %v975, %v1051
  %v1053 = vrot.slane %v1052, 2
  %v1054 = vadd.f32 %v1052, %v1053
  %v1055 = vrot.slane %v1054, 1
  %v1056 = vadd.f32 %v1054, %v1055
  %v1057 = vrot.slane %v976, 4
  %v1058 = vadd.f32 %v976, %v1057
  %v1059 = vrot.slane %v1058, 2
  %v1060 = vadd.f32 %v1058, %v1059
  %v1061 = vrot.slane %v1060, 1
  %v1062 = vadd.f32 %v1060, %v1061
  %v1063 = vrot.slane %v977, 4
  %v1064 = vadd.f32 %v977, %v1063
  %v1065 = vrot.slane %v1064, 2
  %v1066 = vadd.f32 %v1064, %v1065
  %v1067 = vrot.slane %v1066, 1
  %v1068 = vadd.f32 %v1066, %v1067
  %v1069 = vrot.slane %v978, 4
  %v1070 = vadd.f32 %v978, %v1069
  %v1071 = vrot.slane %v1070, 2
  %v1072 = vadd.f32 %v1070, %v1071
  %v1073 = vrot.slane %v1072, 1
  %v1074 = vadd.f32 %v1072, %v1073
  %s1075 = scalar_lea.vmem %s2, 32
  %v1076 = vld [vmem:[%s1075] sm:$0xff]
  %v1077 = vld [vmem:[%s1075 + $0x8] sm:$0xff]
  %v1078 = vsub.f32 %v648, %v760
  %v1079 = vsub.f32 %v654, %v766
  %v1080 = vsub.f32 %v660, %v772
  %v1081 = vsub.f32 %v666, %v778
  %v1082 = vsub.f32 %v672, %v784
  %v1083 = vsub.f32 %v678, %v790
  %v1084 = vsub.f32 %v684, %v796
  %v1085 = vsub.f32 %v690, %v802
  %v1086 = vsub.f32 %v696, %v808
  %v1087 = vsub.f32 %v702, %v814
  %v1088 = vsub.f32 %v708, %v820
  %v1089 = vsub.f32 %v714, %v826
  %v1090 = vsub.f32 %v720, %v832
  %v1091 = vsub.f32 %v726, %v838
  %v1092 = vsub.f32 %v732, %v844
  %v1093 = vsub.f32 %v738, %v850
  %v1110 = vsel %vm541, %v1080, %v1078
  %v1111 = vsel %vm543, %v1082, %v1110
  %v1112 = vsel %vm545, %v1084, %v1111
  %v1113 = vsel %vm547, %v1086, %v1112
  %v1114 = vsel %vm549, %v1088, %v1113
  %v1115 = vsel %vm551, %v1090, %v1114
  %v1116 = vsel %vm553, %v1092, %v1115
  %v1117 = vsel %vm541, %v1081, %v1079
  %v1118 = vsel %vm543, %v1083, %v1117
  %v1119 = vsel %vm545, %v1085, %v1118
  %v1120 = vsel %vm547, %v1087, %v1119
  %v1121 = vsel %vm549, %v1089, %v1120
  %v1122 = vsel %vm551, %v1091, %v1121
  %v1123 = vsel %vm553, %v1093, %v1122
  %v1126 = vadd.f32 %v1076, %v1116
  %v1127 = vadd.f32 %v1077, %v1123
  %1128 = vst [vmem:[%s1075] sm:$0xff] %v1126
  %1129 = vst [vmem:[%s1075 + $0x8] sm:$0xff] %v1127
  %v1130 = vld [vmem:[%s1075 + $0x10] sm:$0xff]
  %v1131 = vld [vmem:[%s1075 + $0x18] sm:$0xff]
  %v1132 = vadd.f32 %v872, %v984
  %v1133 = vadd.f32 %v878, %v990
  %v1134 = vadd.f32 %v884, %v996
  %v1135 = vadd.f32 %v890, %v1002
  %v1136 = vadd.f32 %v896, %v1008
  %v1137 = vadd.f32 %v902, %v1014
  %v1138 = vadd.f32 %v908, %v1020
  %v1139 = vadd.f32 %v914, %v1026
  %v1140 = vadd.f32 %v920, %v1032
  %v1141 = vadd.f32 %v926, %v1038
  %v1142 = vadd.f32 %v932, %v1044
  %v1143 = vadd.f32 %v938, %v1050
  %v1144 = vadd.f32 %v944, %v1056
  %v1145 = vadd.f32 %v950, %v1062
  %v1146 = vadd.f32 %v956, %v1068
  %v1147 = vadd.f32 %v962, %v1074
  %v1164 = vsel %vm541, %v1134, %v1132
  %v1165 = vsel %vm543, %v1136, %v1164
  %v1166 = vsel %vm545, %v1138, %v1165
  %v1167 = vsel %vm547, %v1140, %v1166
  %v1168 = vsel %vm549, %v1142, %v1167
  %v1169 = vsel %vm551, %v1144, %v1168
  %v1170 = vsel %vm553, %v1146, %v1169
  %v1171 = vsel %vm541, %v1135, %v1133
  %v1172 = vsel %vm543, %v1137, %v1171
  %v1173 = vsel %vm545, %v1139, %v1172
  %v1174 = vsel %vm547, %v1141, %v1173
  %v1175 = vsel %vm549, %v1143, %v1174
  %v1176 = vsel %vm551, %v1145, %v1175
  %v1177 = vsel %vm553, %v1147, %v1176
  %v1180 = vadd.f32 %v1130, %v1170
  %v1181 = vadd.f32 %v1131, %v1177
  %1182 = vst [vmem:[%s1075 + $0x10] sm:$0xff] %v1180
  %1183 = vst [vmem:[%s1075 + $0x18] sm:$0xff] %v1181
  // Predicated region
  $region14: #{_lambda_.22} parent=0 // pred_check
    _
  $region15: #{_lambda_.22} parent=0 // pred_check_branch
    %1185 = sbr.rel (0) target = $region17
  $region16: #{_lambda_.22} parent=0 // pred_region
    _
  $region17: #{_lambda_.22} parent=0 // pred_fallthru
    _
  // Predicated region
  $region18: #{_lambda_.22} parent=0 // pred_check
    _
  $region19: #{_lambda_.22} parent=0 // pred_check_branch
    %1187 = sbr.rel (0) target = $region21
  $region20: #{_lambda_.22} parent=0 // pred_region
    _
  $region21: #{_lambda_.22} parent=0 // pred_fallthru
    _

// kernel: _lambda_.25
$region0: #{_lambda_.25}
  #allocation0 [shape = 'u32[]', space=smem, size = 0x4, offset = 0x4, fixed_abs, tag = 'smem constant byte address 0x4 - core index']
  #allocation1 [shape = 'u32[144,128]{1,0:T(1,128)}', space=vmem, size = 0x12000, scoped, tag = 'internal scratch']
  %s0 = inlined_call_operand.vmem [shape: f32[2,8,512], index: 0, kind: input, shape index: {}]
  %s1 = inlined_call_operand.vmem [shape: f32[1,8,512], index: 1, kind: input, shape index: {}]
  %s2 = inlined_call_operand.vmem [shape: f32[2,1,512], index: 2, kind: output, shape index: {}]
  %s3 = sld [smem:[#allocation0]]
  $region22: #{_lambda_.25} parent=0
    _
  %s5 = ssub.s32 1, %s3
  %s6 = scalar_select 0, %s5, %s3
  // Predicated region
  $region2: #{_lambda_.25} parent=0 // pred_check
    _
  $region3: #{_lambda_.25} parent=0 // pred_check_branch
    %8 = sbr.rel (0) target = $region5
  $region4: #{_lambda_.25} parent=0 // pred_region
    _
  $region5: #{_lambda_.25} parent=0 // pred_fallthru
    _
  // Predicated region
  $region6: #{_lambda_.25} parent=0 // pred_check
    _
  $region7: #{_lambda_.25} parent=0 // pred_check_branch
    %10 = sbr.rel (0) target = $region9
  $region8: #{_lambda_.25} parent=0 // pred_region
    _
  $region9: #{_lambda_.25} parent=0 // pred_fallthru
    _
  %p11 = scmp.eq.s32.totalorder 0, 0
  // Predicated region
  $region10: #{_lambda_.25} parent=0 // pred_check
    %p12 = pneg %p11
  $region11: #{_lambda_.25} parent=0 // pred_check_branch
    %14 = sbr.rel (%p12) target = $region13
  $region12: #{_lambda_.25} parent=0 // pred_region
    %v15 = vlaneseq
    %vm16 = vcmp.ge.s32.totalorder %v15, 0
    %vm17 = vcmp.lt.s32.totalorder %v15, 512
    %vm18 = vmand %vm16, %vm17
    %19 = vst.msk [vmem:[%s2] sm:$0xf] %vm18, 0.0
    %20 = vst.msk [vmem:[%s2 + $0x4] sm:$0xf] %vm18, 0.0
  $region13: #{_lambda_.25} parent=0 // pred_fallthru
    _
  %v21 = vld [vmem:[%s1] sm:$0xff]
  %v22 = vld [vmem:[%s1 + $0x8] sm:$0xff]
  %v23 = vld [vmem:[%s1 + $0x10] sm:$0xff]
  %v24 = vld [vmem:[%s1 + $0x18] sm:$0xff]
  %v25 = vld [vmem:[%s0] sm:$0xff]
  %v26 = vld [vmem:[%s0 + $0x8] sm:$0xff]
  %v27 = vld [vmem:[%s0 + $0x10] sm:$0xff]
  %v28 = vld [vmem:[%s0 + $0x18] sm:$0xff]
  %v29 = vmul.f32 %v21, %v25
  %v30 = vmul.f32 %v22, %v26
  %v31 = vrot.slane %v29, 4
  %v32 = vadd.f32 %v29, %v31
  %v33 = vrot.slane %v32, 2
  %v34 = vadd.f32 %v32, %v33
  %v35 = vrot.slane %v34, 1
  %v36 = vadd.f32 %v34, %v35
  %v37 = vrot.slane %v30, 4
  %v38 = vadd.f32 %v30, %v37
  %v39 = vrot.slane %v38, 2
  %v40 = vadd.f32 %v38, %v39
  %v41 = vrot.slane %v40, 1
  %v42 = vadd.f32 %v40, %v41
  %v43 = vmul.f32 %v23, %v27
  %v44 = vmul.f32 %v24, %v28
  %v45 = vrot.slane %v43, 4
  %v46 = vadd.f32 %v43, %v45
  %v47 = vrot.slane %v46, 2
  %v48 = vadd.f32 %v46, %v47
  %v49 = vrot.slane %v48, 1
  %v50 = vadd.f32 %v48, %v49
  %v51 = vrot.slane %v44, 4
  %v52 = vadd.f32 %v44, %v51
  %v53 = vrot.slane %v52, 2
  %v54 = vadd.f32 %v52, %v53
  %v55 = vrot.slane %v54, 1
  %v56 = vadd.f32 %v54, %v55
  %v57 = vmul.f32 %v21, %v27
  %v58 = vmul.f32 %v22, %v28
  %v59 = vrot.slane %v57, 4
  %v60 = vadd.f32 %v57, %v59
  %v61 = vrot.slane %v60, 2
  %v62 = vadd.f32 %v60, %v61
  %v63 = vrot.slane %v62, 1
  %v64 = vadd.f32 %v62, %v63
  %v65 = vrot.slane %v58, 4
  %v66 = vadd.f32 %v58, %v65
  %v67 = vrot.slane %v66, 2
  %v68 = vadd.f32 %v66, %v67
  %v69 = vrot.slane %v68, 1
  %v70 = vadd.f32 %v68, %v69
  %v71 = vmul.f32 %v23, %v25
  %v72 = vmul.f32 %v24, %v26
  %v73 = vrot.slane %v71, 4
  %v74 = vadd.f32 %v71, %v73
  %v75 = vrot.slane %v74, 2
  %v76 = vadd.f32 %v74, %v75
  %v77 = vrot.slane %v76, 1
  %v78 = vadd.f32 %v76, %v77
  %v79 = vrot.slane %v72, 4
  %v80 = vadd.f32 %v72, %v79
  %v81 = vrot.slane %v80, 2
  %v82 = vadd.f32 %v80, %v81
  %v83 = vrot.slane %v82, 1
  %v84 = vadd.f32 %v82, %v83
  %v85 = vld [vmem:[%s2] sm:$0x3]
  %v86 = vsub.f32 %v36, %v50
  %v87 = vsub.f32 %v42, %v56
  %v90 = vcombine.low %v86, %v87
  %v92 = vunpack.c.l.s4 1966171168
  %v93 = vunpack.c.0.s8 %v92
  %v94 = vlaneseq
  %v95 = vshrl.u32 %v94, 7
  %v96 = vsub.s32 %v93, %v95
  %v97 = vrot.slane %v90, %v96
  %v99 = vunpack.c.l.s4 1966171168
  %v100 = vunpack.c.0.s8 %v99
  %v101 = vlaneseq
  %v102 = vshrl.u32 %v101, 7
  %v103 = vsub.s32 %v100, %v102
  %v104 = vrot.slane %v97, %v103
  %v106 = vadd.f32 %v85, %v104
  %v107 = vlaneseq
  %vm108 = vcmp.ge.s32.totalorder %v107, 0
  %vm109 = vcmp.lt.s32.totalorder %v107, 256
  %vm110 = vmand %vm108, %vm109
  %111 = vst.msk [vmem:[%s2] sm:$0x3] %vm110, %v106
  %v112 = vld [vmem:[%s2 + $0x2] sm:$0x3]
  %v113 = vadd.f32 %v64, %v78
  %v114 = vadd.f32 %v70, %v84
  %v117 = vcombine.low %v113, %v114
  %v119 = vunpack.c.l.s4 1966171168
  %v120 = vunpack.c.0.s8 %v119
  %v121 = vlaneseq
  %v122 = vshrl.u32 %v121, 7
  %v123 = vsub.s32 %v120, %v122
  %v124 = vrot.slane %v117, %v123
  %v126 = vunpack.c.l.s4 1966171168
  %v127 = vunpack.c.0.s8 %v126
  %v128 = vlaneseq
  %v129 = vshrl.u32 %v128, 7
  %v130 = vsub.s32 %v127, %v129
  %v131 = vrot.slane %v124, %v130
  %v133 = vadd.f32 %v112, %v131
  %134 = vst.msk [vmem:[%s2 + $0x2] sm:$0x3] %vm110, %v133
  %s135 = scalar_lea.vmem %s0, 32
  %v136 = vld [vmem:[%s135] sm:$0xff]
  %v137 = vld [vmem:[%s135 + $0x8] sm:$0xff]
  %v138 = vld [vmem:[%s135 + $0x10] sm:$0xff]
  %v139 = vld [vmem:[%s135 + $0x18] sm:$0xff]
  %v140 = vmul.f32 %v21, %v136
  %v141 = vmul.f32 %v22, %v137
  %v142 = vrot.slane %v140, 4
  %v143 = vadd.f32 %v140, %v142
  %v144 = vrot.slane %v143, 2
  %v145 = vadd.f32 %v143, %v144
  %v146 = vrot.slane %v145, 1
  %v147 = vadd.f32 %v145, %v146
  %v148 = vrot.slane %v141, 4
  %v149 = vadd.f32 %v141, %v148
  %v150 = vrot.slane %v149, 2
  %v151 = vadd.f32 %v149, %v150
  %v152 = vrot.slane %v151, 1
  %v153 = vadd.f32 %v151, %v152
  %v154 = vmul.f32 %v23, %v138
  %v155 = vmul.f32 %v24, %v139
  %v156 = vrot.slane %v154, 4
  %v157 = vadd.f32 %v154, %v156
  %v158 = vrot.slane %v157, 2
  %v159 = vadd.f32 %v157, %v158
  %v160 = vrot.slane %v159, 1
  %v161 = vadd.f32 %v159, %v160
  %v162 = vrot.slane %v155, 4
  %v163 = vadd.f32 %v155, %v162
  %v164 = vrot.slane %v163, 2
  %v165 = vadd.f32 %v163, %v164
  %v166 = vrot.slane %v165, 1
  %v167 = vadd.f32 %v165, %v166
  %v168 = vmul.f32 %v21, %v138
  %v169 = vmul.f32 %v22, %v139
  %v170 = vrot.slane %v168, 4
  %v171 = vadd.f32 %v168, %v170
  %v172 = vrot.slane %v171, 2
  %v173 = vadd.f32 %v171, %v172
  %v174 = vrot.slane %v173, 1
  %v175 = vadd.f32 %v173, %v174
  %v176 = vrot.slane %v169, 4
  %v177 = vadd.f32 %v169, %v176
  %v178 = vrot.slane %v177, 2
  %v179 = vadd.f32 %v177, %v178
  %v180 = vrot.slane %v179, 1
  %v181 = vadd.f32 %v179, %v180
  %v182 = vmul.f32 %v23, %v136
  %v183 = vmul.f32 %v24, %v137
  %v184 = vrot.slane %v182, 4
  %v185 = vadd.f32 %v182, %v184
  %v186 = vrot.slane %v185, 2
  %v187 = vadd.f32 %v185, %v186
  %v188 = vrot.slane %v187, 1
  %v189 = vadd.f32 %v187, %v188
  %v190 = vrot.slane %v183, 4
  %v191 = vadd.f32 %v183, %v190
  %v192 = vrot.slane %v191, 2
  %v193 = vadd.f32 %v191, %v192
  %v194 = vrot.slane %v193, 1
  %v195 = vadd.f32 %v193, %v194
  %s196 = scalar_lea.vmem %s2, 4
  %v197 = vld [vmem:[%s196] sm:$0x3]
  %v198 = vsub.f32 %v147, %v161
  %v199 = vsub.f32 %v153, %v167
  %v202 = vcombine.low %v198, %v199
  %v204 = vunpack.c.l.s4 1966171168
  %v205 = vunpack.c.0.s8 %v204
  %v206 = vlaneseq
  %v207 = vshrl.u32 %v206, 7
  %v208 = vsub.s32 %v205, %v207
  %v209 = vrot.slane %v202, %v208
  %v211 = vunpack.c.l.s4 1966171168
  %v212 = vunpack.c.0.s8 %v211
  %v213 = vlaneseq
  %v214 = vshrl.u32 %v213, 7
  %v215 = vsub.s32 %v212, %v214
  %v216 = vrot.slane %v209, %v215
  %v218 = vadd.f32 %v197, %v216
  %219 = vst.msk [vmem:[%s196] sm:$0x3] %vm110, %v218
  %v220 = vld [vmem:[%s196 + $0x2] sm:$0x3]
  %v221 = vadd.f32 %v175, %v189
  %v222 = vadd.f32 %v181, %v195
  %v225 = vcombine.low %v221, %v222
  %v227 = vunpack.c.l.s4 1966171168
  %v228 = vunpack.c.0.s8 %v227
  %v229 = vlaneseq
  %v230 = vshrl.u32 %v229, 7
  %v231 = vsub.s32 %v228, %v230
  %v232 = vrot.slane %v225, %v231
  %v234 = vunpack.c.l.s4 1966171168
  %v235 = vunpack.c.0.s8 %v234
  %v236 = vlaneseq
  %v237 = vshrl.u32 %v236, 7
  %v238 = vsub.s32 %v235, %v237
  %v239 = vrot.slane %v232, %v238
  %v241 = vadd.f32 %v220, %v239
  %242 = vst.msk [vmem:[%s196 + $0x2] sm:$0x3] %vm110, %v241
  // Predicated region
  $region14: #{_lambda_.25} parent=0 // pred_check
    _
  $region15: #{_lambda_.25} parent=0 // pred_check_branch
    %244 = sbr.rel (0) target = $region17
  $region16: #{_lambda_.25} parent=0 // pred_region
    _
  $region17: #{_lambda_.25} parent=0 // pred_fallthru
    _
  // Predicated region
  $region18: #{_lambda_.25} parent=0 // pred_check
    _
  $region19: #{_lambda_.25} parent=0 // pred_check_branch
    %246 = sbr.rel (0) target = $region21
  $region20: #{_lambda_.25} parent=0 // pred_region
    _
  $region21: #{_lambda_.25} parent=0 // pred_fallthru
    _

// kernel: reverse.21
$region0: #{reverse.21}
  %s0 = inlined_call_operand.vmem [shape: f32[2,1,16,7], index: 0, kind: input, shape index: {}]
  %s1 = inlined_call_operand.vmem [shape: f32[2,1,16,7], index: 1, kind: output, shape index: {}]
  $region1: #{reverse.21} parent=0
    #allocation0 [shape = 'u8[16384]{0}', space=vmem, size = 0x4000, scoped, tag = 'operand span for operand 0']
    #allocation1 [shape = 'u8[8192]{0}', space=vmem, size = 0x2000, scoped, tag = 'operand span for operand 1']
    %s2 = scalar_lea.vmem [#allocation0], 8
    // Predicated region
    $region2: #{reverse.21} parent=1 // pred_check
      _
    $region3: #{reverse.21} parent=1 // pred_check_branch
      %4 = sbr.rel (0) target = $region5
    $region4: #{reverse.21} parent=1 // pred_region
      // Predicated region
      $region6: #{reverse.21} parent=4 // pred_check
        _
      $region7: #{reverse.21} parent=4 // pred_check_branch
        %6 = sbr.rel (0) target = $region9
      $region8: #{reverse.21} parent=4 // pred_region
        // Predicated region
        $region21: #{reverse.21} parent=8 // pred_check
          _
        $region22: #{reverse.21} parent=8 // pred_check_branch
          %24 = sbr.rel (0) target = $region24
        $region23: #{reverse.21} parent=8 // pred_region
          loop: start=0, step=1, limit=1
          $region25: #{reverse.21} parent=23 // loop_pre_header
            _
          $region26: #{reverse.21} parent=23 // loop_header
            %s26 = sphi 0, %s30
            %p27 = scmp.ge.s32.totalorder %s26, 1
            %s31 = sphi %s0, %s0
            %s32 = sphi %s2, %s2
          $region27: #{reverse.21} parent=23 // loop_header_branch
            %29 = sbr.rel (%p27) target = $region31
          $region28: #{reverse.21} parent=23 // loop_body
            %v33 = vld [vmem:[%s31] sm:$0xff]
            %34 = vst [vmem:[%s32] sm:$0xff] %v33
            %v35 = vld [vmem:[%s31 + $0x8] sm:$0xff]
            %36 = vst [vmem:[%s32 + $0x10] sm:$0xff] %v35
          $region29: #{reverse.21} parent=23 // loop_footer
            %s30 = sadd.s32 1, %s26
          $region30: #{reverse.21} parent=23 // loop_footer_branch
            %25 = sbr.rel target = $region26
          $region31: #{reverse.21} parent=23 // loop_exit
            _
        $region24: #{reverse.21} parent=8 // pred_fallthru
          _
        // Predicated region
        $region32: #{reverse.21} parent=8 // pred_check
          _
        $region33: #{reverse.21} parent=8 // pred_check_branch
          %38 = sbr.rel target = $region35
        $region34: #{reverse.21} parent=8 // pred_region
          _
        $region35: #{reverse.21} parent=8 // pred_fallthru
          _
      $region9: #{reverse.21} parent=4 // pred_fallthru
        _
      // Predicated region
      $region10: #{reverse.21} parent=4 // pred_check
        _
      $region11: #{reverse.21} parent=4 // pred_check_branch
        %8 = sbr.rel target = $region13
      $region12: #{reverse.21} parent=4 // pred_region
        %s10 = ssub.s32 256, 1
        loop: start=0, step=1, limit=1
        $region14: #{reverse.21} parent=12 // loop_pre_header
          _
        $region15: #{reverse.21} parent=12 // loop_header
          %s12 = sphi 0, %s16
          %p13 = scmp.ge.s32.totalorder %s12, 1
          %s17 = sphi %s0, %s0
          %s18 = sphi %s2, %s2
        $region16: #{reverse.21} parent=12 // loop_header_branch
          %15 = sbr.rel (%p13) target = $region20
        $region17: #{reverse.21} parent=12 // loop_body
          %v19 = vld [vmem:[%s17] sm:%s10]
          %20 = vst [vmem:[%s18] sm:%s10] %v19
          %v21 = vld [vmem:[%s17 + $0x8] sm:%s10]
          %22 = vst [vmem:[%s18 + $0x10] sm:%s10] %v21
        $region18: #{reverse.21} parent=12 // loop_footer
          %s16 = sadd.s32 1, %s12
        $region19: #{reverse.21} parent=12 // loop_footer_branch
          %11 = sbr.rel target = $region15
        $region20: #{reverse.21} parent=12 // loop_exit
          _
      $region13: #{reverse.21} parent=4 // pred_fallthru
        _
    $region5: #{reverse.21} parent=1 // pred_fallthru
      _
    %39 = vnop
    %s40 = scalar_lea.vmem [#allocation0], 7
    %v41 = vld [vmem:[%s40] ss:$-1 sm:$0xff]
    %v42 = vrot.slane %v41, 1
    %43 = vst [vmem:[#allocation1] sm:$0xff] %v42
    %s44 = scalar_lea.vmem [#allocation0], 8
    %s45 = scalar_lea.vmem %s44, 7 [#allocation0]
    %v46 = vld [vmem:[%s45] ss:$-1 sm:$0xff]
    %v47 = vrot.slane %v46, 1
    %v48 = vlaneseq
    %v49 = vshrl.u32 %v48, 7
    %vm50 = vcmp.lt.s32.totalorder %v49, 7
    %51 = vst.msk [vmem:[#allocation1] sm:$0xff] %vm50, %v47
    %s52 = scalar_lea.vmem [#allocation1], 8
    %s53 = scalar_lea.vmem [#allocation0], 16
    %s54 = scalar_lea.vmem %s53, 7 [#allocation0]
    %v55 = vld [vmem:[%s54] ss:$-1 sm:$0xff]
    %v56 = vrot.slane %v55, 1
    %57 = vst [vmem:[%s52] sm:$0xff] %v56
    %s58 = scalar_lea.vmem %s53, 8 [#allocation0]
    %s59 = scalar_lea.vmem %s58, 7 [#allocation0]
    %v60 = vld [vmem:[%s59] ss:$-1 sm:$0xff]
    %v61 = vrot.slane %v60, 1
    %v62 = vlaneseq
    %v63 = vshrl.u32 %v62, 7
    %vm64 = vcmp.lt.s32.totalorder %v63, 7
    %65 = vst.msk [vmem:[%s52] sm:$0xff] %vm64, %v61
    // Predicated region
    $region36: #{reverse.21} parent=1 // pred_check
      _
    $region37: #{reverse.21} parent=1 // pred_check_branch
      %67 = sbr.rel (0) target = $region39
    $region38: #{reverse.21} parent=1 // pred_region
      // Predicated region
      $region40: #{reverse.21} parent=38 // pred_check
        _
      $region41: #{reverse.21} parent=38 // pred_check_branch
        %69 = sbr.rel (0) target = $region43
      $region42: #{reverse.21} parent=38 // pred_region
        // Predicated region
        $region55: #{reverse.21} parent=42 // pred_check
          _
        $region56: #{reverse.21} parent=42 // pred_check_branch
          %87 = sbr.rel (0) target = $region58
        $region57: #{reverse.21} parent=42 // pred_region
          loop: start=0, step=1, limit=1
          $region59: #{reverse.21} parent=57 // loop_pre_header
            _
          $region60: #{reverse.21} parent=57 // loop_header
            %s89 = sphi 0, %s93
            %p90 = scmp.ge.s32.totalorder %s89, 1
            %s94 = sphi [#allocation1], [#allocation1]
            %s95 = sphi %s1, %s1
          $region61: #{reverse.21} parent=57 // loop_header_branch
            %92 = sbr.rel (%p90) target = $region65
          $region62: #{reverse.21} parent=57 // loop_body
            %v96 = vld [vmem:[%s94] sm:$0xff]
            %97 = vst [vmem:[%s95] sm:$0xff] %v96
            %v98 = vld [vmem:[%s94 + $0x8] sm:$0xff]
            %99 = vst [vmem:[%s95 + $0x8] sm:$0xff] %v98
          $region63: #{reverse.21} parent=57 // loop_footer
            %s93 = sadd.s32 1, %s89
          $region64: #{reverse.21} parent=57 // loop_footer_branch
            %88 = sbr.rel target = $region60
          $region65: #{reverse.21} parent=57 // loop_exit
            _
        $region58: #{reverse.21} parent=42 // pred_fallthru
          _
        // Predicated region
        $region66: #{reverse.21} parent=42 // pred_check
          _
        $region67: #{reverse.21} parent=42 // pred_check_branch
          %101 = sbr.rel target = $region69
        $region68: #{reverse.21} parent=42 // pred_region
          _
        $region69: #{reverse.21} parent=42 // pred_fallthru
          _
      $region43: #{reverse.21} parent=38 // pred_fallthru
        _
      // Predicated region
      $region44: #{reverse.21} parent=38 // pred_check
        _
      $region45: #{reverse.21} parent=38 // pred_check_branch
        %71 = sbr.rel target = $region47
      $region46: #{reverse.21} parent=38 // pred_region
        %s73 = ssub.s32 256, 1
        loop: start=0, step=1, limit=1
        $region48: #{reverse.21} parent=46 // loop_pre_header
          _
        $region49: #{reverse.21} parent=46 // loop_header
          %s75 = sphi 0, %s79
          %p76 = scmp.ge.s32.totalorder %s75, 1
          %s80 = sphi [#allocation1], [#allocation1]
          %s81 = sphi %s1, %s1
        $region50: #{reverse.21} parent=46 // loop_header_branch
          %78 = sbr.rel (%p76) target = $region54
        $region51: #{reverse.21} parent=46 // loop_body
          %v82 = vld [vmem:[%s80] sm:%s73]
          %83 = vst [vmem:[%s81] sm:%s73] %v82
          %v84 = vld [vmem:[%s80 + $0x8] sm:%s73]
          %85 = vst [vmem:[%s81 + $0x8] sm:%s73] %v84
        $region52: #{reverse.21} parent=46 // loop_footer
          %s79 = sadd.s32 1, %s75
        $region53: #{reverse.21} parent=46 // loop_footer_branch
          %74 = sbr.rel target = $region49
        $region54: #{reverse.21} parent=46 // loop_exit
          _
      $region47: #{reverse.21} parent=38 // pred_fallthru
        _
    $region39: #{reverse.21} parent=1 // pred_fallthru
      _
    %102 = vnop

// kernel: _lambda_.26
$region0: #{_lambda_.26}
  #allocation0 [shape = 'u32[]', space=smem, size = 0x4, offset = 0x4, fixed_abs, tag = 'smem constant byte address 0x4 - core index']
  #allocation1 [shape = 'u32[144,128]{1,0:T(1,128)}', space=vmem, size = 0x12000, scoped, tag = 'internal scratch']
  #allocation2 [shape = 'f32[1,1,1]{2,1,0:T(1,128)S(1)}', space=vmem, size = 0x200, scoped, tag = 'scoped memory for _lambda_.26']
  #allocation3 [shape = 'f32[1,1,1]{2,1,0:T(1,128)S(1)}', space=vmem, size = 0x200, scoped, tag = 'scoped memory for _lambda_.26']
  %s0 = inlined_call_operand.vmem [shape: f32[2,1,256], index: 0, kind: input, shape index: {}]
  %s1 = inlined_call_operand.<no memory space> [shape: f32[1,1,1], index: 1, kind: input, shape index: {}]
  %s2 = inlined_call_operand.<no memory space> [shape: f32[1,1,1], index: 2, kind: input, shape index: {}]
  %s3 = inlined_call_operand.vmem [shape: f32[2,1,256], index: 3, kind: output, shape index: {}]
  %s4 = sld [smem:[#allocation0]]
  $region22: #{_lambda_.26} parent=0
    _
  %s6 = ssub.s32 1, %s4
  %s7 = scalar_select 0, %s6, %s4
  %v8 = vstv %s1
  %9 = vst [vmem:[#allocation2] sm:$0x1] %v8
  %v10 = vstv %s2
  %11 = vst [vmem:[#allocation3] sm:$0x1] %v10
  // Predicated region
  $region2: #{_lambda_.26} parent=0 // pred_check
    _
  $region3: #{_lambda_.26} parent=0 // pred_check_branch
    %13 = sbr.rel (0) target = $region5
  $region4: #{_lambda_.26} parent=0 // pred_region
    _
  $region5: #{_lambda_.26} parent=0 // pred_fallthru
    _
  // Predicated region
  $region6: #{_lambda_.26} parent=0 // pred_check
    _
  $region7: #{_lambda_.26} parent=0 // pred_check_branch
    %15 = sbr.rel (0) target = $region9
  $region8: #{_lambda_.26} parent=0 // pred_region
    _
  $region9: #{_lambda_.26} parent=0 // pred_fallthru
    _
  // Predicated region
  $region10: #{_lambda_.26} parent=0 // pred_check
    _
  $region11: #{_lambda_.26} parent=0 // pred_check_branch
    %17 = sbr.rel (0) target = $region13
  $region12: #{_lambda_.26} parent=0 // pred_region
    _
  $region13: #{_lambda_.26} parent=0 // pred_fallthru
    _
  %v18 = vld [vmem:[%s0] sm:$0x3]
  %v19 = vld [vmem:[%s0 + $0x2] sm:$0x3]
  %v20 = vld [vmem:[#allocation2] sm:$0x1]
  %v21 = vld [vmem:[#allocation3] sm:$0x1]
  %v24 = vlaneseq
  %v25 = vshrl.u32 %v24, 7
  %v26 = vsub.s32 0, %v25
  %v27 = vrot.slane %v18, %v26
  %v28 = vlaneseq
  %v29 = vshrl.u32 %v28, 7
  %v30 = vsub.s32 1, %v29
  %v31 = vrot.slane %v18, %v30
  %v32 = vlaneseq
  %v33 = vshrl.u32 %v32, 7
  %v34 = vsub.s32 0, %v33
  %v35 = vrot.slane %v19, %v34
  %v36 = vlaneseq
  %v37 = vshrl.u32 %v36, 7
  %v38 = vsub.s32 1, %v37
  %v39 = vrot.slane %v19, %v38
  %vm44 = vcmask 1040384
  %v45 = vsel %vm44, %v27, 0.0
  %v46 = vsel %vm44, %v31, 0.0
  %v47 = vadd.f32 %v45, %v46
  %48 = vadd.xlane.f32.xlu0 %v47
  %v49 = vpop.xlane.xlu0 %48
  %v50 = vsel %vm44, %v35, 0.0
  %v51 = vsel %vm44, %v39, 0.0
  %v52 = vadd.f32 %v50, %v51
  %53 = vadd.xlane.f32.xlu0 %v52
  %v54 = vpop.xlane.xlu0 %53
  %v55 = vsel %vm44, %v49, 0.0
  %v56 = vsel %vm44, %v54, 0.0
  %v57 = vadd.f32 %v55, %v56
  %v58 = vmul.f32 %v18, %v18
  %v59 = vmul.f32 %v19, %v19
  %v62 = vlaneseq
  %v63 = vshrl.u32 %v62, 7
  %v64 = vsub.s32 0, %v63
  %v65 = vrot.slane %v58, %v64
  %v66 = vlaneseq
  %v67 = vshrl.u32 %v66, 7
  %v68 = vsub.s32 1, %v67
  %v69 = vrot.slane %v58, %v68
  %v70 = vlaneseq
  %v71 = vshrl.u32 %v70, 7
  %v72 = vsub.s32 0, %v71
  %v73 = vrot.slane %v59, %v72
  %v74 = vlaneseq
  %v75 = vshrl.u32 %v74, 7
  %v76 = vsub.s32 1, %v75
  %v77 = vrot.slane %v59, %v76
  %v82 = vsel %vm44, %v65, 0.0
  %v83 = vsel %vm44, %v69, 0.0
  %v84 = vadd.f32 %v82, %v83
  %85 = vadd.xlane.f32.xlu0 %v84
  %v86 = vpop.xlane.xlu0 %85
  %v87 = vsel %vm44, %v73, 0.0
  %v88 = vsel %vm44, %v77, 0.0
  %v89 = vadd.f32 %v87, %v88
  %90 = vadd.xlane.f32.xlu0 %v89
  %v91 = vpop.xlane.xlu0 %90
  %v92 = vsel %vm44, %v86, 0.0
  %v93 = vsel %vm44, %v91, 0.0
  %v94 = vadd.f32 %v92, %v93
  %v95 = vmul.f32 %v57, 0.001953125
  %v96 = vmul.f32 %v94, 0.001953125
  %v97 = vmul.f32 %v95, %v95
  %v98 = vsub.f32 %v96, %v97
  %v99 = vadd.f32 %v98, 1e-05
  %v100 = vrsqrt.pop %v99
  %v101 = vmul.f32 %v20, %v100
  %v102 = vmul.f32 %v95, %v101
  %v103 = vsub.f32 %v21, %v102
  %105 = vset.pattern.permute.xlu0 0
  %106 = vperm.xlu0 %105, %v101
  %v107 = vpop.permute.xlu0 %106
  %v109 = vlaneseq
  %v110 = vshrl.u32 %v109, 7
  %v111 = vsub.s32 0, %v110
  %v112 = vrot.slane %v107, %v111
  %v113 = vmul.f32 %v18, %v112
  %v114 = vmul.f32 %v19, %v112
  %116 = vset.pattern.permute.xlu0 0
  %117 = vperm.xlu0 %116, %v103
  %v118 = vpop.permute.xlu0 %117
  %v120 = vlaneseq
  %v121 = vshrl.u32 %v120, 7
  %v122 = vsub.s32 0, %v121
  %v123 = vrot.slane %v118, %v122
  %v124 = vadd.f32 %v113, %v123
  %v125 = vadd.f32 %v114, %v123
  %v126 = vmax.f32 %v124, 0.0
  %v127 = vmax.f32 %v125, 0.0
  %v128 = vlaneseq
  %vm129 = vcmp.ge.s32.totalorder %v128, 0
  %vm130 = vcmp.lt.s32.totalorder %v128, 256
  %vm131 = vmand %vm129, %vm130
  %132 = vst.msk [vmem:[%s3] sm:$0x3] %vm131, %v126
  %133 = vst.msk [vmem:[%s3 + $0x2] sm:$0x3] %vm131, %v127
  // Predicated region
  $region14: #{_lambda_.26} parent=0 // pred_check
    _
  $region15: #{_lambda_.26} parent=0 // pred_check_branch
    %135 = sbr.rel (0) target = $region17
  $region16: #{_lambda_.26} parent=0 // pred_region
    _
  $region17: #{_lambda_.26} parent=0 // pred_fallthru
    _
  // Predicated region
  $region18: #{_lambda_.26} parent=0 // pred_check
    _
  $region19: #{_lambda_.26} parent=0 // pred_check_branch
    %137 = sbr.rel (0) target = $region21
  $region20: #{_lambda_.26} parent=0 // pred_region
    _
  $region21: #{_lambda_.26} parent=0 // pred_fallthru
    _

// kernel: _lambda_.27
$region0: #{_lambda_.27}
  #allocation0 [shape = 'u32[]', space=smem, size = 0x4, offset = 0x4, fixed_abs, tag = 'smem constant byte address 0x4 - core index']
  #allocation1 [shape = 'u32[144,128]{1,0:T(1,128)}', space=vmem, size = 0x12000, scoped, tag = 'internal scratch']
  %s0 = inlined_call_operand.vmem [shape: f32[2,1,512], index: 0, kind: input, shape index: {}]
  %s1 = inlined_call_operand.vmem [shape: f32[1,1,512], index: 1, kind: input, shape index: {}]
  %s2 = inlined_call_operand.vmem [shape: f32[2,1,512], index: 2, kind: output, shape index: {}]
  %s3 = sld [smem:[#allocation0]]
  $region22: #{_lambda_.27} parent=0
    _
  %s5 = ssub.s32 1, %s3
  %s6 = scalar_select 0, %s5, %s3
  // Predicated region
  $region2: #{_lambda_.27} parent=0 // pred_check
    _
  $region3: #{_lambda_.27} parent=0 // pred_check_branch
    %8 = sbr.rel (0) target = $region5
  $region4: #{_lambda_.27} parent=0 // pred_region
    _
  $region5: #{_lambda_.27} parent=0 // pred_fallthru
    _
  // Predicated region
  $region6: #{_lambda_.27} parent=0 // pred_check
    _
  $region7: #{_lambda_.27} parent=0 // pred_check_branch
    %10 = sbr.rel (0) target = $region9
  $region8: #{_lambda_.27} parent=0 // pred_region
    _
  $region9: #{_lambda_.27} parent=0 // pred_fallthru
    _
  %p11 = scmp.eq.s32.totalorder 0, 0
  // Predicated region
  $region10: #{_lambda_.27} parent=0 // pred_check
    %p12 = pneg %p11
  $region11: #{_lambda_.27} parent=0 // pred_check_branch
    %14 = sbr.rel (%p12) target = $region13
  $region12: #{_lambda_.27} parent=0 // pred_region
    %v15 = vlaneseq
    %vm16 = vcmp.ge.s32.totalorder %v15, 0
    %vm17 = vcmp.lt.s32.totalorder %v15, 512
    %vm18 = vmand %vm16, %vm17
    %19 = vst.msk [vmem:[%s2] sm:$0xf] %vm18, 0.0
    %20 = vst.msk [vmem:[%s2 + $0x4] sm:$0xf] %vm18, 0.0
  $region13: #{_lambda_.27} parent=0 // pred_fallthru
    _
  %v21 = vld [vmem:[%s1] sm:$0xf]
  %v22 = vld [vmem:[%s0] sm:$0xf]
  %v23 = vmul.f32 %v21, %v22
  %v24 = vadd.f32 %v23, 0.0
  %v26 = vrot.slane %v22, 2
  %v29 = vrot.slane %v21, 2
  %v31 = vmul.f32 %v29, %v26
  %v32 = vadd.f32 %v31, 0.0
  %v33 = vmul.f32 %v21, %v26
  %v34 = vadd.f32 %v33, 0.0
  %v35 = vmul.f32 %v29, %v22
  %v36 = vadd.f32 %v35, 0.0
  %v37 = vld [vmem:[%s2] sm:$0x3]
  %v38 = vsub.f32 %v24, %v32
  %v39 = vadd.f32 %v37, %v38
  %v40 = vlaneseq
  %vm41 = vcmp.ge.s32.totalorder %v40, 0
  %vm42 = vcmp.lt.s32.totalorder %v40, 256
  %vm43 = vmand %vm41, %vm42
  %44 = vst.msk [vmem:[%s2] sm:$0x3] %vm43, %v39
  %v45 = vld [vmem:[%s2 + $0x2] sm:$0x3]
  %v46 = vadd.f32 %v34, %v36
  %v47 = vadd.f32 %v45, %v46
  %48 = vst.msk [vmem:[%s2 + $0x2] sm:$0x3] %vm43, %v47
  %s49 = scalar_lea.vmem %s0, 4
  %v50 = vld [vmem:[%s49] sm:$0xf]
  %v51 = vmul.f32 %v21, %v50
  %v52 = vadd.f32 %v51, 0.0
  %v54 = vrot.slane %v50, 2
  %v56 = vmul.f32 %v29, %v54
  %v57 = vadd.f32 %v56, 0.0
  %v58 = vmul.f32 %v21, %v54
  %v59 = vadd.f32 %v58, 0.0
  %v60 = vmul.f32 %v29, %v50
  %v61 = vadd.f32 %v60, 0.0
  %s62 = scalar_lea.vmem %s2, 4
  %v63 = vld [vmem:[%s62] sm:$0x3]
  %v64 = vsub.f32 %v52, %v57
  %v65 = vadd.f32 %v63, %v64
  %66 = vst.msk [vmem:[%s62] sm:$0x3] %vm43, %v65
  %v67 = vld [vmem:[%s62 + $0x2] sm:$0x3]
  %v68 = vadd.f32 %v59, %v61
  %v69 = vadd.f32 %v67, %v68
  %70 = vst.msk [vmem:[%s62 + $0x2] sm:$0x3] %vm43, %v69
  // Predicated region
  $region14: #{_lambda_.27} parent=0 // pred_check
    _
  $region15: #{_lambda_.27} parent=0 // pred_check_branch
    %72 = sbr.rel (0) target = $region17
  $region16: #{_lambda_.27} parent=0 // pred_region
    _
  $region17: #{_lambda_.27} parent=0 // pred_fallthru
    _
  // Predicated region
  $region18: #{_lambda_.27} parent=0 // pred_check
    _
  $region19: #{_lambda_.27} parent=0 // pred_check_branch
    %74 = sbr.rel (0) target = $region21
  $region20: #{_lambda_.27} parent=0 // pred_region
    _
  $region21: #{_lambda_.27} parent=0 // pred_fallthru
    _

// kernel: _lambda_.28
$region0: #{_lambda_.28}
  #allocation0 [shape = 'u32[]', space=smem, size = 0x4, offset = 0x4, fixed_abs, tag = 'smem constant byte address 0x4 - core index']
  #allocation1 [shape = 'u32[144,128]{1,0:T(1,128)}', space=vmem, size = 0x12000, scoped, tag = 'internal scratch']
  #allocation2 [shape = 'f32[1,1]{1,0:T(1,128)S(1)}', space=vmem, size = 0x200, scoped, tag = 'scoped memory for _lambda_.28']
  %s0 = inlined_call_operand.vmem [shape: f32[1,8], index: 0, kind: input, shape index: {}]
  %s1 = inlined_call_operand.vmem [shape: f32[8,512], index: 1, kind: input, shape index: {}]
  %s2 = inlined_call_operand.<no memory space> [shape: f32[1,1], index: 2, kind: input, shape index: {}]
  %s3 = inlined_call_operand.vmem [shape: f32[1,512], index: 3, kind: output, shape index: {}]
  %s4 = sld [smem:[#allocation0]]
  $region22: #{_lambda_.28} parent=0
    _
  %s6 = ssub.s32 1, %s4
  %s7 = scalar_select 0, %s6, %s4
  %v8 = vstv %s2
  %9 = vst [vmem:[#allocation2] sm:$0x1] %v8
  // Predicated region
  $region2: #{_lambda_.28} parent=0 // pred_check
    _
  $region3: #{_lambda_.28} parent=0 // pred_check_branch
    %11 = sbr.rel (0) target = $region5
  $region4: #{_lambda_.28} parent=0 // pred_region
    _
  $region5: #{_lambda_.28} parent=0 // pred_fallthru
    _
  // Predicated region
  $region6: #{_lambda_.28} parent=0 // pred_check
    _
  $region7: #{_lambda_.28} parent=0 // pred_check_branch
    %13 = sbr.rel (0) target = $region9
  $region8: #{_lambda_.28} parent=0 // pred_region
    _
  $region9: #{_lambda_.28} parent=0 // pred_fallthru
    _
  // Predicated region
  $region10: #{_lambda_.28} parent=0 // pred_check
    _
  $region11: #{_lambda_.28} parent=0 // pred_check_branch
    %15 = sbr.rel (0) target = $region13
  $region12: #{_lambda_.28} parent=0 // pred_region
    _
  $region13: #{_lambda_.28} parent=0 // pred_fallthru
    _
  %v16 = vld [vmem:[%s0] sm:$0x1]
  %v17 = vld [vmem:[%s1] sm:$0xff]
  %v18 = vld [vmem:[%s1 + $0x8] sm:$0xff]
  %v19 = vld [vmem:[%s1 + $0x10] sm:$0xff]
  %v20 = vld [vmem:[%s1 + $0x18] sm:$0xff]
  %v21 = vld [vmem:[#allocation2] sm:$0x1]
  %23 = vset.pattern.permute.xlu0 0
  %24 = vperm.xlu0 %23, %v21
  %v25 = vpop.permute.xlu0 %24
  %v27 = vlaneseq
  %v28 = vshrl.u32 %v27, 7
  %v29 = vsub.s32 0, %v28
  %v30 = vrot.slane %v25, %v29
  %vm31 = vcmask 64512
  %v33 = vsel %vm31, %v16, 0
  %35 = vmatprep.subr.mxu0 0.0
  %36 = vmatpush1.msra.mxu0 0.0
  %37 = vmatprep.subr.mxu0 0.0
  %38 = vmatpush1.msra.mxu0 0.0
  %39 = vmatprep.subr.mxu0 0.0
  %40 = vmatpush1.msra.mxu0 0.0
  %41 = vmatprep.subr.mxu0 0.0
  %42 = vmatpush1.msra.mxu0 0.0
  %43 = vmatprep.subr.mxu0 0.0
  %44 = vmatpush1.msra.mxu0 0.0
  %45 = vmatprep.subr.mxu0 0.0
  %46 = vmatpush1.msra.mxu0 0.0
  %47 = vmatprep.subr.mxu0 0.0
  %48 = vmatpush1.msra.mxu0 0.0
  %49 = vmatprep.subr.mxu0 0.0
  %50 = vmatpush1.msra.mxu0 0.0
  %51 = vmatprep.subr.mxu0 0.0
  %52 = vmatpush1.msra.mxu0 0.0
  %53 = vmatprep.subr.mxu0 0.0
  %54 = vmatpush1.msra.mxu0 0.0
  %55 = vmatprep.subr.mxu0 0.0
  %56 = vmatpush1.msra.mxu0 0.0
  %57 = vmatprep.subr.mxu0 0.0
  %58 = vmatpush1.msra.mxu0 0.0
  %59 = vmatprep.subr.mxu0 0.0
  %60 = vmatpush1.msra.mxu0 0.0
  %61 = vmatprep.subr.mxu0 0.0
  %62 = vmatpush1.msra.mxu0 0.0
  %63 = vmatprep.subr.mxu0 0.0
  %64 = vmatpush1.msra.mxu0 0.0
  %65 = vmatprep.subr.mxu0 %v18
  %66 = vmatpush1.msra.mxu0 %v17
  %67 = vmatprep.subr.mxu0 0.0
  %68 = vmatpush2.msra.mxu0 0.0
  %69 = vmatprep.subr.mxu0 0.0
  %70 = vmatpush2.msra.mxu0 0.0
  %71 = vmatprep.subr.mxu0 0.0
  %72 = vmatpush2.msra.mxu0 0.0
  %73 = vmatprep.subr.mxu0 0.0
  %74 = vmatpush2.msra.mxu0 0.0
  %75 = vmatprep.subr.mxu0 0.0
  %76 = vmatpush2.msra.mxu0 0.0
  %77 = vmatprep.subr.mxu0 0.0
  %78 = vmatpush2.msra.mxu0 0.0
  %79 = vmatprep.subr.mxu0 0.0
  %80 = vmatpush2.msra.mxu0 0.0
  %81 = vmatprep.subr.mxu0 0.0
  %82 = vmatpush2.msra.mxu0 0.0
  %83 = vmatprep.subr.mxu0 0.0
  %84 = vmatpush2.msra.mxu0 0.0
  %85 = vmatprep.subr.mxu0 0.0
  %86 = vmatpush2.msra.mxu0 0.0
  %87 = vmatprep.subr.mxu0 0.0
  %88 = vmatpush2.msra.mxu0 0.0
  %89 = vmatprep.subr.mxu0 0.0
  %90 = vmatpush2.msra.mxu0 0.0
  %91 = vmatprep.subr.mxu0 0.0
  %92 = vmatpush2.msra.mxu0 0.0
  %93 = vmatprep.subr.mxu0 0.0
  %94 = vmatpush2.msra.mxu0 0.0
  %95 = vmatprep.subr.mxu0 0.0
  %96 = vmatpush2.msra.mxu0 0.0
  %97 = vmatprep.subr.mxu0 0.0
  %98 = vmatpush2.msra.mxu0 0.0
  %99 = vmatprep.mubr.f32.mxu0 0.0
  %100 = vmatmul.mubr.f32.gmra.mxu0 %v33
  %v101 = vpop.f32.mrf.mxu0
  %v102 = vadd.f32 %v30, %v101
  %v103 = vpop.f32.mrf.mxu0
  %v104 = vadd.f32 %v30, %v103
  %105 = vdwg.mxu0
  %106 = vmatprep.subr.mxu0 0.0
  %107 = vmatpush1.msra.mxu0 0.0
  %108 = vmatprep.subr.mxu0 0.0
  %109 = vmatpush1.msra.mxu0 0.0
  %110 = vmatprep.subr.mxu0 0.0
  %111 = vmatpush1.msra.mxu0 0.0
  %112 = vmatprep.subr.mxu0 0.0
  %113 = vmatpush1.msra.mxu0 0.0
  %114 = vmatprep.subr.mxu0 0.0
  %115 = vmatpush1.msra.mxu0 0.0
  %116 = vmatprep.subr.mxu0 0.0
  %117 = vmatpush1.msra.mxu0 0.0
  %118 = vmatprep.subr.mxu0 0.0
  %119 = vmatpush1.msra.mxu0 0.0
  %120 = vmatprep.subr.mxu0 0.0
  %121 = vmatpush1.msra.mxu0 0.0
  %122 = vmatprep.subr.mxu0 0.0
  %123 = vmatpush1.msra.mxu0 0.0
  %124 = vmatprep.subr.mxu0 0.0
  %125 = vmatpush1.msra.mxu0 0.0
  %126 = vmatprep.subr.mxu0 0.0
  %127 = vmatpush1.msra.mxu0 0.0
  %128 = vmatprep.subr.mxu0 0.0
  %129 = vmatpush1.msra.mxu0 0.0
  %130 = vmatprep.subr.mxu0 0.0
  %131 = vmatpush1.msra.mxu0 0.0
  %132 = vmatprep.subr.mxu0 0.0
  %133 = vmatpush1.msra.mxu0 0.0
  %134 = vmatprep.subr.mxu0 0.0
  %135 = vmatpush1.msra.mxu0 0.0
  %136 = vmatprep.subr.mxu0 %v20
  %137 = vmatpush1.msra.mxu0 %v19
  %138 = vmatprep.subr.mxu0 0.0
  %139 = vmatpush2.msra.mxu0 0.0
  %140 = vmatprep.subr.mxu0 0.0
  %141 = vmatpush2.msra.mxu0 0.0
  %142 = vmatprep.subr.mxu0 0.0
  %143 = vmatpush2.msra.mxu0 0.0
  %144 = vmatprep.subr.mxu0 0.0
  %145 = vmatpush2.msra.mxu0 0.0
  %146 = vmatprep.subr.mxu0 0.0
  %147 = vmatpush2.msra.mxu0 0.0
  %148 = vmatprep.subr.mxu0 0.0
  %149 = vmatpush2.msra.mxu0 0.0
  %150 = vmatprep.subr.mxu0 0.0
  %151 = vmatpush2.msra.mxu0 0.0
  %152 = vmatprep.subr.mxu0 0.0
  %153 = vmatpush2.msra.mxu0 0.0
  %154 = vmatprep.subr.mxu0 0.0
  %155 = vmatpush2.msra.mxu0 0.0
  %156 = vmatprep.subr.mxu0 0.0
  %157 = vmatpush2.msra.mxu0 0.0
  %158 = vmatprep.subr.mxu0 0.0
  %159 = vmatpush2.msra.mxu0 0.0
  %160 = vmatprep.subr.mxu0 0.0
  %161 = vmatpush2.msra.mxu0 0.0
  %162 = vmatprep.subr.mxu0 0.0
  %163 = vmatpush2.msra.mxu0 0.0
  %164 = vmatprep.subr.mxu0 0.0
  %165 = vmatpush2.msra.mxu0 0.0
  %166 = vmatprep.subr.mxu0 0.0
  %167 = vmatpush2.msra.mxu0 0.0
  %168 = vmatprep.subr.mxu0 0.0
  %169 = vmatpush2.msra.mxu0 0.0
  %170 = vmatprep.mubr.f32.mxu0 0.0
  %171 = vmatmul.mubr.f32.gmra.mxu0 %v33
  %v172 = vpop.f32.mrf.mxu0
  %v173 = vadd.f32 %v30, %v172
  %v174 = vpop.f32.mrf.mxu0
  %v175 = vadd.f32 %v30, %v174
  %176 = vdwg.mxu0
  %v181 = vcombine.low %v102, %v104
  %v182 = vcombine.low %v173, %v175
  %v184 = vunpack.c.l.s4 1966171168
  %v185 = vunpack.c.0.s8 %v184
  %v186 = vlaneseq
  %v187 = vshrl.u32 %v186, 7
  %v188 = vsub.s32 %v185, %v187
  %v189 = vrot.slane %v181, %v188
  %v191 = vunpack.c.l.s4 1966171168
  %v192 = vunpack.c.0.s8 %v191
  %v193 = vlaneseq
  %v194 = vshrl.u32 %v193, 7
  %v195 = vsub.s32 %v192, %v194
  %v196 = vrot.slane %v182, %v195
  %v197 = vcombine.low %v189, %v196
  %v199 = vunpack.c.l.s4 1966171168
  %v200 = vunpack.c.0.s8 %v199
  %v201 = vlaneseq
  %v202 = vshrl.u32 %v201, 7
  %v203 = vsub.s32 %v200, %v202
  %v204 = vrot.slane %v197, %v203
  %v206 = vlaneseq
  %vm207 = vcmp.ge.s32.totalorder %v206, 0
  %vm208 = vcmp.lt.s32.totalorder %v206, 512
  %vm209 = vmand %vm207, %vm208
  %210 = vst.msk [vmem:[%s3] sm:$0xf] %vm209, %v204
  // Predicated region
  $region14: #{_lambda_.28} parent=0 // pred_check
    _
  $region15: #{_lambda_.28} parent=0 // pred_check_branch
    %212 = sbr.rel (0) target = $region17
  $region16: #{_lambda_.28} parent=0 // pred_region
    _
  $region17: #{_lambda_.28} parent=0 // pred_fallthru
    _
  // Predicated region
  $region18: #{_lambda_.28} parent=0 // pred_check
    _
  $region19: #{_lambda_.28} parent=0 // pred_check_branch
    %214 = sbr.rel (0) target = $region21
  $region20: #{_lambda_.28} parent=0 // pred_region
    _
  $region21: #{_lambda_.28} parent=0 // pred_fallthru
    _

// kernel: _lambda_.29
$region0: #{_lambda_.29}
  #allocation0 [shape = 'u32[]', space=smem, size = 0x4, offset = 0x4, fixed_abs, tag = 'smem constant byte address 0x4 - core index']
  #allocation1 [shape = 'u32[144,128]{1,0:T(1,128)}', space=vmem, size = 0x12000, scoped, tag = 'internal scratch']
  #allocation2 [shape = 'f32[1,1,1]{2,1,0:T(1,128)S(1)}', space=vmem, size = 0x200, scoped, tag = 'scoped memory for _lambda_.29']
  #allocation3 [shape = 'f32[1,1,1]{2,1,0:T(1,128)S(1)}', space=vmem, size = 0x200, scoped, tag = 'scoped memory for _lambda_.29']
  %s0 = inlined_call_operand.vmem [shape: f32[2,1,256], index: 0, kind: input, shape index: {}]
  %s1 = inlined_call_operand.vmem [shape: f32[2,1,256], index: 1, kind: input, shape index: {}]
  %s2 = inlined_call_operand.<no memory space> [shape: f32[1,1,1], index: 2, kind: input, shape index: {}]
  %s3 = inlined_call_operand.<no memory space> [shape: f32[1,1,1], index: 3, kind: input, shape index: {}]
  %s4 = inlined_call_operand.vmem [shape: f32[2,1,256], index: 4, kind: output, shape index: {}]
  %s5 = sld [smem:[#allocation0]]
  $region26: #{_lambda_.29} parent=0
    _
  %s7 = ssub.s32 1, %s5
  %s8 = scalar_select 0, %s7, %s5
  %v9 = vstv %s2
  %10 = vst [vmem:[#allocation2] sm:$0x1] %v9
  %v11 = vstv %s3
  %12 = vst [vmem:[#allocation3] sm:$0x1] %v11
  // Predicated region
  $region2: #{_lambda_.29} parent=0 // pred_check
    _
  $region3: #{_lambda_.29} parent=0 // pred_check_branch
    %14 = sbr.rel (0) target = $region5
  $region4: #{_lambda_.29} parent=0 // pred_region
    _
  $region5: #{_lambda_.29} parent=0 // pred_fallthru
    _
  // Predicated region
  $region6: #{_lambda_.29} parent=0 // pred_check
    _
  $region7: #{_lambda_.29} parent=0 // pred_check_branch
    %16 = sbr.rel (0) target = $region9
  $region8: #{_lambda_.29} parent=0 // pred_region
    _
  $region9: #{_lambda_.29} parent=0 // pred_fallthru
    _
  // Predicated region
  $region10: #{_lambda_.29} parent=0 // pred_check
    _
  $region11: #{_lambda_.29} parent=0 // pred_check_branch
    %18 = sbr.rel (0) target = $region13
  $region12: #{_lambda_.29} parent=0 // pred_region
    _
  $region13: #{_lambda_.29} parent=0 // pred_fallthru
    _
  // Predicated region
  $region14: #{_lambda_.29} parent=0 // pred_check
    _
  $region15: #{_lambda_.29} parent=0 // pred_check_branch
    %20 = sbr.rel (0) target = $region17
  $region16: #{_lambda_.29} parent=0 // pred_region
    _
  $region17: #{_lambda_.29} parent=0 // pred_fallthru
    _
  %v21 = vld [vmem:[%s0] sm:$0x3]
  %v22 = vld [vmem:[%s0 + $0x2] sm:$0x3]
  %v23 = vld [vmem:[#allocation2] sm:$0x1]
  %v24 = vld [vmem:[#allocation3] sm:$0x1]
  %v27 = vlaneseq
  %v28 = vshrl.u32 %v27, 7
  %v29 = vsub.s32 0, %v28
  %v30 = vrot.slane %v21, %v29
  %v31 = vlaneseq
  %v32 = vshrl.u32 %v31, 7
  %v33 = vsub.s32 1, %v32
  %v34 = vrot.slane %v21, %v33
  %v35 = vlaneseq
  %v36 = vshrl.u32 %v35, 7
  %v37 = vsub.s32 0, %v36
  %v38 = vrot.slane %v22, %v37
  %v39 = vlaneseq
  %v40 = vshrl.u32 %v39, 7
  %v41 = vsub.s32 1, %v40
  %v42 = vrot.slane %v22, %v41
  %vm47 = vcmask 1040384
  %v48 = vsel %vm47, %v30, 0.0
  %v49 = vsel %vm47, %v34, 0.0
  %v50 = vadd.f32 %v48, %v49
  %51 = vadd.xlane.f32.xlu0 %v50
  %v52 = vpop.xlane.xlu0 %51
  %v53 = vsel %vm47, %v38, 0.0
  %v54 = vsel %vm47, %v42, 0.0
  %v55 = vadd.f32 %v53, %v54
  %56 = vadd.xlane.f32.xlu0 %v55
  %v57 = vpop.xlane.xlu0 %56
  %v58 = vsel %vm47, %v52, 0.0
  %v59 = vsel %vm47, %v57, 0.0
  %v60 = vadd.f32 %v58, %v59
  %v61 = vmul.f32 %v21, %v21
  %v62 = vmul.f32 %v22, %v22
  %v65 = vlaneseq
  %v66 = vshrl.u32 %v65, 7
  %v67 = vsub.s32 0, %v66
  %v68 = vrot.slane %v61, %v67
  %v69 = vlaneseq
  %v70 = vshrl.u32 %v69, 7
  %v71 = vsub.s32 1, %v70
  %v72 = vrot.slane %v61, %v71
  %v73 = vlaneseq
  %v74 = vshrl.u32 %v73, 7
  %v75 = vsub.s32 0, %v74
  %v76 = vrot.slane %v62, %v75
  %v77 = vlaneseq
  %v78 = vshrl.u32 %v77, 7
  %v79 = vsub.s32 1, %v78
  %v80 = vrot.slane %v62, %v79
  %v85 = vsel %vm47, %v68, 0.0
  %v86 = vsel %vm47, %v72, 0.0
  %v87 = vadd.f32 %v85, %v86
  %88 = vadd.xlane.f32.xlu0 %v87
  %v89 = vpop.xlane.xlu0 %88
  %v90 = vsel %vm47, %v76, 0.0
  %v91 = vsel %vm47, %v80, 0.0
  %v92 = vadd.f32 %v90, %v91
  %93 = vadd.xlane.f32.xlu0 %v92
  %v94 = vpop.xlane.xlu0 %93
  %v95 = vsel %vm47, %v89, 0.0
  %v96 = vsel %vm47, %v94, 0.0
  %v97 = vadd.f32 %v95, %v96
  %v98 = vmul.f32 %v60, 0.001953125
  %v99 = vmul.f32 %v97, 0.001953125
  %v100 = vmul.f32 %v98, %v98
  %v101 = vsub.f32 %v99, %v100
  %v102 = vadd.f32 %v101, 1e-05
  %v103 = vrsqrt.pop %v102
  %v104 = vmul.f32 %v23, %v103
  %v105 = vmul.f32 %v98, %v104
  %v106 = vsub.f32 %v24, %v105
  %108 = vset.pattern.permute.xlu0 0
  %109 = vperm.xlu0 %108, %v104
  %v110 = vpop.permute.xlu0 %109
  %v112 = vlaneseq
  %v113 = vshrl.u32 %v112, 7
  %v114 = vsub.s32 0, %v113
  %v115 = vrot.slane %v110, %v114
  %v116 = vmul.f32 %v21, %v115
  %v117 = vmul.f32 %v22, %v115
  %119 = vset.pattern.permute.xlu0 0
  %120 = vperm.xlu0 %119, %v106
  %v121 = vpop.permute.xlu0 %120
  %v123 = vlaneseq
  %v124 = vshrl.u32 %v123, 7
  %v125 = vsub.s32 0, %v124
  %v126 = vrot.slane %v121, %v125
  %v127 = vadd.f32 %v116, %v126
  %v128 = vadd.f32 %v117, %v126
  %v129 = vld [vmem:[%s1] sm:$0x3]
  %v130 = vld [vmem:[%s1 + $0x2] sm:$0x3]
  %v131 = vadd.f32 %v127, %v129
  %v132 = vadd.f32 %v128, %v130
  %v133 = vmax.f32 %v131, 0.0
  %v134 = vmax.f32 %v132, 0.0
  %v135 = vlaneseq
  %vm136 = vcmp.ge.s32.totalorder %v135, 0
  %vm137 = vcmp.lt.s32.totalorder %v135, 256
  %vm138 = vmand %vm136, %vm137
  %139 = vst.msk [vmem:[%s4] sm:$0x3] %vm138, %v133
  %140 = vst.msk [vmem:[%s4 + $0x2] sm:$0x3] %vm138, %v134
  // Predicated region
  $region18: #{_lambda_.29} parent=0 // pred_check
    _
  $region19: #{_lambda_.29} parent=0 // pred_check_branch
    %142 = sbr.rel (0) target = $region21
  $region20: #{_lambda_.29} parent=0 // pred_region
    _
  $region21: #{_lambda_.29} parent=0 // pred_fallthru
    _
  // Predicated region
  $region22: #{_lambda_.29} parent=0 // pred_check
    _
  $region23: #{_lambda_.29} parent=0 // pred_check_branch
    %144 = sbr.rel (0) target = $region25
  $region24: #{_lambda_.29} parent=0 // pred_region
    _
  $region25: #{_lambda_.29} parent=0 // pred_fallthru
    _

</llo_original>
